<compile_context>
chip_gen: v5e
topology: v5e:2x2
jax: 0.10.0
libtpu: 0.0.40
codegen_flags: <defaults>
</compile_context>

<pallas_src>
import functools

import jax
import jax.numpy as jnp
from jax.experimental import pallas as pl
from jax.experimental.pallas import tpu as pltpu

EPS = 1e-5                     # nn.BatchNorm2d default eps
LANE = 128                     # channel dims padded to multiples of this
TILE_M = 256                   # rows per grid step for flattened-spatial matmuls
VMEM_LIMIT = 32 * 1024 * 1024  # portable across v5e / v6e / v7x


def _round_up(n, m):
    return ((n + m - 1) // m) * m


# ----------------------------- Pallas kernels ------------------------------


def _mm_stats_kernel(x_ref, w_ref, s_ref, b_ref, y_ref, sum_ref, sq_ref,
                     *, in_affine, in_relu, mask_rows, m_real, tm):
    """Tiled (1x1 conv) matmul with fused input-BN apply and partial BN stats.

    x_ref: (TM, K) f32   w_ref: (K, Cout) bf16   s_ref/b_ref: (1, K) f32
    y_ref: (TM, Cout) f32   sum_ref/sq_ref: (1, 8, Cout) f32 (per-tile partials)
    """
    x = x_ref[...].astype(jnp.float32)
    if in_affine:
        # Previous layer's BatchNorm applied on the fly (scale/shift precomputed
        # from the batch statistics of that layer).
        x = x * s_ref[...] + b_ref[...]
        if in_relu:
            x = jnp.maximum(x, 0.0)
    y = jnp.dot(x.astype(jnp.bfloat16), w_ref[...],
                preferred_element_type=jnp.float32)           # MXU, f32 accum
    if mask_rows:
        # Zero rows that are pure M-padding so BN statistics stay exact.
        rows = pl.program_id(0) * tm + jax.lax.broadcasted_iota(
            jnp.int32, (tm, 1), 0)
        y = jnp.where(rows < m_real, y, 0.0)
    y_ref[...] = y
    psum = jnp.sum(y, axis=0, keepdims=True)
    psq = jnp.sum(y * y, axis=0, keepdims=True)
    sum_ref[0] = jnp.broadcast_to(psum, (8, y.shape[1]))
    sq_ref[0] = jnp.broadcast_to(psq, (8, y.shape[1]))


def _conv3x3_stats_kernel(y1_ref, w_ref, s_ref, b_ref,
                          y_ref, sum_ref, sq_ref,
                          xpad_ref, acc_ref, *, stride):
    """3x3 conv (pad=1) as 9 accumulated shifted matmuls, bn1+ReLU fused on load.

    y1_ref: (1, H, W, C) f32 pre-BN conv1 output   w_ref: (9, C, Cout) bf16
    s_ref/b_ref: (1, C) f32 bn1 scale/shift
    y_ref: (1, Ho, Wo, Cout) f32   sum/sq_ref: (1, 8, Cout) per-image partials
    xpad_ref: VMEM (H+2, W+2, C) f32   acc_ref: VMEM (Ho*Wo, Cout) f32
    """
    h, w, c = y1_ref.shape[1], y1_ref.shape[2], y1_ref.shape[3]
    ho, wo, cout = y_ref.shape[1], y_ref.shape[2], y_ref.shape[3]

    # bn1 + ReLU folded into this kernel's load.
    h1 = jnp.maximum(y1_ref[0] * s_ref[...] + b_ref[...], 0.0)

    # Zero-padded activation only ever lives in VMEM (never round-trips HBM).
    xpad_ref[...] = jnp.zeros_like(xpad_ref)
    xpad_ref[1:h + 1, 1:w + 1, :] = h1

    acc_ref[...] = jnp.zeros_like(acc_ref)
    for kh in range(3):
        for kw in range(3):
            if stride == 1:
                patch = xpad_ref[kh:kh + ho, kw:kw + wo, :]
            else:
                patch = xpad_ref[kh:kh + (ho - 1) * stride + 1,
                                 kw:kw + (wo - 1) * stride + 1, :]
                patch = patch[::stride, ::stride, :]
            acc_ref[...] += jnp.dot(
                patch.reshape(ho * wo, c).astype(jnp.bfloat16),
                w_ref[kh * 3 + kw],
                preferred_element_type=jnp.float32)

    acc = acc_ref[...]
    y_ref[0] = acc.reshape(ho, wo, cout)
    psum = jnp.sum(acc, axis=0, keepdims=True)
    psq = jnp.sum(acc * acc, axis=0, keepdims=True)
    sum_ref[0] = jnp.broadcast_to(psum, (8, cout))
    sq_ref[0] = jnp.broadcast_to(psq, (8, cout))


def _bn_add_relu_kernel(y3_ref, sc_ref, s3_ref, b3_ref, ss_ref, bs_ref, o_ref):
    """Fused epilogue: bn3 apply + shortcut-bn apply + residual add + ReLU."""
    h3 = y3_ref[...].astype(jnp.float32) * s3_ref[...] + b3_ref[...]
    sc = sc_ref[...].astype(jnp.float32) * ss_ref[...] + bs_ref[...]
    o_ref[...] = jnp.maximum(h3 + sc, 0.0)


# ------------------------------ pallas_call wrappers ------------------------


def matmul_stats(x2d, w, in_scale, in_shift, *, in_affine, in_relu, m_real):
    m_pad, k = x2d.shape
    cout = w.shape[1]
    n_tiles = m_pad // TILE_M
    kern = functools.partial(
        _mm_stats_kernel, in_affine=in_affine, in_relu=in_relu,
        mask_rows=(m_pad != m_real), m_real=m_real, tm=TILE_M)
    flops = 2 * m_pad * k * cout
    bytes_acc = m_pad * k * 4 + k * cout * 2 + m_pad * cout * 4 + 2 * n_tiles * 8 * cout * 4
    return pl.pallas_call(
        kern,
        out_shape=(jax.ShapeDtypeStruct((m_pad, cout), jnp.float32),
                   jax.ShapeDtypeStruct((n_tiles, 8, cout), jnp.float32),
                   jax.ShapeDtypeStruct((n_tiles, 8, cout), jnp.float32)),
        grid=(n_tiles,),
        in_specs=[pl.BlockSpec((TILE_M, k), lambda i: (i, 0)),
                  pl.BlockSpec((k, cout), lambda i: (0, 0)),
                  pl.BlockSpec((1, k), lambda i: (0, 0)),
                  pl.BlockSpec((1, k), lambda i: (0, 0))],
        out_specs=(pl.BlockSpec((TILE_M, cout), lambda i: (i, 0)),
                   pl.BlockSpec((1, 8, cout), lambda i: (i, 0, 0)),
                   pl.BlockSpec((1, 8, cout), lambda i: (i, 0, 0))),
        compiler_params=pltpu.CompilerParams(
            dimension_semantics=("parallel",),
            vmem_limit_bytes=VMEM_LIMIT),
        cost_estimate=pl.CostEstimate(flops=flops, transcendentals=0,
                                      bytes_accessed=bytes_acc),
    )(x2d, w, in_scale, in_shift)


def conv3x3_stats(y1_img, w2, in_scale, in_shift, *, stride):
    n, h, w, c = y1_img.shape
    cout = w2.shape[2]
    ho = (h - 1) // stride + 1
    wo = (w - 1) // stride + 1
    kern = functools.partial(_conv3x3_stats_kernel, stride=stride)
    flops = 2 * n * ho * wo * 9 * c * cout
    bytes_acc = n * h * w * c * 4 + 9 * c * cout * 2 + n * ho * wo * cout * 4 + 2 * n * 8 * cout * 4
    return pl.pallas_call(
        kern,
        out_shape=(jax.ShapeDtypeStruct((n, ho, wo, cout), jnp.float32),
                   jax.ShapeDtypeStruct((n, 8, cout), jnp.float32),
                   jax.ShapeDtypeStruct((n, 8, cout), jnp.float32)),
        grid=(n,),
        in_specs=[pl.BlockSpec((1, h, w, c), lambda b: (b, 0, 0, 0)),
                  pl.BlockSpec((9, c, cout), lambda b: (0, 0, 0)),
                  pl.BlockSpec((1, c), lambda b: (0, 0)),
                  pl.BlockSpec((1, c), lambda b: (0, 0))],
        out_specs=(pl.BlockSpec((1, ho, wo, cout), lambda b: (b, 0, 0, 0)),
                   pl.BlockSpec((1, 8, cout), lambda b: (b, 0, 0)),
                   pl.BlockSpec((1, 8, cout), lambda b: (b, 0, 0))),
        scratch_shapes=[pltpu.VMEM((h + 2, w + 2, c), jnp.float32),
                        pltpu.VMEM((ho * wo, cout), jnp.float32)],
        compiler_params=pltpu.CompilerParams(
            dimension_semantics=("parallel",),
            vmem_limit_bytes=VMEM_LIMIT),
        cost_estimate=pl.CostEstimate(flops=flops, transcendentals=0,
                                      bytes_accessed=bytes_acc),
    )(y1_img, w2, in_scale, in_shift)


def bn_add_relu(y3, sc, s3, b3, ss, bs):
    m_pad, c = y3.shape
    n_tiles = m_pad // TILE_M
    return pl.pallas_call(
        _bn_add_relu_kernel,
        out_shape=jax.ShapeDtypeStruct((m_pad, c), jnp.float32),
        grid=(n_tiles,),
        in_specs=[pl.BlockSpec((TILE_M, c), lambda i: (i, 0)),
                  pl.BlockSpec((TILE_M, c), lambda i: (i, 0)),
                  pl.BlockSpec((1, c), lambda i: (0, 0)),
                  pl.BlockSpec((1, c), lambda i: (0, 0)),
                  pl.BlockSpec((1, c), lambda i: (0, 0)),
                  pl.BlockSpec((1, c), lambda i: (0, 0))],
        out_specs=pl.BlockSpec((TILE_M, c), lambda i: (i, 0)),
        compiler_params=pltpu.CompilerParams(
            dimension_semantics=("parallel",),
            vmem_limit_bytes=VMEM_LIMIT),
        cost_estimate=pl.CostEstimate(flops=5 * m_pad * c, transcendentals=0,
                                      bytes_accessed=3 * m_pad * c * 4),
    )(y3, sc, s3, b3, ss, bs)


# ------------------------------ parameters ---------------------------------


def init_bottleneck_params(key, in_planes, planes, expansion=4):
    out_planes = expansion * planes
    k1, k2, k3, k4 = jax.random.split(key, 4)
    return {
        "w1": 0.1 * jax.random.normal(k1, (in_planes, planes), jnp.float32),
        "w2": 0.1 * jax.random.normal(k2, (3, 3, planes, planes), jnp.float32),  # HWIO
        "w3": 0.1 * jax.random.normal(k3, (planes, out_planes), jnp.float32),
        "ws": 0.1 * jax.random.normal(k4, (in_planes, out_planes), jnp.float32),
        "g1": jnp.ones((planes,), jnp.float32), "b1": jnp.zeros((planes,), jnp.float32),
        "g2": jnp.ones((planes,), jnp.float32), "b2": jnp.zeros((planes,), jnp.float32),
        "g3": jnp.ones((out_planes,), jnp.float32), "b3": jnp.zeros((out_planes,), jnp.float32),
        "gs": jnp.ones((out_planes,), jnp.float32), "bs": jnp.zeros((out_planes,), jnp.float32),
    }


def pack_params(params):
    """Pad channels to 128 lanes and cast matmul weights to bf16 (offline)."""
    in_planes, planes = params["w1"].shape
    out_planes = params["w3"].shape[1]
    cin_p = _round_up(in_planes, LANE)
    c1_p = _round_up(planes, LANE)
    c3_p = _round_up(out_planes, LANE)

    def pad2(wt, r, c):
        return jnp.zeros((r, c), jnp.bfloat16).at[:wt.shape[0], :wt.shape[1]].set(
            wt.astype(jnp.bfloat16))

    def pad1(v, c):  # padded gamma/beta are zero -> padded channels stay zero
        return jnp.zeros((c,), jnp.float32).at[:v.shape[0]].set(v)

    w2p = jnp.zeros((9, c1_p, c1_p), jnp.bfloat16).at[:, :planes, :planes].set(
        params["w2"].reshape(9, planes, planes).astype(jnp.bfloat16))

    return {
        "w1": pad2(params["w1"], cin_p, c1_p),
        "w2": w2p,
        "w3": pad2(params["w3"], c1_p, c3_p),
        "ws": pad2(params["ws"], cin_p, c3_p),
        "g1": pad1(params["g1"], c1_p), "b1": pad1(params["b1"], c1_p),
        "g2": pad1(params["g2"], c1_p), "b2": pad1(params["b2"], c1_p),
        "g3": pad1(params["g3"], c3_p), "b3": pad1(params["b3"], c3_p),
        "gs": pad1(params["gs"], c3_p), "bs": pad1(params["bs"], c3_p),
    }


def _bn_coeffs(psum, psq, m, gamma, beta):
    """Combine per-tile partial sums into per-channel (scale, shift)."""
    s = jnp.sum(psum[:, 0, :], axis=0)
    sq = jnp.sum(psq[:, 0, :], axis=0)
    mean = s / m
    var = jnp.maximum(sq / m - mean * mean, 0.0)
    scale = gamma * jax.lax.rsqrt(var + EPS)
    shift = beta - mean * scale
    return scale.reshape(1, -1), shift.reshape(1, -1)


# ------------------------------ Bottleneck forward ---------------------------


@functools.partial(jax.jit, static_argnames=("in_planes", "out_planes", "stride"))
def bottleneck_forward(x_nchw, packed, *, in_planes, out_planes, stride=1):
    p = packed
    cin_p = p["w1"].shape[0]
    c1_p = p["w1"].shape[1]
    c3_p = p["w3"].shape[1]

    x = jnp.transpose(x_nchw, (0, 2, 3, 1)).astype(jnp.float32)   # NHWC
    n, h, w, _ = x.shape
    ho = (h - 1) // stride + 1
    wo = (w - 1) // stride + 1
    m1 = n * h * w
    m2 = n * ho * wo
    m1_pad = _round_up(m1, TILE_M)
    m2_pad = _round_up(m2, TILE_M)

    # pad channels, flatten spatial, pad M to the tile size
    x_p = jnp.zeros((n, h, w, cin_p), jnp.float32).at[..., :in_planes].set(x)
    x2d = x_p.reshape(m1, cin_p)
    if m1_pad != m1:
        x2d = jnp.pad(x2d, ((0, m1_pad - m1), (0, 0)))

    one_cin = jnp.ones((1, cin_p), jnp.float32)
    zero_cin = jnp.zeros((1, cin_p), jnp.float32)

    # --- conv1 (1x1) + bn1 stats ---
    y1, s1sum, s1sq = matmul_stats(x2d, p["w1"], one_cin, zero_cin,
                                   in_affine=False, in_relu=False, m_real=m1)
    sc1, sh1 = _bn_coeffs(s1sum, s1sq, m1, p["g1"], p["b1"])

    # --- conv2 (3x3, stride, pad=1): bn1+relu folded in, 9 shifted matmuls ---
    y1_img = y1[:m1].reshape(n, h, w, c1_p)
    y2_img, s2sum, s2sq = conv3x3_stats(y1_img, p["w2"], sc1, sh1, stride=stride)
    sc2, sh2 = _bn_coeffs(s2sum, s2sq, m2, p["g2"], p["b2"])

    # --- conv3 (1x1): bn2+relu folded in ---
    y2 = y2_img.reshape(m2, c1_p)
    if m2_pad != m2:
        y2 = jnp.pad(y2, ((0, m2_pad - m2), (0, 0)))
    y3, s3sum, s3sq = matmul_stats(y2, p["w3"], sc2, sh2,
                                   in_affine=True, in_relu=True, m_real=m2)
    sc3, sh3 = _bn_coeffs(s3sum, s3sq, m2, p["g3"], p["b3"])

    # --- shortcut ---
    if stride != 1 or in_planes != out_planes:
        xs = x_p[:, ::stride, ::stride, :].reshape(m2, cin_p)
        if m2_pad != m2:
            xs = jnp.pad(xs, ((0, m2_pad - m2), (0, 0)))
        sc_arr, sssum, sssq = matmul_stats(xs, p["ws"], one_cin, zero_cin,
                                           in_affine=False, in_relu=False,
                                           m_real=m2)
        scs, shs = _bn_coeffs(sssum, sssq, m2, p["gs"], p["bs"])
    else:
        sc_arr = x2d                              # identity (cin_p == c3_p)
        scs = jnp.ones((1, c3_p), jnp.float32)
        shs = jnp.zeros((1, c3_p), jnp.float32)

    # --- fused bn3 + shortcut-bn + residual add + ReLU ---
    out2d = bn_add_relu(y3, sc_arr, sc3, sh3, scs, shs)
    out = out2d[:m2, :out_planes].reshape(n, ho, wo, out_planes)
    return jnp.transpose(out, (0, 3, 1, 2))       # back to NCHW


# ----------------------------- pure-JAX reference ---------------------------


def ref_bottleneck(x_nchw, params, stride=1):
    x = jnp.transpose(x_nchw, (0, 2, 3, 1)).astype(jnp.float32)

    def bn(y, g, b):
        mean = jnp.mean(y, axis=(0, 1, 2), keepdims=True)
        var = jnp.mean(jnp.square(y - mean), axis=(0, 1, 2), keepdims=True)
        return (y - mean) * jax.lax.rsqrt(var + EPS) * g + b

    def mm(a, wt):  # bf16 operands, f32 accumulation (matches kernel precision)
        return jnp.einsum("nhwc,cd->nhwd", a.astype(jnp.bfloat16),
                          wt.astype(jnp.bfloat16),
                          preferred_element_type=jnp.float32)

    h = jnp.maximum(bn(mm(x, params["w1"]), params["g1"], params["b1"]), 0.0)
    h = jax.lax.conv_general_dilated(
        h.astype(jnp.bfloat16), params["w2"].astype(jnp.bfloat16),
        (stride, stride), [(1, 1), (1, 1)],
        dimension_numbers=("NHWC", "HWIO", "NHWC"),
        preferred_element_type=jnp.float32)
    h = jnp.maximum(bn(h, params["g2"], params["b2"]), 0.0)
    h = bn(mm(h, params["w3"]), params["g3"], params["b3"])
    in_planes = x.shape[-1]
    out_planes = params["w3"].shape[1]
    if stride != 1 or in_planes != out_planes:
        sc = bn(mm(x[:, ::stride, ::stride, :], params["ws"]),
                params["gs"], params["bs"])
    else:
        sc = x
    return jnp.transpose(jnp.maximum(h + sc, 0.0), (0, 3, 1, 2))


# --------------------------------- main --------------------------------------


if __name__ == "__main__":
    key = jax.random.PRNGKey(0)
    kx, kp = jax.random.split(key)

    # Small shapes consistent with Bottleneck(in_planes=4, planes=4, stride=1)
    N, IN_PLANES, PLANES, HW, STRIDE = 2, 4, 4, 16, 1
    OUT_PLANES = 4 * PLANES
    x = jax.random.normal(kx, (N, IN_PLANES, HW, HW), jnp.float32)   # NCHW
    params = init_bottleneck_params(kp, IN_PLANES, PLANES)
    packed = pack_params(params)

    out = bottleneck_forward(x, packed, in_planes=IN_PLANES,
                             out_planes=OUT_PLANES, stride=STRIDE)
    out = jax.block_until_ready(out)

    ref = jax.block_until_ready(ref_bottleneck(x, params, stride=STRIDE))
    assert out.shape == (N, OUT_PLANES, HW, HW), out.shape
    err = float(jnp.max(jnp.abs(out - ref)))
    assert err < 2e-2, f"max abs err {err}"
    print("KERNEL_OK")
</pallas_src>

<mosaic_0001>
module attributes {stable_mosaic.version = 11 : i64} {
  func.func @_mm_stats_kernel(%arg0: i32, %arg1: memref<256x128xf32, #tpu.memory_space<vmem>>, %arg2: memref<128x128xbf16, #tpu.memory_space<vmem>>, %arg3: memref<1x128xf32, #tpu.memory_space<vmem>>, %arg4: memref<1x128xf32, #tpu.memory_space<vmem>>, %arg5: memref<256x128xf32, #tpu.memory_space<vmem>>, %arg6: memref<1x8x128xf32, #tpu.memory_space<vmem>>, %arg7: memref<1x8x128xf32, #tpu.memory_space<vmem>>) attributes {dimension_semantics = [#tpu.dimension_semantics<parallel>], iteration_bounds = array<i64: 2>, scalar_prefetch = 0 : i64, scratch_operands = 0 : i64, tpu.core_type = #tpu.core_type<tc>, window_params = [{transform_indices = @transform_0, window_bounds = array<i64: 256, 128>}, {pipeline_mode = #tpu.pipeline_mode<synchronous>, transform_indices = @transform_1, window_bounds = array<i64: 128, 128>}, {pipeline_mode = #tpu.pipeline_mode<synchronous>, transform_indices = @transform_2, window_bounds = array<i64: 1, 128>}, {pipeline_mode = #tpu.pipeline_mode<synchronous>, transform_indices = @transform_3, window_bounds = array<i64: 1, 128>}, {transform_indices = @transform_4, window_bounds = array<i64: 256, 128>}, {transform_indices = @transform_5, window_bounds = array<i64: 1, 8, 128>}, {transform_indices = @transform_6, window_bounds = array<i64: 1, 8, 128>}]} {
    %c0 = arith.constant 0 : index
    %c0_0 = arith.constant 0 : index
    %0 = vector.load %arg1[%c0, %c0_0] : memref<256x128xf32, #tpu.memory_space<vmem>>, vector<256x128xf32>
    %1 = arith.truncf %0 : vector<256x128xf32> to vector<256x128xbf16>
    %c0_1 = arith.constant 0 : index
    %c0_2 = arith.constant 0 : index
    %2 = vector.load %arg2[%c0_1, %c0_2] : memref<128x128xbf16, #tpu.memory_space<vmem>>, vector<128x128xbf16>
    %cst = arith.constant dense<0.000000e+00> : vector<256x128xf32>
    %3 = tpu.matmul %1, %2, %cst {dimension_numbers = #tpu.dot_dimension_numbers<[1], [0], [0], [1], [0, 0, 1, 1], [], []>} : vector<256x128xbf16>, vector<128x128xbf16>, vector<256x128xf32> -> vector<256x128xf32>
    %c0_3 = arith.constant 0 : index
    %c0_4 = arith.constant 0 : index
    %4 = vector.load %arg5[%c0_3, %c0_4] : memref<256x128xf32, #tpu.memory_space<vmem>>, vector<256x128xf32>
    tpu.vector_store %arg5[%c0_3, %c0_4], %3 {strides = array<i32>} : memref<256x128xf32, #tpu.memory_space<vmem>>, vector<256x128xf32>,
    %cst_5 = arith.constant dense<0.000000e+00> : vector<128xf32>
    %5 = vector.multi_reduction <add>, %3, %cst_5 [0] : vector<256x128xf32> to vector<128xf32>
    %6 = vector.shape_cast %5 : vector<128xf32> to vector<1x128xf32>
    %7 = arith.mulf %3, %3 : vector<256x128xf32>
    %cst_6 = arith.constant dense<0.000000e+00> : vector<128xf32>
    %8 = vector.multi_reduction <add>, %7, %cst_6 [0] : vector<256x128xf32> to vector<128xf32>
    %9 = vector.shape_cast %8 : vector<128xf32> to vector<1x128xf32>
    %10 = vector.shape_cast %6 : vector<1x128xf32> to vector<1x128xf32>
    %11 = vector.broadcast %10 : vector<1x128xf32> to vector<8x128xf32>
    %c0_7 = arith.constant 0 : index
    %c0_8 = arith.constant 0 : index
    %c0_9 = arith.constant 0 : index
    %12 = vector.load %arg6[%c0_7, %c0_8, %c0_9] : memref<1x8x128xf32, #tpu.memory_space<vmem>>, vector<1x8x128xf32>
    %13 = vector.shape_cast %12 : vector<1x8x128xf32> to vector<8x128xf32>
    %14 = vector.shape_cast %11 : vector<8x128xf32> to vector<1x8x128xf32>
    tpu.vector_store %arg6[%c0_7, %c0_8, %c0_9], %14 {strides = array<i32>} : memref<1x8x128xf32, #tpu.memory_space<vmem>>, vector<1x8x128xf32>,
    %15 = vector.shape_cast %9 : vector<1x128xf32> to vector<1x128xf32>
    %16 = vector.broadcast %15 : vector<1x128xf32> to vector<8x128xf32>
    %c0_10 = arith.constant 0 : index
    %c0_11 = arith.constant 0 : index
    %c0_12 = arith.constant 0 : index
    %17 = vector.load %arg7[%c0_10, %c0_11, %c0_12] : memref<1x8x128xf32, #tpu.memory_space<vmem>>, vector<1x8x128xf32>
    %18 = vector.shape_cast %17 : vector<1x8x128xf32> to vector<8x128xf32>
    %19 = vector.shape_cast %16 : vector<8x128xf32> to vector<1x8x128xf32>
    tpu.vector_store %arg7[%c0_10, %c0_11, %c0_12], %19 {strides = array<i32>} : memref<1x8x128xf32, #tpu.memory_space<vmem>>, vector<1x8x128xf32>,
    return
  }
  func.func @transform_0(%arg0: i32) -> (i32, i32) {
    %c0_i32 = arith.constant 0 : i32
    %c0_i32_0 = arith.constant 0 : i32
    return %arg0, %c0_i32 : i32, i32
  }
  func.func @transform_1(%arg0: i32) -> (i32, i32) {
    %c0_i32 = arith.constant 0 : i32
    %c0_i32_0 = arith.constant 0 : i32
    %c0_i32_1 = arith.constant 0 : i32
    return %c0_i32, %c0_i32_0 : i32, i32
  }
  func.func @transform_2(%arg0: i32) -> (i32, i32) {
    %c0_i32 = arith.constant 0 : i32
    %c0_i32_0 = arith.constant 0 : i32
    %c0_i32_1 = arith.constant 0 : i32
    return %c0_i32, %c0_i32_0 : i32, i32
  }
  func.func @transform_3(%arg0: i32) -> (i32, i32) {
    %c0_i32 = arith.constant 0 : i32
    %c0_i32_0 = arith.constant 0 : i32
    %c0_i32_1 = arith.constant 0 : i32
    return %c0_i32, %c0_i32_0 : i32, i32
  }
  func.func @transform_4(%arg0: i32) -> (i32, i32) {
    %c0_i32 = arith.constant 0 : i32
    %c0_i32_0 = arith.constant 0 : i32
    return %arg0, %c0_i32 : i32, i32
  }
  func.func @transform_5(%arg0: i32) -> (i32, i32, i32) {
    %c0_i32 = arith.constant 0 : i32
    %c0_i32_0 = arith.constant 0 : i32
    %c0_i32_1 = arith.constant 0 : i32
    return %arg0, %c0_i32, %c0_i32_0 : i32, i32, i32
  }
  func.func @transform_6(%arg0: i32) -> (i32, i32, i32) {
    %c0_i32 = arith.constant 0 : i32
    %c0_i32_0 = arith.constant 0 : i32
    %c0_i32_1 = arith.constant 0 : i32
    return %arg0, %c0_i32, %c0_i32_0 : i32, i32, i32
  }
}

module attributes {stable_mosaic.version = 11 : i64} {
  func.func @_mm_stats_kernel(%arg0: i32, %arg1: memref<256x128xf32, #tpu.memory_space<vmem>>, %arg2: memref<128x128xbf16, #tpu.memory_space<vmem>>, %arg3: memref<1x128xf32, #tpu.memory_space<vmem>>, %arg4: memref<1x128xf32, #tpu.memory_space<vmem>>, %arg5: memref<256x128xf32, #tpu.memory_space<vmem>>, %arg6: memref<1x8x128xf32, #tpu.memory_space<vmem>>, %arg7: memref<1x8x128xf32, #tpu.memory_space<vmem>>) attributes {dimension_semantics = [#tpu.dimension_semantics<parallel>], iteration_bounds = array<i64: 2>, scalar_prefetch = 0 : i64, scratch_operands = 0 : i64, tpu.core_type = #tpu.core_type<tc>, window_params = [{transform_indices = @transform_0, window_bounds = array<i64: 256, 128>}, {pipeline_mode = #tpu.pipeline_mode<synchronous>, transform_indices = @transform_1, window_bounds = array<i64: 128, 128>}, {pipeline_mode = #tpu.pipeline_mode<synchronous>, transform_indices = @transform_2, window_bounds = array<i64: 1, 128>}, {pipeline_mode = #tpu.pipeline_mode<synchronous>, transform_indices = @transform_3, window_bounds = array<i64: 1, 128>}, {transform_indices = @transform_4, window_bounds = array<i64: 256, 128>}, {transform_indices = @transform_5, window_bounds = array<i64: 1, 8, 128>}, {transform_indices = @transform_6, window_bounds = array<i64: 1, 8, 128>}]} {
    %c0 = arith.constant 0 : index
    %c0_0 = arith.constant 0 : index
    %0 = vector.load %arg1[%c0, %c0_0] : memref<256x128xf32, #tpu.memory_space<vmem>>, vector<256x128xf32>
    %c0_1 = arith.constant 0 : index
    %c0_2 = arith.constant 0 : index
    %1 = vector.load %arg3[%c0_1, %c0_2] : memref<1x128xf32, #tpu.memory_space<vmem>>, vector<1x128xf32>
    %2 = vector.broadcast %1 : vector<1x128xf32> to vector<256x128xf32>
    %3 = arith.mulf %0, %2 : vector<256x128xf32>
    %c0_3 = arith.constant 0 : index
    %c0_4 = arith.constant 0 : index
    %4 = vector.load %arg4[%c0_3, %c0_4] : memref<1x128xf32, #tpu.memory_space<vmem>>, vector<1x128xf32>
    %5 = vector.broadcast %4 : vector<1x128xf32> to vector<256x128xf32>
    %6 = arith.addf %3, %5 : vector<256x128xf32>
    %cst = arith.constant 0.000000e+00 : f32
    %7 = vector.broadcast %cst : f32 to vector<256x128xf32>
    %8 = arith.maximumf %6, %7 : vector<256x128xf32>
    %9 = arith.truncf %8 : vector<256x128xf32> to vector<256x128xbf16>
    %c0_5 = arith.constant 0 : index
    %c0_6 = arith.constant 0 : index
    %10 = vector.load %arg2[%c0_5, %c0_6] : memref<128x128xbf16, #tpu.memory_space<vmem>>, vector<128x128xbf16>
    %cst_7 = arith.constant dense<0.000000e+00> : vector<256x128xf32>
    %11 = tpu.matmul %9, %10, %cst_7 {dimension_numbers = #tpu.dot_dimension_numbers<[1], [0], [0], [1], [0, 0, 1, 1], [], []>} : vector<256x128xbf16>, vector<128x128xbf16>, vector<256x128xf32> -> vector<256x128xf32>
    %c0_8 = arith.constant 0 : index
    %c0_9 = arith.constant 0 : index
    %12 = vector.load %arg5[%c0_8, %c0_9] : memref<256x128xf32, #tpu.memory_space<vmem>>, vector<256x128xf32>
    tpu.vector_store %arg5[%c0_8, %c0_9], %11 {strides = array<i32>} : memref<256x128xf32, #tpu.memory_space<vmem>>, vector<256x128xf32>,
    %cst_10 = arith.constant dense<0.000000e+00> : vector<128xf32>
    %13 = vector.multi_reduction <add>, %11, %cst_10 [0] : vector<256x128xf32> to vector<128xf32>
    %14 = vector.shape_cast %13 : vector<128xf32> to vector<1x128xf32>
    %15 = arith.mulf %11, %11 : vector<256x128xf32>
    %cst_11 = arith.constant dense<0.000000e+00> : vector<128xf32>
    %16 = vector.multi_reduction <add>, %15, %cst_11 [0] : vector<256x128xf32> to vector<128xf32>
    %17 = vector.shape_cast %16 : vector<128xf32> to vector<1x128xf32>
    %18 = vector.shape_cast %14 : vector<1x128xf32> to vector<1x128xf32>
    %19 = vector.broadcast %18 : vector<1x128xf32> to vector<8x128xf32>
    %c0_12 = arith.constant 0 : index
    %c0_13 = arith.constant 0 : index
    %c0_14 = arith.constant 0 : index
    %20 = vector.load %arg6[%c0_12, %c0_13, %c0_14] : memref<1x8x128xf32, #tpu.memory_space<vmem>>, vector<1x8x128xf32>
    %21 = vector.shape_cast %20 : vector<1x8x128xf32> to vector<8x128xf32>
    %22 = vector.shape_cast %19 : vector<8x128xf32> to vector<1x8x128xf32>
    tpu.vector_store %arg6[%c0_12, %c0_13, %c0_14], %22 {strides = array<i32>} : memref<1x8x128xf32, #tpu.memory_space<vmem>>, vector<1x8x128xf32>,
    %23 = vector.shape_cast %17 : vector<1x128xf32> to vector<1x128xf32>
    %24 = vector.broadcast %23 : vector<1x128xf32> to vector<8x128xf32>
    %c0_15 = arith.constant 0 : index
    %c0_16 = arith.constant 0 : index
    %c0_17 = arith.constant 0 : index
    %25 = vector.load %arg7[%c0_15, %c0_16, %c0_17] : memref<1x8x128xf32, #tpu.memory_space<vmem>>, vector<1x8x128xf32>
    %26 = vector.shape_cast %25 : vector<1x8x128xf32> to vector<8x128xf32>
    %27 = vector.shape_cast %24 : vector<8x128xf32> to vector<1x8x128xf32>
    tpu.vector_store %arg7[%c0_15, %c0_16, %c0_17], %27 {strides = array<i32>} : memref<1x8x128xf32, #tpu.memory_space<vmem>>, vector<1x8x128xf32>,
    return
  }
  func.func @transform_0(%arg0: i32) -> (i32, i32) {
    %c0_i32 = arith.constant 0 : i32
    %c0_i32_0 = arith.constant 0 : i32
    return %arg0, %c0_i32 : i32, i32
  }
  func.func @transform_1(%arg0: i32) -> (i32, i32) {
    %c0_i32 = arith.constant 0 : i32
    %c0_i32_0 = arith.constant 0 : i32
    %c0_i32_1 = arith.constant 0 : i32
    return %c0_i32, %c0_i32_0 : i32, i32
  }
  func.func @transform_2(%arg0: i32) -> (i32, i32) {
    %c0_i32 = arith.constant 0 : i32
    %c0_i32_0 = arith.constant 0 : i32
    %c0_i32_1 = arith.constant 0 : i32
    return %c0_i32, %c0_i32_0 : i32, i32
  }
  func.func @transform_3(%arg0: i32) -> (i32, i32) {
    %c0_i32 = arith.constant 0 : i32
    %c0_i32_0 = arith.constant 0 : i32
    %c0_i32_1 = arith.constant 0 : i32
    return %c0_i32, %c0_i32_0 : i32, i32
  }
  func.func @transform_4(%arg0: i32) -> (i32, i32) {
    %c0_i32 = arith.constant 0 : i32
    %c0_i32_0 = arith.constant 0 : i32
    return %arg0, %c0_i32 : i32, i32
  }
  func.func @transform_5(%arg0: i32) -> (i32, i32, i32) {
    %c0_i32 = arith.constant 0 : i32
    %c0_i32_0 = arith.constant 0 : i32
    %c0_i32_1 = arith.constant 0 : i32
    return %arg0, %c0_i32, %c0_i32_0 : i32, i32, i32
  }
  func.func @transform_6(%arg0: i32) -> (i32, i32, i32) {
    %c0_i32 = arith.constant 0 : i32
    %c0_i32_0 = arith.constant 0 : i32
    %c0_i32_1 = arith.constant 0 : i32
    return %arg0, %c0_i32, %c0_i32_0 : i32, i32, i32
  }
}

module attributes {stable_mosaic.version = 11 : i64} {
  func.func @_conv3x3_stats_kernel(%arg0: i32, %arg1: memref<1x16x16x128xf32, #tpu.memory_space<vmem>>, %arg2: memref<9x128x128xbf16, #tpu.memory_space<vmem>>, %arg3: memref<1x128xf32, #tpu.memory_space<vmem>>, %arg4: memref<1x128xf32, #tpu.memory_space<vmem>>, %arg5: memref<1x16x16x128xf32, #tpu.memory_space<vmem>>, %arg6: memref<1x8x128xf32, #tpu.memory_space<vmem>>, %arg7: memref<1x8x128xf32, #tpu.memory_space<vmem>>, %arg8: memref<18x18x128xf32, #tpu.memory_space<vmem>>, %arg9: memref<256x128xf32, #tpu.memory_space<vmem>>) attributes {dimension_semantics = [#tpu.dimension_semantics<parallel>], iteration_bounds = array<i64: 2>, scalar_prefetch = 0 : i64, scratch_operands = 2 : i64, tpu.core_type = #tpu.core_type<tc>, window_params = [{transform_indices = @transform_0, window_bounds = array<i64: 1, 16, 16, 128>}, {pipeline_mode = #tpu.pipeline_mode<synchronous>, transform_indices = @transform_1, window_bounds = array<i64: 9, 128, 128>}, {pipeline_mode = #tpu.pipeline_mode<synchronous>, transform_indices = @transform_2, window_bounds = array<i64: 1, 128>}, {pipeline_mode = #tpu.pipeline_mode<synchronous>, transform_indices = @transform_3, window_bounds = array<i64: 1, 128>}, {transform_indices = @transform_4, window_bounds = array<i64: 1, 16, 16, 128>}, {transform_indices = @transform_5, window_bounds = array<i64: 1, 8, 128>}, {transform_indices = @transform_6, window_bounds = array<i64: 1, 8, 128>}]} {
    %c0 = arith.constant 0 : index
    %c0_0 = arith.constant 0 : index
    %c0_1 = arith.constant 0 : index
    %c0_2 = arith.constant 0 : index
    %0 = vector.load %arg1[%c0, %c0_0, %c0_1, %c0_2] : memref<1x16x16x128xf32, #tpu.memory_space<vmem>>, vector<1x16x16x128xf32>
    %1 = vector.shape_cast %0 : vector<1x16x16x128xf32> to vector<16x16x128xf32>
    %c0_3 = arith.constant 0 : index
    %c0_4 = arith.constant 0 : index
    %2 = vector.load %arg3[%c0_3, %c0_4] : memref<1x128xf32, #tpu.memory_space<vmem>>, vector<1x128xf32>
    %3 = vector.shape_cast %2 : vector<1x128xf32> to vector<1x1x128xf32>
    %4 = vector.broadcast %3 : vector<1x1x128xf32> to vector<16x16x128xf32>
    %5 = arith.mulf %1, %4 : vector<16x16x128xf32>
    %c0_5 = arith.constant 0 : index
    %c0_6 = arith.constant 0 : index
    %6 = vector.load %arg4[%c0_5, %c0_6] : memref<1x128xf32, #tpu.memory_space<vmem>>, vector<1x128xf32>
    %7 = vector.shape_cast %6 : vector<1x128xf32> to vector<1x1x128xf32>
    %8 = vector.broadcast %7 : vector<1x1x128xf32> to vector<16x16x128xf32>
    %9 = arith.addf %5, %8 : vector<16x16x128xf32>
    %cst = arith.constant 0.000000e+00 : f32
    %10 = vector.broadcast %cst : f32 to vector<16x16x128xf32>
    %11 = arith.maximumf %9, %10 : vector<16x16x128xf32>
    %cst_7 = arith.constant 0.000000e+00 : f32
    %12 = vector.broadcast %cst_7 : f32 to vector<18x18x128xf32>
    %c0_8 = arith.constant 0 : index
    %c0_9 = arith.constant 0 : index
    %c0_10 = arith.constant 0 : index
    %13 = vector.load %arg8[%c0_8, %c0_9, %c0_10] : memref<18x18x128xf32, #tpu.memory_space<vmem>>, vector<18x18x128xf32>
    tpu.vector_store %arg8[%c0_8, %c0_9, %c0_10], %12 {strides = array<i32>} : memref<18x18x128xf32, #tpu.memory_space<vmem>>, vector<18x18x128xf32>,
    %c1 = arith.constant 1 : index
    %c1_11 = arith.constant 1 : index
    %c0_12 = arith.constant 0 : index
    %14 = vector.load %arg8[%c1, %c1_11, %c0_12] : memref<18x18x128xf32, #tpu.memory_space<vmem>>, vector<16x16x128xf32>
    tpu.vector_store %arg8[%c1, %c1_11, %c0_12], %11 {strides = array<i32>} : memref<18x18x128xf32, #tpu.memory_space<vmem>>, vector<16x16x128xf32>,
    %cst_13 = arith.constant 0.000000e+00 : f32
    %15 = vector.broadcast %cst_13 : f32 to vector<256x128xf32>
    %c0_14 = arith.constant 0 : index
    %c0_15 = arith.constant 0 : index
    %16 = vector.load %arg9[%c0_14, %c0_15] : memref<256x128xf32, #tpu.memory_space<vmem>>, vector<256x128xf32>
    tpu.vector_store %arg9[%c0_14, %c0_15], %15 {strides = array<i32>} : memref<256x128xf32, #tpu.memory_space<vmem>>, vector<256x128xf32>,
    %c0_16 = arith.constant 0 : index
    %c0_17 = arith.constant 0 : index
    %c0_18 = arith.constant 0 : index
    %17 = vector.load %arg8[%c0_16, %c0_17, %c0_18] : memref<18x18x128xf32, #tpu.memory_space<vmem>>, vector<16x16x128xf32>
    %c0_19 = arith.constant 0 : index
    %c0_20 = arith.constant 0 : index
    %18 = vector.load %arg9[%c0_19, %c0_20] : memref<256x128xf32, #tpu.memory_space<vmem>>, vector<256x128xf32>
    %19 = vector.shape_cast %17 : vector<16x16x128xf32> to vector<256x128xf32>
    %20 = arith.truncf %19 : vector<256x128xf32> to vector<256x128xbf16>
    %c0_21 = arith.constant 0 : index
    %c0_22 = arith.constant 0 : index
    %c0_23 = arith.constant 0 : index
    %21 = vector.load %arg2[%c0_21, %c0_22, %c0_23] : memref<9x128x128xbf16, #tpu.memory_space<vmem>>, vector<1x128x128xbf16>
    %22 = vector.shape_cast %21 : vector<1x128x128xbf16> to vector<128x128xbf16>
    %cst_24 = arith.constant dense<0.000000e+00> : vector<256x128xf32>
    %23 = tpu.matmul %20, %22, %cst_24 {dimension_numbers = #tpu.dot_dimension_numbers<[1], [0], [0], [1], [0, 0, 1, 1], [], []>} : vector<256x128xbf16>, vector<128x128xbf16>, vector<256x128xf32> -> vector<256x128xf32>
    %24 = arith.addf %18, %23 : vector<256x128xf32>
    %c0_25 = arith.constant 0 : index
    %c0_26 = arith.constant 0 : index
    %25 = vector.load %arg9[%c0_25, %c0_26] : memref<256x128xf32, #tpu.memory_space<vmem>>, vector<256x128xf32>
    tpu.vector_store %arg9[%c0_25, %c0_26], %24 {strides = array<i32>} : memref<256x128xf32, #tpu.memory_space<vmem>>, vector<256x128xf32>,
    %c0_27 = arith.constant 0 : index
    %c1_28 = arith.constant 1 : index
    %c0_29 = arith.constant 0 : index
    %26 = vector.load %arg8[%c0_27, %c1_28, %c0_29] : memref<18x18x128xf32, #tpu.memory_space<vmem>>, vector<16x16x128xf32>
    %c0_30 = arith.constant 0 : index
    %c0_31 = arith.constant 0 : index
    %27 = vector.load %arg9[%c0_30, %c0_31] : memref<256x128xf32, #tpu.memory_space<vmem>>, vector<256x128xf32>
    %28 = vector.shape_cast %26 : vector<16x16x128xf32> to vector<256x128xf32>
    %29 = arith.truncf %28 : vector<256x128xf32> to vector<256x128xbf16>
    %c1_32 = arith.constant 1 : index
    %c0_33 = arith.constant 0 : index
    %c0_34 = arith.constant 0 : index
    %30 = vector.load %arg2[%c1_32, %c0_33, %c0_34] : memref<9x128x128xbf16, #tpu.memory_space<vmem>>, vector<1x128x128xbf16>
    %31 = vector.shape_cast %30 : vector<1x128x128xbf16> to vector<128x128xbf16>
    %cst_35 = arith.constant dense<0.000000e+00> : vector<256x128xf32>
    %32 = tpu.matmul %29, %31, %cst_35 {dimension_numbers = #tpu.dot_dimension_numbers<[1], [0], [0], [1], [0, 0, 1, 1], [], []>} : vector<256x128xbf16>, vector<128x128xbf16>, vector<256x128xf32> -> vector<256x128xf32>
    %33 = arith.addf %27, %32 : vector<256x128xf32>
    %c0_36 = arith.constant 0 : index
    %c0_37 = arith.constant 0 : index
    %34 = vector.load %arg9[%c0_36, %c0_37] : memref<256x128xf32, #tpu.memory_space<vmem>>, vector<256x128xf32>
    tpu.vector_store %arg9[%c0_36, %c0_37], %33 {strides = array<i32>} : memref<256x128xf32, #tpu.memory_space<vmem>>, vector<256x128xf32>,
    %c0_38 = arith.constant 0 : index
    %c2 = arith.constant 2 : index
    %c0_39 = arith.constant 0 : index
    %35 = vector.load %arg8[%c0_38, %c2, %c0_39] : memref<18x18x128xf32, #tpu.memory_space<vmem>>, vector<16x16x128xf32>
    %c0_40 = arith.constant 0 : index
    %c0_41 = arith.constant 0 : index
    %36 = vector.load %arg9[%c0_40, %c0_41] : memref<256x128xf32, #tpu.memory_space<vmem>>, vector<256x128xf32>
    %37 = vector.shape_cast %35 : vector<16x16x128xf32> to vector<256x128xf32>
    %38 = arith.truncf %37 : vector<256x128xf32> to vector<256x128xbf16>
    %c2_42 = arith.constant 2 : index
    %c0_43 = arith.constant 0 : index
    %c0_44 = arith.constant 0 : index
    %39 = vector.load %arg2[%c2_42, %c0_43, %c0_44] : memref<9x128x128xbf16, #tpu.memory_space<vmem>>, vector<1x128x128xbf16>
    %40 = vector.shape_cast %39 : vector<1x128x128xbf16> to vector<128x128xbf16>
    %cst_45 = arith.constant dense<0.000000e+00> : vector<256x128xf32>
    %41 = tpu.matmul %38, %40, %cst_45 {dimension_numbers = #tpu.dot_dimension_numbers<[1], [0], [0], [1], [0, 0, 1, 1], [], []>} : vector<256x128xbf16>, vector<128x128xbf16>, vector<256x128xf32> -> vector<256x128xf32>
    %42 = arith.addf %36, %41 : vector<256x128xf32>
    %c0_46 = arith.constant 0 : index
    %c0_47 = arith.constant 0 : index
    %43 = vector.load %arg9[%c0_46, %c0_47] : memref<256x128xf32, #tpu.memory_space<vmem>>, vector<256x128xf32>
    tpu.vector_store %arg9[%c0_46, %c0_47], %42 {strides = array<i32>} : memref<256x128xf32, #tpu.memory_space<vmem>>, vector<256x128xf32>,
    %c1_48 = arith.constant 1 : index
    %c0_49 = arith.constant 0 : index
    %c0_50 = arith.constant 0 : index
    %44 = vector.load %arg8[%c1_48, %c0_49, %c0_50] : memref<18x18x128xf32, #tpu.memory_space<vmem>>, vector<16x16x128xf32>
    %c0_51 = arith.constant 0 : index
    %c0_52 = arith.constant 0 : index
    %45 = vector.load %arg9[%c0_51, %c0_52] : memref<256x128xf32, #tpu.memory_space<vmem>>, vector<256x128xf32>
    %46 = vector.shape_cast %44 : vector<16x16x128xf32> to vector<256x128xf32>
    %47 = arith.truncf %46 : vector<256x128xf32> to vector<256x128xbf16>
    %c3 = arith.constant 3 : index
    %c0_53 = arith.constant 0 : index
    %c0_54 = arith.constant 0 : index
    %48 = vector.load %arg2[%c3, %c0_53, %c0_54] : memref<9x128x128xbf16, #tpu.memory_space<vmem>>, vector<1x128x128xbf16>
    %49 = vector.shape_cast %48 : vector<1x128x128xbf16> to vector<128x128xbf16>
    %cst_55 = arith.constant dense<0.000000e+00> : vector<256x128xf32>
    %50 = tpu.matmul %47, %49, %cst_55 {dimension_numbers = #tpu.dot_dimension_numbers<[1], [0], [0], [1], [0, 0, 1, 1], [], []>} : vector<256x128xbf16>, vector<128x128xbf16>, vector<256x128xf32> -> vector<256x128xf32>
    %51 = arith.addf %45, %50 : vector<256x128xf32>
    %c0_56 = arith.constant 0 : index
    %c0_57 = arith.constant 0 : index
    %52 = vector.load %arg9[%c0_56, %c0_57] : memref<256x128xf32, #tpu.memory_space<vmem>>, vector<256x128xf32>
    tpu.vector_store %arg9[%c0_56, %c0_57], %51 {strides = array<i32>} : memref<256x128xf32, #tpu.memory_space<vmem>>, vector<256x128xf32>,
    %c1_58 = arith.constant 1 : index
    %c1_59 = arith.constant 1 : index
    %c0_60 = arith.constant 0 : index
    %53 = vector.load %arg8[%c1_58, %c1_59, %c0_60] : memref<18x18x128xf32, #tpu.memory_space<vmem>>, vector<16x16x128xf32>
    %c0_61 = arith.constant 0 : index
    %c0_62 = arith.constant 0 : index
    %54 = vector.load %arg9[%c0_61, %c0_62] : memref<256x128xf32, #tpu.memory_space<vmem>>, vector<256x128xf32>
    %55 = vector.shape_cast %53 : vector<16x16x128xf32> to vector<256x128xf32>
    %56 = arith.truncf %55 : vector<256x128xf32> to vector<256x128xbf16>
    %c4 = arith.constant 4 : index
    %c0_63 = arith.constant 0 : index
    %c0_64 = arith.constant 0 : index
    %57 = vector.load %arg2[%c4, %c0_63, %c0_64] : memref<9x128x128xbf16, #tpu.memory_space<vmem>>, vector<1x128x128xbf16>
    %58 = vector.shape_cast %57 : vector<1x128x128xbf16> to vector<128x128xbf16>
    %cst_65 = arith.constant dense<0.000000e+00> : vector<256x128xf32>
    %59 = tpu.matmul %56, %58, %cst_65 {dimension_numbers = #tpu.dot_dimension_numbers<[1], [0], [0], [1], [0, 0, 1, 1], [], []>} : vector<256x128xbf16>, vector<128x128xbf16>, vector<256x128xf32> -> vector<256x128xf32>
    %60 = arith.addf %54, %59 : vector<256x128xf32>
    %c0_66 = arith.constant 0 : index
    %c0_67 = arith.constant 0 : index
    %61 = vector.load %arg9[%c0_66, %c0_67] : memref<256x128xf32, #tpu.memory_space<vmem>>, vector<256x128xf32>
    tpu.vector_store %arg9[%c0_66, %c0_67], %60 {strides = array<i32>} : memref<256x128xf32, #tpu.memory_space<vmem>>, vector<256x128xf32>,
    %c1_68 = arith.constant 1 : index
    %c2_69 = arith.constant 2 : index
    %c0_70 = arith.constant 0 : index
    %62 = vector.load %arg8[%c1_68, %c2_69, %c0_70] : memref<18x18x128xf32, #tpu.memory_space<vmem>>, vector<16x16x128xf32>
    %c0_71 = arith.constant 0 : index
    %c0_72 = arith.constant 0 : index
    %63 = vector.load %arg9[%c0_71, %c0_72] : memref<256x128xf32, #tpu.memory_space<vmem>>, vector<256x128xf32>
    %64 = vector.shape_cast %62 : vector<16x16x128xf32> to vector<256x128xf32>
    %65 = arith.truncf %64 : vector<256x128xf32> to vector<256x128xbf16>
    %c5 = arith.constant 5 : index
    %c0_73 = arith.constant 0 : index
    %c0_74 = arith.constant 0 : index
    %66 = vector.load %arg2[%c5, %c0_73, %c0_74] : memref<9x128x128xbf16, #tpu.memory_space<vmem>>, vector<1x128x128xbf16>
    %67 = vector.shape_cast %66 : vector<1x128x128xbf16> to vector<128x128xbf16>
    %cst_75 = arith.constant dense<0.000000e+00> : vector<256x128xf32>
    %68 = tpu.matmul %65, %67, %cst_75 {dimension_numbers = #tpu.dot_dimension_numbers<[1], [0], [0], [1], [0, 0, 1, 1], [], []>} : vector<256x128xbf16>, vector<128x128xbf16>, vector<256x128xf32> -> vector<256x128xf32>
    %69 = arith.addf %63, %68 : vector<256x128xf32>
    %c0_76 = arith.constant 0 : index
    %c0_77 = arith.constant 0 : index
    %70 = vector.load %arg9[%c0_76, %c0_77] : memref<256x128xf32, #tpu.memory_space<vmem>>, vector<256x128xf32>
    tpu.vector_store %arg9[%c0_76, %c0_77], %69 {strides = array<i32>} : memref<256x128xf32, #tpu.memory_space<vmem>>, vector<256x128xf32>,
    %c2_78 = arith.constant 2 : index
    %c0_79 = arith.constant 0 : index
    %c0_80 = arith.constant 0 : index
    %71 = vector.load %arg8[%c2_78, %c0_79, %c0_80] : memref<18x18x128xf32, #tpu.memory_space<vmem>>, vector<16x16x128xf32>
    %c0_81 = arith.constant 0 : index
    %c0_82 = arith.constant 0 : index
    %72 = vector.load %arg9[%c0_81, %c0_82] : memref<256x128xf32, #tpu.memory_space<vmem>>, vector<256x128xf32>
    %73 = vector.shape_cast %71 : vector<16x16x128xf32> to vector<256x128xf32>
    %74 = arith.truncf %73 : vector<256x128xf32> to vector<256x128xbf16>
    %c6 = arith.constant 6 : index
    %c0_83 = arith.constant 0 : index
    %c0_84 = arith.constant 0 : index
    %75 = vector.load %arg2[%c6, %c0_83, %c0_84] : memref<9x128x128xbf16, #tpu.memory_space<vmem>>, vector<1x128x128xbf16>
    %76 = vector.shape_cast %75 : vector<1x128x128xbf16> to vector<128x128xbf16>
    %cst_85 = arith.constant dense<0.000000e+00> : vector<256x128xf32>
    %77 = tpu.matmul %74, %76, %cst_85 {dimension_numbers = #tpu.dot_dimension_numbers<[1], [0], [0], [1], [0, 0, 1, 1], [], []>} : vector<256x128xbf16>, vector<128x128xbf16>, vector<256x128xf32> -> vector<256x128xf32>
    %78 = arith.addf %72, %77 : vector<256x128xf32>
    %c0_86 = arith.constant 0 : index
    %c0_87 = arith.constant 0 : index
    %79 = vector.load %arg9[%c0_86, %c0_87] : memref<256x128xf32, #tpu.memory_space<vmem>>, vector<256x128xf32>
    tpu.vector_store %arg9[%c0_86, %c0_87], %78 {strides = array<i32>} : memref<256x128xf32, #tpu.memory_space<vmem>>, vector<256x128xf32>,
    %c2_88 = arith.constant 2 : index
    %c1_89 = arith.constant 1 : index
    %c0_90 = arith.constant 0 : index
    %80 = vector.load %arg8[%c2_88, %c1_89, %c0_90] : memref<18x18x128xf32, #tpu.memory_space<vmem>>, vector<16x16x128xf32>
    %c0_91 = arith.constant 0 : index
    %c0_92 = arith.constant 0 : index
    %81 = vector.load %arg9[%c0_91, %c0_92] : memref<256x128xf32, #tpu.memory_space<vmem>>, vector<256x128xf32>
    %82 = vector.shape_cast %80 : vector<16x16x128xf32> to vector<256x128xf32>
    %83 = arith.truncf %82 : vector<256x128xf32> to vector<256x128xbf16>
    %c7 = arith.constant 7 : index
    %c0_93 = arith.constant 0 : index
    %c0_94 = arith.constant 0 : index
    %84 = vector.load %arg2[%c7, %c0_93, %c0_94] : memref<9x128x128xbf16, #tpu.memory_space<vmem>>, vector<1x128x128xbf16>
    %85 = vector.shape_cast %84 : vector<1x128x128xbf16> to vector<128x128xbf16>
    %cst_95 = arith.constant dense<0.000000e+00> : vector<256x128xf32>
    %86 = tpu.matmul %83, %85, %cst_95 {dimension_numbers = #tpu.dot_dimension_numbers<[1], [0], [0], [1], [0, 0, 1, 1], [], []>} : vector<256x128xbf16>, vector<128x128xbf16>, vector<256x128xf32> -> vector<256x128xf32>
    %87 = arith.addf %81, %86 : vector<256x128xf32>
    %c0_96 = arith.constant 0 : index
    %c0_97 = arith.constant 0 : index
    %88 = vector.load %arg9[%c0_96, %c0_97] : memref<256x128xf32, #tpu.memory_space<vmem>>, vector<256x128xf32>
    tpu.vector_store %arg9[%c0_96, %c0_97], %87 {strides = array<i32>} : memref<256x128xf32, #tpu.memory_space<vmem>>, vector<256x128xf32>,
    %c2_98 = arith.constant 2 : index
    %c2_99 = arith.constant 2 : index
    %c0_100 = arith.constant 0 : index
    %89 = vector.load %arg8[%c2_98, %c2_99, %c0_100] : memref<18x18x128xf32, #tpu.memory_space<vmem>>, vector<16x16x128xf32>
    %c0_101 = arith.constant 0 : index
    %c0_102 = arith.constant 0 : index
    %90 = vector.load %arg9[%c0_101, %c0_102] : memref<256x128xf32, #tpu.memory_space<vmem>>, vector<256x128xf32>
    %91 = vector.shape_cast %89 : vector<16x16x128xf32> to vector<256x128xf32>
    %92 = arith.truncf %91 : vector<256x128xf32> to vector<256x128xbf16>
    %c8 = arith.constant 8 : index
    %c0_103 = arith.constant 0 : index
    %c0_104 = arith.constant 0 : index
    %93 = vector.load %arg2[%c8, %c0_103, %c0_104] : memref<9x128x128xbf16, #tpu.memory_space<vmem>>, vector<1x128x128xbf16>
    %94 = vector.shape_cast %93 : vector<1x128x128xbf16> to vector<128x128xbf16>
    %cst_105 = arith.constant dense<0.000000e+00> : vector<256x128xf32>
    %95 = tpu.matmul %92, %94, %cst_105 {dimension_numbers = #tpu.dot_dimension_numbers<[1], [0], [0], [1], [0, 0, 1, 1], [], []>} : vector<256x128xbf16>, vector<128x128xbf16>, vector<256x128xf32> -> vector<256x128xf32>
    %96 = arith.addf %90, %95 : vector<256x128xf32>
    %c0_106 = arith.constant 0 : index
    %c0_107 = arith.constant 0 : index
    %97 = vector.load %arg9[%c0_106, %c0_107] : memref<256x128xf32, #tpu.memory_space<vmem>>, vector<256x128xf32>
    tpu.vector_store %arg9[%c0_106, %c0_107], %96 {strides = array<i32>} : memref<256x128xf32, #tpu.memory_space<vmem>>, vector<256x128xf32>,
    %c0_108 = arith.constant 0 : index
    %c0_109 = arith.constant 0 : index
    %98 = vector.load %arg9[%c0_108, %c0_109] : memref<256x128xf32, #tpu.memory_space<vmem>>, vector<256x128xf32>
    %99 = vector.shape_cast %98 : vector<256x128xf32> to vector<16x16x128xf32>
    %c0_110 = arith.constant 0 : index
    %c0_111 = arith.constant 0 : index
    %c0_112 = arith.constant 0 : index
    %c0_113 = arith.constant 0 : index
    %100 = vector.load %arg5[%c0_110, %c0_111, %c0_112, %c0_113] : memref<1x16x16x128xf32, #tpu.memory_space<vmem>>, vector<1x16x16x128xf32>
    %101 = vector.shape_cast %100 : vector<1x16x16x128xf32> to vector<16x16x128xf32>
    %102 = vector.shape_cast %99 : vector<16x16x128xf32> to vector<1x16x16x128xf32>
    tpu.vector_store %arg5[%c0_110, %c0_111, %c0_112, %c0_113], %102 {strides = array<i32>} : memref<1x16x16x128xf32, #tpu.memory_space<vmem>>, vector<1x16x16x128xf32>,
    %cst_114 = arith.constant dense<0.000000e+00> : vector<128xf32>
    %103 = vector.multi_reduction <add>, %98, %cst_114 [0] : vector<256x128xf32> to vector<128xf32>
    %104 = vector.shape_cast %103 : vector<128xf32> to vector<1x128xf32>
    %105 = arith.mulf %98, %98 : vector<256x128xf32>
    %cst_115 = arith.constant dense<0.000000e+00> : vector<128xf32>
    %106 = vector.multi_reduction <add>, %105, %cst_115 [0] : vector<256x128xf32> to vector<128xf32>
    %107 = vector.shape_cast %106 : vector<128xf32> to vector<1x128xf32>
    %108 = vector.shape_cast %104 : vector<1x128xf32> to vector<1x128xf32>
    %109 = vector.broadcast %108 : vector<1x128xf32> to vector<8x128xf32>
    %c0_116 = arith.constant 0 : index
    %c0_117 = arith.constant 0 : index
    %c0_118 = arith.constant 0 : index
    %110 = vector.load %arg6[%c0_116, %c0_117, %c0_118] : memref<1x8x128xf32, #tpu.memory_space<vmem>>, vector<1x8x128xf32>
    %111 = vector.shape_cast %110 : vector<1x8x128xf32> to vector<8x128xf32>
    %112 = vector.shape_cast %109 : vector<8x128xf32> to vector<1x8x128xf32>
    tpu.vector_store %arg6[%c0_116, %c0_117, %c0_118], %112 {strides = array<i32>} : memref<1x8x128xf32, #tpu.memory_space<vmem>>, vector<1x8x128xf32>,
    %113 = vector.shape_cast %107 : vector<1x128xf32> to vector<1x128xf32>
    %114 = vector.broadcast %113 : vector<1x128xf32> to vector<8x128xf32>
    %c0_119 = arith.constant 0 : index
    %c0_120 = arith.constant 0 : index
    %c0_121 = arith.constant 0 : index
    %115 = vector.load %arg7[%c0_119, %c0_120, %c0_121] : memref<1x8x128xf32, #tpu.memory_space<vmem>>, vector<1x8x128xf32>
    %116 = vector.shape_cast %115 : vector<1x8x128xf32> to vector<8x128xf32>
    %117 = vector.shape_cast %114 : vector<8x128xf32> to vector<1x8x128xf32>
    tpu.vector_store %arg7[%c0_119, %c0_120, %c0_121], %117 {strides = array<i32>} : memref<1x8x128xf32, #tpu.memory_space<vmem>>, vector<1x8x128xf32>,
    return
  }
  func.func @transform_0(%arg0: i32) -> (i32, i32, i32, i32) {
    %c0_i32 = arith.constant 0 : i32
    %c0_i32_0 = arith.constant 0 : i32
    %c0_i32_1 = arith.constant 0 : i32
    %c0_i32_2 = arith.constant 0 : i32
    return %arg0, %c0_i32, %c0_i32_0, %c0_i32_1 : i32, i32, i32, i32
  }
  func.func @transform_1(%arg0: i32) -> (i32, i32, i32) {
    %c0_i32 = arith.constant 0 : i32
    %c0_i32_0 = arith.constant 0 : i32
    %c0_i32_1 = arith.constant 0 : i32
    %c0_i32_2 = arith.constant 0 : i32
    return %c0_i32, %c0_i32_0, %c0_i32_1 : i32, i32, i32
  }
  func.func @transform_2(%arg0: i32) -> (i32, i32) {
    %c0_i32 = arith.constant 0 : i32
    %c0_i32_0 = arith.constant 0 : i32
    %c0_i32_1 = arith.constant 0 : i32
    return %c0_i32, %c0_i32_0 : i32, i32
  }
  func.func @transform_3(%arg0: i32) -> (i32, i32) {
    %c0_i32 = arith.constant 0 : i32
    %c0_i32_0 = arith.constant 0 : i32
    %c0_i32_1 = arith.constant 0 : i32
    return %c0_i32, %c0_i32_0 : i32, i32
  }
  func.func @transform_4(%arg0: i32) -> (i32, i32, i32, i32) {
    %c0_i32 = arith.constant 0 : i32
    %c0_i32_0 = arith.constant 0 : i32
    %c0_i32_1 = arith.constant 0 : i32
    %c0_i32_2 = arith.constant 0 : i32
    return %arg0, %c0_i32, %c0_i32_0, %c0_i32_1 : i32, i32, i32, i32
  }
  func.func @transform_5(%arg0: i32) -> (i32, i32, i32) {
    %c0_i32 = arith.constant 0 : i32
    %c0_i32_0 = arith.constant 0 : i32
    %c0_i32_1 = arith.constant 0 : i32
    return %arg0, %c0_i32, %c0_i32_0 : i32, i32, i32
  }
  func.func @transform_6(%arg0: i32) -> (i32, i32, i32) {
    %c0_i32 = arith.constant 0 : i32
    %c0_i32_0 = arith.constant 0 : i32
    %c0_i32_1 = arith.constant 0 : i32
    return %arg0, %c0_i32, %c0_i32_0 : i32, i32, i32
  }
}

module attributes {stable_mosaic.version = 11 : i64} {
  func.func @_bn_add_relu_kernel(%arg0: i32, %arg1: memref<256x128xf32, #tpu.memory_space<vmem>>, %arg2: memref<256x128xf32, #tpu.memory_space<vmem>>, %arg3: memref<1x128xf32, #tpu.memory_space<vmem>>, %arg4: memref<1x128xf32, #tpu.memory_space<vmem>>, %arg5: memref<1x128xf32, #tpu.memory_space<vmem>>, %arg6: memref<1x128xf32, #tpu.memory_space<vmem>>, %arg7: memref<256x128xf32, #tpu.memory_space<vmem>>) attributes {dimension_semantics = [#tpu.dimension_semantics<parallel>], iteration_bounds = array<i64: 2>, scalar_prefetch = 0 : i64, scratch_operands = 0 : i64, tpu.core_type = #tpu.core_type<tc>, window_params = [{transform_indices = @transform_0, window_bounds = array<i64: 256, 128>}, {transform_indices = @transform_1, window_bounds = array<i64: 256, 128>}, {pipeline_mode = #tpu.pipeline_mode<synchronous>, transform_indices = @transform_2, window_bounds = array<i64: 1, 128>}, {pipeline_mode = #tpu.pipeline_mode<synchronous>, transform_indices = @transform_3, window_bounds = array<i64: 1, 128>}, {pipeline_mode = #tpu.pipeline_mode<synchronous>, transform_indices = @transform_4, window_bounds = array<i64: 1, 128>}, {pipeline_mode = #tpu.pipeline_mode<synchronous>, transform_indices = @transform_5, window_bounds = array<i64: 1, 128>}, {transform_indices = @transform_6, window_bounds = array<i64: 256, 128>}]} {
    %c0 = arith.constant 0 : index
    %c0_0 = arith.constant 0 : index
    %0 = vector.load %arg1[%c0, %c0_0] : memref<256x128xf32, #tpu.memory_space<vmem>>, vector<256x128xf32>
    %c0_1 = arith.constant 0 : index
    %c0_2 = arith.constant 0 : index
    %1 = vector.load %arg3[%c0_1, %c0_2] : memref<1x128xf32, #tpu.memory_space<vmem>>, vector<1x128xf32>
    %2 = vector.broadcast %1 : vector<1x128xf32> to vector<256x128xf32>
    %3 = arith.mulf %0, %2 : vector<256x128xf32>
    %c0_3 = arith.constant 0 : index
    %c0_4 = arith.constant 0 : index
    %4 = vector.load %arg4[%c0_3, %c0_4] : memref<1x128xf32, #tpu.memory_space<vmem>>, vector<1x128xf32>
    %5 = vector.broadcast %4 : vector<1x128xf32> to vector<256x128xf32>
    %6 = arith.addf %3, %5 : vector<256x128xf32>
    %c0_5 = arith.constant 0 : index
    %c0_6 = arith.constant 0 : index
    %7 = vector.load %arg2[%c0_5, %c0_6] : memref<256x128xf32, #tpu.memory_space<vmem>>, vector<256x128xf32>
    %c0_7 = arith.constant 0 : index
    %c0_8 = arith.constant 0 : index
    %8 = vector.load %arg5[%c0_7, %c0_8] : memref<1x128xf32, #tpu.memory_space<vmem>>, vector<1x128xf32>
    %9 = vector.broadcast %8 : vector<1x128xf32> to vector<256x128xf32>
    %10 = arith.mulf %7, %9 : vector<256x128xf32>
    %c0_9 = arith.constant 0 : index
    %c0_10 = arith.constant 0 : index
    %11 = vector.load %arg6[%c0_9, %c0_10] : memref<1x128xf32, #tpu.memory_space<vmem>>, vector<1x128xf32>
    %12 = vector.broadcast %11 : vector<1x128xf32> to vector<256x128xf32>
    %13 = arith.addf %10, %12 : vector<256x128xf32>
    %14 = arith.addf %6, %13 : vector<256x128xf32>
    %cst = arith.constant 0.000000e+00 : f32
    %15 = vector.broadcast %cst : f32 to vector<256x128xf32>
    %16 = arith.maximumf %14, %15 : vector<256x128xf32>
    %c0_11 = arith.constant 0 : index
    %c0_12 = arith.constant 0 : index
    %17 = vector.load %arg7[%c0_11, %c0_12] : memref<256x128xf32, #tpu.memory_space<vmem>>, vector<256x128xf32>
    tpu.vector_store %arg7[%c0_11, %c0_12], %16 {strides = array<i32>} : memref<256x128xf32, #tpu.memory_space<vmem>>, vector<256x128xf32>,
    return
  }
  func.func @transform_0(%arg0: i32) -> (i32, i32) {
    %c0_i32 = arith.constant 0 : i32
    %c0_i32_0 = arith.constant 0 : i32
    return %arg0, %c0_i32 : i32, i32
  }
  func.func @transform_1(%arg0: i32) -> (i32, i32) {
    %c0_i32 = arith.constant 0 : i32
    %c0_i32_0 = arith.constant 0 : i32
    return %arg0, %c0_i32 : i32, i32
  }
  func.func @transform_2(%arg0: i32) -> (i32, i32) {
    %c0_i32 = arith.constant 0 : i32
    %c0_i32_0 = arith.constant 0 : i32
    %c0_i32_1 = arith.constant 0 : i32
    return %c0_i32, %c0_i32_0 : i32, i32
  }
  func.func @transform_3(%arg0: i32) -> (i32, i32) {
    %c0_i32 = arith.constant 0 : i32
    %c0_i32_0 = arith.constant 0 : i32
    %c0_i32_1 = arith.constant 0 : i32
    return %c0_i32, %c0_i32_0 : i32, i32
  }
  func.func @transform_4(%arg0: i32) -> (i32, i32) {
    %c0_i32 = arith.constant 0 : i32
    %c0_i32_0 = arith.constant 0 : i32
    %c0_i32_1 = arith.constant 0 : i32
    return %c0_i32, %c0_i32_0 : i32, i32
  }
  func.func @transform_5(%arg0: i32) -> (i32, i32) {
    %c0_i32 = arith.constant 0 : i32
    %c0_i32_0 = arith.constant 0 : i32
    %c0_i32_1 = arith.constant 0 : i32
    return %c0_i32, %c0_i32_0 : i32, i32
  }
  func.func @transform_6(%arg0: i32) -> (i32, i32) {
    %c0_i32 = arith.constant 0 : i32
    %c0_i32_0 = arith.constant 0 : i32
    return %arg0, %c0_i32 : i32, i32
  }
}

</mosaic_0001>

<llo_original>
// kernel: bottleneck_forward.8
$region0: #{bottleneck_forward.8}
  #allocation0 [shape = 'u32[]', space=smem, size = 0x4, offset = 0x4, fixed_abs, tag = 'smem constant byte address 0x4 - core index']
  #allocation1 [shape = 'u32[72,128]{1,0:T(1,128)}', space=vmem, size = 0x9000, scoped, tag = 'internal scratch']
  %s0 = inlined_call_operand.vmem [shape: f32[512,128], index: 0, kind: input, shape index: {}]
  %s1 = inlined_call_operand.vmem [shape: bf16[128,128], index: 1, kind: input, shape index: {}]
  %s2 = inlined_call_operand.vmem [shape: f32[1,128], index: 2, kind: input, shape index: {}]
  %s3 = inlined_call_operand.vmem [shape: f32[1,128], index: 3, kind: input, shape index: {}]
  %s4 = inlined_call_operand.vmem [shape: f32[512,128], index: 4, kind: output, shape index: {0}]
  %s5 = inlined_call_operand.vmem [shape: f32[2,8,128], index: 5, kind: output, shape index: {1}]
  %s6 = inlined_call_operand.vmem [shape: f32[2,8,128], index: 6, kind: output, shape index: {2}]
  %7 = xla_tuple %s4, %s5, %s6
  %s8 = sld [smem:[#allocation0]]
  $region65: #{bottleneck_forward.8} parent=0
    _
  %s10 = ssub.s32 1, %s8
  %s11 = scalar_select 0, %s10, %s8
  loop: start=0, step=1, limit=4
  $region2: #{bottleneck_forward.8} parent=0 // loop_pre_header
    _
  $region3: #{bottleneck_forward.8} parent=0 // loop_header
    %s13 = sphi 0, %s17
    %p14 = scmp.ge.s32.totalorder %s13, 4
    %s23 = sphi 0, %s25
    %s26 = sphi 0, %s23
    %s27 = sphi 0, %s26
    %s43 = sphi 0, %s27
    %s47 = sphi 0, %s47
    %s49 = sphi 0, %s47
    %s50 = sphi 0, %s49
    %s64 = sphi 0, %s50
    %s68 = sphi 0, %s68
    %s70 = sphi 0, %s68
    %s71 = sphi 0, %s70
    %s85 = sphi 0, %s71
    %s89 = sphi 0, %s89
    %s91 = sphi 0, %s89
    %s92 = sphi 0, %s91
    %s106 = sphi 0, %s92
    %s112 = sphi 0, %s114
    %s115 = sphi 0, %s112
    %s116 = sphi 0, %s115
    %s132 = sphi 0, %s116
    %s138 = sphi 0, %s140
    %s141 = sphi 0, %s138
    %s142 = sphi 0, %s141
    %s158 = sphi 0, %s142
    %s164 = sphi 0, %s166
    %s167 = sphi 0, %s164
    %s168 = sphi 0, %s167
    %s184 = sphi 0, %s168
  $region4: #{bottleneck_forward.8} parent=0 // loop_header_branch
    %16 = sbr.rel (%p14) target = $region8
  $region5: #{bottleneck_forward.8} parent=0 // loop_body
    %s18 = ssub.s32 %s13, 1
    %s19 = ssub.s32 %s13, 2
    %s20 = sadd.s32 %s13, 1
    %s21 = ssub.s32 %s13, %s20
    %p22 = scmp.eq.s32.totalorder %s21, 0
    %s24 = sadd.s32 %s23, 1
    %s25 = scalar_select %p22, %s23, %s24
    %p28 = pneg %p22
    %p29 = scmp.eq.s32.totalorder %s13, 1
    %p30 = por %p28, %p29
    %p31 = scmp.ne.s32.totalorder %s23, %s26
    %p32 = scmp.eq.s32.totalorder %s13, 0
    %p33 = por %p31, %p32
    %p34 = scmp.ne.s32.totalorder %s23, %s26
    %p35 = scmp.eq.s32.totalorder %s18, 1
    %p36 = por %p34, %p35
    %p37 = scmp.ne.s32.totalorder %s26, %s27
    %p38 = scmp.eq.s32.totalorder %s18, 0
    %p39 = por %p37, %p38
    %p40 = scmp.ne.s32.totalorder %s26, %s27
    %p41 = scmp.eq.s32.totalorder %s19, 1
    %p42 = por %p40, %p41
    %p44 = scmp.ne.s32.totalorder %s27, %s43
    %p45 = scmp.eq.s32.totalorder %s19, 0
    %p46 = por %p44, %p45
    %s48 = sadd.s32 %s47, 1
    %p51 = scmp.eq.s32.totalorder %s13, 1
    %p52 = scmp.ne.s32.totalorder %s47, %s49
    %p53 = scmp.eq.s32.totalorder %s13, 0
    %p54 = por %p52, %p53
    %p55 = scmp.ne.s32.totalorder %s47, %s49
    %p56 = scmp.eq.s32.totalorder %s18, 1
    %p57 = por %p55, %p56
    %p58 = scmp.ne.s32.totalorder %s49, %s50
    %p59 = scmp.eq.s32.totalorder %s18, 0
    %p60 = por %p58, %p59
    %p61 = scmp.ne.s32.totalorder %s49, %s50
    %p62 = scmp.eq.s32.totalorder %s19, 1
    %p63 = por %p61, %p62
    %p65 = scmp.ne.s32.totalorder %s50, %s64
    %p66 = scmp.eq.s32.totalorder %s19, 0
    %p67 = por %p65, %p66
    %s69 = sadd.s32 %s68, 1
    %p72 = scmp.eq.s32.totalorder %s13, 1
    %p73 = scmp.ne.s32.totalorder %s68, %s70
    %p74 = scmp.eq.s32.totalorder %s13, 0
    %p75 = por %p73, %p74
    %p76 = scmp.ne.s32.totalorder %s68, %s70
    %p77 = scmp.eq.s32.totalorder %s18, 1
    %p78 = por %p76, %p77
    %p79 = scmp.ne.s32.totalorder %s70, %s71
    %p80 = scmp.eq.s32.totalorder %s18, 0
    %p81 = por %p79, %p80
    %p82 = scmp.ne.s32.totalorder %s70, %s71
    %p83 = scmp.eq.s32.totalorder %s19, 1
    %p84 = por %p82, %p83
    %p86 = scmp.ne.s32.totalorder %s71, %s85
    %p87 = scmp.eq.s32.totalorder %s19, 0
    %p88 = por %p86, %p87
    %s90 = sadd.s32 %s89, 1
    %p93 = scmp.eq.s32.totalorder %s13, 1
    %p94 = scmp.ne.s32.totalorder %s89, %s91
    %p95 = scmp.eq.s32.totalorder %s13, 0
    %p96 = por %p94, %p95
    %p97 = scmp.ne.s32.totalorder %s89, %s91
    %p98 = scmp.eq.s32.totalorder %s18, 1
    %p99 = por %p97, %p98
    %p100 = scmp.ne.s32.totalorder %s91, %s92
    %p101 = scmp.eq.s32.totalorder %s18, 0
    %p102 = por %p100, %p101
    %p103 = scmp.ne.s32.totalorder %s91, %s92
    %p104 = scmp.eq.s32.totalorder %s19, 1
    %p105 = por %p103, %p104
    %p107 = scmp.ne.s32.totalorder %s92, %s106
    %p108 = scmp.eq.s32.totalorder %s19, 0
    %p109 = por %p107, %p108
    %s110 = ssub.s32 %s13, %s20
    %p111 = scmp.eq.s32.totalorder %s110, 0
    %s113 = sadd.s32 %s112, 1
    %s114 = scalar_select %p111, %s112, %s113
    %p117 = pneg %p111
    %p118 = scmp.eq.s32.totalorder %s13, 1
    %p119 = por %p117, %p118
    %p120 = scmp.ne.s32.totalorder %s112, %s115
    %p121 = scmp.eq.s32.totalorder %s13, 0
    %p122 = por %p120, %p121
    %p123 = scmp.ne.s32.totalorder %s112, %s115
    %p124 = scmp.eq.s32.totalorder %s18, 1
    %p125 = por %p123, %p124
    %p126 = scmp.ne.s32.totalorder %s115, %s116
    %p127 = scmp.eq.s32.totalorder %s18, 0
    %p128 = por %p126, %p127
    %p129 = scmp.ne.s32.totalorder %s115, %s116
    %p130 = scmp.eq.s32.totalorder %s19, 1
    %p131 = por %p129, %p130
    %p133 = scmp.ne.s32.totalorder %s116, %s132
    %p134 = scmp.eq.s32.totalorder %s19, 0
    %p135 = por %p133, %p134
    %s136 = ssub.s32 %s13, %s20
    %p137 = scmp.eq.s32.totalorder %s136, 0
    %s139 = sadd.s32 %s138, 1
    %s140 = scalar_select %p137, %s138, %s139
    %p143 = pneg %p137
    %p144 = scmp.eq.s32.totalorder %s13, 1
    %p145 = por %p143, %p144
    %p146 = scmp.ne.s32.totalorder %s138, %s141
    %p147 = scmp.eq.s32.totalorder %s13, 0
    %p148 = por %p146, %p147
    %p149 = scmp.ne.s32.totalorder %s138, %s141
    %p150 = scmp.eq.s32.totalorder %s18, 1
    %p151 = por %p149, %p150
    %p152 = scmp.ne.s32.totalorder %s141, %s142
    %p153 = scmp.eq.s32.totalorder %s18, 0
    %p154 = por %p152, %p153
    %p155 = scmp.ne.s32.totalorder %s141, %s142
    %p156 = scmp.eq.s32.totalorder %s19, 1
    %p157 = por %p155, %p156
    %p159 = scmp.ne.s32.totalorder %s142, %s158
    %p160 = scmp.eq.s32.totalorder %s19, 0
    %p161 = por %p159, %p160
    %s162 = ssub.s32 %s13, %s20
    %p163 = scmp.eq.s32.totalorder %s162, 0
    %s165 = sadd.s32 %s164, 1
    %s166 = scalar_select %p163, %s164, %s165
    %p169 = pneg %p163
    %p170 = scmp.eq.s32.totalorder %s13, 1
    %p171 = por %p169, %p170
    %p172 = scmp.ne.s32.totalorder %s164, %s167
    %p173 = scmp.eq.s32.totalorder %s13, 0
    %p174 = por %p172, %p173
    %p175 = scmp.ne.s32.totalorder %s164, %s167
    %p176 = scmp.eq.s32.totalorder %s18, 1
    %p177 = por %p175, %p176
    %p178 = scmp.ne.s32.totalorder %s167, %s168
    %p179 = scmp.eq.s32.totalorder %s18, 0
    %p180 = por %p178, %p179
    %p181 = scmp.ne.s32.totalorder %s167, %s168
    %p182 = scmp.eq.s32.totalorder %s19, 1
    %p183 = por %p181, %p182
    %p185 = scmp.ne.s32.totalorder %s168, %s184
    %p186 = scmp.eq.s32.totalorder %s19, 0
    %p187 = por %p185, %p186
    %p188 = scmp.le.s32.totalorder 1, %s13
    %p189 = scmp.lt.s32.totalorder %s13, 3
    %p190 = pnand %p188, %p189
    %p191 = pneg %p190
    // Predicated region
    $region9: #{bottleneck_forward.8} parent=5 // pred_check
      _
    $region10: #{bottleneck_forward.8} parent=5 // pred_check_branch
      %193 = sbr.rel (%p190) target = $region12
    $region11: #{bottleneck_forward.8} parent=5 // pred_region
      %s194 = ssub.s32 %s13, 1
      // Predicated region
      $region13: #{bottleneck_forward.8} parent=11 // pred_check
        %p195 = pneg %p60
      $region14: #{bottleneck_forward.8} parent=11 // pred_check_branch
        %197 = sbr.rel (%p195) target = $region16
      $region15: #{bottleneck_forward.8} parent=11 // pred_region
        _
      $region16: #{bottleneck_forward.8} parent=11 // pred_fallthru
        _
      // Predicated region
      $region17: #{bottleneck_forward.8} parent=11 // pred_check
        %p198 = pneg %p81
      $region18: #{bottleneck_forward.8} parent=11 // pred_check_branch
        %200 = sbr.rel (%p198) target = $region20
      $region19: #{bottleneck_forward.8} parent=11 // pred_region
        _
      $region20: #{bottleneck_forward.8} parent=11 // pred_fallthru
        _
      // Predicated region
      $region21: #{bottleneck_forward.8} parent=11 // pred_check
        %p201 = pneg %p102
      $region22: #{bottleneck_forward.8} parent=11 // pred_check_branch
        %203 = sbr.rel (%p201) target = $region24
      $region23: #{bottleneck_forward.8} parent=11 // pred_region
        _
      $region24: #{bottleneck_forward.8} parent=11 // pred_fallthru
        _
    $region12: #{bottleneck_forward.8} parent=5 // pred_fallthru
      _
    %p204 = scmp.lt.s32.totalorder %s13, 2
    // Predicated region
    $region25: #{bottleneck_forward.8} parent=5 // pred_check
      %p205 = pneg %p204
    $region26: #{bottleneck_forward.8} parent=5 // pred_check_branch
      %207 = sbr.rel (%p205) target = $region28
    $region27: #{bottleneck_forward.8} parent=5 // pred_region
      // Predicated region
      $region29: #{bottleneck_forward.8} parent=27 // pred_check
        %p208 = pneg %p33
      $region30: #{bottleneck_forward.8} parent=27 // pred_check_branch
        %210 = sbr.rel (%p208) target = $region32
      $region31: #{bottleneck_forward.8} parent=27 // pred_region
        %s211 = smul.u32 32, %s13
        %p212 = scmp.lt.s32.totalorder %s211, 63
        %s213 = scalar_select %p212, %s211, 63
        %s214 = smul.addr %s213, 8
        %s215 = scalar_lea.vmem %s0, %s214
        %s216 = smul.u32 32, %s13
      $region32: #{bottleneck_forward.8} parent=27 // pred_fallthru
        _
    $region28: #{bottleneck_forward.8} parent=5 // pred_fallthru
      _
    %p217 = scmp.le.s32.totalorder 1, %s13
    %p218 = scmp.lt.s32.totalorder %s13, 3
    %p219 = pnand %p217, %p218
    %p220 = pneg %p219
    // Predicated region
    $region33: #{bottleneck_forward.8} parent=5 // pred_check
      _
    $region34: #{bottleneck_forward.8} parent=5 // pred_check_branch
      %222 = sbr.rel (%p219) target = $region36
    $region35: #{bottleneck_forward.8} parent=5 // pred_region
      %s223 = ssub.s32 %s13, 1
      %s224 = smul.u32 32, %s18
      %p225 = scmp.lt.s32.totalorder %s224, 63
      %s226 = scalar_select %p225, %s224, 63
      %s227 = smul.addr %s226, 8
      %s228 = scalar_lea.vmem %s0, %s227
      %p229 = pneg %p39
      %p230 = pneg %p36
      %p231 = pneg %p60
      %p232 = pneg %p57
      %p233 = pneg %p81
      %p234 = pneg %p78
      %p235 = pneg %p102
      %p236 = pneg %p99
      %p237 = pneg %p128
      %p238 = pneg %p125
      %s239 = smul.u32 32, %s18
      %p240 = scmp.lt.s32.totalorder %s239, 63
      %s241 = scalar_select %p240, %s239, 63
      %s242 = smul.addr %s241, 8
      %s243 = scalar_lea.vmem %s4, %s242
      %p244 = pneg %p154
      %p245 = pneg %p151
      %p246 = scmp.lt.s32.totalorder %s18, 1
      %s247 = scalar_select %p246, %s18, 1
      %s248 = smul.addr %s247, 8
      %s249 = scalar_lea.vmem %s5, %s248
      %p250 = pneg %p180
      %p251 = pneg %p177
      %p252 = scmp.lt.s32.totalorder %s18, 1
      %s253 = scalar_select %p252, %s18, 1
      %s254 = smul.addr %s253, 8
      %s255 = scalar_lea.vmem %s6, %s254
      %s256 = smul.u32 32, %s18
      %p257 = scmp.lt.s32.totalorder %s256, 63
      %s258 = scalar_select %p257, %s256, 63
      %s259 = smul.addr %s258, 8
      %s260 = scalar_lea.vmem %s0, %s259
      %s261 = smul.u32 32, %s18
      %s262 = smul.u32 32, %s18
      %p263 = scmp.lt.s32.totalorder %s262, 63
      %s264 = scalar_select %p263, %s262, 63
      %s265 = smul.addr %s264, 8
      %s266 = scalar_lea.vmem %s4, %s265
      %s267 = smul.u32 32, %s18
      %p268 = scmp.lt.s32.totalorder %s18, 1
      %s269 = scalar_select %p268, %s18, 1
      %s270 = smul.addr %s269, 8
      %s271 = scalar_lea.vmem %s5, %s270
      %p272 = scmp.lt.s32.totalorder %s18, 1
      %s273 = scalar_select %p272, %s18, 1
      %s274 = smul.addr %s273, 8
      %s275 = scalar_lea.vmem %s6, %s274
      %v276 = vld [vmem:[%s260] sm:$0xff]
      %v277 = vld [vmem:[%s260 + $0x8] sm:$0xff]
      %v278 = vld [vmem:[%s260 + $0x10] sm:$0xff]
      %v279 = vld [vmem:[%s260 + $0x18] sm:$0xff]
      %v280 = vld [vmem:[%s260 + $0x20] sm:$0xff]
      %v281 = vld [vmem:[%s260 + $0x28] sm:$0xff]
      %v282 = vld [vmem:[%s260 + $0x30] sm:$0xff]
      %v283 = vld [vmem:[%s260 + $0x38] sm:$0xff]
      %v284 = vld [vmem:[%s260 + $0x40] sm:$0xff]
      %v285 = vld [vmem:[%s260 + $0x48] sm:$0xff]
      %v286 = vld [vmem:[%s260 + $0x50] sm:$0xff]
      %v287 = vld [vmem:[%s260 + $0x58] sm:$0xff]
      %v288 = vld [vmem:[%s260 + $0x60] sm:$0xff]
      %v289 = vld [vmem:[%s260 + $0x68] sm:$0xff]
      %v290 = vld [vmem:[%s260 + $0x70] sm:$0xff]
      %v291 = vld [vmem:[%s260 + $0x78] sm:$0xff]
      %v292 = vld [vmem:[%s260 + $0x80] sm:$0xff]
      %v293 = vld [vmem:[%s260 + $0x88] sm:$0xff]
      %v294 = vld [vmem:[%s260 + $0x90] sm:$0xff]
      %v295 = vld [vmem:[%s260 + $0x98] sm:$0xff]
      %v296 = vld [vmem:[%s260 + $0xa0] sm:$0xff]
      %v297 = vld [vmem:[%s260 + $0xa8] sm:$0xff]
      %v298 = vld [vmem:[%s260 + $0xb0] sm:$0xff]
      %v299 = vld [vmem:[%s260 + $0xb8] sm:$0xff]
      %v300 = vld [vmem:[%s260 + $0xc0] sm:$0xff]
      %v301 = vld [vmem:[%s260 + $0xc8] sm:$0xff]
      %v302 = vld [vmem:[%s260 + $0xd0] sm:$0xff]
      %v303 = vld [vmem:[%s260 + $0xd8] sm:$0xff]
      %v304 = vld [vmem:[%s260 + $0xe0] sm:$0xff]
      %v305 = vld [vmem:[%s260 + $0xe8] sm:$0xff]
      %v306 = vld [vmem:[%s260 + $0xf0] sm:$0xff]
      %v307 = vld [vmem:[%s260 + $0xf8] sm:$0xff]
      %v308 = vpack.c.bf16 %v277, %v276
      %v309 = vpack.c.bf16 %v279, %v278
      %v310 = vpack.c.bf16 %v281, %v280
      %v311 = vpack.c.bf16 %v283, %v282
      %v312 = vpack.c.bf16 %v285, %v284
      %v313 = vpack.c.bf16 %v287, %v286
      %v314 = vpack.c.bf16 %v289, %v288
      %v315 = vpack.c.bf16 %v291, %v290
      %v316 = vpack.c.bf16 %v293, %v292
      %v317 = vpack.c.bf16 %v295, %v294
      %v318 = vpack.c.bf16 %v297, %v296
      %v319 = vpack.c.bf16 %v299, %v298
      %v320 = vpack.c.bf16 %v301, %v300
      %v321 = vpack.c.bf16 %v303, %v302
      %v322 = vpack.c.bf16 %v305, %v304
      %v323 = vpack.c.bf16 %v307, %v306
      %v324 = vld [vmem:[%s1] sm:$0xf]
      %v325 = vld [vmem:[%s1 + $0x4] sm:$0xf]
      %v326 = vld [vmem:[%s1 + $0x8] sm:$0xf]
      %v327 = vld [vmem:[%s1 + $0xc] sm:$0xf]
      %v328 = vld [vmem:[%s1 + $0x10] sm:$0xf]
      %v329 = vld [vmem:[%s1 + $0x14] sm:$0xf]
      %v330 = vld [vmem:[%s1 + $0x18] sm:$0xf]
      %v331 = vld [vmem:[%s1 + $0x1c] sm:$0xf]
      %v332 = vld [vmem:[%s1 + $0x20] sm:$0xf]
      %v333 = vld [vmem:[%s1 + $0x24] sm:$0xf]
      %v334 = vld [vmem:[%s1 + $0x28] sm:$0xf]
      %v335 = vld [vmem:[%s1 + $0x2c] sm:$0xf]
      %v336 = vld [vmem:[%s1 + $0x30] sm:$0xf]
      %v337 = vld [vmem:[%s1 + $0x34] sm:$0xf]
      %v338 = vld [vmem:[%s1 + $0x38] sm:$0xf]
      %v339 = vld [vmem:[%s1 + $0x3c] sm:$0xf]
      %v356 = vunpack.c.l.b16 %v324
      %v357 = vunpack.c.l.b16 %v325
      %v358 = vunpack.c.l.b16 %v326
      %v359 = vunpack.c.l.b16 %v327
      %v360 = vunpack.c.l.b16 %v328
      %v361 = vunpack.c.l.b16 %v329
      %v362 = vunpack.c.l.b16 %v330
      %v363 = vunpack.c.l.b16 %v331
      %v364 = vunpack.c.l.b16 %v332
      %v365 = vunpack.c.l.b16 %v333
      %v366 = vunpack.c.l.b16 %v334
      %v367 = vunpack.c.l.b16 %v335
      %v368 = vunpack.c.l.b16 %v336
      %v369 = vunpack.c.l.b16 %v337
      %v370 = vunpack.c.l.b16 %v338
      %v371 = vunpack.c.l.b16 %v339
      %v372 = vpack.c.b16 %v357, %v356
      %v373 = vpack.c.b16 %v359, %v358
      %v374 = vpack.c.b16 %v361, %v360
      %v375 = vpack.c.b16 %v363, %v362
      %v376 = vpack.c.b16 %v365, %v364
      %v377 = vpack.c.b16 %v367, %v366
      %v378 = vpack.c.b16 %v369, %v368
      %v379 = vpack.c.b16 %v371, %v370
      %388 = vmatpush.bf16.msra.mxu0 %v379
      %389 = vmatpush.bf16.msra.mxu0 %v378
      %390 = vmatpush.bf16.msra.mxu0 %v377
      %391 = vmatpush.bf16.msra.mxu0 %v376
      %392 = vmatpush.bf16.msra.mxu0 %v375
      %393 = vmatpush.bf16.msra.mxu0 %v374
      %394 = vmatpush.bf16.msra.mxu0 %v373
      %395 = vmatpush.bf16.msra.mxu0 %v372
      %396 = vmatmul.bf16.gmra.mxu0 %v308
      %v397 = vpop.f32.mrf.mxu0
      %v398 = vadd.f32 0.0, %v397
      %v399 = vpop.f32.mrf.mxu0
      %v400 = vadd.f32 0.0, %v399
      %401 = vmatmul.bf16.gmra.mxu0 %v309
      %v402 = vpop.f32.mrf.mxu0
      %v403 = vadd.f32 0.0, %v402
      %v404 = vpop.f32.mrf.mxu0
      %v405 = vadd.f32 0.0, %v404
      %406 = vmatmul.bf16.gmra.mxu0 %v310
      %v407 = vpop.f32.mrf.mxu0
      %v408 = vadd.f32 0.0, %v407
      %v409 = vpop.f32.mrf.mxu0
      %v410 = vadd.f32 0.0, %v409
      %411 = vmatmul.bf16.gmra.mxu0 %v311
      %v412 = vpop.f32.mrf.mxu0
      %v413 = vadd.f32 0.0, %v412
      %v414 = vpop.f32.mrf.mxu0
      %v415 = vadd.f32 0.0, %v414
      %416 = vmatmul.bf16.gmra.mxu0 %v312
      %v417 = vpop.f32.mrf.mxu0
      %v418 = vadd.f32 0.0, %v417
      %v419 = vpop.f32.mrf.mxu0
      %v420 = vadd.f32 0.0, %v419
      %421 = vmatmul.bf16.gmra.mxu0 %v313
      %v422 = vpop.f32.mrf.mxu0
      %v423 = vadd.f32 0.0, %v422
      %v424 = vpop.f32.mrf.mxu0
      %v425 = vadd.f32 0.0, %v424
      %426 = vmatmul.bf16.gmra.mxu0 %v314
      %v427 = vpop.f32.mrf.mxu0
      %v428 = vadd.f32 0.0, %v427
      %v429 = vpop.f32.mrf.mxu0
      %v430 = vadd.f32 0.0, %v429
      %431 = vmatmul.bf16.gmra.mxu0 %v315
      %v432 = vpop.f32.mrf.mxu0
      %v433 = vadd.f32 0.0, %v432
      %v434 = vpop.f32.mrf.mxu0
      %v435 = vadd.f32 0.0, %v434
      %436 = vmatmul.bf16.gmra.mxu0 %v316
      %v437 = vpop.f32.mrf.mxu0
      %v438 = vadd.f32 0.0, %v437
      %v439 = vpop.f32.mrf.mxu0
      %v440 = vadd.f32 0.0, %v439
      %441 = vmatmul.bf16.gmra.mxu0 %v317
      %v442 = vpop.f32.mrf.mxu0
      %v443 = vadd.f32 0.0, %v442
      %v444 = vpop.f32.mrf.mxu0
      %v445 = vadd.f32 0.0, %v444
      %446 = vmatmul.bf16.gmra.mxu0 %v318
      %v447 = vpop.f32.mrf.mxu0
      %v448 = vadd.f32 0.0, %v447
      %v449 = vpop.f32.mrf.mxu0
      %v450 = vadd.f32 0.0, %v449
      %451 = vmatmul.bf16.gmra.mxu0 %v319
      %v452 = vpop.f32.mrf.mxu0
      %v453 = vadd.f32 0.0, %v452
      %v454 = vpop.f32.mrf.mxu0
      %v455 = vadd.f32 0.0, %v454
      %456 = vmatmul.bf16.gmra.mxu0 %v320
      %v457 = vpop.f32.mrf.mxu0
      %v458 = vadd.f32 0.0, %v457
      %v459 = vpop.f32.mrf.mxu0
      %v460 = vadd.f32 0.0, %v459
      %461 = vmatmul.bf16.gmra.mxu0 %v321
      %v462 = vpop.f32.mrf.mxu0
      %v463 = vadd.f32 0.0, %v462
      %v464 = vpop.f32.mrf.mxu0
      %v465 = vadd.f32 0.0, %v464
      %466 = vmatmul.bf16.gmra.mxu0 %v322
      %v467 = vpop.f32.mrf.mxu0
      %v468 = vadd.f32 0.0, %v467
      %v469 = vpop.f32.mrf.mxu0
      %v470 = vadd.f32 0.0, %v469
      %471 = vmatmul.bf16.gmra.mxu0 %v323
      %v472 = vpop.f32.mrf.mxu0
      %v473 = vadd.f32 0.0, %v472
      %v474 = vpop.f32.mrf.mxu0
      %v475 = vadd.f32 0.0, %v474
      %476 = vdwg.mxu0
      %477 = vst [vmem:[%s266] sm:$0xff] %v398
      %478 = vst [vmem:[%s266 + $0x8] sm:$0xff] %v400
      %479 = vst [vmem:[%s266 + $0x10] sm:$0xff] %v403
      %480 = vst [vmem:[%s266 + $0x18] sm:$0xff] %v405
      %481 = vst [vmem:[%s266 + $0x20] sm:$0xff] %v408
      %482 = vst [vmem:[%s266 + $0x28] sm:$0xff] %v410
      %483 = vst [vmem:[%s266 + $0x30] sm:$0xff] %v413
      %484 = vst [vmem:[%s266 + $0x38] sm:$0xff] %v415
      %485 = vst [vmem:[%s266 + $0x40] sm:$0xff] %v418
      %486 = vst [vmem:[%s266 + $0x48] sm:$0xff] %v420
      %487 = vst [vmem:[%s266 + $0x50] sm:$0xff] %v423
      %488 = vst [vmem:[%s266 + $0x58] sm:$0xff] %v425
      %489 = vst [vmem:[%s266 + $0x60] sm:$0xff] %v428
      %490 = vst [vmem:[%s266 + $0x68] sm:$0xff] %v430
      %491 = vst [vmem:[%s266 + $0x70] sm:$0xff] %v433
      %492 = vst [vmem:[%s266 + $0x78] sm:$0xff] %v435
      %493 = vst [vmem:[%s266 + $0x80] sm:$0xff] %v438
      %494 = vst [vmem:[%s266 + $0x88] sm:$0xff] %v440
      %495 = vst [vmem:[%s266 + $0x90] sm:$0xff] %v443
      %496 = vst [vmem:[%s266 + $0x98] sm:$0xff] %v445
      %497 = vst [vmem:[%s266 + $0xa0] sm:$0xff] %v448
      %498 = vst [vmem:[%s266 + $0xa8] sm:$0xff] %v450
      %499 = vst [vmem:[%s266 + $0xb0] sm:$0xff] %v453
      %500 = vst [vmem:[%s266 + $0xb8] sm:$0xff] %v455
      %501 = vst [vmem:[%s266 + $0xc0] sm:$0xff] %v458
      %502 = vst [vmem:[%s266 + $0xc8] sm:$0xff] %v460
      %503 = vst [vmem:[%s266 + $0xd0] sm:$0xff] %v463
      %504 = vst [vmem:[%s266 + $0xd8] sm:$0xff] %v465
      %505 = vst [vmem:[%s266 + $0xe0] sm:$0xff] %v468
      %506 = vst [vmem:[%s266 + $0xe8] sm:$0xff] %v470
      %507 = vst [vmem:[%s266 + $0xf0] sm:$0xff] %v473
      %508 = vst [vmem:[%s266 + $0xf8] sm:$0xff] %v475
      %v509 = vadd.f32 %v398, %v400
      %v510 = vadd.f32 %v509, %v403
      %v511 = vadd.f32 %v510, %v405
      %v512 = vadd.f32 %v511, %v408
      %v513 = vadd.f32 %v512, %v410
      %v514 = vadd.f32 %v513, %v413
      %v515 = vadd.f32 %v514, %v415
      %v516 = vadd.f32 %v515, %v418
      %v517 = vadd.f32 %v516, %v420
      %v518 = vadd.f32 %v517, %v423
      %v519 = vadd.f32 %v518, %v425
      %v520 = vadd.f32 %v519, %v428
      %v521 = vadd.f32 %v520, %v430
      %v522 = vadd.f32 %v521, %v433
      %v523 = vadd.f32 %v522, %v435
      %v524 = vadd.f32 %v523, %v438
      %v525 = vadd.f32 %v524, %v440
      %v526 = vadd.f32 %v525, %v443
      %v527 = vadd.f32 %v526, %v445
      %v528 = vadd.f32 %v527, %v448
      %v529 = vadd.f32 %v528, %v450
      %v530 = vadd.f32 %v529, %v453
      %v531 = vadd.f32 %v530, %v455
      %v532 = vadd.f32 %v531, %v458
      %v533 = vadd.f32 %v532, %v460
      %v534 = vadd.f32 %v533, %v463
      %v535 = vadd.f32 %v534, %v465
      %v536 = vadd.f32 %v535, %v468
      %v537 = vadd.f32 %v536, %v470
      %v538 = vadd.f32 %v537, %v473
      %v539 = vadd.f32 %v538, %v475
      %v540 = vrot.slane %v539, 4
      %v541 = vadd.f32 %v539, %v540
      %v542 = vrot.slane %v541, 2
      %v543 = vadd.f32 %v541, %v542
      %v544 = vrot.slane %v543, 1
      %v545 = vadd.f32 %v543, %v544
      %v546 = vmul.f32 %v398, %v398
      %v547 = vmul.f32 %v400, %v400
      %v548 = vmul.f32 %v403, %v403
      %v549 = vmul.f32 %v405, %v405
      %v550 = vmul.f32 %v408, %v408
      %v551 = vmul.f32 %v410, %v410
      %v552 = vmul.f32 %v413, %v413
      %v553 = vmul.f32 %v415, %v415
      %v554 = vmul.f32 %v418, %v418
      %v555 = vmul.f32 %v420, %v420
      %v556 = vmul.f32 %v423, %v423
      %v557 = vmul.f32 %v425, %v425
      %v558 = vmul.f32 %v428, %v428
      %v559 = vmul.f32 %v430, %v430
      %v560 = vmul.f32 %v433, %v433
      %v561 = vmul.f32 %v435, %v435
      %v562 = vmul.f32 %v438, %v438
      %v563 = vmul.f32 %v440, %v440
      %v564 = vmul.f32 %v443, %v443
      %v565 = vmul.f32 %v445, %v445
      %v566 = vmul.f32 %v448, %v448
      %v567 = vmul.f32 %v450, %v450
      %v568 = vmul.f32 %v453, %v453
      %v569 = vmul.f32 %v455, %v455
      %v570 = vmul.f32 %v458, %v458
      %v571 = vmul.f32 %v460, %v460
      %v572 = vmul.f32 %v463, %v463
      %v573 = vmul.f32 %v465, %v465
      %v574 = vmul.f32 %v468, %v468
      %v575 = vmul.f32 %v470, %v470
      %v576 = vmul.f32 %v473, %v473
      %v577 = vmul.f32 %v475, %v475
      %v578 = vadd.f32 %v546, %v547
      %v579 = vadd.f32 %v578, %v548
      %v580 = vadd.f32 %v579, %v549
      %v581 = vadd.f32 %v580, %v550
      %v582 = vadd.f32 %v581, %v551
      %v583 = vadd.f32 %v582, %v552
      %v584 = vadd.f32 %v583, %v553
      %v585 = vadd.f32 %v584, %v554
      %v586 = vadd.f32 %v585, %v555
      %v587 = vadd.f32 %v586, %v556
      %v588 = vadd.f32 %v587, %v557
      %v589 = vadd.f32 %v588, %v558
      %v590 = vadd.f32 %v589, %v559
      %v591 = vadd.f32 %v590, %v560
      %v592 = vadd.f32 %v591, %v561
      %v593 = vadd.f32 %v592, %v562
      %v594 = vadd.f32 %v593, %v563
      %v595 = vadd.f32 %v594, %v564
      %v596 = vadd.f32 %v595, %v565
      %v597 = vadd.f32 %v596, %v566
      %v598 = vadd.f32 %v597, %v567
      %v599 = vadd.f32 %v598, %v568
      %v600 = vadd.f32 %v599, %v569
      %v601 = vadd.f32 %v600, %v570
      %v602 = vadd.f32 %v601, %v571
      %v603 = vadd.f32 %v602, %v572
      %v604 = vadd.f32 %v603, %v573
      %v605 = vadd.f32 %v604, %v574
      %v606 = vadd.f32 %v605, %v575
      %v607 = vadd.f32 %v606, %v576
      %v608 = vadd.f32 %v607, %v577
      %v609 = vrot.slane %v608, 4
      %v610 = vadd.f32 %v608, %v609
      %v611 = vrot.slane %v610, 2
      %v612 = vadd.f32 %v610, %v611
      %v613 = vrot.slane %v612, 1
      %v614 = vadd.f32 %v612, %v613
      %615 = vst [vmem:[%s271] sm:$0xff] %v545
      %616 = vst [vmem:[%s275] sm:$0xff] %v614
      %s617 = smul.u32 32, %s18
      %p618 = scmp.lt.s32.totalorder %s617, 63
      %s619 = scalar_select %p618, %s617, 63
      %s620 = smul.addr %s619, 8
      %s621 = scalar_lea.vmem %s4, %s620
      %p622 = scmp.lt.s32.totalorder %s18, 1
      %s623 = scalar_select %p622, %s18, 1
      %s624 = smul.addr %s623, 8
      %s625 = scalar_lea.vmem %s5, %s624
      %p626 = scmp.lt.s32.totalorder %s18, 1
      %s627 = scalar_select %p626, %s18, 1
      %s628 = smul.addr %s627, 8
      %s629 = scalar_lea.vmem %s6, %s628
      // Predicated region
      $region37: #{bottleneck_forward.8} parent=35 // pred_check
        %p630 = pneg %p125
      $region38: #{bottleneck_forward.8} parent=35 // pred_check_branch
        %632 = sbr.rel (%p630) target = $region40
      $region39: #{bottleneck_forward.8} parent=35 // pred_region
        %s633 = smul.u32 32, %s18
      $region40: #{bottleneck_forward.8} parent=35 // pred_fallthru
        _
      // Predicated region
      $region41: #{bottleneck_forward.8} parent=35 // pred_check
        %p634 = pneg %p151
      $region42: #{bottleneck_forward.8} parent=35 // pred_check_branch
        %636 = sbr.rel (%p634) target = $region44
      $region43: #{bottleneck_forward.8} parent=35 // pred_region
        _
      $region44: #{bottleneck_forward.8} parent=35 // pred_fallthru
        _
      // Predicated region
      $region45: #{bottleneck_forward.8} parent=35 // pred_check
        %p637 = pneg %p177
      $region46: #{bottleneck_forward.8} parent=35 // pred_check_branch
        %639 = sbr.rel (%p637) target = $region48
      $region47: #{bottleneck_forward.8} parent=35 // pred_region
        _
      $region48: #{bottleneck_forward.8} parent=35 // pred_fallthru
        _
    $region36: #{bottleneck_forward.8} parent=5 // pred_fallthru
      _
    %p640 = scmp.le.s32.totalorder 2, %s13
    // Predicated region
    $region49: #{bottleneck_forward.8} parent=5 // pred_check
      %p641 = pneg %p640
    $region50: #{bottleneck_forward.8} parent=5 // pred_check_branch
      %643 = sbr.rel (%p641) target = $region52
    $region51: #{bottleneck_forward.8} parent=5 // pred_region
      %s644 = ssub.s32 %s13, 2
      // Predicated region
      $region53: #{bottleneck_forward.8} parent=51 // pred_check
        %p645 = pneg %p131
      $region54: #{bottleneck_forward.8} parent=51 // pred_check_branch
        %647 = sbr.rel (%p645) target = $region56
      $region55: #{bottleneck_forward.8} parent=51 // pred_region
        %s648 = smul.u32 32, %s19
        %p649 = scmp.lt.s32.totalorder %s648, 63
        %s650 = scalar_select %p649, %s648, 63
        %s651 = smul.addr %s650, 8
        %s652 = scalar_lea.vmem %s4, %s651
      $region56: #{bottleneck_forward.8} parent=51 // pred_fallthru
        _
      // Predicated region
      $region57: #{bottleneck_forward.8} parent=51 // pred_check
        %p653 = pneg %p157
      $region58: #{bottleneck_forward.8} parent=51 // pred_check_branch
        %655 = sbr.rel (%p653) target = $region60
      $region59: #{bottleneck_forward.8} parent=51 // pred_region
        %p656 = scmp.lt.s32.totalorder %s19, 1
        %s657 = scalar_select %p656, %s19, 1
        %s658 = smul.addr %s657, 8
        %s659 = scalar_lea.vmem %s5, %s658
      $region60: #{bottleneck_forward.8} parent=51 // pred_fallthru
        _
      // Predicated region
      $region61: #{bottleneck_forward.8} parent=51 // pred_check
        %p660 = pneg %p183
      $region62: #{bottleneck_forward.8} parent=51 // pred_check_branch
        %662 = sbr.rel (%p660) target = $region64
      $region63: #{bottleneck_forward.8} parent=51 // pred_region
        %p663 = scmp.lt.s32.totalorder %s19, 1
        %s664 = scalar_select %p663, %s19, 1
        %s665 = smul.addr %s664, 8
        %s666 = scalar_lea.vmem %s6, %s665
      $region64: #{bottleneck_forward.8} parent=51 // pred_fallthru
        _
    $region52: #{bottleneck_forward.8} parent=5 // pred_fallthru
      _
  $region6: #{bottleneck_forward.8} parent=0 // loop_footer
    %s17 = sadd.s32 1, %s13
  $region7: #{bottleneck_forward.8} parent=0 // loop_footer_branch
    %12 = sbr.rel target = $region3
  $region8: #{bottleneck_forward.8} parent=0 // loop_exit
    _

// kernel: bottleneck_forward.7
$region0: #{bottleneck_forward.7}
  #allocation0 [shape = 'u32[]', space=smem, size = 0x4, offset = 0x4, fixed_abs, tag = 'smem constant byte address 0x4 - core index']
  #allocation1 [shape = 'u32[72,128]{1,0:T(1,128)}', space=vmem, size = 0x9000, scoped, tag = 'internal scratch']
  %s0 = inlined_call_operand.vmem [shape: f32[512,128], index: 0, kind: input, shape index: {}]
  %s1 = inlined_call_operand.vmem [shape: bf16[128,128], index: 1, kind: input, shape index: {}]
  %s2 = inlined_call_operand.vmem [shape: f32[1,128], index: 2, kind: input, shape index: {}]
  %s3 = inlined_call_operand.vmem [shape: f32[1,128], index: 3, kind: input, shape index: {}]
  %s4 = inlined_call_operand.vmem [shape: f32[512,128], index: 4, kind: output, shape index: {0}]
  %s5 = inlined_call_operand.vmem [shape: f32[2,8,128], index: 5, kind: output, shape index: {1}]
  %s6 = inlined_call_operand.vmem [shape: f32[2,8,128], index: 6, kind: output, shape index: {2}]
  %7 = xla_tuple %s4, %s5, %s6
  %s8 = sld [smem:[#allocation0]]
  $region65: #{bottleneck_forward.7} parent=0
    _
  %s10 = ssub.s32 1, %s8
  %s11 = scalar_select 0, %s10, %s8
  loop: start=0, step=1, limit=4
  $region2: #{bottleneck_forward.7} parent=0 // loop_pre_header
    _
  $region3: #{bottleneck_forward.7} parent=0 // loop_header
    %s13 = sphi 0, %s17
    %p14 = scmp.ge.s32.totalorder %s13, 4
    %s23 = sphi 0, %s25
    %s26 = sphi 0, %s23
    %s27 = sphi 0, %s26
    %s43 = sphi 0, %s27
    %s47 = sphi 0, %s47
    %s49 = sphi 0, %s47
    %s50 = sphi 0, %s49
    %s64 = sphi 0, %s50
    %s68 = sphi 0, %s68
    %s70 = sphi 0, %s68
    %s71 = sphi 0, %s70
    %s85 = sphi 0, %s71
    %s89 = sphi 0, %s89
    %s91 = sphi 0, %s89
    %s92 = sphi 0, %s91
    %s106 = sphi 0, %s92
    %s112 = sphi 0, %s114
    %s115 = sphi 0, %s112
    %s116 = sphi 0, %s115
    %s132 = sphi 0, %s116
    %s138 = sphi 0, %s140
    %s141 = sphi 0, %s138
    %s142 = sphi 0, %s141
    %s158 = sphi 0, %s142
    %s164 = sphi 0, %s166
    %s167 = sphi 0, %s164
    %s168 = sphi 0, %s167
    %s184 = sphi 0, %s168
  $region4: #{bottleneck_forward.7} parent=0 // loop_header_branch
    %16 = sbr.rel (%p14) target = $region8
  $region5: #{bottleneck_forward.7} parent=0 // loop_body
    %s18 = ssub.s32 %s13, 1
    %s19 = ssub.s32 %s13, 2
    %s20 = sadd.s32 %s13, 1
    %s21 = ssub.s32 %s13, %s20
    %p22 = scmp.eq.s32.totalorder %s21, 0
    %s24 = sadd.s32 %s23, 1
    %s25 = scalar_select %p22, %s23, %s24
    %p28 = pneg %p22
    %p29 = scmp.eq.s32.totalorder %s13, 1
    %p30 = por %p28, %p29
    %p31 = scmp.ne.s32.totalorder %s23, %s26
    %p32 = scmp.eq.s32.totalorder %s13, 0
    %p33 = por %p31, %p32
    %p34 = scmp.ne.s32.totalorder %s23, %s26
    %p35 = scmp.eq.s32.totalorder %s18, 1
    %p36 = por %p34, %p35
    %p37 = scmp.ne.s32.totalorder %s26, %s27
    %p38 = scmp.eq.s32.totalorder %s18, 0
    %p39 = por %p37, %p38
    %p40 = scmp.ne.s32.totalorder %s26, %s27
    %p41 = scmp.eq.s32.totalorder %s19, 1
    %p42 = por %p40, %p41
    %p44 = scmp.ne.s32.totalorder %s27, %s43
    %p45 = scmp.eq.s32.totalorder %s19, 0
    %p46 = por %p44, %p45
    %s48 = sadd.s32 %s47, 1
    %p51 = scmp.eq.s32.totalorder %s13, 1
    %p52 = scmp.ne.s32.totalorder %s47, %s49
    %p53 = scmp.eq.s32.totalorder %s13, 0
    %p54 = por %p52, %p53
    %p55 = scmp.ne.s32.totalorder %s47, %s49
    %p56 = scmp.eq.s32.totalorder %s18, 1
    %p57 = por %p55, %p56
    %p58 = scmp.ne.s32.totalorder %s49, %s50
    %p59 = scmp.eq.s32.totalorder %s18, 0
    %p60 = por %p58, %p59
    %p61 = scmp.ne.s32.totalorder %s49, %s50
    %p62 = scmp.eq.s32.totalorder %s19, 1
    %p63 = por %p61, %p62
    %p65 = scmp.ne.s32.totalorder %s50, %s64
    %p66 = scmp.eq.s32.totalorder %s19, 0
    %p67 = por %p65, %p66
    %s69 = sadd.s32 %s68, 1
    %p72 = scmp.eq.s32.totalorder %s13, 1
    %p73 = scmp.ne.s32.totalorder %s68, %s70
    %p74 = scmp.eq.s32.totalorder %s13, 0
    %p75 = por %p73, %p74
    %p76 = scmp.ne.s32.totalorder %s68, %s70
    %p77 = scmp.eq.s32.totalorder %s18, 1
    %p78 = por %p76, %p77
    %p79 = scmp.ne.s32.totalorder %s70, %s71
    %p80 = scmp.eq.s32.totalorder %s18, 0
    %p81 = por %p79, %p80
    %p82 = scmp.ne.s32.totalorder %s70, %s71
    %p83 = scmp.eq.s32.totalorder %s19, 1
    %p84 = por %p82, %p83
    %p86 = scmp.ne.s32.totalorder %s71, %s85
    %p87 = scmp.eq.s32.totalorder %s19, 0
    %p88 = por %p86, %p87
    %s90 = sadd.s32 %s89, 1
    %p93 = scmp.eq.s32.totalorder %s13, 1
    %p94 = scmp.ne.s32.totalorder %s89, %s91
    %p95 = scmp.eq.s32.totalorder %s13, 0
    %p96 = por %p94, %p95
    %p97 = scmp.ne.s32.totalorder %s89, %s91
    %p98 = scmp.eq.s32.totalorder %s18, 1
    %p99 = por %p97, %p98
    %p100 = scmp.ne.s32.totalorder %s91, %s92
    %p101 = scmp.eq.s32.totalorder %s18, 0
    %p102 = por %p100, %p101
    %p103 = scmp.ne.s32.totalorder %s91, %s92
    %p104 = scmp.eq.s32.totalorder %s19, 1
    %p105 = por %p103, %p104
    %p107 = scmp.ne.s32.totalorder %s92, %s106
    %p108 = scmp.eq.s32.totalorder %s19, 0
    %p109 = por %p107, %p108
    %s110 = ssub.s32 %s13, %s20
    %p111 = scmp.eq.s32.totalorder %s110, 0
    %s113 = sadd.s32 %s112, 1
    %s114 = scalar_select %p111, %s112, %s113
    %p117 = pneg %p111
    %p118 = scmp.eq.s32.totalorder %s13, 1
    %p119 = por %p117, %p118
    %p120 = scmp.ne.s32.totalorder %s112, %s115
    %p121 = scmp.eq.s32.totalorder %s13, 0
    %p122 = por %p120, %p121
    %p123 = scmp.ne.s32.totalorder %s112, %s115
    %p124 = scmp.eq.s32.totalorder %s18, 1
    %p125 = por %p123, %p124
    %p126 = scmp.ne.s32.totalorder %s115, %s116
    %p127 = scmp.eq.s32.totalorder %s18, 0
    %p128 = por %p126, %p127
    %p129 = scmp.ne.s32.totalorder %s115, %s116
    %p130 = scmp.eq.s32.totalorder %s19, 1
    %p131 = por %p129, %p130
    %p133 = scmp.ne.s32.totalorder %s116, %s132
    %p134 = scmp.eq.s32.totalorder %s19, 0
    %p135 = por %p133, %p134
    %s136 = ssub.s32 %s13, %s20
    %p137 = scmp.eq.s32.totalorder %s136, 0
    %s139 = sadd.s32 %s138, 1
    %s140 = scalar_select %p137, %s138, %s139
    %p143 = pneg %p137
    %p144 = scmp.eq.s32.totalorder %s13, 1
    %p145 = por %p143, %p144
    %p146 = scmp.ne.s32.totalorder %s138, %s141
    %p147 = scmp.eq.s32.totalorder %s13, 0
    %p148 = por %p146, %p147
    %p149 = scmp.ne.s32.totalorder %s138, %s141
    %p150 = scmp.eq.s32.totalorder %s18, 1
    %p151 = por %p149, %p150
    %p152 = scmp.ne.s32.totalorder %s141, %s142
    %p153 = scmp.eq.s32.totalorder %s18, 0
    %p154 = por %p152, %p153
    %p155 = scmp.ne.s32.totalorder %s141, %s142
    %p156 = scmp.eq.s32.totalorder %s19, 1
    %p157 = por %p155, %p156
    %p159 = scmp.ne.s32.totalorder %s142, %s158
    %p160 = scmp.eq.s32.totalorder %s19, 0
    %p161 = por %p159, %p160
    %s162 = ssub.s32 %s13, %s20
    %p163 = scmp.eq.s32.totalorder %s162, 0
    %s165 = sadd.s32 %s164, 1
    %s166 = scalar_select %p163, %s164, %s165
    %p169 = pneg %p163
    %p170 = scmp.eq.s32.totalorder %s13, 1
    %p171 = por %p169, %p170
    %p172 = scmp.ne.s32.totalorder %s164, %s167
    %p173 = scmp.eq.s32.totalorder %s13, 0
    %p174 = por %p172, %p173
    %p175 = scmp.ne.s32.totalorder %s164, %s167
    %p176 = scmp.eq.s32.totalorder %s18, 1
    %p177 = por %p175, %p176
    %p178 = scmp.ne.s32.totalorder %s167, %s168
    %p179 = scmp.eq.s32.totalorder %s18, 0
    %p180 = por %p178, %p179
    %p181 = scmp.ne.s32.totalorder %s167, %s168
    %p182 = scmp.eq.s32.totalorder %s19, 1
    %p183 = por %p181, %p182
    %p185 = scmp.ne.s32.totalorder %s168, %s184
    %p186 = scmp.eq.s32.totalorder %s19, 0
    %p187 = por %p185, %p186
    %p188 = scmp.le.s32.totalorder 1, %s13
    %p189 = scmp.lt.s32.totalorder %s13, 3
    %p190 = pnand %p188, %p189
    %p191 = pneg %p190
    // Predicated region
    $region9: #{bottleneck_forward.7} parent=5 // pred_check
      _
    $region10: #{bottleneck_forward.7} parent=5 // pred_check_branch
      %193 = sbr.rel (%p190) target = $region12
    $region11: #{bottleneck_forward.7} parent=5 // pred_region
      %s194 = ssub.s32 %s13, 1
      // Predicated region
      $region13: #{bottleneck_forward.7} parent=11 // pred_check
        %p195 = pneg %p60
      $region14: #{bottleneck_forward.7} parent=11 // pred_check_branch
        %197 = sbr.rel (%p195) target = $region16
      $region15: #{bottleneck_forward.7} parent=11 // pred_region
        _
      $region16: #{bottleneck_forward.7} parent=11 // pred_fallthru
        _
      // Predicated region
      $region17: #{bottleneck_forward.7} parent=11 // pred_check
        %p198 = pneg %p81
      $region18: #{bottleneck_forward.7} parent=11 // pred_check_branch
        %200 = sbr.rel (%p198) target = $region20
      $region19: #{bottleneck_forward.7} parent=11 // pred_region
        _
      $region20: #{bottleneck_forward.7} parent=11 // pred_fallthru
        _
      // Predicated region
      $region21: #{bottleneck_forward.7} parent=11 // pred_check
        %p201 = pneg %p102
      $region22: #{bottleneck_forward.7} parent=11 // pred_check_branch
        %203 = sbr.rel (%p201) target = $region24
      $region23: #{bottleneck_forward.7} parent=11 // pred_region
        _
      $region24: #{bottleneck_forward.7} parent=11 // pred_fallthru
        _
    $region12: #{bottleneck_forward.7} parent=5 // pred_fallthru
      _
    %p204 = scmp.lt.s32.totalorder %s13, 2
    // Predicated region
    $region25: #{bottleneck_forward.7} parent=5 // pred_check
      %p205 = pneg %p204
    $region26: #{bottleneck_forward.7} parent=5 // pred_check_branch
      %207 = sbr.rel (%p205) target = $region28
    $region27: #{bottleneck_forward.7} parent=5 // pred_region
      // Predicated region
      $region29: #{bottleneck_forward.7} parent=27 // pred_check
        %p208 = pneg %p33
      $region30: #{bottleneck_forward.7} parent=27 // pred_check_branch
        %210 = sbr.rel (%p208) target = $region32
      $region31: #{bottleneck_forward.7} parent=27 // pred_region
        %s211 = smul.u32 32, %s13
        %p212 = scmp.lt.s32.totalorder %s211, 63
        %s213 = scalar_select %p212, %s211, 63
        %s214 = smul.addr %s213, 8
        %s215 = scalar_lea.vmem %s0, %s214
        %s216 = smul.u32 32, %s13
      $region32: #{bottleneck_forward.7} parent=27 // pred_fallthru
        _
    $region28: #{bottleneck_forward.7} parent=5 // pred_fallthru
      _
    %p217 = scmp.le.s32.totalorder 1, %s13
    %p218 = scmp.lt.s32.totalorder %s13, 3
    %p219 = pnand %p217, %p218
    %p220 = pneg %p219
    // Predicated region
    $region33: #{bottleneck_forward.7} parent=5 // pred_check
      _
    $region34: #{bottleneck_forward.7} parent=5 // pred_check_branch
      %222 = sbr.rel (%p219) target = $region36
    $region35: #{bottleneck_forward.7} parent=5 // pred_region
      %s223 = ssub.s32 %s13, 1
      %s224 = smul.u32 32, %s18
      %p225 = scmp.lt.s32.totalorder %s224, 63
      %s226 = scalar_select %p225, %s224, 63
      %s227 = smul.addr %s226, 8
      %s228 = scalar_lea.vmem %s0, %s227
      %p229 = pneg %p39
      %p230 = pneg %p36
      %p231 = pneg %p60
      %p232 = pneg %p57
      %p233 = pneg %p81
      %p234 = pneg %p78
      %p235 = pneg %p102
      %p236 = pneg %p99
      %p237 = pneg %p128
      %p238 = pneg %p125
      %s239 = smul.u32 32, %s18
      %p240 = scmp.lt.s32.totalorder %s239, 63
      %s241 = scalar_select %p240, %s239, 63
      %s242 = smul.addr %s241, 8
      %s243 = scalar_lea.vmem %s4, %s242
      %p244 = pneg %p154
      %p245 = pneg %p151
      %p246 = scmp.lt.s32.totalorder %s18, 1
      %s247 = scalar_select %p246, %s18, 1
      %s248 = smul.addr %s247, 8
      %s249 = scalar_lea.vmem %s5, %s248
      %p250 = pneg %p180
      %p251 = pneg %p177
      %p252 = scmp.lt.s32.totalorder %s18, 1
      %s253 = scalar_select %p252, %s18, 1
      %s254 = smul.addr %s253, 8
      %s255 = scalar_lea.vmem %s6, %s254
      %s256 = smul.u32 32, %s18
      %p257 = scmp.lt.s32.totalorder %s256, 63
      %s258 = scalar_select %p257, %s256, 63
      %s259 = smul.addr %s258, 8
      %s260 = scalar_lea.vmem %s0, %s259
      %s261 = smul.u32 32, %s18
      %s262 = smul.u32 32, %s18
      %p263 = scmp.lt.s32.totalorder %s262, 63
      %s264 = scalar_select %p263, %s262, 63
      %s265 = smul.addr %s264, 8
      %s266 = scalar_lea.vmem %s4, %s265
      %s267 = smul.u32 32, %s18
      %p268 = scmp.lt.s32.totalorder %s18, 1
      %s269 = scalar_select %p268, %s18, 1
      %s270 = smul.addr %s269, 8
      %s271 = scalar_lea.vmem %s5, %s270
      %p272 = scmp.lt.s32.totalorder %s18, 1
      %s273 = scalar_select %p272, %s18, 1
      %s274 = smul.addr %s273, 8
      %s275 = scalar_lea.vmem %s6, %s274
      %v276 = vld [vmem:[%s260] sm:$0xff]
      %v277 = vld [vmem:[%s260 + $0x8] sm:$0xff]
      %v278 = vld [vmem:[%s260 + $0x10] sm:$0xff]
      %v279 = vld [vmem:[%s260 + $0x18] sm:$0xff]
      %v280 = vld [vmem:[%s260 + $0x20] sm:$0xff]
      %v281 = vld [vmem:[%s260 + $0x28] sm:$0xff]
      %v282 = vld [vmem:[%s260 + $0x30] sm:$0xff]
      %v283 = vld [vmem:[%s260 + $0x38] sm:$0xff]
      %v284 = vld [vmem:[%s260 + $0x40] sm:$0xff]
      %v285 = vld [vmem:[%s260 + $0x48] sm:$0xff]
      %v286 = vld [vmem:[%s260 + $0x50] sm:$0xff]
      %v287 = vld [vmem:[%s260 + $0x58] sm:$0xff]
      %v288 = vld [vmem:[%s260 + $0x60] sm:$0xff]
      %v289 = vld [vmem:[%s260 + $0x68] sm:$0xff]
      %v290 = vld [vmem:[%s260 + $0x70] sm:$0xff]
      %v291 = vld [vmem:[%s260 + $0x78] sm:$0xff]
      %v292 = vld [vmem:[%s260 + $0x80] sm:$0xff]
      %v293 = vld [vmem:[%s260 + $0x88] sm:$0xff]
      %v294 = vld [vmem:[%s260 + $0x90] sm:$0xff]
      %v295 = vld [vmem:[%s260 + $0x98] sm:$0xff]
      %v296 = vld [vmem:[%s260 + $0xa0] sm:$0xff]
      %v297 = vld [vmem:[%s260 + $0xa8] sm:$0xff]
      %v298 = vld [vmem:[%s260 + $0xb0] sm:$0xff]
      %v299 = vld [vmem:[%s260 + $0xb8] sm:$0xff]
      %v300 = vld [vmem:[%s260 + $0xc0] sm:$0xff]
      %v301 = vld [vmem:[%s260 + $0xc8] sm:$0xff]
      %v302 = vld [vmem:[%s260 + $0xd0] sm:$0xff]
      %v303 = vld [vmem:[%s260 + $0xd8] sm:$0xff]
      %v304 = vld [vmem:[%s260 + $0xe0] sm:$0xff]
      %v305 = vld [vmem:[%s260 + $0xe8] sm:$0xff]
      %v306 = vld [vmem:[%s260 + $0xf0] sm:$0xff]
      %v307 = vld [vmem:[%s260 + $0xf8] sm:$0xff]
      %v308 = vld [vmem:[%s2] sm:$0x1]
      %v310 = vperm.slane %v308, 0
      %v312 = vmul.f32 %v276, %v310
      %v313 = vmul.f32 %v277, %v310
      %v314 = vmul.f32 %v278, %v310
      %v315 = vmul.f32 %v279, %v310
      %v316 = vmul.f32 %v280, %v310
      %v317 = vmul.f32 %v281, %v310
      %v318 = vmul.f32 %v282, %v310
      %v319 = vmul.f32 %v283, %v310
      %v320 = vmul.f32 %v284, %v310
      %v321 = vmul.f32 %v285, %v310
      %v322 = vmul.f32 %v286, %v310
      %v323 = vmul.f32 %v287, %v310
      %v324 = vmul.f32 %v288, %v310
      %v325 = vmul.f32 %v289, %v310
      %v326 = vmul.f32 %v290, %v310
      %v327 = vmul.f32 %v291, %v310
      %v328 = vmul.f32 %v292, %v310
      %v329 = vmul.f32 %v293, %v310
      %v330 = vmul.f32 %v294, %v310
      %v331 = vmul.f32 %v295, %v310
      %v332 = vmul.f32 %v296, %v310
      %v333 = vmul.f32 %v297, %v310
      %v334 = vmul.f32 %v298, %v310
      %v335 = vmul.f32 %v299, %v310
      %v336 = vmul.f32 %v300, %v310
      %v337 = vmul.f32 %v301, %v310
      %v338 = vmul.f32 %v302, %v310
      %v339 = vmul.f32 %v303, %v310
      %v340 = vmul.f32 %v304, %v310
      %v341 = vmul.f32 %v305, %v310
      %v342 = vmul.f32 %v306, %v310
      %v343 = vmul.f32 %v307, %v310
      %v344 = vld [vmem:[%s3] sm:$0x1]
      %v346 = vperm.slane %v344, 0
      %v348 = vadd.f32 %v312, %v346
      %v349 = vadd.f32 %v313, %v346
      %v350 = vadd.f32 %v314, %v346
      %v351 = vadd.f32 %v315, %v346
      %v352 = vadd.f32 %v316, %v346
      %v353 = vadd.f32 %v317, %v346
      %v354 = vadd.f32 %v318, %v346
      %v355 = vadd.f32 %v319, %v346
      %v356 = vadd.f32 %v320, %v346
      %v357 = vadd.f32 %v321, %v346
      %v358 = vadd.f32 %v322, %v346
      %v359 = vadd.f32 %v323, %v346
      %v360 = vadd.f32 %v324, %v346
      %v361 = vadd.f32 %v325, %v346
      %v362 = vadd.f32 %v326, %v346
      %v363 = vadd.f32 %v327, %v346
      %v364 = vadd.f32 %v328, %v346
      %v365 = vadd.f32 %v329, %v346
      %v366 = vadd.f32 %v330, %v346
      %v367 = vadd.f32 %v331, %v346
      %v368 = vadd.f32 %v332, %v346
      %v369 = vadd.f32 %v333, %v346
      %v370 = vadd.f32 %v334, %v346
      %v371 = vadd.f32 %v335, %v346
      %v372 = vadd.f32 %v336, %v346
      %v373 = vadd.f32 %v337, %v346
      %v374 = vadd.f32 %v338, %v346
      %v375 = vadd.f32 %v339, %v346
      %v376 = vadd.f32 %v340, %v346
      %v377 = vadd.f32 %v341, %v346
      %v378 = vadd.f32 %v342, %v346
      %v379 = vadd.f32 %v343, %v346
      %v380 = vmax.f32 %v348, 0.0
      %v381 = vmax.f32 %v349, 0.0
      %v382 = vmax.f32 %v350, 0.0
      %v383 = vmax.f32 %v351, 0.0
      %v384 = vmax.f32 %v352, 0.0
      %v385 = vmax.f32 %v353, 0.0
      %v386 = vmax.f32 %v354, 0.0
      %v387 = vmax.f32 %v355, 0.0
      %v388 = vmax.f32 %v356, 0.0
      %v389 = vmax.f32 %v357, 0.0
      %v390 = vmax.f32 %v358, 0.0
      %v391 = vmax.f32 %v359, 0.0
      %v392 = vmax.f32 %v360, 0.0
      %v393 = vmax.f32 %v361, 0.0
      %v394 = vmax.f32 %v362, 0.0
      %v395 = vmax.f32 %v363, 0.0
      %v396 = vmax.f32 %v364, 0.0
      %v397 = vmax.f32 %v365, 0.0
      %v398 = vmax.f32 %v366, 0.0
      %v399 = vmax.f32 %v367, 0.0
      %v400 = vmax.f32 %v368, 0.0
      %v401 = vmax.f32 %v369, 0.0
      %v402 = vmax.f32 %v370, 0.0
      %v403 = vmax.f32 %v371, 0.0
      %v404 = vmax.f32 %v372, 0.0
      %v405 = vmax.f32 %v373, 0.0
      %v406 = vmax.f32 %v374, 0.0
      %v407 = vmax.f32 %v375, 0.0
      %v408 = vmax.f32 %v376, 0.0
      %v409 = vmax.f32 %v377, 0.0
      %v410 = vmax.f32 %v378, 0.0
      %v411 = vmax.f32 %v379, 0.0
      %v412 = vpack.c.bf16 %v381, %v380
      %v413 = vpack.c.bf16 %v383, %v382
      %v414 = vpack.c.bf16 %v385, %v384
      %v415 = vpack.c.bf16 %v387, %v386
      %v416 = vpack.c.bf16 %v389, %v388
      %v417 = vpack.c.bf16 %v391, %v390
      %v418 = vpack.c.bf16 %v393, %v392
      %v419 = vpack.c.bf16 %v395, %v394
      %v420 = vpack.c.bf16 %v397, %v396
      %v421 = vpack.c.bf16 %v399, %v398
      %v422 = vpack.c.bf16 %v401, %v400
      %v423 = vpack.c.bf16 %v403, %v402
      %v424 = vpack.c.bf16 %v405, %v404
      %v425 = vpack.c.bf16 %v407, %v406
      %v426 = vpack.c.bf16 %v409, %v408
      %v427 = vpack.c.bf16 %v411, %v410
      %v428 = vld [vmem:[%s1] sm:$0xf]
      %v429 = vld [vmem:[%s1 + $0x4] sm:$0xf]
      %v430 = vld [vmem:[%s1 + $0x8] sm:$0xf]
      %v431 = vld [vmem:[%s1 + $0xc] sm:$0xf]
      %v432 = vld [vmem:[%s1 + $0x10] sm:$0xf]
      %v433 = vld [vmem:[%s1 + $0x14] sm:$0xf]
      %v434 = vld [vmem:[%s1 + $0x18] sm:$0xf]
      %v435 = vld [vmem:[%s1 + $0x1c] sm:$0xf]
      %v436 = vld [vmem:[%s1 + $0x20] sm:$0xf]
      %v437 = vld [vmem:[%s1 + $0x24] sm:$0xf]
      %v438 = vld [vmem:[%s1 + $0x28] sm:$0xf]
      %v439 = vld [vmem:[%s1 + $0x2c] sm:$0xf]
      %v440 = vld [vmem:[%s1 + $0x30] sm:$0xf]
      %v441 = vld [vmem:[%s1 + $0x34] sm:$0xf]
      %v442 = vld [vmem:[%s1 + $0x38] sm:$0xf]
      %v443 = vld [vmem:[%s1 + $0x3c] sm:$0xf]
      %v460 = vunpack.c.l.b16 %v428
      %v461 = vunpack.c.l.b16 %v429
      %v462 = vunpack.c.l.b16 %v430
      %v463 = vunpack.c.l.b16 %v431
      %v464 = vunpack.c.l.b16 %v432
      %v465 = vunpack.c.l.b16 %v433
      %v466 = vunpack.c.l.b16 %v434
      %v467 = vunpack.c.l.b16 %v435
      %v468 = vunpack.c.l.b16 %v436
      %v469 = vunpack.c.l.b16 %v437
      %v470 = vunpack.c.l.b16 %v438
      %v471 = vunpack.c.l.b16 %v439
      %v472 = vunpack.c.l.b16 %v440
      %v473 = vunpack.c.l.b16 %v441
      %v474 = vunpack.c.l.b16 %v442
      %v475 = vunpack.c.l.b16 %v443
      %v476 = vpack.c.b16 %v461, %v460
      %v477 = vpack.c.b16 %v463, %v462
      %v478 = vpack.c.b16 %v465, %v464
      %v479 = vpack.c.b16 %v467, %v466
      %v480 = vpack.c.b16 %v469, %v468
      %v481 = vpack.c.b16 %v471, %v470
      %v482 = vpack.c.b16 %v473, %v472
      %v483 = vpack.c.b16 %v475, %v474
      %492 = vmatpush.bf16.msra.mxu0 %v483
      %493 = vmatpush.bf16.msra.mxu0 %v482
      %494 = vmatpush.bf16.msra.mxu0 %v481
      %495 = vmatpush.bf16.msra.mxu0 %v480
      %496 = vmatpush.bf16.msra.mxu0 %v479
      %497 = vmatpush.bf16.msra.mxu0 %v478
      %498 = vmatpush.bf16.msra.mxu0 %v477
      %499 = vmatpush.bf16.msra.mxu0 %v476
      %500 = vmatmul.bf16.gmra.mxu0 %v412
      %v501 = vpop.f32.mrf.mxu0
      %v502 = vadd.f32 0.0, %v501
      %v503 = vpop.f32.mrf.mxu0
      %v504 = vadd.f32 0.0, %v503
      %505 = vmatmul.bf16.gmra.mxu0 %v413
      %v506 = vpop.f32.mrf.mxu0
      %v507 = vadd.f32 0.0, %v506
      %v508 = vpop.f32.mrf.mxu0
      %v509 = vadd.f32 0.0, %v508
      %510 = vmatmul.bf16.gmra.mxu0 %v414
      %v511 = vpop.f32.mrf.mxu0
      %v512 = vadd.f32 0.0, %v511
      %v513 = vpop.f32.mrf.mxu0
      %v514 = vadd.f32 0.0, %v513
      %515 = vmatmul.bf16.gmra.mxu0 %v415
      %v516 = vpop.f32.mrf.mxu0
      %v517 = vadd.f32 0.0, %v516
      %v518 = vpop.f32.mrf.mxu0
      %v519 = vadd.f32 0.0, %v518
      %520 = vmatmul.bf16.gmra.mxu0 %v416
      %v521 = vpop.f32.mrf.mxu0
      %v522 = vadd.f32 0.0, %v521
      %v523 = vpop.f32.mrf.mxu0
      %v524 = vadd.f32 0.0, %v523
      %525 = vmatmul.bf16.gmra.mxu0 %v417
      %v526 = vpop.f32.mrf.mxu0
      %v527 = vadd.f32 0.0, %v526
      %v528 = vpop.f32.mrf.mxu0
      %v529 = vadd.f32 0.0, %v528
      %530 = vmatmul.bf16.gmra.mxu0 %v418
      %v531 = vpop.f32.mrf.mxu0
      %v532 = vadd.f32 0.0, %v531
      %v533 = vpop.f32.mrf.mxu0
      %v534 = vadd.f32 0.0, %v533
      %535 = vmatmul.bf16.gmra.mxu0 %v419
      %v536 = vpop.f32.mrf.mxu0
      %v537 = vadd.f32 0.0, %v536
      %v538 = vpop.f32.mrf.mxu0
      %v539 = vadd.f32 0.0, %v538
      %540 = vmatmul.bf16.gmra.mxu0 %v420
      %v541 = vpop.f32.mrf.mxu0
      %v542 = vadd.f32 0.0, %v541
      %v543 = vpop.f32.mrf.mxu0
      %v544 = vadd.f32 0.0, %v543
      %545 = vmatmul.bf16.gmra.mxu0 %v421
      %v546 = vpop.f32.mrf.mxu0
      %v547 = vadd.f32 0.0, %v546
      %v548 = vpop.f32.mrf.mxu0
      %v549 = vadd.f32 0.0, %v548
      %550 = vmatmul.bf16.gmra.mxu0 %v422
      %v551 = vpop.f32.mrf.mxu0
      %v552 = vadd.f32 0.0, %v551
      %v553 = vpop.f32.mrf.mxu0
      %v554 = vadd.f32 0.0, %v553
      %555 = vmatmul.bf16.gmra.mxu0 %v423
      %v556 = vpop.f32.mrf.mxu0
      %v557 = vadd.f32 0.0, %v556
      %v558 = vpop.f32.mrf.mxu0
      %v559 = vadd.f32 0.0, %v558
      %560 = vmatmul.bf16.gmra.mxu0 %v424
      %v561 = vpop.f32.mrf.mxu0
      %v562 = vadd.f32 0.0, %v561
      %v563 = vpop.f32.mrf.mxu0
      %v564 = vadd.f32 0.0, %v563
      %565 = vmatmul.bf16.gmra.mxu0 %v425
      %v566 = vpop.f32.mrf.mxu0
      %v567 = vadd.f32 0.0, %v566
      %v568 = vpop.f32.mrf.mxu0
      %v569 = vadd.f32 0.0, %v568
      %570 = vmatmul.bf16.gmra.mxu0 %v426
      %v571 = vpop.f32.mrf.mxu0
      %v572 = vadd.f32 0.0, %v571
      %v573 = vpop.f32.mrf.mxu0
      %v574 = vadd.f32 0.0, %v573
      %575 = vmatmul.bf16.gmra.mxu0 %v427
      %v576 = vpop.f32.mrf.mxu0
      %v577 = vadd.f32 0.0, %v576
      %v578 = vpop.f32.mrf.mxu0
      %v579 = vadd.f32 0.0, %v578
      %580 = vdwg.mxu0
      %581 = vst [vmem:[%s266] sm:$0xff] %v502
      %582 = vst [vmem:[%s266 + $0x8] sm:$0xff] %v504
      %583 = vst [vmem:[%s266 + $0x10] sm:$0xff] %v507
      %584 = vst [vmem:[%s266 + $0x18] sm:$0xff] %v509
      %585 = vst [vmem:[%s266 + $0x20] sm:$0xff] %v512
      %586 = vst [vmem:[%s266 + $0x28] sm:$0xff] %v514
      %587 = vst [vmem:[%s266 + $0x30] sm:$0xff] %v517
      %588 = vst [vmem:[%s266 + $0x38] sm:$0xff] %v519
      %589 = vst [vmem:[%s266 + $0x40] sm:$0xff] %v522
      %590 = vst [vmem:[%s266 + $0x48] sm:$0xff] %v524
      %591 = vst [vmem:[%s266 + $0x50] sm:$0xff] %v527
      %592 = vst [vmem:[%s266 + $0x58] sm:$0xff] %v529
      %593 = vst [vmem:[%s266 + $0x60] sm:$0xff] %v532
      %594 = vst [vmem:[%s266 + $0x68] sm:$0xff] %v534
      %595 = vst [vmem:[%s266 + $0x70] sm:$0xff] %v537
      %596 = vst [vmem:[%s266 + $0x78] sm:$0xff] %v539
      %597 = vst [vmem:[%s266 + $0x80] sm:$0xff] %v542
      %598 = vst [vmem:[%s266 + $0x88] sm:$0xff] %v544
      %599 = vst [vmem:[%s266 + $0x90] sm:$0xff] %v547
      %600 = vst [vmem:[%s266 + $0x98] sm:$0xff] %v549
      %601 = vst [vmem:[%s266 + $0xa0] sm:$0xff] %v552
      %602 = vst [vmem:[%s266 + $0xa8] sm:$0xff] %v554
      %603 = vst [vmem:[%s266 + $0xb0] sm:$0xff] %v557
      %604 = vst [vmem:[%s266 + $0xb8] sm:$0xff] %v559
      %605 = vst [vmem:[%s266 + $0xc0] sm:$0xff] %v562
      %606 = vst [vmem:[%s266 + $0xc8] sm:$0xff] %v564
      %607 = vst [vmem:[%s266 + $0xd0] sm:$0xff] %v567
      %608 = vst [vmem:[%s266 + $0xd8] sm:$0xff] %v569
      %609 = vst [vmem:[%s266 + $0xe0] sm:$0xff] %v572
      %610 = vst [vmem:[%s266 + $0xe8] sm:$0xff] %v574
      %611 = vst [vmem:[%s266 + $0xf0] sm:$0xff] %v577
      %612 = vst [vmem:[%s266 + $0xf8] sm:$0xff] %v579
      %v613 = vadd.f32 %v502, %v504
      %v614 = vadd.f32 %v613, %v507
      %v615 = vadd.f32 %v614, %v509
      %v616 = vadd.f32 %v615, %v512
      %v617 = vadd.f32 %v616, %v514
      %v618 = vadd.f32 %v617, %v517
      %v619 = vadd.f32 %v618, %v519
      %v620 = vadd.f32 %v619, %v522
      %v621 = vadd.f32 %v620, %v524
      %v622 = vadd.f32 %v621, %v527
      %v623 = vadd.f32 %v622, %v529
      %v624 = vadd.f32 %v623, %v532
      %v625 = vadd.f32 %v624, %v534
      %v626 = vadd.f32 %v625, %v537
      %v627 = vadd.f32 %v626, %v539
      %v628 = vadd.f32 %v627, %v542
      %v629 = vadd.f32 %v628, %v544
      %v630 = vadd.f32 %v629, %v547
      %v631 = vadd.f32 %v630, %v549
      %v632 = vadd.f32 %v631, %v552
      %v633 = vadd.f32 %v632, %v554
      %v634 = vadd.f32 %v633, %v557
      %v635 = vadd.f32 %v634, %v559
      %v636 = vadd.f32 %v635, %v562
      %v637 = vadd.f32 %v636, %v564
      %v638 = vadd.f32 %v637, %v567
      %v639 = vadd.f32 %v638, %v569
      %v640 = vadd.f32 %v639, %v572
      %v641 = vadd.f32 %v640, %v574
      %v642 = vadd.f32 %v641, %v577
      %v643 = vadd.f32 %v642, %v579
      %v644 = vrot.slane %v643, 4
      %v645 = vadd.f32 %v643, %v644
      %v646 = vrot.slane %v645, 2
      %v647 = vadd.f32 %v645, %v646
      %v648 = vrot.slane %v647, 1
      %v649 = vadd.f32 %v647, %v648
      %v650 = vmul.f32 %v502, %v502
      %v651 = vmul.f32 %v504, %v504
      %v652 = vmul.f32 %v507, %v507
      %v653 = vmul.f32 %v509, %v509
      %v654 = vmul.f32 %v512, %v512
      %v655 = vmul.f32 %v514, %v514
      %v656 = vmul.f32 %v517, %v517
      %v657 = vmul.f32 %v519, %v519
      %v658 = vmul.f32 %v522, %v522
      %v659 = vmul.f32 %v524, %v524
      %v660 = vmul.f32 %v527, %v527
      %v661 = vmul.f32 %v529, %v529
      %v662 = vmul.f32 %v532, %v532
      %v663 = vmul.f32 %v534, %v534
      %v664 = vmul.f32 %v537, %v537
      %v665 = vmul.f32 %v539, %v539
      %v666 = vmul.f32 %v542, %v542
      %v667 = vmul.f32 %v544, %v544
      %v668 = vmul.f32 %v547, %v547
      %v669 = vmul.f32 %v549, %v549
      %v670 = vmul.f32 %v552, %v552
      %v671 = vmul.f32 %v554, %v554
      %v672 = vmul.f32 %v557, %v557
      %v673 = vmul.f32 %v559, %v559
      %v674 = vmul.f32 %v562, %v562
      %v675 = vmul.f32 %v564, %v564
      %v676 = vmul.f32 %v567, %v567
      %v677 = vmul.f32 %v569, %v569
      %v678 = vmul.f32 %v572, %v572
      %v679 = vmul.f32 %v574, %v574
      %v680 = vmul.f32 %v577, %v577
      %v681 = vmul.f32 %v579, %v579
      %v682 = vadd.f32 %v650, %v651
      %v683 = vadd.f32 %v682, %v652
      %v684 = vadd.f32 %v683, %v653
      %v685 = vadd.f32 %v684, %v654
      %v686 = vadd.f32 %v685, %v655
      %v687 = vadd.f32 %v686, %v656
      %v688 = vadd.f32 %v687, %v657
      %v689 = vadd.f32 %v688, %v658
      %v690 = vadd.f32 %v689, %v659
      %v691 = vadd.f32 %v690, %v660
      %v692 = vadd.f32 %v691, %v661
      %v693 = vadd.f32 %v692, %v662
      %v694 = vadd.f32 %v693, %v663
      %v695 = vadd.f32 %v694, %v664
      %v696 = vadd.f32 %v695, %v665
      %v697 = vadd.f32 %v696, %v666
      %v698 = vadd.f32 %v697, %v667
      %v699 = vadd.f32 %v698, %v668
      %v700 = vadd.f32 %v699, %v669
      %v701 = vadd.f32 %v700, %v670
      %v702 = vadd.f32 %v701, %v671
      %v703 = vadd.f32 %v702, %v672
      %v704 = vadd.f32 %v703, %v673
      %v705 = vadd.f32 %v704, %v674
      %v706 = vadd.f32 %v705, %v675
      %v707 = vadd.f32 %v706, %v676
      %v708 = vadd.f32 %v707, %v677
      %v709 = vadd.f32 %v708, %v678
      %v710 = vadd.f32 %v709, %v679
      %v711 = vadd.f32 %v710, %v680
      %v712 = vadd.f32 %v711, %v681
      %v713 = vrot.slane %v712, 4
      %v714 = vadd.f32 %v712, %v713
      %v715 = vrot.slane %v714, 2
      %v716 = vadd.f32 %v714, %v715
      %v717 = vrot.slane %v716, 1
      %v718 = vadd.f32 %v716, %v717
      %719 = vst [vmem:[%s271] sm:$0xff] %v649
      %720 = vst [vmem:[%s275] sm:$0xff] %v718
      %s721 = smul.u32 32, %s18
      %p722 = scmp.lt.s32.totalorder %s721, 63
      %s723 = scalar_select %p722, %s721, 63
      %s724 = smul.addr %s723, 8
      %s725 = scalar_lea.vmem %s4, %s724
      %p726 = scmp.lt.s32.totalorder %s18, 1
      %s727 = scalar_select %p726, %s18, 1
      %s728 = smul.addr %s727, 8
      %s729 = scalar_lea.vmem %s5, %s728
      %p730 = scmp.lt.s32.totalorder %s18, 1
      %s731 = scalar_select %p730, %s18, 1
      %s732 = smul.addr %s731, 8
      %s733 = scalar_lea.vmem %s6, %s732
      // Predicated region
      $region37: #{bottleneck_forward.7} parent=35 // pred_check
        %p734 = pneg %p125
      $region38: #{bottleneck_forward.7} parent=35 // pred_check_branch
        %736 = sbr.rel (%p734) target = $region40
      $region39: #{bottleneck_forward.7} parent=35 // pred_region
        %s737 = smul.u32 32, %s18
      $region40: #{bottleneck_forward.7} parent=35 // pred_fallthru
        _
      // Predicated region
      $region41: #{bottleneck_forward.7} parent=35 // pred_check
        %p738 = pneg %p151
      $region42: #{bottleneck_forward.7} parent=35 // pred_check_branch
        %740 = sbr.rel (%p738) target = $region44
      $region43: #{bottleneck_forward.7} parent=35 // pred_region
        _
      $region44: #{bottleneck_forward.7} parent=35 // pred_fallthru
        _
      // Predicated region
      $region45: #{bottleneck_forward.7} parent=35 // pred_check
        %p741 = pneg %p177
      $region46: #{bottleneck_forward.7} parent=35 // pred_check_branch
        %743 = sbr.rel (%p741) target = $region48
      $region47: #{bottleneck_forward.7} parent=35 // pred_region
        _
      $region48: #{bottleneck_forward.7} parent=35 // pred_fallthru
        _
    $region36: #{bottleneck_forward.7} parent=5 // pred_fallthru
      _
    %p744 = scmp.le.s32.totalorder 2, %s13
    // Predicated region
    $region49: #{bottleneck_forward.7} parent=5 // pred_check
      %p745 = pneg %p744
    $region50: #{bottleneck_forward.7} parent=5 // pred_check_branch
      %747 = sbr.rel (%p745) target = $region52
    $region51: #{bottleneck_forward.7} parent=5 // pred_region
      %s748 = ssub.s32 %s13, 2
      // Predicated region
      $region53: #{bottleneck_forward.7} parent=51 // pred_check
        %p749 = pneg %p131
      $region54: #{bottleneck_forward.7} parent=51 // pred_check_branch
        %751 = sbr.rel (%p749) target = $region56
      $region55: #{bottleneck_forward.7} parent=51 // pred_region
        %s752 = smul.u32 32, %s19
        %p753 = scmp.lt.s32.totalorder %s752, 63
        %s754 = scalar_select %p753, %s752, 63
        %s755 = smul.addr %s754, 8
        %s756 = scalar_lea.vmem %s4, %s755
      $region56: #{bottleneck_forward.7} parent=51 // pred_fallthru
        _
      // Predicated region
      $region57: #{bottleneck_forward.7} parent=51 // pred_check
        %p757 = pneg %p157
      $region58: #{bottleneck_forward.7} parent=51 // pred_check_branch
        %759 = sbr.rel (%p757) target = $region60
      $region59: #{bottleneck_forward.7} parent=51 // pred_region
        %p760 = scmp.lt.s32.totalorder %s19, 1
        %s761 = scalar_select %p760, %s19, 1
        %s762 = smul.addr %s761, 8
        %s763 = scalar_lea.vmem %s5, %s762
      $region60: #{bottleneck_forward.7} parent=51 // pred_fallthru
        _
      // Predicated region
      $region61: #{bottleneck_forward.7} parent=51 // pred_check
        %p764 = pneg %p183
      $region62: #{bottleneck_forward.7} parent=51 // pred_check_branch
        %766 = sbr.rel (%p764) target = $region64
      $region63: #{bottleneck_forward.7} parent=51 // pred_region
        %p767 = scmp.lt.s32.totalorder %s19, 1
        %s768 = scalar_select %p767, %s19, 1
        %s769 = smul.addr %s768, 8
        %s770 = scalar_lea.vmem %s6, %s769
      $region64: #{bottleneck_forward.7} parent=51 // pred_fallthru
        _
    $region52: #{bottleneck_forward.7} parent=5 // pred_fallthru
      _
  $region6: #{bottleneck_forward.7} parent=0 // loop_footer
    %s17 = sadd.s32 1, %s13
  $region7: #{bottleneck_forward.7} parent=0 // loop_footer_branch
    %12 = sbr.rel target = $region3
  $region8: #{bottleneck_forward.7} parent=0 // loop_exit
    _

// kernel: bottleneck_forward.9
$region0: #{bottleneck_forward.9}
  #allocation0 [shape = 'u32[]', space=smem, size = 0x4, offset = 0x4, fixed_abs, tag = 'smem constant byte address 0x4 - core index']
  #allocation1 [shape = 'u32[72,128]{1,0:T(1,128)}', space=vmem, size = 0x9000, scoped, tag = 'internal scratch']
  %s0 = inlined_call_operand.vmem [shape: f32[512,128], index: 0, kind: input, shape index: {}]
  %s1 = inlined_call_operand.vmem [shape: f32[512,128], index: 1, kind: input, shape index: {}]
  %s2 = inlined_call_operand.vmem [shape: f32[1,128], index: 2, kind: input, shape index: {}]
  %s3 = inlined_call_operand.vmem [shape: f32[1,128], index: 3, kind: input, shape index: {}]
  %s4 = inlined_call_operand.vmem [shape: f32[1,128], index: 4, kind: input, shape index: {}]
  %s5 = inlined_call_operand.vmem [shape: f32[1,128], index: 5, kind: input, shape index: {}]
  %s6 = inlined_call_operand.vmem [shape: f32[512,128], index: 6, kind: output, shape index: {}]
  %s7 = sld [smem:[#allocation0]]
  $region57: #{bottleneck_forward.9} parent=0
    _
  %s9 = ssub.s32 1, %s7
  %s10 = scalar_select 0, %s9, %s7
  loop: start=0, step=1, limit=4
  $region2: #{bottleneck_forward.9} parent=0 // loop_pre_header
    _
  $region3: #{bottleneck_forward.9} parent=0 // loop_header
    %s12 = sphi 0, %s16
    %p13 = scmp.ge.s32.totalorder %s12, 4
    %s22 = sphi 0, %s24
    %s25 = sphi 0, %s22
    %s26 = sphi 0, %s25
    %s42 = sphi 0, %s26
    %s48 = sphi 0, %s50
    %s51 = sphi 0, %s48
    %s52 = sphi 0, %s51
    %s68 = sphi 0, %s52
    %s72 = sphi 0, %s72
    %s74 = sphi 0, %s72
    %s75 = sphi 0, %s74
    %s89 = sphi 0, %s75
    %s93 = sphi 0, %s93
    %s95 = sphi 0, %s93
    %s96 = sphi 0, %s95
    %s110 = sphi 0, %s96
    %s114 = sphi 0, %s114
    %s116 = sphi 0, %s114
    %s117 = sphi 0, %s116
    %s131 = sphi 0, %s117
    %s135 = sphi 0, %s135
    %s137 = sphi 0, %s135
    %s138 = sphi 0, %s137
    %s152 = sphi 0, %s138
    %s158 = sphi 0, %s160
    %s161 = sphi 0, %s158
    %s162 = sphi 0, %s161
    %s178 = sphi 0, %s162
  $region4: #{bottleneck_forward.9} parent=0 // loop_header_branch
    %15 = sbr.rel (%p13) target = $region8
  $region5: #{bottleneck_forward.9} parent=0 // loop_body
    %s17 = ssub.s32 %s12, 1
    %s18 = ssub.s32 %s12, 2
    %s19 = sadd.s32 %s12, 1
    %s20 = ssub.s32 %s12, %s19
    %p21 = scmp.eq.s32.totalorder %s20, 0
    %s23 = sadd.s32 %s22, 1
    %s24 = scalar_select %p21, %s22, %s23
    %p27 = pneg %p21
    %p28 = scmp.eq.s32.totalorder %s12, 1
    %p29 = por %p27, %p28
    %p30 = scmp.ne.s32.totalorder %s22, %s25
    %p31 = scmp.eq.s32.totalorder %s12, 0
    %p32 = por %p30, %p31
    %p33 = scmp.ne.s32.totalorder %s22, %s25
    %p34 = scmp.eq.s32.totalorder %s17, 1
    %p35 = por %p33, %p34
    %p36 = scmp.ne.s32.totalorder %s25, %s26
    %p37 = scmp.eq.s32.totalorder %s17, 0
    %p38 = por %p36, %p37
    %p39 = scmp.ne.s32.totalorder %s25, %s26
    %p40 = scmp.eq.s32.totalorder %s18, 1
    %p41 = por %p39, %p40
    %p43 = scmp.ne.s32.totalorder %s26, %s42
    %p44 = scmp.eq.s32.totalorder %s18, 0
    %p45 = por %p43, %p44
    %s46 = ssub.s32 %s12, %s19
    %p47 = scmp.eq.s32.totalorder %s46, 0
    %s49 = sadd.s32 %s48, 1
    %s50 = scalar_select %p47, %s48, %s49
    %p53 = pneg %p47
    %p54 = scmp.eq.s32.totalorder %s12, 1
    %p55 = por %p53, %p54
    %p56 = scmp.ne.s32.totalorder %s48, %s51
    %p57 = scmp.eq.s32.totalorder %s12, 0
    %p58 = por %p56, %p57
    %p59 = scmp.ne.s32.totalorder %s48, %s51
    %p60 = scmp.eq.s32.totalorder %s17, 1
    %p61 = por %p59, %p60
    %p62 = scmp.ne.s32.totalorder %s51, %s52
    %p63 = scmp.eq.s32.totalorder %s17, 0
    %p64 = por %p62, %p63
    %p65 = scmp.ne.s32.totalorder %s51, %s52
    %p66 = scmp.eq.s32.totalorder %s18, 1
    %p67 = por %p65, %p66
    %p69 = scmp.ne.s32.totalorder %s52, %s68
    %p70 = scmp.eq.s32.totalorder %s18, 0
    %p71 = por %p69, %p70
    %s73 = sadd.s32 %s72, 1
    %p76 = scmp.eq.s32.totalorder %s12, 1
    %p77 = scmp.ne.s32.totalorder %s72, %s74
    %p78 = scmp.eq.s32.totalorder %s12, 0
    %p79 = por %p77, %p78
    %p80 = scmp.ne.s32.totalorder %s72, %s74
    %p81 = scmp.eq.s32.totalorder %s17, 1
    %p82 = por %p80, %p81
    %p83 = scmp.ne.s32.totalorder %s74, %s75
    %p84 = scmp.eq.s32.totalorder %s17, 0
    %p85 = por %p83, %p84
    %p86 = scmp.ne.s32.totalorder %s74, %s75
    %p87 = scmp.eq.s32.totalorder %s18, 1
    %p88 = por %p86, %p87
    %p90 = scmp.ne.s32.totalorder %s75, %s89
    %p91 = scmp.eq.s32.totalorder %s18, 0
    %p92 = por %p90, %p91
    %s94 = sadd.s32 %s93, 1
    %p97 = scmp.eq.s32.totalorder %s12, 1
    %p98 = scmp.ne.s32.totalorder %s93, %s95
    %p99 = scmp.eq.s32.totalorder %s12, 0
    %p100 = por %p98, %p99
    %p101 = scmp.ne.s32.totalorder %s93, %s95
    %p102 = scmp.eq.s32.totalorder %s17, 1
    %p103 = por %p101, %p102
    %p104 = scmp.ne.s32.totalorder %s95, %s96
    %p105 = scmp.eq.s32.totalorder %s17, 0
    %p106 = por %p104, %p105
    %p107 = scmp.ne.s32.totalorder %s95, %s96
    %p108 = scmp.eq.s32.totalorder %s18, 1
    %p109 = por %p107, %p108
    %p111 = scmp.ne.s32.totalorder %s96, %s110
    %p112 = scmp.eq.s32.totalorder %s18, 0
    %p113 = por %p111, %p112
    %s115 = sadd.s32 %s114, 1
    %p118 = scmp.eq.s32.totalorder %s12, 1
    %p119 = scmp.ne.s32.totalorder %s114, %s116
    %p120 = scmp.eq.s32.totalorder %s12, 0
    %p121 = por %p119, %p120
    %p122 = scmp.ne.s32.totalorder %s114, %s116
    %p123 = scmp.eq.s32.totalorder %s17, 1
    %p124 = por %p122, %p123
    %p125 = scmp.ne.s32.totalorder %s116, %s117
    %p126 = scmp.eq.s32.totalorder %s17, 0
    %p127 = por %p125, %p126
    %p128 = scmp.ne.s32.totalorder %s116, %s117
    %p129 = scmp.eq.s32.totalorder %s18, 1
    %p130 = por %p128, %p129
    %p132 = scmp.ne.s32.totalorder %s117, %s131
    %p133 = scmp.eq.s32.totalorder %s18, 0
    %p134 = por %p132, %p133
    %s136 = sadd.s32 %s135, 1
    %p139 = scmp.eq.s32.totalorder %s12, 1
    %p140 = scmp.ne.s32.totalorder %s135, %s137
    %p141 = scmp.eq.s32.totalorder %s12, 0
    %p142 = por %p140, %p141
    %p143 = scmp.ne.s32.totalorder %s135, %s137
    %p144 = scmp.eq.s32.totalorder %s17, 1
    %p145 = por %p143, %p144
    %p146 = scmp.ne.s32.totalorder %s137, %s138
    %p147 = scmp.eq.s32.totalorder %s17, 0
    %p148 = por %p146, %p147
    %p149 = scmp.ne.s32.totalorder %s137, %s138
    %p150 = scmp.eq.s32.totalorder %s18, 1
    %p151 = por %p149, %p150
    %p153 = scmp.ne.s32.totalorder %s138, %s152
    %p154 = scmp.eq.s32.totalorder %s18, 0
    %p155 = por %p153, %p154
    %s156 = ssub.s32 %s12, %s19
    %p157 = scmp.eq.s32.totalorder %s156, 0
    %s159 = sadd.s32 %s158, 1
    %s160 = scalar_select %p157, %s158, %s159
    %p163 = pneg %p157
    %p164 = scmp.eq.s32.totalorder %s12, 1
    %p165 = por %p163, %p164
    %p166 = scmp.ne.s32.totalorder %s158, %s161
    %p167 = scmp.eq.s32.totalorder %s12, 0
    %p168 = por %p166, %p167
    %p169 = scmp.ne.s32.totalorder %s158, %s161
    %p170 = scmp.eq.s32.totalorder %s17, 1
    %p171 = por %p169, %p170
    %p172 = scmp.ne.s32.totalorder %s161, %s162
    %p173 = scmp.eq.s32.totalorder %s17, 0
    %p174 = por %p172, %p173
    %p175 = scmp.ne.s32.totalorder %s161, %s162
    %p176 = scmp.eq.s32.totalorder %s18, 1
    %p177 = por %p175, %p176
    %p179 = scmp.ne.s32.totalorder %s162, %s178
    %p180 = scmp.eq.s32.totalorder %s18, 0
    %p181 = por %p179, %p180
    %p182 = scmp.le.s32.totalorder 1, %s12
    %p183 = scmp.lt.s32.totalorder %s12, 3
    %p184 = pnand %p182, %p183
    %p185 = pneg %p184
    // Predicated region
    $region9: #{bottleneck_forward.9} parent=5 // pred_check
      _
    $region10: #{bottleneck_forward.9} parent=5 // pred_check_branch
      %187 = sbr.rel (%p184) target = $region12
    $region11: #{bottleneck_forward.9} parent=5 // pred_region
      %s188 = ssub.s32 %s12, 1
      // Predicated region
      $region13: #{bottleneck_forward.9} parent=11 // pred_check
        %p189 = pneg %p85
      $region14: #{bottleneck_forward.9} parent=11 // pred_check_branch
        %191 = sbr.rel (%p189) target = $region16
      $region15: #{bottleneck_forward.9} parent=11 // pred_region
        _
      $region16: #{bottleneck_forward.9} parent=11 // pred_fallthru
        _
      // Predicated region
      $region17: #{bottleneck_forward.9} parent=11 // pred_check
        %p192 = pneg %p106
      $region18: #{bottleneck_forward.9} parent=11 // pred_check_branch
        %194 = sbr.rel (%p192) target = $region20
      $region19: #{bottleneck_forward.9} parent=11 // pred_region
        _
      $region20: #{bottleneck_forward.9} parent=11 // pred_fallthru
        _
      // Predicated region
      $region21: #{bottleneck_forward.9} parent=11 // pred_check
        %p195 = pneg %p127
      $region22: #{bottleneck_forward.9} parent=11 // pred_check_branch
        %197 = sbr.rel (%p195) target = $region24
      $region23: #{bottleneck_forward.9} parent=11 // pred_region
        _
      $region24: #{bottleneck_forward.9} parent=11 // pred_fallthru
        _
      // Predicated region
      $region25: #{bottleneck_forward.9} parent=11 // pred_check
        %p198 = pneg %p148
      $region26: #{bottleneck_forward.9} parent=11 // pred_check_branch
        %200 = sbr.rel (%p198) target = $region28
      $region27: #{bottleneck_forward.9} parent=11 // pred_region
        _
      $region28: #{bottleneck_forward.9} parent=11 // pred_fallthru
        _
    $region12: #{bottleneck_forward.9} parent=5 // pred_fallthru
      _
    %p201 = scmp.lt.s32.totalorder %s12, 2
    // Predicated region
    $region29: #{bottleneck_forward.9} parent=5 // pred_check
      %p202 = pneg %p201
    $region30: #{bottleneck_forward.9} parent=5 // pred_check_branch
      %204 = sbr.rel (%p202) target = $region32
    $region31: #{bottleneck_forward.9} parent=5 // pred_region
      // Predicated region
      $region33: #{bottleneck_forward.9} parent=31 // pred_check
        %p205 = pneg %p32
      $region34: #{bottleneck_forward.9} parent=31 // pred_check_branch
        %207 = sbr.rel (%p205) target = $region36
      $region35: #{bottleneck_forward.9} parent=31 // pred_region
        %s208 = smul.u32 32, %s12
        %p209 = scmp.lt.s32.totalorder %s208, 63
        %s210 = scalar_select %p209, %s208, 63
        %s211 = smul.addr %s210, 8
        %s212 = scalar_lea.vmem %s0, %s211
        %s213 = smul.u32 32, %s12
      $region36: #{bottleneck_forward.9} parent=31 // pred_fallthru
        _
      // Predicated region
      $region37: #{bottleneck_forward.9} parent=31 // pred_check
        %p214 = pneg %p58
      $region38: #{bottleneck_forward.9} parent=31 // pred_check_branch
        %216 = sbr.rel (%p214) target = $region40
      $region39: #{bottleneck_forward.9} parent=31 // pred_region
        %s217 = smul.u32 32, %s12
        %p218 = scmp.lt.s32.totalorder %s217, 63
        %s219 = scalar_select %p218, %s217, 63
        %s220 = smul.addr %s219, 8
        %s221 = scalar_lea.vmem %s1, %s220
        %s222 = smul.u32 32, %s12
      $region40: #{bottleneck_forward.9} parent=31 // pred_fallthru
        _
    $region32: #{bottleneck_forward.9} parent=5 // pred_fallthru
      _
    %p223 = scmp.le.s32.totalorder 1, %s12
    %p224 = scmp.lt.s32.totalorder %s12, 3
    %p225 = pnand %p223, %p224
    %p226 = pneg %p225
    // Predicated region
    $region41: #{bottleneck_forward.9} parent=5 // pred_check
      _
    $region42: #{bottleneck_forward.9} parent=5 // pred_check_branch
      %228 = sbr.rel (%p225) target = $region44
    $region43: #{bottleneck_forward.9} parent=5 // pred_region
      %s229 = ssub.s32 %s12, 1
      %s230 = smul.u32 32, %s17
      %p231 = scmp.lt.s32.totalorder %s230, 63
      %s232 = scalar_select %p231, %s230, 63
      %s233 = smul.addr %s232, 8
      %s234 = scalar_lea.vmem %s0, %s233
      %p235 = pneg %p38
      %p236 = pneg %p35
      %s237 = smul.u32 32, %s17
      %p238 = scmp.lt.s32.totalorder %s237, 63
      %s239 = scalar_select %p238, %s237, 63
      %s240 = smul.addr %s239, 8
      %s241 = scalar_lea.vmem %s1, %s240
      %p242 = pneg %p64
      %p243 = pneg %p61
      %p244 = pneg %p85
      %p245 = pneg %p82
      %p246 = pneg %p106
      %p247 = pneg %p103
      %p248 = pneg %p127
      %p249 = pneg %p124
      %p250 = pneg %p148
      %p251 = pneg %p145
      %p252 = pneg %p174
      %p253 = pneg %p171
      %s254 = smul.u32 32, %s17
      %p255 = scmp.lt.s32.totalorder %s254, 63
      %s256 = scalar_select %p255, %s254, 63
      %s257 = smul.addr %s256, 8
      %s258 = scalar_lea.vmem %s6, %s257
      %s259 = smul.u32 32, %s17
      %p260 = scmp.lt.s32.totalorder %s259, 63
      %s261 = scalar_select %p260, %s259, 63
      %s262 = smul.addr %s261, 8
      %s263 = scalar_lea.vmem %s0, %s262
      %s264 = smul.u32 32, %s17
      %s265 = smul.u32 32, %s17
      %p266 = scmp.lt.s32.totalorder %s265, 63
      %s267 = scalar_select %p266, %s265, 63
      %s268 = smul.addr %s267, 8
      %s269 = scalar_lea.vmem %s1, %s268
      %s270 = smul.u32 32, %s17
      %s271 = smul.u32 32, %s17
      %p272 = scmp.lt.s32.totalorder %s271, 63
      %s273 = scalar_select %p272, %s271, 63
      %s274 = smul.addr %s273, 8
      %s275 = scalar_lea.vmem %s6, %s274
      %s276 = smul.u32 32, %s17
      %v277 = vld [vmem:[%s263] sm:$0xff]
      %v278 = vld [vmem:[%s263 + $0x8] sm:$0xff]
      %v279 = vld [vmem:[%s263 + $0x10] sm:$0xff]
      %v280 = vld [vmem:[%s263 + $0x18] sm:$0xff]
      %v281 = vld [vmem:[%s263 + $0x20] sm:$0xff]
      %v282 = vld [vmem:[%s263 + $0x28] sm:$0xff]
      %v283 = vld [vmem:[%s263 + $0x30] sm:$0xff]
      %v284 = vld [vmem:[%s263 + $0x38] sm:$0xff]
      %v285 = vld [vmem:[%s263 + $0x40] sm:$0xff]
      %v286 = vld [vmem:[%s263 + $0x48] sm:$0xff]
      %v287 = vld [vmem:[%s263 + $0x50] sm:$0xff]
      %v288 = vld [vmem:[%s263 + $0x58] sm:$0xff]
      %v289 = vld [vmem:[%s263 + $0x60] sm:$0xff]
      %v290 = vld [vmem:[%s263 + $0x68] sm:$0xff]
      %v291 = vld [vmem:[%s263 + $0x70] sm:$0xff]
      %v292 = vld [vmem:[%s263 + $0x78] sm:$0xff]
      %v293 = vld [vmem:[%s263 + $0x80] sm:$0xff]
      %v294 = vld [vmem:[%s263 + $0x88] sm:$0xff]
      %v295 = vld [vmem:[%s263 + $0x90] sm:$0xff]
      %v296 = vld [vmem:[%s263 + $0x98] sm:$0xff]
      %v297 = vld [vmem:[%s263 + $0xa0] sm:$0xff]
      %v298 = vld [vmem:[%s263 + $0xa8] sm:$0xff]
      %v299 = vld [vmem:[%s263 + $0xb0] sm:$0xff]
      %v300 = vld [vmem:[%s263 + $0xb8] sm:$0xff]
      %v301 = vld [vmem:[%s263 + $0xc0] sm:$0xff]
      %v302 = vld [vmem:[%s263 + $0xc8] sm:$0xff]
      %v303 = vld [vmem:[%s263 + $0xd0] sm:$0xff]
      %v304 = vld [vmem:[%s263 + $0xd8] sm:$0xff]
      %v305 = vld [vmem:[%s263 + $0xe0] sm:$0xff]
      %v306 = vld [vmem:[%s263 + $0xe8] sm:$0xff]
      %v307 = vld [vmem:[%s263 + $0xf0] sm:$0xff]
      %v308 = vld [vmem:[%s263 + $0xf8] sm:$0xff]
      %v309 = vld [vmem:[%s2] sm:$0x1]
      %v311 = vperm.slane %v309, 0
      %v313 = vmul.f32 %v277, %v311
      %v314 = vmul.f32 %v278, %v311
      %v315 = vmul.f32 %v279, %v311
      %v316 = vmul.f32 %v280, %v311
      %v317 = vmul.f32 %v281, %v311
      %v318 = vmul.f32 %v282, %v311
      %v319 = vmul.f32 %v283, %v311
      %v320 = vmul.f32 %v284, %v311
      %v321 = vmul.f32 %v285, %v311
      %v322 = vmul.f32 %v286, %v311
      %v323 = vmul.f32 %v287, %v311
      %v324 = vmul.f32 %v288, %v311
      %v325 = vmul.f32 %v289, %v311
      %v326 = vmul.f32 %v290, %v311
      %v327 = vmul.f32 %v291, %v311
      %v328 = vmul.f32 %v292, %v311
      %v329 = vmul.f32 %v293, %v311
      %v330 = vmul.f32 %v294, %v311
      %v331 = vmul.f32 %v295, %v311
      %v332 = vmul.f32 %v296, %v311
      %v333 = vmul.f32 %v297, %v311
      %v334 = vmul.f32 %v298, %v311
      %v335 = vmul.f32 %v299, %v311
      %v336 = vmul.f32 %v300, %v311
      %v337 = vmul.f32 %v301, %v311
      %v338 = vmul.f32 %v302, %v311
      %v339 = vmul.f32 %v303, %v311
      %v340 = vmul.f32 %v304, %v311
      %v341 = vmul.f32 %v305, %v311
      %v342 = vmul.f32 %v306, %v311
      %v343 = vmul.f32 %v307, %v311
      %v344 = vmul.f32 %v308, %v311
      %v345 = vld [vmem:[%s3] sm:$0x1]
      %v347 = vperm.slane %v345, 0
      %v349 = vadd.f32 %v313, %v347
      %v350 = vadd.f32 %v314, %v347
      %v351 = vadd.f32 %v315, %v347
      %v352 = vadd.f32 %v316, %v347
      %v353 = vadd.f32 %v317, %v347
      %v354 = vadd.f32 %v318, %v347
      %v355 = vadd.f32 %v319, %v347
      %v356 = vadd.f32 %v320, %v347
      %v357 = vadd.f32 %v321, %v347
      %v358 = vadd.f32 %v322, %v347
      %v359 = vadd.f32 %v323, %v347
      %v360 = vadd.f32 %v324, %v347
      %v361 = vadd.f32 %v325, %v347
      %v362 = vadd.f32 %v326, %v347
      %v363 = vadd.f32 %v327, %v347
      %v364 = vadd.f32 %v328, %v347
      %v365 = vadd.f32 %v329, %v347
      %v366 = vadd.f32 %v330, %v347
      %v367 = vadd.f32 %v331, %v347
      %v368 = vadd.f32 %v332, %v347
      %v369 = vadd.f32 %v333, %v347
      %v370 = vadd.f32 %v334, %v347
      %v371 = vadd.f32 %v335, %v347
      %v372 = vadd.f32 %v336, %v347
      %v373 = vadd.f32 %v337, %v347
      %v374 = vadd.f32 %v338, %v347
      %v375 = vadd.f32 %v339, %v347
      %v376 = vadd.f32 %v340, %v347
      %v377 = vadd.f32 %v341, %v347
      %v378 = vadd.f32 %v342, %v347
      %v379 = vadd.f32 %v343, %v347
      %v380 = vadd.f32 %v344, %v347
      %v381 = vld [vmem:[%s269] sm:$0xff]
      %v382 = vld [vmem:[%s269 + $0x8] sm:$0xff]
      %v383 = vld [vmem:[%s269 + $0x10] sm:$0xff]
      %v384 = vld [vmem:[%s269 + $0x18] sm:$0xff]
      %v385 = vld [vmem:[%s269 + $0x20] sm:$0xff]
      %v386 = vld [vmem:[%s269 + $0x28] sm:$0xff]
      %v387 = vld [vmem:[%s269 + $0x30] sm:$0xff]
      %v388 = vld [vmem:[%s269 + $0x38] sm:$0xff]
      %v389 = vld [vmem:[%s269 + $0x40] sm:$0xff]
      %v390 = vld [vmem:[%s269 + $0x48] sm:$0xff]
      %v391 = vld [vmem:[%s269 + $0x50] sm:$0xff]
      %v392 = vld [vmem:[%s269 + $0x58] sm:$0xff]
      %v393 = vld [vmem:[%s269 + $0x60] sm:$0xff]
      %v394 = vld [vmem:[%s269 + $0x68] sm:$0xff]
      %v395 = vld [vmem:[%s269 + $0x70] sm:$0xff]
      %v396 = vld [vmem:[%s269 + $0x78] sm:$0xff]
      %v397 = vld [vmem:[%s269 + $0x80] sm:$0xff]
      %v398 = vld [vmem:[%s269 + $0x88] sm:$0xff]
      %v399 = vld [vmem:[%s269 + $0x90] sm:$0xff]
      %v400 = vld [vmem:[%s269 + $0x98] sm:$0xff]
      %v401 = vld [vmem:[%s269 + $0xa0] sm:$0xff]
      %v402 = vld [vmem:[%s269 + $0xa8] sm:$0xff]
      %v403 = vld [vmem:[%s269 + $0xb0] sm:$0xff]
      %v404 = vld [vmem:[%s269 + $0xb8] sm:$0xff]
      %v405 = vld [vmem:[%s269 + $0xc0] sm:$0xff]
      %v406 = vld [vmem:[%s269 + $0xc8] sm:$0xff]
      %v407 = vld [vmem:[%s269 + $0xd0] sm:$0xff]
      %v408 = vld [vmem:[%s269 + $0xd8] sm:$0xff]
      %v409 = vld [vmem:[%s269 + $0xe0] sm:$0xff]
      %v410 = vld [vmem:[%s269 + $0xe8] sm:$0xff]
      %v411 = vld [vmem:[%s269 + $0xf0] sm:$0xff]
      %v412 = vld [vmem:[%s269 + $0xf8] sm:$0xff]
      %v413 = vld [vmem:[%s4] sm:$0x1]
      %v415 = vperm.slane %v413, 0
      %v417 = vmul.f32 %v381, %v415
      %v418 = vmul.f32 %v382, %v415
      %v419 = vmul.f32 %v383, %v415
      %v420 = vmul.f32 %v384, %v415
      %v421 = vmul.f32 %v385, %v415
      %v422 = vmul.f32 %v386, %v415
      %v423 = vmul.f32 %v387, %v415
      %v424 = vmul.f32 %v388, %v415
      %v425 = vmul.f32 %v389, %v415
      %v426 = vmul.f32 %v390, %v415
      %v427 = vmul.f32 %v391, %v415
      %v428 = vmul.f32 %v392, %v415
      %v429 = vmul.f32 %v393, %v415
      %v430 = vmul.f32 %v394, %v415
      %v431 = vmul.f32 %v395, %v415
      %v432 = vmul.f32 %v396, %v415
      %v433 = vmul.f32 %v397, %v415
      %v434 = vmul.f32 %v398, %v415
      %v435 = vmul.f32 %v399, %v415
      %v436 = vmul.f32 %v400, %v415
      %v437 = vmul.f32 %v401, %v415
      %v438 = vmul.f32 %v402, %v415
      %v439 = vmul.f32 %v403, %v415
      %v440 = vmul.f32 %v404, %v415
      %v441 = vmul.f32 %v405, %v415
      %v442 = vmul.f32 %v406, %v415
      %v443 = vmul.f32 %v407, %v415
      %v444 = vmul.f32 %v408, %v415
      %v445 = vmul.f32 %v409, %v415
      %v446 = vmul.f32 %v410, %v415
      %v447 = vmul.f32 %v411, %v415
      %v448 = vmul.f32 %v412, %v415
      %v449 = vld [vmem:[%s5] sm:$0x1]
      %v451 = vperm.slane %v449, 0
      %v453 = vadd.f32 %v417, %v451
      %v454 = vadd.f32 %v418, %v451
      %v455 = vadd.f32 %v419, %v451
      %v456 = vadd.f32 %v420, %v451
      %v457 = vadd.f32 %v421, %v451
      %v458 = vadd.f32 %v422, %v451
      %v459 = vadd.f32 %v423, %v451
      %v460 = vadd.f32 %v424, %v451
      %v461 = vadd.f32 %v425, %v451
      %v462 = vadd.f32 %v426, %v451
      %v463 = vadd.f32 %v427, %v451
      %v464 = vadd.f32 %v428, %v451
      %v465 = vadd.f32 %v429, %v451
      %v466 = vadd.f32 %v430, %v451
      %v467 = vadd.f32 %v431, %v451
      %v468 = vadd.f32 %v432, %v451
      %v469 = vadd.f32 %v433, %v451
      %v470 = vadd.f32 %v434, %v451
      %v471 = vadd.f32 %v435, %v451
      %v472 = vadd.f32 %v436, %v451
      %v473 = vadd.f32 %v437, %v451
      %v474 = vadd.f32 %v438, %v451
      %v475 = vadd.f32 %v439, %v451
      %v476 = vadd.f32 %v440, %v451
      %v477 = vadd.f32 %v441, %v451
      %v478 = vadd.f32 %v442, %v451
      %v479 = vadd.f32 %v443, %v451
      %v480 = vadd.f32 %v444, %v451
      %v481 = vadd.f32 %v445, %v451
      %v482 = vadd.f32 %v446, %v451
      %v483 = vadd.f32 %v447, %v451
      %v484 = vadd.f32 %v448, %v451
      %v485 = vadd.f32 %v349, %v453
      %v486 = vadd.f32 %v350, %v454
      %v487 = vadd.f32 %v351, %v455
      %v488 = vadd.f32 %v352, %v456
      %v489 = vadd.f32 %v353, %v457
      %v490 = vadd.f32 %v354, %v458
      %v491 = vadd.f32 %v355, %v459
      %v492 = vadd.f32 %v356, %v460
      %v493 = vadd.f32 %v357, %v461
      %v494 = vadd.f32 %v358, %v462
      %v495 = vadd.f32 %v359, %v463
      %v496 = vadd.f32 %v360, %v464
      %v497 = vadd.f32 %v361, %v465
      %v498 = vadd.f32 %v362, %v466
      %v499 = vadd.f32 %v363, %v467
      %v500 = vadd.f32 %v364, %v468
      %v501 = vadd.f32 %v365, %v469
      %v502 = vadd.f32 %v366, %v470
      %v503 = vadd.f32 %v367, %v471
      %v504 = vadd.f32 %v368, %v472
      %v505 = vadd.f32 %v369, %v473
      %v506 = vadd.f32 %v370, %v474
      %v507 = vadd.f32 %v371, %v475
      %v508 = vadd.f32 %v372, %v476
      %v509 = vadd.f32 %v373, %v477
      %v510 = vadd.f32 %v374, %v478
      %v511 = vadd.f32 %v375, %v479
      %v512 = vadd.f32 %v376, %v480
      %v513 = vadd.f32 %v377, %v481
      %v514 = vadd.f32 %v378, %v482
      %v515 = vadd.f32 %v379, %v483
      %v516 = vadd.f32 %v380, %v484
      %v517 = vmax.f32 %v485, 0.0
      %v518 = vmax.f32 %v486, 0.0
      %v519 = vmax.f32 %v487, 0.0
      %v520 = vmax.f32 %v488, 0.0
      %v521 = vmax.f32 %v489, 0.0
      %v522 = vmax.f32 %v490, 0.0
      %v523 = vmax.f32 %v491, 0.0
      %v524 = vmax.f32 %v492, 0.0
      %v525 = vmax.f32 %v493, 0.0
      %v526 = vmax.f32 %v494, 0.0
      %v527 = vmax.f32 %v495, 0.0
      %v528 = vmax.f32 %v496, 0.0
      %v529 = vmax.f32 %v497, 0.0
      %v530 = vmax.f32 %v498, 0.0
      %v531 = vmax.f32 %v499, 0.0
      %v532 = vmax.f32 %v500, 0.0
      %v533 = vmax.f32 %v501, 0.0
      %v534 = vmax.f32 %v502, 0.0
      %v535 = vmax.f32 %v503, 0.0
      %v536 = vmax.f32 %v504, 0.0
      %v537 = vmax.f32 %v505, 0.0
      %v538 = vmax.f32 %v506, 0.0
      %v539 = vmax.f32 %v507, 0.0
      %v540 = vmax.f32 %v508, 0.0
      %v541 = vmax.f32 %v509, 0.0
      %v542 = vmax.f32 %v510, 0.0
      %v543 = vmax.f32 %v511, 0.0
      %v544 = vmax.f32 %v512, 0.0
      %v545 = vmax.f32 %v513, 0.0
      %v546 = vmax.f32 %v514, 0.0
      %v547 = vmax.f32 %v515, 0.0
      %v548 = vmax.f32 %v516, 0.0
      %549 = vst [vmem:[%s275] sm:$0xff] %v517
      %550 = vst [vmem:[%s275 + $0x8] sm:$0xff] %v518
      %551 = vst [vmem:[%s275 + $0x10] sm:$0xff] %v519
      %552 = vst [vmem:[%s275 + $0x18] sm:$0xff] %v520
      %553 = vst [vmem:[%s275 + $0x20] sm:$0xff] %v521
      %554 = vst [vmem:[%s275 + $0x28] sm:$0xff] %v522
      %555 = vst [vmem:[%s275 + $0x30] sm:$0xff] %v523
      %556 = vst [vmem:[%s275 + $0x38] sm:$0xff] %v524
      %557 = vst [vmem:[%s275 + $0x40] sm:$0xff] %v525
      %558 = vst [vmem:[%s275 + $0x48] sm:$0xff] %v526
      %559 = vst [vmem:[%s275 + $0x50] sm:$0xff] %v527
      %560 = vst [vmem:[%s275 + $0x58] sm:$0xff] %v528
      %561 = vst [vmem:[%s275 + $0x60] sm:$0xff] %v529
      %562 = vst [vmem:[%s275 + $0x68] sm:$0xff] %v530
      %563 = vst [vmem:[%s275 + $0x70] sm:$0xff] %v531
      %564 = vst [vmem:[%s275 + $0x78] sm:$0xff] %v532
      %565 = vst [vmem:[%s275 + $0x80] sm:$0xff] %v533
      %566 = vst [vmem:[%s275 + $0x88] sm:$0xff] %v534
      %567 = vst [vmem:[%s275 + $0x90] sm:$0xff] %v535
      %568 = vst [vmem:[%s275 + $0x98] sm:$0xff] %v536
      %569 = vst [vmem:[%s275 + $0xa0] sm:$0xff] %v537
      %570 = vst [vmem:[%s275 + $0xa8] sm:$0xff] %v538
      %571 = vst [vmem:[%s275 + $0xb0] sm:$0xff] %v539
      %572 = vst [vmem:[%s275 + $0xb8] sm:$0xff] %v540
      %573 = vst [vmem:[%s275 + $0xc0] sm:$0xff] %v541
      %574 = vst [vmem:[%s275 + $0xc8] sm:$0xff] %v542
      %575 = vst [vmem:[%s275 + $0xd0] sm:$0xff] %v543
      %576 = vst [vmem:[%s275 + $0xd8] sm:$0xff] %v544
      %577 = vst [vmem:[%s275 + $0xe0] sm:$0xff] %v545
      %578 = vst [vmem:[%s275 + $0xe8] sm:$0xff] %v546
      %579 = vst [vmem:[%s275 + $0xf0] sm:$0xff] %v547
      %580 = vst [vmem:[%s275 + $0xf8] sm:$0xff] %v548
      %s581 = smul.u32 32, %s17
      %p582 = scmp.lt.s32.totalorder %s581, 63
      %s583 = scalar_select %p582, %s581, 63
      %s584 = smul.addr %s583, 8
      %s585 = scalar_lea.vmem %s6, %s584
      // Predicated region
      $region45: #{bottleneck_forward.9} parent=43 // pred_check
        %p586 = pneg %p171
      $region46: #{bottleneck_forward.9} parent=43 // pred_check_branch
        %588 = sbr.rel (%p586) target = $region48
      $region47: #{bottleneck_forward.9} parent=43 // pred_region
        %s589 = smul.u32 32, %s17
      $region48: #{bottleneck_forward.9} parent=43 // pred_fallthru
        _
    $region44: #{bottleneck_forward.9} parent=5 // pred_fallthru
      _
    %p590 = scmp.le.s32.totalorder 2, %s12
    // Predicated region
    $region49: #{bottleneck_forward.9} parent=5 // pred_check
      %p591 = pneg %p590
    $region50: #{bottleneck_forward.9} parent=5 // pred_check_branch
      %593 = sbr.rel (%p591) target = $region52
    $region51: #{bottleneck_forward.9} parent=5 // pred_region
      %s594 = ssub.s32 %s12, 2
      // Predicated region
      $region53: #{bottleneck_forward.9} parent=51 // pred_check
        %p595 = pneg %p177
      $region54: #{bottleneck_forward.9} parent=51 // pred_check_branch
        %597 = sbr.rel (%p595) target = $region56
      $region55: #{bottleneck_forward.9} parent=51 // pred_region
        %s598 = smul.u32 32, %s18
        %p599 = scmp.lt.s32.totalorder %s598, 63
        %s600 = scalar_select %p599, %s598, 63
        %s601 = smul.addr %s600, 8
        %s602 = scalar_lea.vmem %s6, %s601
      $region56: #{bottleneck_forward.9} parent=51 // pred_fallthru
        _
    $region52: #{bottleneck_forward.9} parent=5 // pred_fallthru
      _
  $region6: #{bottleneck_forward.9} parent=0 // loop_footer
    %s16 = sadd.s32 1, %s12
  $region7: #{bottleneck_forward.9} parent=0 // loop_footer_branch
    %11 = sbr.rel target = $region3
  $region8: #{bottleneck_forward.9} parent=0 // loop_exit
    _

// kernel: bottleneck_forward.6
$region0: #{bottleneck_forward.6}
  #allocation0 [shape = 'u32[]', space=smem, size = 0x4, offset = 0x4, fixed_abs, tag = 'smem constant byte address 0x4 - core index']
  #allocation1 [shape = 'u32[72,128]{1,0:T(1,128)}', space=vmem, size = 0x9000, scoped, tag = 'internal scratch']
  #allocation2 [shape = 'f32[18,18,128]{2,1,0:T(8,128)}', space=vmem, size = 0x36000, scoped, tag = 'scratch operand']
  #allocation3 [shape = 'f32[256,128]{1,0:T(8,128)}', space=vmem, size = 0x20000, scoped, tag = 'scratch operand']
  %s0 = inlined_call_operand.vmem [shape: f32[2,16,16,128], index: 0, kind: input, shape index: {}]
  %s1 = inlined_call_operand.vmem [shape: bf16[9,128,128], index: 1, kind: input, shape index: {}]
  %s2 = inlined_call_operand.vmem [shape: f32[1,128], index: 2, kind: input, shape index: {}]
  %s3 = inlined_call_operand.vmem [shape: f32[1,128], index: 3, kind: input, shape index: {}]
  %s4 = inlined_call_operand.vmem [shape: f32[2,16,16,128], index: 4, kind: output, shape index: {0}]
  %s5 = inlined_call_operand.vmem [shape: f32[2,8,128], index: 5, kind: output, shape index: {1}]
  %s6 = inlined_call_operand.vmem [shape: f32[2,8,128], index: 6, kind: output, shape index: {2}]
  %7 = xla_tuple %s4, %s5, %s6
  %s8 = sld [smem:[#allocation0]]
  $region65: #{bottleneck_forward.6} parent=0
    _
  %s10 = ssub.s32 1, %s8
  %s11 = scalar_select 0, %s10, %s8
  loop: start=0, step=1, limit=4
  $region2: #{bottleneck_forward.6} parent=0 // loop_pre_header
    _
  $region3: #{bottleneck_forward.6} parent=0 // loop_header
    %s13 = sphi 0, %s17
    %p14 = scmp.ge.s32.totalorder %s13, 4
    %s23 = sphi 0, %s25
    %s26 = sphi 0, %s23
    %s27 = sphi 0, %s26
    %s43 = sphi 0, %s27
    %s47 = sphi 0, %s47
    %s49 = sphi 0, %s47
    %s50 = sphi 0, %s49
    %s64 = sphi 0, %s50
    %s68 = sphi 0, %s68
    %s70 = sphi 0, %s68
    %s71 = sphi 0, %s70
    %s85 = sphi 0, %s71
    %s89 = sphi 0, %s89
    %s91 = sphi 0, %s89
    %s92 = sphi 0, %s91
    %s106 = sphi 0, %s92
    %s112 = sphi 0, %s114
    %s115 = sphi 0, %s112
    %s116 = sphi 0, %s115
    %s132 = sphi 0, %s116
    %s138 = sphi 0, %s140
    %s141 = sphi 0, %s138
    %s142 = sphi 0, %s141
    %s158 = sphi 0, %s142
    %s164 = sphi 0, %s166
    %s167 = sphi 0, %s164
    %s168 = sphi 0, %s167
    %s184 = sphi 0, %s168
  $region4: #{bottleneck_forward.6} parent=0 // loop_header_branch
    %16 = sbr.rel (%p14) target = $region8
  $region5: #{bottleneck_forward.6} parent=0 // loop_body
    %s18 = ssub.s32 %s13, 1
    %s19 = ssub.s32 %s13, 2
    %s20 = sadd.s32 %s13, 1
    %s21 = ssub.s32 %s13, %s20
    %p22 = scmp.eq.s32.totalorder %s21, 0
    %s24 = sadd.s32 %s23, 1
    %s25 = scalar_select %p22, %s23, %s24
    %p28 = pneg %p22
    %p29 = scmp.eq.s32.totalorder %s13, 1
    %p30 = por %p28, %p29
    %p31 = scmp.ne.s32.totalorder %s23, %s26
    %p32 = scmp.eq.s32.totalorder %s13, 0
    %p33 = por %p31, %p32
    %p34 = scmp.ne.s32.totalorder %s23, %s26
    %p35 = scmp.eq.s32.totalorder %s18, 1
    %p36 = por %p34, %p35
    %p37 = scmp.ne.s32.totalorder %s26, %s27
    %p38 = scmp.eq.s32.totalorder %s18, 0
    %p39 = por %p37, %p38
    %p40 = scmp.ne.s32.totalorder %s26, %s27
    %p41 = scmp.eq.s32.totalorder %s19, 1
    %p42 = por %p40, %p41
    %p44 = scmp.ne.s32.totalorder %s27, %s43
    %p45 = scmp.eq.s32.totalorder %s19, 0
    %p46 = por %p44, %p45
    %s48 = sadd.s32 %s47, 1
    %p51 = scmp.eq.s32.totalorder %s13, 1
    %p52 = scmp.ne.s32.totalorder %s47, %s49
    %p53 = scmp.eq.s32.totalorder %s13, 0
    %p54 = por %p52, %p53
    %p55 = scmp.ne.s32.totalorder %s47, %s49
    %p56 = scmp.eq.s32.totalorder %s18, 1
    %p57 = por %p55, %p56
    %p58 = scmp.ne.s32.totalorder %s49, %s50
    %p59 = scmp.eq.s32.totalorder %s18, 0
    %p60 = por %p58, %p59
    %p61 = scmp.ne.s32.totalorder %s49, %s50
    %p62 = scmp.eq.s32.totalorder %s19, 1
    %p63 = por %p61, %p62
    %p65 = scmp.ne.s32.totalorder %s50, %s64
    %p66 = scmp.eq.s32.totalorder %s19, 0
    %p67 = por %p65, %p66
    %s69 = sadd.s32 %s68, 1
    %p72 = scmp.eq.s32.totalorder %s13, 1
    %p73 = scmp.ne.s32.totalorder %s68, %s70
    %p74 = scmp.eq.s32.totalorder %s13, 0
    %p75 = por %p73, %p74
    %p76 = scmp.ne.s32.totalorder %s68, %s70
    %p77 = scmp.eq.s32.totalorder %s18, 1
    %p78 = por %p76, %p77
    %p79 = scmp.ne.s32.totalorder %s70, %s71
    %p80 = scmp.eq.s32.totalorder %s18, 0
    %p81 = por %p79, %p80
    %p82 = scmp.ne.s32.totalorder %s70, %s71
    %p83 = scmp.eq.s32.totalorder %s19, 1
    %p84 = por %p82, %p83
    %p86 = scmp.ne.s32.totalorder %s71, %s85
    %p87 = scmp.eq.s32.totalorder %s19, 0
    %p88 = por %p86, %p87
    %s90 = sadd.s32 %s89, 1
    %p93 = scmp.eq.s32.totalorder %s13, 1
    %p94 = scmp.ne.s32.totalorder %s89, %s91
    %p95 = scmp.eq.s32.totalorder %s13, 0
    %p96 = por %p94, %p95
    %p97 = scmp.ne.s32.totalorder %s89, %s91
    %p98 = scmp.eq.s32.totalorder %s18, 1
    %p99 = por %p97, %p98
    %p100 = scmp.ne.s32.totalorder %s91, %s92
    %p101 = scmp.eq.s32.totalorder %s18, 0
    %p102 = por %p100, %p101
    %p103 = scmp.ne.s32.totalorder %s91, %s92
    %p104 = scmp.eq.s32.totalorder %s19, 1
    %p105 = por %p103, %p104
    %p107 = scmp.ne.s32.totalorder %s92, %s106
    %p108 = scmp.eq.s32.totalorder %s19, 0
    %p109 = por %p107, %p108
    %s110 = ssub.s32 %s13, %s20
    %p111 = scmp.eq.s32.totalorder %s110, 0
    %s113 = sadd.s32 %s112, 1
    %s114 = scalar_select %p111, %s112, %s113
    %p117 = pneg %p111
    %p118 = scmp.eq.s32.totalorder %s13, 1
    %p119 = por %p117, %p118
    %p120 = scmp.ne.s32.totalorder %s112, %s115
    %p121 = scmp.eq.s32.totalorder %s13, 0
    %p122 = por %p120, %p121
    %p123 = scmp.ne.s32.totalorder %s112, %s115
    %p124 = scmp.eq.s32.totalorder %s18, 1
    %p125 = por %p123, %p124
    %p126 = scmp.ne.s32.totalorder %s115, %s116
    %p127 = scmp.eq.s32.totalorder %s18, 0
    %p128 = por %p126, %p127
    %p129 = scmp.ne.s32.totalorder %s115, %s116
    %p130 = scmp.eq.s32.totalorder %s19, 1
    %p131 = por %p129, %p130
    %p133 = scmp.ne.s32.totalorder %s116, %s132
    %p134 = scmp.eq.s32.totalorder %s19, 0
    %p135 = por %p133, %p134
    %s136 = ssub.s32 %s13, %s20
    %p137 = scmp.eq.s32.totalorder %s136, 0
    %s139 = sadd.s32 %s138, 1
    %s140 = scalar_select %p137, %s138, %s139
    %p143 = pneg %p137
    %p144 = scmp.eq.s32.totalorder %s13, 1
    %p145 = por %p143, %p144
    %p146 = scmp.ne.s32.totalorder %s138, %s141
    %p147 = scmp.eq.s32.totalorder %s13, 0
    %p148 = por %p146, %p147
    %p149 = scmp.ne.s32.totalorder %s138, %s141
    %p150 = scmp.eq.s32.totalorder %s18, 1
    %p151 = por %p149, %p150
    %p152 = scmp.ne.s32.totalorder %s141, %s142
    %p153 = scmp.eq.s32.totalorder %s18, 0
    %p154 = por %p152, %p153
    %p155 = scmp.ne.s32.totalorder %s141, %s142
    %p156 = scmp.eq.s32.totalorder %s19, 1
    %p157 = por %p155, %p156
    %p159 = scmp.ne.s32.totalorder %s142, %s158
    %p160 = scmp.eq.s32.totalorder %s19, 0
    %p161 = por %p159, %p160
    %s162 = ssub.s32 %s13, %s20
    %p163 = scmp.eq.s32.totalorder %s162, 0
    %s165 = sadd.s32 %s164, 1
    %s166 = scalar_select %p163, %s164, %s165
    %p169 = pneg %p163
    %p170 = scmp.eq.s32.totalorder %s13, 1
    %p171 = por %p169, %p170
    %p172 = scmp.ne.s32.totalorder %s164, %s167
    %p173 = scmp.eq.s32.totalorder %s13, 0
    %p174 = por %p172, %p173
    %p175 = scmp.ne.s32.totalorder %s164, %s167
    %p176 = scmp.eq.s32.totalorder %s18, 1
    %p177 = por %p175, %p176
    %p178 = scmp.ne.s32.totalorder %s167, %s168
    %p179 = scmp.eq.s32.totalorder %s18, 0
    %p180 = por %p178, %p179
    %p181 = scmp.ne.s32.totalorder %s167, %s168
    %p182 = scmp.eq.s32.totalorder %s19, 1
    %p183 = por %p181, %p182
    %p185 = scmp.ne.s32.totalorder %s168, %s184
    %p186 = scmp.eq.s32.totalorder %s19, 0
    %p187 = por %p185, %p186
    %p188 = scmp.le.s32.totalorder 1, %s13
    %p189 = scmp.lt.s32.totalorder %s13, 3
    %p190 = pnand %p188, %p189
    %p191 = pneg %p190
    // Predicated region
    $region9: #{bottleneck_forward.6} parent=5 // pred_check
      _
    $region10: #{bottleneck_forward.6} parent=5 // pred_check_branch
      %193 = sbr.rel (%p190) target = $region12
    $region11: #{bottleneck_forward.6} parent=5 // pred_region
      %s194 = ssub.s32 %s13, 1
      // Predicated region
      $region13: #{bottleneck_forward.6} parent=11 // pred_check
        %p195 = pneg %p60
      $region14: #{bottleneck_forward.6} parent=11 // pred_check_branch
        %197 = sbr.rel (%p195) target = $region16
      $region15: #{bottleneck_forward.6} parent=11 // pred_region
        _
      $region16: #{bottleneck_forward.6} parent=11 // pred_fallthru
        _
      // Predicated region
      $region17: #{bottleneck_forward.6} parent=11 // pred_check
        %p198 = pneg %p81
      $region18: #{bottleneck_forward.6} parent=11 // pred_check_branch
        %200 = sbr.rel (%p198) target = $region20
      $region19: #{bottleneck_forward.6} parent=11 // pred_region
        _
      $region20: #{bottleneck_forward.6} parent=11 // pred_fallthru
        _
      // Predicated region
      $region21: #{bottleneck_forward.6} parent=11 // pred_check
        %p201 = pneg %p102
      $region22: #{bottleneck_forward.6} parent=11 // pred_check_branch
        %203 = sbr.rel (%p201) target = $region24
      $region23: #{bottleneck_forward.6} parent=11 // pred_region
        _
      $region24: #{bottleneck_forward.6} parent=11 // pred_fallthru
        _
    $region12: #{bottleneck_forward.6} parent=5 // pred_fallthru
      _
    %p204 = scmp.lt.s32.totalorder %s13, 2
    // Predicated region
    $region25: #{bottleneck_forward.6} parent=5 // pred_check
      %p205 = pneg %p204
    $region26: #{bottleneck_forward.6} parent=5 // pred_check_branch
      %207 = sbr.rel (%p205) target = $region28
    $region27: #{bottleneck_forward.6} parent=5 // pred_region
      // Predicated region
      $region29: #{bottleneck_forward.6} parent=27 // pred_check
        %p208 = pneg %p33
      $region30: #{bottleneck_forward.6} parent=27 // pred_check_branch
        %210 = sbr.rel (%p208) target = $region32
      $region31: #{bottleneck_forward.6} parent=27 // pred_region
        %p211 = scmp.lt.s32.totalorder %s13, 1
        %s212 = scalar_select %p211, %s13, 1
        %s213 = smul.addr %s212, 32
        %s214 = smul.addr %s213, 8
        %s215 = scalar_lea.vmem %s0, %s214
      $region32: #{bottleneck_forward.6} parent=27 // pred_fallthru
        _
    $region28: #{bottleneck_forward.6} parent=5 // pred_fallthru
      _
    %p216 = scmp.le.s32.totalorder 1, %s13
    %p217 = scmp.lt.s32.totalorder %s13, 3
    %p218 = pnand %p216, %p217
    %p219 = pneg %p218
    // Predicated region
    $region33: #{bottleneck_forward.6} parent=5 // pred_check
      _
    $region34: #{bottleneck_forward.6} parent=5 // pred_check_branch
      %221 = sbr.rel (%p218) target = $region36
    $region35: #{bottleneck_forward.6} parent=5 // pred_region
      %s222 = ssub.s32 %s13, 1
      %p223 = scmp.lt.s32.totalorder %s18, 1
      %s224 = scalar_select %p223, %s18, 1
      %s225 = smul.addr %s224, 32
      %s226 = smul.addr %s225, 8
      %s227 = scalar_lea.vmem %s0, %s226
      %p228 = pneg %p39
      %p229 = pneg %p36
      %p230 = pneg %p60
      %p231 = pneg %p57
      %p232 = pneg %p81
      %p233 = pneg %p78
      %p234 = pneg %p102
      %p235 = pneg %p99
      %p236 = pneg %p128
      %p237 = pneg %p125
      %p238 = scmp.lt.s32.totalorder %s18, 1
      %s239 = scalar_select %p238, %s18, 1
      %s240 = smul.addr %s239, 32
      %s241 = smul.addr %s240, 8
      %s242 = scalar_lea.vmem %s4, %s241
      %p243 = pneg %p154
      %p244 = pneg %p151
      %p245 = scmp.lt.s32.totalorder %s18, 1
      %s246 = scalar_select %p245, %s18, 1
      %s247 = smul.addr %s246, 8
      %s248 = scalar_lea.vmem %s5, %s247
      %p249 = pneg %p180
      %p250 = pneg %p177
      %p251 = scmp.lt.s32.totalorder %s18, 1
      %s252 = scalar_select %p251, %s18, 1
      %s253 = smul.addr %s252, 8
      %s254 = scalar_lea.vmem %s6, %s253
      %p255 = scmp.lt.s32.totalorder %s18, 1
      %s256 = scalar_select %p255, %s18, 1
      %s257 = smul.addr %s256, 32
      %s258 = smul.addr %s257, 8
      %s259 = scalar_lea.vmem %s0, %s258
      %p260 = scmp.lt.s32.totalorder %s18, 1
      %s261 = scalar_select %p260, %s18, 1
      %s262 = smul.addr %s261, 32
      %s263 = smul.addr %s262, 8
      %s264 = scalar_lea.vmem %s4, %s263
      %p265 = scmp.lt.s32.totalorder %s18, 1
      %s266 = scalar_select %p265, %s18, 1
      %s267 = smul.addr %s266, 8
      %s268 = scalar_lea.vmem %s5, %s267
      %p269 = scmp.lt.s32.totalorder %s18, 1
      %s270 = scalar_select %p269, %s18, 1
      %s271 = smul.addr %s270, 8
      %s272 = scalar_lea.vmem %s6, %s271
      %v273 = vld [vmem:[%s259] sm:$0xff]
      %v274 = vld [vmem:[%s259 + $0x8] sm:$0xff]
      %v275 = vld [vmem:[%s259 + $0x10] sm:$0xff]
      %v276 = vld [vmem:[%s259 + $0x18] sm:$0xff]
      %v277 = vld [vmem:[%s259 + $0x20] sm:$0xff]
      %v278 = vld [vmem:[%s259 + $0x28] sm:$0xff]
      %v279 = vld [vmem:[%s259 + $0x30] sm:$0xff]
      %v280 = vld [vmem:[%s259 + $0x38] sm:$0xff]
      %v281 = vld [vmem:[%s259 + $0x40] sm:$0xff]
      %v282 = vld [vmem:[%s259 + $0x48] sm:$0xff]
      %v283 = vld [vmem:[%s259 + $0x50] sm:$0xff]
      %v284 = vld [vmem:[%s259 + $0x58] sm:$0xff]
      %v285 = vld [vmem:[%s259 + $0x60] sm:$0xff]
      %v286 = vld [vmem:[%s259 + $0x68] sm:$0xff]
      %v287 = vld [vmem:[%s259 + $0x70] sm:$0xff]
      %v288 = vld [vmem:[%s259 + $0x78] sm:$0xff]
      %v289 = vld [vmem:[%s259 + $0x80] sm:$0xff]
      %v290 = vld [vmem:[%s259 + $0x88] sm:$0xff]
      %v291 = vld [vmem:[%s259 + $0x90] sm:$0xff]
      %v292 = vld [vmem:[%s259 + $0x98] sm:$0xff]
      %v293 = vld [vmem:[%s259 + $0xa0] sm:$0xff]
      %v294 = vld [vmem:[%s259 + $0xa8] sm:$0xff]
      %v295 = vld [vmem:[%s259 + $0xb0] sm:$0xff]
      %v296 = vld [vmem:[%s259 + $0xb8] sm:$0xff]
      %v297 = vld [vmem:[%s259 + $0xc0] sm:$0xff]
      %v298 = vld [vmem:[%s259 + $0xc8] sm:$0xff]
      %v299 = vld [vmem:[%s259 + $0xd0] sm:$0xff]
      %v300 = vld [vmem:[%s259 + $0xd8] sm:$0xff]
      %v301 = vld [vmem:[%s259 + $0xe0] sm:$0xff]
      %v302 = vld [vmem:[%s259 + $0xe8] sm:$0xff]
      %v303 = vld [vmem:[%s259 + $0xf0] sm:$0xff]
      %v304 = vld [vmem:[%s259 + $0xf8] sm:$0xff]
      %v305 = vld [vmem:[%s2] sm:$0x1]
      %v307 = vperm.slane %v305, 0
      %v309 = vmul.f32 %v273, %v307
      %v310 = vmul.f32 %v274, %v307
      %v311 = vmul.f32 %v275, %v307
      %v312 = vmul.f32 %v276, %v307
      %v313 = vmul.f32 %v277, %v307
      %v314 = vmul.f32 %v278, %v307
      %v315 = vmul.f32 %v279, %v307
      %v316 = vmul.f32 %v280, %v307
      %v317 = vmul.f32 %v281, %v307
      %v318 = vmul.f32 %v282, %v307
      %v319 = vmul.f32 %v283, %v307
      %v320 = vmul.f32 %v284, %v307
      %v321 = vmul.f32 %v285, %v307
      %v322 = vmul.f32 %v286, %v307
      %v323 = vmul.f32 %v287, %v307
      %v324 = vmul.f32 %v288, %v307
      %v325 = vmul.f32 %v289, %v307
      %v326 = vmul.f32 %v290, %v307
      %v327 = vmul.f32 %v291, %v307
      %v328 = vmul.f32 %v292, %v307
      %v329 = vmul.f32 %v293, %v307
      %v330 = vmul.f32 %v294, %v307
      %v331 = vmul.f32 %v295, %v307
      %v332 = vmul.f32 %v296, %v307
      %v333 = vmul.f32 %v297, %v307
      %v334 = vmul.f32 %v298, %v307
      %v335 = vmul.f32 %v299, %v307
      %v336 = vmul.f32 %v300, %v307
      %v337 = vmul.f32 %v301, %v307
      %v338 = vmul.f32 %v302, %v307
      %v339 = vmul.f32 %v303, %v307
      %v340 = vmul.f32 %v304, %v307
      %v341 = vld [vmem:[%s3] sm:$0x1]
      %v343 = vperm.slane %v341, 0
      %v345 = vadd.f32 %v309, %v343
      %v346 = vadd.f32 %v310, %v343
      %v347 = vadd.f32 %v311, %v343
      %v348 = vadd.f32 %v312, %v343
      %v349 = vadd.f32 %v313, %v343
      %v350 = vadd.f32 %v314, %v343
      %v351 = vadd.f32 %v315, %v343
      %v352 = vadd.f32 %v316, %v343
      %v353 = vadd.f32 %v317, %v343
      %v354 = vadd.f32 %v318, %v343
      %v355 = vadd.f32 %v319, %v343
      %v356 = vadd.f32 %v320, %v343
      %v357 = vadd.f32 %v321, %v343
      %v358 = vadd.f32 %v322, %v343
      %v359 = vadd.f32 %v323, %v343
      %v360 = vadd.f32 %v324, %v343
      %v361 = vadd.f32 %v325, %v343
      %v362 = vadd.f32 %v326, %v343
      %v363 = vadd.f32 %v327, %v343
      %v364 = vadd.f32 %v328, %v343
      %v365 = vadd.f32 %v329, %v343
      %v366 = vadd.f32 %v330, %v343
      %v367 = vadd.f32 %v331, %v343
      %v368 = vadd.f32 %v332, %v343
      %v369 = vadd.f32 %v333, %v343
      %v370 = vadd.f32 %v334, %v343
      %v371 = vadd.f32 %v335, %v343
      %v372 = vadd.f32 %v336, %v343
      %v373 = vadd.f32 %v337, %v343
      %v374 = vadd.f32 %v338, %v343
      %v375 = vadd.f32 %v339, %v343
      %v376 = vadd.f32 %v340, %v343
      %v377 = vmax.f32 %v345, 0.0
      %v378 = vmax.f32 %v346, 0.0
      %v379 = vmax.f32 %v347, 0.0
      %v380 = vmax.f32 %v348, 0.0
      %v381 = vmax.f32 %v349, 0.0
      %v382 = vmax.f32 %v350, 0.0
      %v383 = vmax.f32 %v351, 0.0
      %v384 = vmax.f32 %v352, 0.0
      %v385 = vmax.f32 %v353, 0.0
      %v386 = vmax.f32 %v354, 0.0
      %v387 = vmax.f32 %v355, 0.0
      %v388 = vmax.f32 %v356, 0.0
      %v389 = vmax.f32 %v357, 0.0
      %v390 = vmax.f32 %v358, 0.0
      %v391 = vmax.f32 %v359, 0.0
      %v392 = vmax.f32 %v360, 0.0
      %v393 = vmax.f32 %v361, 0.0
      %v394 = vmax.f32 %v362, 0.0
      %v395 = vmax.f32 %v363, 0.0
      %v396 = vmax.f32 %v364, 0.0
      %v397 = vmax.f32 %v365, 0.0
      %v398 = vmax.f32 %v366, 0.0
      %v399 = vmax.f32 %v367, 0.0
      %v400 = vmax.f32 %v368, 0.0
      %v401 = vmax.f32 %v369, 0.0
      %v402 = vmax.f32 %v370, 0.0
      %v403 = vmax.f32 %v371, 0.0
      %v404 = vmax.f32 %v372, 0.0
      %v405 = vmax.f32 %v373, 0.0
      %v406 = vmax.f32 %v374, 0.0
      %v407 = vmax.f32 %v375, 0.0
      %v408 = vmax.f32 %v376, 0.0
      %409 = vst [vmem:[#allocation2] sm:$0xff] 0.0
      %410 = vst [vmem:[#allocation2 + $0x8] sm:$0xff] 0.0
      %411 = vst [vmem:[#allocation2 + $0x10] sm:$0x3] 0.0
      %412 = vst [vmem:[#allocation2 + $0x18] sm:$0xff] 0.0
      %413 = vst [vmem:[#allocation2 + $0x20] sm:$0xff] 0.0
      %414 = vst [vmem:[#allocation2 + $0x28] sm:$0x3] 0.0
      %415 = vst [vmem:[#allocation2 + $0x30] sm:$0xff] 0.0
      %416 = vst [vmem:[#allocation2 + $0x38] sm:$0xff] 0.0
      %417 = vst [vmem:[#allocation2 + $0x40] sm:$0x3] 0.0
      %418 = vst [vmem:[#allocation2 + $0x48] sm:$0xff] 0.0
      %419 = vst [vmem:[#allocation2 + $0x50] sm:$0xff] 0.0
      %420 = vst [vmem:[#allocation2 + $0x58] sm:$0x3] 0.0
      %421 = vst [vmem:[#allocation2 + $0x60] sm:$0xff] 0.0
      %422 = vst [vmem:[#allocation2 + $0x68] sm:$0xff] 0.0
      %423 = vst [vmem:[#allocation2 + $0x70] sm:$0x3] 0.0
      %424 = vst [vmem:[#allocation2 + $0x78] sm:$0xff] 0.0
      %425 = vst [vmem:[#allocation2 + $0x80] sm:$0xff] 0.0
      %426 = vst [vmem:[#allocation2 + $0x88] sm:$0x3] 0.0
      %427 = vst [vmem:[#allocation2 + $0x90] sm:$0xff] 0.0
      %428 = vst [vmem:[#allocation2 + $0x98] sm:$0xff] 0.0
      %429 = vst [vmem:[#allocation2 + $0xa0] sm:$0x3] 0.0
      %430 = vst [vmem:[#allocation2 + $0xa8] sm:$0xff] 0.0
      %431 = vst [vmem:[#allocation2 + $0xb0] sm:$0xff] 0.0
      %432 = vst [vmem:[#allocation2 + $0xb8] sm:$0x3] 0.0
      %433 = vst [vmem:[#allocation2 + $0xc0] sm:$0xff] 0.0
      %434 = vst [vmem:[#allocation2 + $0xc8] sm:$0xff] 0.0
      %435 = vst [vmem:[#allocation2 + $0xd0] sm:$0x3] 0.0
      %436 = vst [vmem:[#allocation2 + $0xd8] sm:$0xff] 0.0
      %437 = vst [vmem:[#allocation2 + $0xe0] sm:$0xff] 0.0
      %438 = vst [vmem:[#allocation2 + $0xe8] sm:$0x3] 0.0
      %439 = vst [vmem:[#allocation2 + $0xf0] sm:$0xff] 0.0
      %440 = vst [vmem:[#allocation2 + $0xf8] sm:$0xff] 0.0
      %441 = vst [vmem:[#allocation2 + $0x100] sm:$0x3] 0.0
      %442 = vst [vmem:[#allocation2 + $0x108] sm:$0xff] 0.0
      %443 = vst [vmem:[#allocation2 + $0x110] sm:$0xff] 0.0
      %444 = vst [vmem:[#allocation2 + $0x118] sm:$0x3] 0.0
      %445 = vst [vmem:[#allocation2 + $0x120] sm:$0xff] 0.0
      %446 = vst [vmem:[#allocation2 + $0x128] sm:$0xff] 0.0
      %447 = vst [vmem:[#allocation2 + $0x130] sm:$0x3] 0.0
      %448 = vst [vmem:[#allocation2 + $0x138] sm:$0xff] 0.0
      %449 = vst [vmem:[#allocation2 + $0x140] sm:$0xff] 0.0
      %450 = vst [vmem:[#allocation2 + $0x148] sm:$0x3] 0.0
      %451 = vst [vmem:[#allocation2 + $0x150] sm:$0xff] 0.0
      %452 = vst [vmem:[#allocation2 + $0x158] sm:$0xff] 0.0
      %453 = vst [vmem:[#allocation2 + $0x160] sm:$0x3] 0.0
      %454 = vst [vmem:[#allocation2 + $0x168] sm:$0xff] 0.0
      %455 = vst [vmem:[#allocation2 + $0x170] sm:$0xff] 0.0
      %456 = vst [vmem:[#allocation2 + $0x178] sm:$0x3] 0.0
      %457 = vst [vmem:[#allocation2 + $0x180] sm:$0xff] 0.0
      %458 = vst [vmem:[#allocation2 + $0x188] sm:$0xff] 0.0
      %459 = vst [vmem:[#allocation2 + $0x190] sm:$0x3] 0.0
      %460 = vst [vmem:[#allocation2 + $0x198] sm:$0xff] 0.0
      %461 = vst [vmem:[#allocation2 + $0x1a0] sm:$0xff] 0.0
      %462 = vst [vmem:[#allocation2 + $0x1a8] sm:$0x3] 0.0
      %s463 = scalar_lea.vmem [#allocation2], 24
      %464 = vst [vmem:[%s463 + $0x1] sm:$0xff] %v377
      %465 = vst [vmem:[%s463 + $0x9] sm:$0xff] %v378
      %466 = vst [vmem:[%s463 + $0x19] sm:$0xff] %v379
      %467 = vst [vmem:[%s463 + $0x21] sm:$0xff] %v380
      %468 = vst [vmem:[%s463 + $0x31] sm:$0xff] %v381
      %469 = vst [vmem:[%s463 + $0x39] sm:$0xff] %v382
      %470 = vst [vmem:[%s463 + $0x49] sm:$0xff] %v383
      %471 = vst [vmem:[%s463 + $0x51] sm:$0xff] %v384
      %472 = vst [vmem:[%s463 + $0x61] sm:$0xff] %v385
      %473 = vst [vmem:[%s463 + $0x69] sm:$0xff] %v386
      %474 = vst [vmem:[%s463 + $0x79] sm:$0xff] %v387
      %475 = vst [vmem:[%s463 + $0x81] sm:$0xff] %v388
      %476 = vst [vmem:[%s463 + $0x91] sm:$0xff] %v389
      %477 = vst [vmem:[%s463 + $0x99] sm:$0xff] %v390
      %478 = vst [vmem:[%s463 + $0xa9] sm:$0xff] %v391
      %479 = vst [vmem:[%s463 + $0xb1] sm:$0xff] %v392
      %480 = vst [vmem:[%s463 + $0xc1] sm:$0xff] %v393
      %481 = vst [vmem:[%s463 + $0xc9] sm:$0xff] %v394
      %482 = vst [vmem:[%s463 + $0xd9] sm:$0xff] %v395
      %483 = vst [vmem:[%s463 + $0xe1] sm:$0xff] %v396
      %484 = vst [vmem:[%s463 + $0xf1] sm:$0xff] %v397
      %485 = vst [vmem:[%s463 + $0xf9] sm:$0xff] %v398
      %486 = vst [vmem:[%s463 + $0x109] sm:$0xff] %v399
      %487 = vst [vmem:[%s463 + $0x111] sm:$0xff] %v400
      %488 = vst [vmem:[%s463 + $0x121] sm:$0xff] %v401
      %489 = vst [vmem:[%s463 + $0x129] sm:$0xff] %v402
      %490 = vst [vmem:[%s463 + $0x139] sm:$0xff] %v403
      %491 = vst [vmem:[%s463 + $0x141] sm:$0xff] %v404
      %492 = vst [vmem:[%s463 + $0x151] sm:$0xff] %v405
      %493 = vst [vmem:[%s463 + $0x159] sm:$0xff] %v406
      %494 = vst [vmem:[%s463 + $0x169] sm:$0xff] %v407
      %495 = vst [vmem:[%s463 + $0x171] sm:$0xff] %v408
      %496 = vst [vmem:[#allocation3] sm:$0xff] 0.0
      %497 = vst [vmem:[#allocation3 + $0x8] sm:$0xff] 0.0
      %498 = vst [vmem:[#allocation3 + $0x10] sm:$0xff] 0.0
      %499 = vst [vmem:[#allocation3 + $0x18] sm:$0xff] 0.0
      %500 = vst [vmem:[#allocation3 + $0x20] sm:$0xff] 0.0
      %501 = vst [vmem:[#allocation3 + $0x28] sm:$0xff] 0.0
      %502 = vst [vmem:[#allocation3 + $0x30] sm:$0xff] 0.0
      %503 = vst [vmem:[#allocation3 + $0x38] sm:$0xff] 0.0
      %504 = vst [vmem:[#allocation3 + $0x40] sm:$0xff] 0.0
      %505 = vst [vmem:[#allocation3 + $0x48] sm:$0xff] 0.0
      %506 = vst [vmem:[#allocation3 + $0x50] sm:$0xff] 0.0
      %507 = vst [vmem:[#allocation3 + $0x58] sm:$0xff] 0.0
      %508 = vst [vmem:[#allocation3 + $0x60] sm:$0xff] 0.0
      %509 = vst [vmem:[#allocation3 + $0x68] sm:$0xff] 0.0
      %510 = vst [vmem:[#allocation3 + $0x70] sm:$0xff] 0.0
      %511 = vst [vmem:[#allocation3 + $0x78] sm:$0xff] 0.0
      %512 = vst [vmem:[#allocation3 + $0x80] sm:$0xff] 0.0
      %513 = vst [vmem:[#allocation3 + $0x88] sm:$0xff] 0.0
      %514 = vst [vmem:[#allocation3 + $0x90] sm:$0xff] 0.0
      %515 = vst [vmem:[#allocation3 + $0x98] sm:$0xff] 0.0
      %516 = vst [vmem:[#allocation3 + $0xa0] sm:$0xff] 0.0
      %517 = vst [vmem:[#allocation3 + $0xa8] sm:$0xff] 0.0
      %518 = vst [vmem:[#allocation3 + $0xb0] sm:$0xff] 0.0
      %519 = vst [vmem:[#allocation3 + $0xb8] sm:$0xff] 0.0
      %520 = vst [vmem:[#allocation3 + $0xc0] sm:$0xff] 0.0
      %521 = vst [vmem:[#allocation3 + $0xc8] sm:$0xff] 0.0
      %522 = vst [vmem:[#allocation3 + $0xd0] sm:$0xff] 0.0
      %523 = vst [vmem:[#allocation3 + $0xd8] sm:$0xff] 0.0
      %524 = vst [vmem:[#allocation3 + $0xe0] sm:$0xff] 0.0
      %525 = vst [vmem:[#allocation3 + $0xe8] sm:$0xff] 0.0
      %526 = vst [vmem:[#allocation3 + $0xf0] sm:$0xff] 0.0
      %527 = vst [vmem:[#allocation3 + $0xf8] sm:$0xff] 0.0
      %v528 = vld [vmem:[#allocation2] sm:$0xff]
      %v529 = vld [vmem:[#allocation2 + $0x8] sm:$0xff]
      %v530 = vld [vmem:[#allocation2 + $0x18] sm:$0xff]
      %v531 = vld [vmem:[#allocation2 + $0x20] sm:$0xff]
      %v532 = vld [vmem:[#allocation2 + $0x30] sm:$0xff]
      %v533 = vld [vmem:[#allocation2 + $0x38] sm:$0xff]
      %v534 = vld [vmem:[#allocation2 + $0x48] sm:$0xff]
      %v535 = vld [vmem:[#allocation2 + $0x50] sm:$0xff]
      %v536 = vld [vmem:[#allocation2 + $0x60] sm:$0xff]
      %v537 = vld [vmem:[#allocation2 + $0x68] sm:$0xff]
      %v538 = vld [vmem:[#allocation2 + $0x78] sm:$0xff]
      %v539 = vld [vmem:[#allocation2 + $0x80] sm:$0xff]
      %v540 = vld [vmem:[#allocation2 + $0x90] sm:$0xff]
      %v541 = vld [vmem:[#allocation2 + $0x98] sm:$0xff]
      %v542 = vld [vmem:[#allocation2 + $0xa8] sm:$0xff]
      %v543 = vld [vmem:[#allocation2 + $0xb0] sm:$0xff]
      %v544 = vld [vmem:[#allocation2 + $0xc0] sm:$0xff]
      %v545 = vld [vmem:[#allocation2 + $0xc8] sm:$0xff]
      %v546 = vld [vmem:[#allocation2 + $0xd8] sm:$0xff]
      %v547 = vld [vmem:[#allocation2 + $0xe0] sm:$0xff]
      %v548 = vld [vmem:[#allocation2 + $0xf0] sm:$0xff]
      %v549 = vld [vmem:[#allocation2 + $0xf8] sm:$0xff]
      %v550 = vld [vmem:[#allocation2 + $0x108] sm:$0xff]
      %v551 = vld [vmem:[#allocation2 + $0x110] sm:$0xff]
      %v552 = vld [vmem:[#allocation2 + $0x120] sm:$0xff]
      %v553 = vld [vmem:[#allocation2 + $0x128] sm:$0xff]
      %v554 = vld [vmem:[#allocation2 + $0x138] sm:$0xff]
      %v555 = vld [vmem:[#allocation2 + $0x140] sm:$0xff]
      %v556 = vld [vmem:[#allocation2 + $0x150] sm:$0xff]
      %v557 = vld [vmem:[#allocation2 + $0x158] sm:$0xff]
      %v558 = vld [vmem:[#allocation2 + $0x168] sm:$0xff]
      %v559 = vld [vmem:[#allocation2 + $0x170] sm:$0xff]
      %v560 = vld [vmem:[#allocation3] sm:$0xff]
      %v561 = vld [vmem:[#allocation3 + $0x8] sm:$0xff]
      %v562 = vld [vmem:[#allocation3 + $0x10] sm:$0xff]
      %v563 = vld [vmem:[#allocation3 + $0x18] sm:$0xff]
      %v564 = vld [vmem:[#allocation3 + $0x20] sm:$0xff]
      %v565 = vld [vmem:[#allocation3 + $0x28] sm:$0xff]
      %v566 = vld [vmem:[#allocation3 + $0x30] sm:$0xff]
      %v567 = vld [vmem:[#allocation3 + $0x38] sm:$0xff]
      %v568 = vld [vmem:[#allocation3 + $0x40] sm:$0xff]
      %v569 = vld [vmem:[#allocation3 + $0x48] sm:$0xff]
      %v570 = vld [vmem:[#allocation3 + $0x50] sm:$0xff]
      %v571 = vld [vmem:[#allocation3 + $0x58] sm:$0xff]
      %v572 = vld [vmem:[#allocation3 + $0x60] sm:$0xff]
      %v573 = vld [vmem:[#allocation3 + $0x68] sm:$0xff]
      %v574 = vld [vmem:[#allocation3 + $0x70] sm:$0xff]
      %v575 = vld [vmem:[#allocation3 + $0x78] sm:$0xff]
      %v576 = vld [vmem:[#allocation3 + $0x80] sm:$0xff]
      %v577 = vld [vmem:[#allocation3 + $0x88] sm:$0xff]
      %v578 = vld [vmem:[#allocation3 + $0x90] sm:$0xff]
      %v579 = vld [vmem:[#allocation3 + $0x98] sm:$0xff]
      %v580 = vld [vmem:[#allocation3 + $0xa0] sm:$0xff]
      %v581 = vld [vmem:[#allocation3 + $0xa8] sm:$0xff]
      %v582 = vld [vmem:[#allocation3 + $0xb0] sm:$0xff]
      %v583 = vld [vmem:[#allocation3 + $0xb8] sm:$0xff]
      %v584 = vld [vmem:[#allocation3 + $0xc0] sm:$0xff]
      %v585 = vld [vmem:[#allocation3 + $0xc8] sm:$0xff]
      %v586 = vld [vmem:[#allocation3 + $0xd0] sm:$0xff]
      %v587 = vld [vmem:[#allocation3 + $0xd8] sm:$0xff]
      %v588 = vld [vmem:[#allocation3 + $0xe0] sm:$0xff]
      %v589 = vld [vmem:[#allocation3 + $0xe8] sm:$0xff]
      %v590 = vld [vmem:[#allocation3 + $0xf0] sm:$0xff]
      %v591 = vld [vmem:[#allocation3 + $0xf8] sm:$0xff]
      %v592 = vpack.c.bf16 %v529, %v528
      %v593 = vpack.c.bf16 %v531, %v530
      %v594 = vpack.c.bf16 %v533, %v532
      %v595 = vpack.c.bf16 %v535, %v534
      %v596 = vpack.c.bf16 %v537, %v536
      %v597 = vpack.c.bf16 %v539, %v538
      %v598 = vpack.c.bf16 %v541, %v540
      %v599 = vpack.c.bf16 %v543, %v542
      %v600 = vpack.c.bf16 %v545, %v544
      %v601 = vpack.c.bf16 %v547, %v546
      %v602 = vpack.c.bf16 %v549, %v548
      %v603 = vpack.c.bf16 %v551, %v550
      %v604 = vpack.c.bf16 %v553, %v552
      %v605 = vpack.c.bf16 %v555, %v554
      %v606 = vpack.c.bf16 %v557, %v556
      %v607 = vpack.c.bf16 %v559, %v558
      %v608 = vld [vmem:[%s1] sm:$0xf]
      %v609 = vld [vmem:[%s1 + $0x4] sm:$0xf]
      %v610 = vld [vmem:[%s1 + $0x8] sm:$0xf]
      %v611 = vld [vmem:[%s1 + $0xc] sm:$0xf]
      %v612 = vld [vmem:[%s1 + $0x10] sm:$0xf]
      %v613 = vld [vmem:[%s1 + $0x14] sm:$0xf]
      %v614 = vld [vmem:[%s1 + $0x18] sm:$0xf]
      %v615 = vld [vmem:[%s1 + $0x1c] sm:$0xf]
      %v616 = vld [vmem:[%s1 + $0x20] sm:$0xf]
      %v617 = vld [vmem:[%s1 + $0x24] sm:$0xf]
      %v618 = vld [vmem:[%s1 + $0x28] sm:$0xf]
      %v619 = vld [vmem:[%s1 + $0x2c] sm:$0xf]
      %v620 = vld [vmem:[%s1 + $0x30] sm:$0xf]
      %v621 = vld [vmem:[%s1 + $0x34] sm:$0xf]
      %v622 = vld [vmem:[%s1 + $0x38] sm:$0xf]
      %v623 = vld [vmem:[%s1 + $0x3c] sm:$0xf]
      %v640 = vunpack.c.l.b16 %v608
      %v641 = vunpack.c.l.b16 %v609
      %v642 = vunpack.c.l.b16 %v610
      %v643 = vunpack.c.l.b16 %v611
      %v644 = vunpack.c.l.b16 %v612
      %v645 = vunpack.c.l.b16 %v613
      %v646 = vunpack.c.l.b16 %v614
      %v647 = vunpack.c.l.b16 %v615
      %v648 = vunpack.c.l.b16 %v616
      %v649 = vunpack.c.l.b16 %v617
      %v650 = vunpack.c.l.b16 %v618
      %v651 = vunpack.c.l.b16 %v619
      %v652 = vunpack.c.l.b16 %v620
      %v653 = vunpack.c.l.b16 %v621
      %v654 = vunpack.c.l.b16 %v622
      %v655 = vunpack.c.l.b16 %v623
      %v656 = vpack.c.b16 %v641, %v640
      %v657 = vpack.c.b16 %v643, %v642
      %v658 = vpack.c.b16 %v645, %v644
      %v659 = vpack.c.b16 %v647, %v646
      %v660 = vpack.c.b16 %v649, %v648
      %v661 = vpack.c.b16 %v651, %v650
      %v662 = vpack.c.b16 %v653, %v652
      %v663 = vpack.c.b16 %v655, %v654
      %672 = vmatpush.bf16.msra.mxu0 %v663
      %673 = vmatpush.bf16.msra.mxu0 %v662
      %674 = vmatpush.bf16.msra.mxu0 %v661
      %675 = vmatpush.bf16.msra.mxu0 %v660
      %676 = vmatpush.bf16.msra.mxu0 %v659
      %677 = vmatpush.bf16.msra.mxu0 %v658
      %678 = vmatpush.bf16.msra.mxu0 %v657
      %679 = vmatpush.bf16.msra.mxu0 %v656
      %680 = vmatmul.bf16.gmra.mxu0 %v592
      %v681 = vpop.f32.mrf.mxu0
      %v682 = vadd.f32 0.0, %v681
      %v683 = vpop.f32.mrf.mxu0
      %v684 = vadd.f32 0.0, %v683
      %685 = vmatmul.bf16.gmra.mxu0 %v593
      %v686 = vpop.f32.mrf.mxu0
      %v687 = vadd.f32 0.0, %v686
      %v688 = vpop.f32.mrf.mxu0
      %v689 = vadd.f32 0.0, %v688
      %690 = vmatmul.bf16.gmra.mxu0 %v594
      %v691 = vpop.f32.mrf.mxu0
      %v692 = vadd.f32 0.0, %v691
      %v693 = vpop.f32.mrf.mxu0
      %v694 = vadd.f32 0.0, %v693
      %695 = vmatmul.bf16.gmra.mxu0 %v595
      %v696 = vpop.f32.mrf.mxu0
      %v697 = vadd.f32 0.0, %v696
      %v698 = vpop.f32.mrf.mxu0
      %v699 = vadd.f32 0.0, %v698
      %700 = vmatmul.bf16.gmra.mxu0 %v596
      %v701 = vpop.f32.mrf.mxu0
      %v702 = vadd.f32 0.0, %v701
      %v703 = vpop.f32.mrf.mxu0
      %v704 = vadd.f32 0.0, %v703
      %705 = vmatmul.bf16.gmra.mxu0 %v597
      %v706 = vpop.f32.mrf.mxu0
      %v707 = vadd.f32 0.0, %v706
      %v708 = vpop.f32.mrf.mxu0
      %v709 = vadd.f32 0.0, %v708
      %710 = vmatmul.bf16.gmra.mxu0 %v598
      %v711 = vpop.f32.mrf.mxu0
      %v712 = vadd.f32 0.0, %v711
      %v713 = vpop.f32.mrf.mxu0
      %v714 = vadd.f32 0.0, %v713
      %715 = vmatmul.bf16.gmra.mxu0 %v599
      %v716 = vpop.f32.mrf.mxu0
      %v717 = vadd.f32 0.0, %v716
      %v718 = vpop.f32.mrf.mxu0
      %v719 = vadd.f32 0.0, %v718
      %720 = vmatmul.bf16.gmra.mxu0 %v600
      %v721 = vpop.f32.mrf.mxu0
      %v722 = vadd.f32 0.0, %v721
      %v723 = vpop.f32.mrf.mxu0
      %v724 = vadd.f32 0.0, %v723
      %725 = vmatmul.bf16.gmra.mxu0 %v601
      %v726 = vpop.f32.mrf.mxu0
      %v727 = vadd.f32 0.0, %v726
      %v728 = vpop.f32.mrf.mxu0
      %v729 = vadd.f32 0.0, %v728
      %730 = vmatmul.bf16.gmra.mxu0 %v602
      %v731 = vpop.f32.mrf.mxu0
      %v732 = vadd.f32 0.0, %v731
      %v733 = vpop.f32.mrf.mxu0
      %v734 = vadd.f32 0.0, %v733
      %735 = vmatmul.bf16.gmra.mxu0 %v603
      %v736 = vpop.f32.mrf.mxu0
      %v737 = vadd.f32 0.0, %v736
      %v738 = vpop.f32.mrf.mxu0
      %v739 = vadd.f32 0.0, %v738
      %740 = vmatmul.bf16.gmra.mxu0 %v604
      %v741 = vpop.f32.mrf.mxu0
      %v742 = vadd.f32 0.0, %v741
      %v743 = vpop.f32.mrf.mxu0
      %v744 = vadd.f32 0.0, %v743
      %745 = vmatmul.bf16.gmra.mxu0 %v605
      %v746 = vpop.f32.mrf.mxu0
      %v747 = vadd.f32 0.0, %v746
      %v748 = vpop.f32.mrf.mxu0
      %v749 = vadd.f32 0.0, %v748
      %750 = vmatmul.bf16.gmra.mxu0 %v606
      %v751 = vpop.f32.mrf.mxu0
      %v752 = vadd.f32 0.0, %v751
      %v753 = vpop.f32.mrf.mxu0
      %v754 = vadd.f32 0.0, %v753
      %755 = vmatmul.bf16.gmra.mxu0 %v607
      %v756 = vpop.f32.mrf.mxu0
      %v757 = vadd.f32 0.0, %v756
      %v758 = vpop.f32.mrf.mxu0
      %v759 = vadd.f32 0.0, %v758
      %760 = vdwg.mxu0
      %v761 = vadd.f32 %v560, %v682
      %v762 = vadd.f32 %v561, %v684
      %v763 = vadd.f32 %v562, %v687
      %v764 = vadd.f32 %v563, %v689
      %v765 = vadd.f32 %v564, %v692
      %v766 = vadd.f32 %v565, %v694
      %v767 = vadd.f32 %v566, %v697
      %v768 = vadd.f32 %v567, %v699
      %v769 = vadd.f32 %v568, %v702
      %v770 = vadd.f32 %v569, %v704
      %v771 = vadd.f32 %v570, %v707
      %v772 = vadd.f32 %v571, %v709
      %v773 = vadd.f32 %v572, %v712
      %v774 = vadd.f32 %v573, %v714
      %v775 = vadd.f32 %v574, %v717
      %v776 = vadd.f32 %v575, %v719
      %v777 = vadd.f32 %v576, %v722
      %v778 = vadd.f32 %v577, %v724
      %v779 = vadd.f32 %v578, %v727
      %v780 = vadd.f32 %v579, %v729
      %v781 = vadd.f32 %v580, %v732
      %v782 = vadd.f32 %v581, %v734
      %v783 = vadd.f32 %v582, %v737
      %v784 = vadd.f32 %v583, %v739
      %v785 = vadd.f32 %v584, %v742
      %v786 = vadd.f32 %v585, %v744
      %v787 = vadd.f32 %v586, %v747
      %v788 = vadd.f32 %v587, %v749
      %v789 = vadd.f32 %v588, %v752
      %v790 = vadd.f32 %v589, %v754
      %v791 = vadd.f32 %v590, %v757
      %v792 = vadd.f32 %v591, %v759
      %793 = vst [vmem:[#allocation3] sm:$0xff] %v761
      %794 = vst [vmem:[#allocation3 + $0x8] sm:$0xff] %v762
      %795 = vst [vmem:[#allocation3 + $0x10] sm:$0xff] %v763
      %796 = vst [vmem:[#allocation3 + $0x18] sm:$0xff] %v764
      %797 = vst [vmem:[#allocation3 + $0x20] sm:$0xff] %v765
      %798 = vst [vmem:[#allocation3 + $0x28] sm:$0xff] %v766
      %799 = vst [vmem:[#allocation3 + $0x30] sm:$0xff] %v767
      %800 = vst [vmem:[#allocation3 + $0x38] sm:$0xff] %v768
      %801 = vst [vmem:[#allocation3 + $0x40] sm:$0xff] %v769
      %802 = vst [vmem:[#allocation3 + $0x48] sm:$0xff] %v770
      %803 = vst [vmem:[#allocation3 + $0x50] sm:$0xff] %v771
      %804 = vst [vmem:[#allocation3 + $0x58] sm:$0xff] %v772
      %805 = vst [vmem:[#allocation3 + $0x60] sm:$0xff] %v773
      %806 = vst [vmem:[#allocation3 + $0x68] sm:$0xff] %v774
      %807 = vst [vmem:[#allocation3 + $0x70] sm:$0xff] %v775
      %808 = vst [vmem:[#allocation3 + $0x78] sm:$0xff] %v776
      %809 = vst [vmem:[#allocation3 + $0x80] sm:$0xff] %v777
      %810 = vst [vmem:[#allocation3 + $0x88] sm:$0xff] %v778
      %811 = vst [vmem:[#allocation3 + $0x90] sm:$0xff] %v779
      %812 = vst [vmem:[#allocation3 + $0x98] sm:$0xff] %v780
      %813 = vst [vmem:[#allocation3 + $0xa0] sm:$0xff] %v781
      %814 = vst [vmem:[#allocation3 + $0xa8] sm:$0xff] %v782
      %815 = vst [vmem:[#allocation3 + $0xb0] sm:$0xff] %v783
      %816 = vst [vmem:[#allocation3 + $0xb8] sm:$0xff] %v784
      %817 = vst [vmem:[#allocation3 + $0xc0] sm:$0xff] %v785
      %818 = vst [vmem:[#allocation3 + $0xc8] sm:$0xff] %v786
      %819 = vst [vmem:[#allocation3 + $0xd0] sm:$0xff] %v787
      %820 = vst [vmem:[#allocation3 + $0xd8] sm:$0xff] %v788
      %821 = vst [vmem:[#allocation3 + $0xe0] sm:$0xff] %v789
      %822 = vst [vmem:[#allocation3 + $0xe8] sm:$0xff] %v790
      %823 = vst [vmem:[#allocation3 + $0xf0] sm:$0xff] %v791
      %824 = vst [vmem:[#allocation3 + $0xf8] sm:$0xff] %v792
      %v825 = vld [vmem:[#allocation2 + $0x1] sm:$0xff]
      %v826 = vld [vmem:[#allocation2 + $0x9] sm:$0xff]
      %v827 = vld [vmem:[#allocation2 + $0x19] sm:$0xff]
      %v828 = vld [vmem:[#allocation2 + $0x21] sm:$0xff]
      %v829 = vld [vmem:[#allocation2 + $0x31] sm:$0xff]
      %v830 = vld [vmem:[#allocation2 + $0x39] sm:$0xff]
      %v831 = vld [vmem:[#allocation2 + $0x49] sm:$0xff]
      %v832 = vld [vmem:[#allocation2 + $0x51] sm:$0xff]
      %v833 = vld [vmem:[#allocation2 + $0x61] sm:$0xff]
      %v834 = vld [vmem:[#allocation2 + $0x69] sm:$0xff]
      %v835 = vld [vmem:[#allocation2 + $0x79] sm:$0xff]
      %v836 = vld [vmem:[#allocation2 + $0x81] sm:$0xff]
      %v837 = vld [vmem:[#allocation2 + $0x91] sm:$0xff]
      %v838 = vld [vmem:[#allocation2 + $0x99] sm:$0xff]
      %v839 = vld [vmem:[#allocation2 + $0xa9] sm:$0xff]
      %v840 = vld [vmem:[#allocation2 + $0xb1] sm:$0xff]
      %v841 = vld [vmem:[#allocation2 + $0xc1] sm:$0xff]
      %v842 = vld [vmem:[#allocation2 + $0xc9] sm:$0xff]
      %v843 = vld [vmem:[#allocation2 + $0xd9] sm:$0xff]
      %v844 = vld [vmem:[#allocation2 + $0xe1] sm:$0xff]
      %v845 = vld [vmem:[#allocation2 + $0xf1] sm:$0xff]
      %v846 = vld [vmem:[#allocation2 + $0xf9] sm:$0xff]
      %v847 = vld [vmem:[#allocation2 + $0x109] sm:$0xff]
      %v848 = vld [vmem:[#allocation2 + $0x111] sm:$0xff]
      %v849 = vld [vmem:[#allocation2 + $0x121] sm:$0xff]
      %v850 = vld [vmem:[#allocation2 + $0x129] sm:$0xff]
      %v851 = vld [vmem:[#allocation2 + $0x139] sm:$0xff]
      %v852 = vld [vmem:[#allocation2 + $0x141] sm:$0xff]
      %v853 = vld [vmem:[#allocation2 + $0x151] sm:$0xff]
      %v854 = vld [vmem:[#allocation2 + $0x159] sm:$0xff]
      %v855 = vld [vmem:[#allocation2 + $0x169] sm:$0xff]
      %v856 = vld [vmem:[#allocation2 + $0x171] sm:$0xff]
      %v857 = vld [vmem:[#allocation3] sm:$0xff]
      %v858 = vld [vmem:[#allocation3 + $0x8] sm:$0xff]
      %v859 = vld [vmem:[#allocation3 + $0x10] sm:$0xff]
      %v860 = vld [vmem:[#allocation3 + $0x18] sm:$0xff]
      %v861 = vld [vmem:[#allocation3 + $0x20] sm:$0xff]
      %v862 = vld [vmem:[#allocation3 + $0x28] sm:$0xff]
      %v863 = vld [vmem:[#allocation3 + $0x30] sm:$0xff]
      %v864 = vld [vmem:[#allocation3 + $0x38] sm:$0xff]
      %v865 = vld [vmem:[#allocation3 + $0x40] sm:$0xff]
      %v866 = vld [vmem:[#allocation3 + $0x48] sm:$0xff]
      %v867 = vld [vmem:[#allocation3 + $0x50] sm:$0xff]
      %v868 = vld [vmem:[#allocation3 + $0x58] sm:$0xff]
      %v869 = vld [vmem:[#allocation3 + $0x60] sm:$0xff]
      %v870 = vld [vmem:[#allocation3 + $0x68] sm:$0xff]
      %v871 = vld [vmem:[#allocation3 + $0x70] sm:$0xff]
      %v872 = vld [vmem:[#allocation3 + $0x78] sm:$0xff]
      %v873 = vld [vmem:[#allocation3 + $0x80] sm:$0xff]
      %v874 = vld [vmem:[#allocation3 + $0x88] sm:$0xff]
      %v875 = vld [vmem:[#allocation3 + $0x90] sm:$0xff]
      %v876 = vld [vmem:[#allocation3 + $0x98] sm:$0xff]
      %v877 = vld [vmem:[#allocation3 + $0xa0] sm:$0xff]
      %v878 = vld [vmem:[#allocation3 + $0xa8] sm:$0xff]
      %v879 = vld [vmem:[#allocation3 + $0xb0] sm:$0xff]
      %v880 = vld [vmem:[#allocation3 + $0xb8] sm:$0xff]
      %v881 = vld [vmem:[#allocation3 + $0xc0] sm:$0xff]
      %v882 = vld [vmem:[#allocation3 + $0xc8] sm:$0xff]
      %v883 = vld [vmem:[#allocation3 + $0xd0] sm:$0xff]
      %v884 = vld [vmem:[#allocation3 + $0xd8] sm:$0xff]
      %v885 = vld [vmem:[#allocation3 + $0xe0] sm:$0xff]
      %v886 = vld [vmem:[#allocation3 + $0xe8] sm:$0xff]
      %v887 = vld [vmem:[#allocation3 + $0xf0] sm:$0xff]
      %v888 = vld [vmem:[#allocation3 + $0xf8] sm:$0xff]
      %v889 = vpack.c.bf16 %v826, %v825
      %v890 = vpack.c.bf16 %v828, %v827
      %v891 = vpack.c.bf16 %v830, %v829
      %v892 = vpack.c.bf16 %v832, %v831
      %v893 = vpack.c.bf16 %v834, %v833
      %v894 = vpack.c.bf16 %v836, %v835
      %v895 = vpack.c.bf16 %v838, %v837
      %v896 = vpack.c.bf16 %v840, %v839
      %v897 = vpack.c.bf16 %v842, %v841
      %v898 = vpack.c.bf16 %v844, %v843
      %v899 = vpack.c.bf16 %v846, %v845
      %v900 = vpack.c.bf16 %v848, %v847
      %v901 = vpack.c.bf16 %v850, %v849
      %v902 = vpack.c.bf16 %v852, %v851
      %v903 = vpack.c.bf16 %v854, %v853
      %v904 = vpack.c.bf16 %v856, %v855
      %s905 = scalar_lea.vmem %s1, 64
      %v906 = vld [vmem:[%s905] sm:$0xf]
      %v907 = vld [vmem:[%s905 + $0x4] sm:$0xf]
      %v908 = vld [vmem:[%s905 + $0x8] sm:$0xf]
      %v909 = vld [vmem:[%s905 + $0xc] sm:$0xf]
      %v910 = vld [vmem:[%s905 + $0x10] sm:$0xf]
      %v911 = vld [vmem:[%s905 + $0x14] sm:$0xf]
      %v912 = vld [vmem:[%s905 + $0x18] sm:$0xf]
      %v913 = vld [vmem:[%s905 + $0x1c] sm:$0xf]
      %v914 = vld [vmem:[%s905 + $0x20] sm:$0xf]
      %v915 = vld [vmem:[%s905 + $0x24] sm:$0xf]
      %v916 = vld [vmem:[%s905 + $0x28] sm:$0xf]
      %v917 = vld [vmem:[%s905 + $0x2c] sm:$0xf]
      %v918 = vld [vmem:[%s905 + $0x30] sm:$0xf]
      %v919 = vld [vmem:[%s905 + $0x34] sm:$0xf]
      %v920 = vld [vmem:[%s905 + $0x38] sm:$0xf]
      %v921 = vld [vmem:[%s905 + $0x3c] sm:$0xf]
      %v938 = vunpack.c.l.b16 %v906
      %v939 = vunpack.c.l.b16 %v907
      %v940 = vunpack.c.l.b16 %v908
      %v941 = vunpack.c.l.b16 %v909
      %v942 = vunpack.c.l.b16 %v910
      %v943 = vunpack.c.l.b16 %v911
      %v944 = vunpack.c.l.b16 %v912
      %v945 = vunpack.c.l.b16 %v913
      %v946 = vunpack.c.l.b16 %v914
      %v947 = vunpack.c.l.b16 %v915
      %v948 = vunpack.c.l.b16 %v916
      %v949 = vunpack.c.l.b16 %v917
      %v950 = vunpack.c.l.b16 %v918
      %v951 = vunpack.c.l.b16 %v919
      %v952 = vunpack.c.l.b16 %v920
      %v953 = vunpack.c.l.b16 %v921
      %v954 = vpack.c.b16 %v939, %v938
      %v955 = vpack.c.b16 %v941, %v940
      %v956 = vpack.c.b16 %v943, %v942
      %v957 = vpack.c.b16 %v945, %v944
      %v958 = vpack.c.b16 %v947, %v946
      %v959 = vpack.c.b16 %v949, %v948
      %v960 = vpack.c.b16 %v951, %v950
      %v961 = vpack.c.b16 %v953, %v952
      %970 = vmatpush.bf16.msra.mxu0 %v961
      %971 = vmatpush.bf16.msra.mxu0 %v960
      %972 = vmatpush.bf16.msra.mxu0 %v959
      %973 = vmatpush.bf16.msra.mxu0 %v958
      %974 = vmatpush.bf16.msra.mxu0 %v957
      %975 = vmatpush.bf16.msra.mxu0 %v956
      %976 = vmatpush.bf16.msra.mxu0 %v955
      %977 = vmatpush.bf16.msra.mxu0 %v954
      %978 = vmatmul.bf16.gmra.mxu0 %v889
      %v979 = vpop.f32.mrf.mxu0
      %v980 = vadd.f32 0.0, %v979
      %v981 = vpop.f32.mrf.mxu0
      %v982 = vadd.f32 0.0, %v981
      %983 = vmatmul.bf16.gmra.mxu0 %v890
      %v984 = vpop.f32.mrf.mxu0
      %v985 = vadd.f32 0.0, %v984
      %v986 = vpop.f32.mrf.mxu0
      %v987 = vadd.f32 0.0, %v986
      %988 = vmatmul.bf16.gmra.mxu0 %v891
      %v989 = vpop.f32.mrf.mxu0
      %v990 = vadd.f32 0.0, %v989
      %v991 = vpop.f32.mrf.mxu0
      %v992 = vadd.f32 0.0, %v991
      %993 = vmatmul.bf16.gmra.mxu0 %v892
      %v994 = vpop.f32.mrf.mxu0
      %v995 = vadd.f32 0.0, %v994
      %v996 = vpop.f32.mrf.mxu0
      %v997 = vadd.f32 0.0, %v996
      %998 = vmatmul.bf16.gmra.mxu0 %v893
      %v999 = vpop.f32.mrf.mxu0
      %v1000 = vadd.f32 0.0, %v999
      %v1001 = vpop.f32.mrf.mxu0
      %v1002 = vadd.f32 0.0, %v1001
      %1003 = vmatmul.bf16.gmra.mxu0 %v894
      %v1004 = vpop.f32.mrf.mxu0
      %v1005 = vadd.f32 0.0, %v1004
      %v1006 = vpop.f32.mrf.mxu0
      %v1007 = vadd.f32 0.0, %v1006
      %1008 = vmatmul.bf16.gmra.mxu0 %v895
      %v1009 = vpop.f32.mrf.mxu0
      %v1010 = vadd.f32 0.0, %v1009
      %v1011 = vpop.f32.mrf.mxu0
      %v1012 = vadd.f32 0.0, %v1011
      %1013 = vmatmul.bf16.gmra.mxu0 %v896
      %v1014 = vpop.f32.mrf.mxu0
      %v1015 = vadd.f32 0.0, %v1014
      %v1016 = vpop.f32.mrf.mxu0
      %v1017 = vadd.f32 0.0, %v1016
      %1018 = vmatmul.bf16.gmra.mxu0 %v897
      %v1019 = vpop.f32.mrf.mxu0
      %v1020 = vadd.f32 0.0, %v1019
      %v1021 = vpop.f32.mrf.mxu0
      %v1022 = vadd.f32 0.0, %v1021
      %1023 = vmatmul.bf16.gmra.mxu0 %v898
      %v1024 = vpop.f32.mrf.mxu0
      %v1025 = vadd.f32 0.0, %v1024
      %v1026 = vpop.f32.mrf.mxu0
      %v1027 = vadd.f32 0.0, %v1026
      %1028 = vmatmul.bf16.gmra.mxu0 %v899
      %v1029 = vpop.f32.mrf.mxu0
      %v1030 = vadd.f32 0.0, %v1029
      %v1031 = vpop.f32.mrf.mxu0
      %v1032 = vadd.f32 0.0, %v1031
      %1033 = vmatmul.bf16.gmra.mxu0 %v900
      %v1034 = vpop.f32.mrf.mxu0
      %v1035 = vadd.f32 0.0, %v1034
      %v1036 = vpop.f32.mrf.mxu0
      %v1037 = vadd.f32 0.0, %v1036
      %1038 = vmatmul.bf16.gmra.mxu0 %v901
      %v1039 = vpop.f32.mrf.mxu0
      %v1040 = vadd.f32 0.0, %v1039
      %v1041 = vpop.f32.mrf.mxu0
      %v1042 = vadd.f32 0.0, %v1041
      %1043 = vmatmul.bf16.gmra.mxu0 %v902
      %v1044 = vpop.f32.mrf.mxu0
      %v1045 = vadd.f32 0.0, %v1044
      %v1046 = vpop.f32.mrf.mxu0
      %v1047 = vadd.f32 0.0, %v1046
      %1048 = vmatmul.bf16.gmra.mxu0 %v903
      %v1049 = vpop.f32.mrf.mxu0
      %v1050 = vadd.f32 0.0, %v1049
      %v1051 = vpop.f32.mrf.mxu0
      %v1052 = vadd.f32 0.0, %v1051
      %1053 = vmatmul.bf16.gmra.mxu0 %v904
      %v1054 = vpop.f32.mrf.mxu0
      %v1055 = vadd.f32 0.0, %v1054
      %v1056 = vpop.f32.mrf.mxu0
      %v1057 = vadd.f32 0.0, %v1056
      %1058 = vdwg.mxu0
      %v1059 = vadd.f32 %v857, %v980
      %v1060 = vadd.f32 %v858, %v982
      %v1061 = vadd.f32 %v859, %v985
      %v1062 = vadd.f32 %v860, %v987
      %v1063 = vadd.f32 %v861, %v990
      %v1064 = vadd.f32 %v862, %v992
      %v1065 = vadd.f32 %v863, %v995
      %v1066 = vadd.f32 %v864, %v997
      %v1067 = vadd.f32 %v865, %v1000
      %v1068 = vadd.f32 %v866, %v1002
      %v1069 = vadd.f32 %v867, %v1005
      %v1070 = vadd.f32 %v868, %v1007
      %v1071 = vadd.f32 %v869, %v1010
      %v1072 = vadd.f32 %v870, %v1012
      %v1073 = vadd.f32 %v871, %v1015
      %v1074 = vadd.f32 %v872, %v1017
      %v1075 = vadd.f32 %v873, %v1020
      %v1076 = vadd.f32 %v874, %v1022
      %v1077 = vadd.f32 %v875, %v1025
      %v1078 = vadd.f32 %v876, %v1027
      %v1079 = vadd.f32 %v877, %v1030
      %v1080 = vadd.f32 %v878, %v1032
      %v1081 = vadd.f32 %v879, %v1035
      %v1082 = vadd.f32 %v880, %v1037
      %v1083 = vadd.f32 %v881, %v1040
      %v1084 = vadd.f32 %v882, %v1042
      %v1085 = vadd.f32 %v883, %v1045
      %v1086 = vadd.f32 %v884, %v1047
      %v1087 = vadd.f32 %v885, %v1050
      %v1088 = vadd.f32 %v886, %v1052
      %v1089 = vadd.f32 %v887, %v1055
      %v1090 = vadd.f32 %v888, %v1057
      %1091 = vst [vmem:[#allocation3] sm:$0xff] %v1059
      %1092 = vst [vmem:[#allocation3 + $0x8] sm:$0xff] %v1060
      %1093 = vst [vmem:[#allocation3 + $0x10] sm:$0xff] %v1061
      %1094 = vst [vmem:[#allocation3 + $0x18] sm:$0xff] %v1062
      %1095 = vst [vmem:[#allocation3 + $0x20] sm:$0xff] %v1063
      %1096 = vst [vmem:[#allocation3 + $0x28] sm:$0xff] %v1064
      %1097 = vst [vmem:[#allocation3 + $0x30] sm:$0xff] %v1065
      %1098 = vst [vmem:[#allocation3 + $0x38] sm:$0xff] %v1066
      %1099 = vst [vmem:[#allocation3 + $0x40] sm:$0xff] %v1067
      %1100 = vst [vmem:[#allocation3 + $0x48] sm:$0xff] %v1068
      %1101 = vst [vmem:[#allocation3 + $0x50] sm:$0xff] %v1069
      %1102 = vst [vmem:[#allocation3 + $0x58] sm:$0xff] %v1070
      %1103 = vst [vmem:[#allocation3 + $0x60] sm:$0xff] %v1071
      %1104 = vst [vmem:[#allocation3 + $0x68] sm:$0xff] %v1072
      %1105 = vst [vmem:[#allocation3 + $0x70] sm:$0xff] %v1073
      %1106 = vst [vmem:[#allocation3 + $0x78] sm:$0xff] %v1074
      %1107 = vst [vmem:[#allocation3 + $0x80] sm:$0xff] %v1075
      %1108 = vst [vmem:[#allocation3 + $0x88] sm:$0xff] %v1076
      %1109 = vst [vmem:[#allocation3 + $0x90] sm:$0xff] %v1077
      %1110 = vst [vmem:[#allocation3 + $0x98] sm:$0xff] %v1078
      %1111 = vst [vmem:[#allocation3 + $0xa0] sm:$0xff] %v1079
      %1112 = vst [vmem:[#allocation3 + $0xa8] sm:$0xff] %v1080
      %1113 = vst [vmem:[#allocation3 + $0xb0] sm:$0xff] %v1081
      %1114 = vst [vmem:[#allocation3 + $0xb8] sm:$0xff] %v1082
      %1115 = vst [vmem:[#allocation3 + $0xc0] sm:$0xff] %v1083
      %1116 = vst [vmem:[#allocation3 + $0xc8] sm:$0xff] %v1084
      %1117 = vst [vmem:[#allocation3 + $0xd0] sm:$0xff] %v1085
      %1118 = vst [vmem:[#allocation3 + $0xd8] sm:$0xff] %v1086
      %1119 = vst [vmem:[#allocation3 + $0xe0] sm:$0xff] %v1087
      %1120 = vst [vmem:[#allocation3 + $0xe8] sm:$0xff] %v1088
      %1121 = vst [vmem:[#allocation3 + $0xf0] sm:$0xff] %v1089
      %1122 = vst [vmem:[#allocation3 + $0xf8] sm:$0xff] %v1090
      %v1123 = vld [vmem:[#allocation2 + $0x2] sm:$0xff]
      %v1124 = vld [vmem:[#allocation2 + $0xa] sm:$0xff]
      %v1125 = vld [vmem:[#allocation2 + $0x1a] sm:$0xff]
      %v1126 = vld [vmem:[#allocation2 + $0x22] sm:$0xff]
      %v1127 = vld [vmem:[#allocation2 + $0x32] sm:$0xff]
      %v1128 = vld [vmem:[#allocation2 + $0x3a] sm:$0xff]
      %v1129 = vld [vmem:[#allocation2 + $0x4a] sm:$0xff]
      %v1130 = vld [vmem:[#allocation2 + $0x52] sm:$0xff]
      %v1131 = vld [vmem:[#allocation2 + $0x62] sm:$0xff]
      %v1132 = vld [vmem:[#allocation2 + $0x6a] sm:$0xff]
      %v1133 = vld [vmem:[#allocation2 + $0x7a] sm:$0xff]
      %v1134 = vld [vmem:[#allocation2 + $0x82] sm:$0xff]
      %v1135 = vld [vmem:[#allocation2 + $0x92] sm:$0xff]
      %v1136 = vld [vmem:[#allocation2 + $0x9a] sm:$0xff]
      %v1137 = vld [vmem:[#allocation2 + $0xaa] sm:$0xff]
      %v1138 = vld [vmem:[#allocation2 + $0xb2] sm:$0xff]
      %v1139 = vld [vmem:[#allocation2 + $0xc2] sm:$0xff]
      %v1140 = vld [vmem:[#allocation2 + $0xca] sm:$0xff]
      %v1141 = vld [vmem:[#allocation2 + $0xda] sm:$0xff]
      %v1142 = vld [vmem:[#allocation2 + $0xe2] sm:$0xff]
      %v1143 = vld [vmem:[#allocation2 + $0xf2] sm:$0xff]
      %v1144 = vld [vmem:[#allocation2 + $0xfa] sm:$0xff]
      %v1145 = vld [vmem:[#allocation2 + $0x10a] sm:$0xff]
      %v1146 = vld [vmem:[#allocation2 + $0x112] sm:$0xff]
      %v1147 = vld [vmem:[#allocation2 + $0x122] sm:$0xff]
      %v1148 = vld [vmem:[#allocation2 + $0x12a] sm:$0xff]
      %v1149 = vld [vmem:[#allocation2 + $0x13a] sm:$0xff]
      %v1150 = vld [vmem:[#allocation2 + $0x142] sm:$0xff]
      %v1151 = vld [vmem:[#allocation2 + $0x152] sm:$0xff]
      %v1152 = vld [vmem:[#allocation2 + $0x15a] sm:$0xff]
      %v1153 = vld [vmem:[#allocation2 + $0x16a] sm:$0xff]
      %v1154 = vld [vmem:[#allocation2 + $0x172] sm:$0xff]
      %v1155 = vld [vmem:[#allocation3] sm:$0xff]
      %v1156 = vld [vmem:[#allocation3 + $0x8] sm:$0xff]
      %v1157 = vld [vmem:[#allocation3 + $0x10] sm:$0xff]
      %v1158 = vld [vmem:[#allocation3 + $0x18] sm:$0xff]
      %v1159 = vld [vmem:[#allocation3 + $0x20] sm:$0xff]
      %v1160 = vld [vmem:[#allocation3 + $0x28] sm:$0xff]
      %v1161 = vld [vmem:[#allocation3 + $0x30] sm:$0xff]
      %v1162 = vld [vmem:[#allocation3 + $0x38] sm:$0xff]
      %v1163 = vld [vmem:[#allocation3 + $0x40] sm:$0xff]
      %v1164 = vld [vmem:[#allocation3 + $0x48] sm:$0xff]
      %v1165 = vld [vmem:[#allocation3 + $0x50] sm:$0xff]
      %v1166 = vld [vmem:[#allocation3 + $0x58] sm:$0xff]
      %v1167 = vld [vmem:[#allocation3 + $0x60] sm:$0xff]
      %v1168 = vld [vmem:[#allocation3 + $0x68] sm:$0xff]
      %v1169 = vld [vmem:[#allocation3 + $0x70] sm:$0xff]
      %v1170 = vld [vmem:[#allocation3 + $0x78] sm:$0xff]
      %v1171 = vld [vmem:[#allocation3 + $0x80] sm:$0xff]
      %v1172 = vld [vmem:[#allocation3 + $0x88] sm:$0xff]
      %v1173 = vld [vmem:[#allocation3 + $0x90] sm:$0xff]
      %v1174 = vld [vmem:[#allocation3 + $0x98] sm:$0xff]
      %v1175 = vld [vmem:[#allocation3 + $0xa0] sm:$0xff]
      %v1176 = vld [vmem:[#allocation3 + $0xa8] sm:$0xff]
      %v1177 = vld [vmem:[#allocation3 + $0xb0] sm:$0xff]
      %v1178 = vld [vmem:[#allocation3 + $0xb8] sm:$0xff]
      %v1179 = vld [vmem:[#allocation3 + $0xc0] sm:$0xff]
      %v1180 = vld [vmem:[#allocation3 + $0xc8] sm:$0xff]
      %v1181 = vld [vmem:[#allocation3 + $0xd0] sm:$0xff]
      %v1182 = vld [vmem:[#allocation3 + $0xd8] sm:$0xff]
      %v1183 = vld [vmem:[#allocation3 + $0xe0] sm:$0xff]
      %v1184 = vld [vmem:[#allocation3 + $0xe8] sm:$0xff]
      %v1185 = vld [vmem:[#allocation3 + $0xf0] sm:$0xff]
      %v1186 = vld [vmem:[#allocation3 + $0xf8] sm:$0xff]
      %v1187 = vpack.c.bf16 %v1124, %v1123
      %v1188 = vpack.c.bf16 %v1126, %v1125
      %v1189 = vpack.c.bf16 %v1128, %v1127
      %v1190 = vpack.c.bf16 %v1130, %v1129
      %v1191 = vpack.c.bf16 %v1132, %v1131
      %v1192 = vpack.c.bf16 %v1134, %v1133
      %v1193 = vpack.c.bf16 %v1136, %v1135
      %v1194 = vpack.c.bf16 %v1138, %v1137
      %v1195 = vpack.c.bf16 %v1140, %v1139
      %v1196 = vpack.c.bf16 %v1142, %v1141
      %v1197 = vpack.c.bf16 %v1144, %v1143
      %v1198 = vpack.c.bf16 %v1146, %v1145
      %v1199 = vpack.c.bf16 %v1148, %v1147
      %v1200 = vpack.c.bf16 %v1150, %v1149
      %v1201 = vpack.c.bf16 %v1152, %v1151
      %v1202 = vpack.c.bf16 %v1154, %v1153
      %s1203 = scalar_lea.vmem %s1, 128
      %v1204 = vld [vmem:[%s1203] sm:$0xf]
      %v1205 = vld [vmem:[%s1203 + $0x4] sm:$0xf]
      %v1206 = vld [vmem:[%s1203 + $0x8] sm:$0xf]
      %v1207 = vld [vmem:[%s1203 + $0xc] sm:$0xf]
      %v1208 = vld [vmem:[%s1203 + $0x10] sm:$0xf]
      %v1209 = vld [vmem:[%s1203 + $0x14] sm:$0xf]
      %v1210 = vld [vmem:[%s1203 + $0x18] sm:$0xf]
      %v1211 = vld [vmem:[%s1203 + $0x1c] sm:$0xf]
      %v1212 = vld [vmem:[%s1203 + $0x20] sm:$0xf]
      %v1213 = vld [vmem:[%s1203 + $0x24] sm:$0xf]
      %v1214 = vld [vmem:[%s1203 + $0x28] sm:$0xf]
      %v1215 = vld [vmem:[%s1203 + $0x2c] sm:$0xf]
      %v1216 = vld [vmem:[%s1203 + $0x30] sm:$0xf]
      %v1217 = vld [vmem:[%s1203 + $0x34] sm:$0xf]
      %v1218 = vld [vmem:[%s1203 + $0x38] sm:$0xf]
      %v1219 = vld [vmem:[%s1203 + $0x3c] sm:$0xf]
      %v1236 = vunpack.c.l.b16 %v1204
      %v1237 = vunpack.c.l.b16 %v1205
      %v1238 = vunpack.c.l.b16 %v1206
      %v1239 = vunpack.c.l.b16 %v1207
      %v1240 = vunpack.c.l.b16 %v1208
      %v1241 = vunpack.c.l.b16 %v1209
      %v1242 = vunpack.c.l.b16 %v1210
      %v1243 = vunpack.c.l.b16 %v1211
      %v1244 = vunpack.c.l.b16 %v1212
      %v1245 = vunpack.c.l.b16 %v1213
      %v1246 = vunpack.c.l.b16 %v1214
      %v1247 = vunpack.c.l.b16 %v1215
      %v1248 = vunpack.c.l.b16 %v1216
      %v1249 = vunpack.c.l.b16 %v1217
      %v1250 = vunpack.c.l.b16 %v1218
      %v1251 = vunpack.c.l.b16 %v1219
      %v1252 = vpack.c.b16 %v1237, %v1236
      %v1253 = vpack.c.b16 %v1239, %v1238
      %v1254 = vpack.c.b16 %v1241, %v1240
      %v1255 = vpack.c.b16 %v1243, %v1242
      %v1256 = vpack.c.b16 %v1245, %v1244
      %v1257 = vpack.c.b16 %v1247, %v1246
      %v1258 = vpack.c.b16 %v1249, %v1248
      %v1259 = vpack.c.b16 %v1251, %v1250
      %1268 = vmatpush.bf16.msra.mxu0 %v1259
      %1269 = vmatpush.bf16.msra.mxu0 %v1258
      %1270 = vmatpush.bf16.msra.mxu0 %v1257
      %1271 = vmatpush.bf16.msra.mxu0 %v1256
      %1272 = vmatpush.bf16.msra.mxu0 %v1255
      %1273 = vmatpush.bf16.msra.mxu0 %v1254
      %1274 = vmatpush.bf16.msra.mxu0 %v1253
      %1275 = vmatpush.bf16.msra.mxu0 %v1252
      %1276 = vmatmul.bf16.gmra.mxu0 %v1187
      %v1277 = vpop.f32.mrf.mxu0
      %v1278 = vadd.f32 0.0, %v1277
      %v1279 = vpop.f32.mrf.mxu0
      %v1280 = vadd.f32 0.0, %v1279
      %1281 = vmatmul.bf16.gmra.mxu0 %v1188
      %v1282 = vpop.f32.mrf.mxu0
      %v1283 = vadd.f32 0.0, %v1282
      %v1284 = vpop.f32.mrf.mxu0
      %v1285 = vadd.f32 0.0, %v1284
      %1286 = vmatmul.bf16.gmra.mxu0 %v1189
      %v1287 = vpop.f32.mrf.mxu0
      %v1288 = vadd.f32 0.0, %v1287
      %v1289 = vpop.f32.mrf.mxu0
      %v1290 = vadd.f32 0.0, %v1289
      %1291 = vmatmul.bf16.gmra.mxu0 %v1190
      %v1292 = vpop.f32.mrf.mxu0
      %v1293 = vadd.f32 0.0, %v1292
      %v1294 = vpop.f32.mrf.mxu0
      %v1295 = vadd.f32 0.0, %v1294
      %1296 = vmatmul.bf16.gmra.mxu0 %v1191
      %v1297 = vpop.f32.mrf.mxu0
      %v1298 = vadd.f32 0.0, %v1297
      %v1299 = vpop.f32.mrf.mxu0
      %v1300 = vadd.f32 0.0, %v1299
      %1301 = vmatmul.bf16.gmra.mxu0 %v1192
      %v1302 = vpop.f32.mrf.mxu0
      %v1303 = vadd.f32 0.0, %v1302
      %v1304 = vpop.f32.mrf.mxu0
      %v1305 = vadd.f32 0.0, %v1304
      %1306 = vmatmul.bf16.gmra.mxu0 %v1193
      %v1307 = vpop.f32.mrf.mxu0
      %v1308 = vadd.f32 0.0, %v1307
      %v1309 = vpop.f32.mrf.mxu0
      %v1310 = vadd.f32 0.0, %v1309
      %1311 = vmatmul.bf16.gmra.mxu0 %v1194
      %v1312 = vpop.f32.mrf.mxu0
      %v1313 = vadd.f32 0.0, %v1312
      %v1314 = vpop.f32.mrf.mxu0
      %v1315 = vadd.f32 0.0, %v1314
      %1316 = vmatmul.bf16.gmra.mxu0 %v1195
      %v1317 = vpop.f32.mrf.mxu0
      %v1318 = vadd.f32 0.0, %v1317
      %v1319 = vpop.f32.mrf.mxu0
      %v1320 = vadd.f32 0.0, %v1319
      %1321 = vmatmul.bf16.gmra.mxu0 %v1196
      %v1322 = vpop.f32.mrf.mxu0
      %v1323 = vadd.f32 0.0, %v1322
      %v1324 = vpop.f32.mrf.mxu0
      %v1325 = vadd.f32 0.0, %v1324
      %1326 = vmatmul.bf16.gmra.mxu0 %v1197
      %v1327 = vpop.f32.mrf.mxu0
      %v1328 = vadd.f32 0.0, %v1327
      %v1329 = vpop.f32.mrf.mxu0
      %v1330 = vadd.f32 0.0, %v1329
      %1331 = vmatmul.bf16.gmra.mxu0 %v1198
      %v1332 = vpop.f32.mrf.mxu0
      %v1333 = vadd.f32 0.0, %v1332
      %v1334 = vpop.f32.mrf.mxu0
      %v1335 = vadd.f32 0.0, %v1334
      %1336 = vmatmul.bf16.gmra.mxu0 %v1199
      %v1337 = vpop.f32.mrf.mxu0
      %v1338 = vadd.f32 0.0, %v1337
      %v1339 = vpop.f32.mrf.mxu0
      %v1340 = vadd.f32 0.0, %v1339
      %1341 = vmatmul.bf16.gmra.mxu0 %v1200
      %v1342 = vpop.f32.mrf.mxu0
      %v1343 = vadd.f32 0.0, %v1342
      %v1344 = vpop.f32.mrf.mxu0
      %v1345 = vadd.f32 0.0, %v1344
      %1346 = vmatmul.bf16.gmra.mxu0 %v1201
      %v1347 = vpop.f32.mrf.mxu0
      %v1348 = vadd.f32 0.0, %v1347
      %v1349 = vpop.f32.mrf.mxu0
      %v1350 = vadd.f32 0.0, %v1349
      %1351 = vmatmul.bf16.gmra.mxu0 %v1202
      %v1352 = vpop.f32.mrf.mxu0
      %v1353 = vadd.f32 0.0, %v1352
      %v1354 = vpop.f32.mrf.mxu0
      %v1355 = vadd.f32 0.0, %v1354
      %1356 = vdwg.mxu0
      %v1357 = vadd.f32 %v1155, %v1278
      %v1358 = vadd.f32 %v1156, %v1280
      %v1359 = vadd.f32 %v1157, %v1283
      %v1360 = vadd.f32 %v1158, %v1285
      %v1361 = vadd.f32 %v1159, %v1288
      %v1362 = vadd.f32 %v1160, %v1290
      %v1363 = vadd.f32 %v1161, %v1293
      %v1364 = vadd.f32 %v1162, %v1295
      %v1365 = vadd.f32 %v1163, %v1298
      %v1366 = vadd.f32 %v1164, %v1300
      %v1367 = vadd.f32 %v1165, %v1303
      %v1368 = vadd.f32 %v1166, %v1305
      %v1369 = vadd.f32 %v1167, %v1308
      %v1370 = vadd.f32 %v1168, %v1310
      %v1371 = vadd.f32 %v1169, %v1313
      %v1372 = vadd.f32 %v1170, %v1315
      %v1373 = vadd.f32 %v1171, %v1318
      %v1374 = vadd.f32 %v1172, %v1320
      %v1375 = vadd.f32 %v1173, %v1323
      %v1376 = vadd.f32 %v1174, %v1325
      %v1377 = vadd.f32 %v1175, %v1328
      %v1378 = vadd.f32 %v1176, %v1330
      %v1379 = vadd.f32 %v1177, %v1333
      %v1380 = vadd.f32 %v1178, %v1335
      %v1381 = vadd.f32 %v1179, %v1338
      %v1382 = vadd.f32 %v1180, %v1340
      %v1383 = vadd.f32 %v1181, %v1343
      %v1384 = vadd.f32 %v1182, %v1345
      %v1385 = vadd.f32 %v1183, %v1348
      %v1386 = vadd.f32 %v1184, %v1350
      %v1387 = vadd.f32 %v1185, %v1353
      %v1388 = vadd.f32 %v1186, %v1355
      %1389 = vst [vmem:[#allocation3] sm:$0xff] %v1357
      %1390 = vst [vmem:[#allocation3 + $0x8] sm:$0xff] %v1358
      %1391 = vst [vmem:[#allocation3 + $0x10] sm:$0xff] %v1359
      %1392 = vst [vmem:[#allocation3 + $0x18] sm:$0xff] %v1360
      %1393 = vst [vmem:[#allocation3 + $0x20] sm:$0xff] %v1361
      %1394 = vst [vmem:[#allocation3 + $0x28] sm:$0xff] %v1362
      %1395 = vst [vmem:[#allocation3 + $0x30] sm:$0xff] %v1363
      %1396 = vst [vmem:[#allocation3 + $0x38] sm:$0xff] %v1364
      %1397 = vst [vmem:[#allocation3 + $0x40] sm:$0xff] %v1365
      %1398 = vst [vmem:[#allocation3 + $0x48] sm:$0xff] %v1366
      %1399 = vst [vmem:[#allocation3 + $0x50] sm:$0xff] %v1367
      %1400 = vst [vmem:[#allocation3 + $0x58] sm:$0xff] %v1368
      %1401 = vst [vmem:[#allocation3 + $0x60] sm:$0xff] %v1369
      %1402 = vst [vmem:[#allocation3 + $0x68] sm:$0xff] %v1370
      %1403 = vst [vmem:[#allocation3 + $0x70] sm:$0xff] %v1371
      %1404 = vst [vmem:[#allocation3 + $0x78] sm:$0xff] %v1372
      %1405 = vst [vmem:[#allocation3 + $0x80] sm:$0xff] %v1373
      %1406 = vst [vmem:[#allocation3 + $0x88] sm:$0xff] %v1374
      %1407 = vst [vmem:[#allocation3 + $0x90] sm:$0xff] %v1375
      %1408 = vst [vmem:[#allocation3 + $0x98] sm:$0xff] %v1376
      %1409 = vst [vmem:[#allocation3 + $0xa0] sm:$0xff] %v1377
      %1410 = vst [vmem:[#allocation3 + $0xa8] sm:$0xff] %v1378
      %1411 = vst [vmem:[#allocation3 + $0xb0] sm:$0xff] %v1379
      %1412 = vst [vmem:[#allocation3 + $0xb8] sm:$0xff] %v1380
      %1413 = vst [vmem:[#allocation3 + $0xc0] sm:$0xff] %v1381
      %1414 = vst [vmem:[#allocation3 + $0xc8] sm:$0xff] %v1382
      %1415 = vst [vmem:[#allocation3 + $0xd0] sm:$0xff] %v1383
      %1416 = vst [vmem:[#allocation3 + $0xd8] sm:$0xff] %v1384
      %1417 = vst [vmem:[#allocation3 + $0xe0] sm:$0xff] %v1385
      %1418 = vst [vmem:[#allocation3 + $0xe8] sm:$0xff] %v1386
      %1419 = vst [vmem:[#allocation3 + $0xf0] sm:$0xff] %v1387
      %1420 = vst [vmem:[#allocation3 + $0xf8] sm:$0xff] %v1388
      %v1421 = vld [vmem:[%s463] sm:$0xff]
      %v1422 = vld [vmem:[%s463 + $0x8] sm:$0xff]
      %v1423 = vld [vmem:[%s463 + $0x18] sm:$0xff]
      %v1424 = vld [vmem:[%s463 + $0x20] sm:$0xff]
      %v1425 = vld [vmem:[%s463 + $0x30] sm:$0xff]
      %v1426 = vld [vmem:[%s463 + $0x38] sm:$0xff]
      %v1427 = vld [vmem:[%s463 + $0x48] sm:$0xff]
      %v1428 = vld [vmem:[%s463 + $0x50] sm:$0xff]
      %v1429 = vld [vmem:[%s463 + $0x60] sm:$0xff]
      %v1430 = vld [vmem:[%s463 + $0x68] sm:$0xff]
      %v1431 = vld [vmem:[%s463 + $0x78] sm:$0xff]
      %v1432 = vld [vmem:[%s463 + $0x80] sm:$0xff]
      %v1433 = vld [vmem:[%s463 + $0x90] sm:$0xff]
      %v1434 = vld [vmem:[%s463 + $0x98] sm:$0xff]
      %v1435 = vld [vmem:[%s463 + $0xa8] sm:$0xff]
      %v1436 = vld [vmem:[%s463 + $0xb0] sm:$0xff]
      %v1437 = vld [vmem:[%s463 + $0xc0] sm:$0xff]
      %v1438 = vld [vmem:[%s463 + $0xc8] sm:$0xff]
      %v1439 = vld [vmem:[%s463 + $0xd8] sm:$0xff]
      %v1440 = vld [vmem:[%s463 + $0xe0] sm:$0xff]
      %v1441 = vld [vmem:[%s463 + $0xf0] sm:$0xff]
      %v1442 = vld [vmem:[%s463 + $0xf8] sm:$0xff]
      %v1443 = vld [vmem:[%s463 + $0x108] sm:$0xff]
      %v1444 = vld [vmem:[%s463 + $0x110] sm:$0xff]
      %v1445 = vld [vmem:[%s463 + $0x120] sm:$0xff]
      %v1446 = vld [vmem:[%s463 + $0x128] sm:$0xff]
      %v1447 = vld [vmem:[%s463 + $0x138] sm:$0xff]
      %v1448 = vld [vmem:[%s463 + $0x140] sm:$0xff]
      %v1449 = vld [vmem:[%s463 + $0x150] sm:$0xff]
      %v1450 = vld [vmem:[%s463 + $0x158] sm:$0xff]
      %v1451 = vld [vmem:[%s463 + $0x168] sm:$0xff]
      %v1452 = vld [vmem:[%s463 + $0x170] sm:$0xff]
      %v1453 = vld [vmem:[#allocation3] sm:$0xff]
      %v1454 = vld [vmem:[#allocation3 + $0x8] sm:$0xff]
      %v1455 = vld [vmem:[#allocation3 + $0x10] sm:$0xff]
      %v1456 = vld [vmem:[#allocation3 + $0x18] sm:$0xff]
      %v1457 = vld [vmem:[#allocation3 + $0x20] sm:$0xff]
      %v1458 = vld [vmem:[#allocation3 + $0x28] sm:$0xff]
      %v1459 = vld [vmem:[#allocation3 + $0x30] sm:$0xff]
      %v1460 = vld [vmem:[#allocation3 + $0x38] sm:$0xff]
      %v1461 = vld [vmem:[#allocation3 + $0x40] sm:$0xff]
      %v1462 = vld [vmem:[#allocation3 + $0x48] sm:$0xff]
      %v1463 = vld [vmem:[#allocation3 + $0x50] sm:$0xff]
      %v1464 = vld [vmem:[#allocation3 + $0x58] sm:$0xff]
      %v1465 = vld [vmem:[#allocation3 + $0x60] sm:$0xff]
      %v1466 = vld [vmem:[#allocation3 + $0x68] sm:$0xff]
      %v1467 = vld [vmem:[#allocation3 + $0x70] sm:$0xff]
      %v1468 = vld [vmem:[#allocation3 + $0x78] sm:$0xff]
      %v1469 = vld [vmem:[#allocation3 + $0x80] sm:$0xff]
      %v1470 = vld [vmem:[#allocation3 + $0x88] sm:$0xff]
      %v1471 = vld [vmem:[#allocation3 + $0x90] sm:$0xff]
      %v1472 = vld [vmem:[#allocation3 + $0x98] sm:$0xff]
      %v1473 = vld [vmem:[#allocation3 + $0xa0] sm:$0xff]
      %v1474 = vld [vmem:[#allocation3 + $0xa8] sm:$0xff]
      %v1475 = vld [vmem:[#allocation3 + $0xb0] sm:$0xff]
      %v1476 = vld [vmem:[#allocation3 + $0xb8] sm:$0xff]
      %v1477 = vld [vmem:[#allocation3 + $0xc0] sm:$0xff]
      %v1478 = vld [vmem:[#allocation3 + $0xc8] sm:$0xff]
      %v1479 = vld [vmem:[#allocation3 + $0xd0] sm:$0xff]
      %v1480 = vld [vmem:[#allocation3 + $0xd8] sm:$0xff]
      %v1481 = vld [vmem:[#allocation3 + $0xe0] sm:$0xff]
      %v1482 = vld [vmem:[#allocation3 + $0xe8] sm:$0xff]
      %v1483 = vld [vmem:[#allocation3 + $0xf0] sm:$0xff]
      %v1484 = vld [vmem:[#allocation3 + $0xf8] sm:$0xff]
      %v1485 = vpack.c.bf16 %v1422, %v1421
      %v1486 = vpack.c.bf16 %v1424, %v1423
      %v1487 = vpack.c.bf16 %v1426, %v1425
      %v1488 = vpack.c.bf16 %v1428, %v1427
      %v1489 = vpack.c.bf16 %v1430, %v1429
      %v1490 = vpack.c.bf16 %v1432, %v1431
      %v1491 = vpack.c.bf16 %v1434, %v1433
      %v1492 = vpack.c.bf16 %v1436, %v1435
      %v1493 = vpack.c.bf16 %v1438, %v1437
      %v1494 = vpack.c.bf16 %v1440, %v1439
      %v1495 = vpack.c.bf16 %v1442, %v1441
      %v1496 = vpack.c.bf16 %v1444, %v1443
      %v1497 = vpack.c.bf16 %v1446, %v1445
      %v1498 = vpack.c.bf16 %v1448, %v1447
      %v1499 = vpack.c.bf16 %v1450, %v1449
      %v1500 = vpack.c.bf16 %v1452, %v1451
      %s1501 = scalar_lea.vmem %s1, 192
      %v1502 = vld [vmem:[%s1501] sm:$0xf]
      %v1503 = vld [vmem:[%s1501 + $0x4] sm:$0xf]
      %v1504 = vld [vmem:[%s1501 + $0x8] sm:$0xf]
      %v1505 = vld [vmem:[%s1501 + $0xc] sm:$0xf]
      %v1506 = vld [vmem:[%s1501 + $0x10] sm:$0xf]
      %v1507 = vld [vmem:[%s1501 + $0x14] sm:$0xf]
      %v1508 = vld [vmem:[%s1501 + $0x18] sm:$0xf]
      %v1509 = vld [vmem:[%s1501 + $0x1c] sm:$0xf]
      %v1510 = vld [vmem:[%s1501 + $0x20] sm:$0xf]
      %v1511 = vld [vmem:[%s1501 + $0x24] sm:$0xf]
      %v1512 = vld [vmem:[%s1501 + $0x28] sm:$0xf]
      %v1513 = vld [vmem:[%s1501 + $0x2c] sm:$0xf]
      %v1514 = vld [vmem:[%s1501 + $0x30] sm:$0xf]
      %v1515 = vld [vmem:[%s1501 + $0x34] sm:$0xf]
      %v1516 = vld [vmem:[%s1501 + $0x38] sm:$0xf]
      %v1517 = vld [vmem:[%s1501 + $0x3c] sm:$0xf]
      %v1534 = vunpack.c.l.b16 %v1502
      %v1535 = vunpack.c.l.b16 %v1503
      %v1536 = vunpack.c.l.b16 %v1504
      %v1537 = vunpack.c.l.b16 %v1505
      %v1538 = vunpack.c.l.b16 %v1506
      %v1539 = vunpack.c.l.b16 %v1507
      %v1540 = vunpack.c.l.b16 %v1508
      %v1541 = vunpack.c.l.b16 %v1509
      %v1542 = vunpack.c.l.b16 %v1510
      %v1543 = vunpack.c.l.b16 %v1511
      %v1544 = vunpack.c.l.b16 %v1512
      %v1545 = vunpack.c.l.b16 %v1513
      %v1546 = vunpack.c.l.b16 %v1514
      %v1547 = vunpack.c.l.b16 %v1515
      %v1548 = vunpack.c.l.b16 %v1516
      %v1549 = vunpack.c.l.b16 %v1517
      %v1550 = vpack.c.b16 %v1535, %v1534
      %v1551 = vpack.c.b16 %v1537, %v1536
      %v1552 = vpack.c.b16 %v1539, %v1538
      %v1553 = vpack.c.b16 %v1541, %v1540
      %v1554 = vpack.c.b16 %v1543, %v1542
      %v1555 = vpack.c.b16 %v1545, %v1544
      %v1556 = vpack.c.b16 %v1547, %v1546
      %v1557 = vpack.c.b16 %v1549, %v1548
      %1566 = vmatpush.bf16.msra.mxu0 %v1557
      %1567 = vmatpush.bf16.msra.mxu0 %v1556
      %1568 = vmatpush.bf16.msra.mxu0 %v1555
      %1569 = vmatpush.bf16.msra.mxu0 %v1554
      %1570 = vmatpush.bf16.msra.mxu0 %v1553
      %1571 = vmatpush.bf16.msra.mxu0 %v1552
      %1572 = vmatpush.bf16.msra.mxu0 %v1551
      %1573 = vmatpush.bf16.msra.mxu0 %v1550
      %1574 = vmatmul.bf16.gmra.mxu0 %v1485
      %v1575 = vpop.f32.mrf.mxu0
      %v1576 = vadd.f32 0.0, %v1575
      %v1577 = vpop.f32.mrf.mxu0
      %v1578 = vadd.f32 0.0, %v1577
      %1579 = vmatmul.bf16.gmra.mxu0 %v1486
      %v1580 = vpop.f32.mrf.mxu0
      %v1581 = vadd.f32 0.0, %v1580
      %v1582 = vpop.f32.mrf.mxu0
      %v1583 = vadd.f32 0.0, %v1582
      %1584 = vmatmul.bf16.gmra.mxu0 %v1487
      %v1585 = vpop.f32.mrf.mxu0
      %v1586 = vadd.f32 0.0, %v1585
      %v1587 = vpop.f32.mrf.mxu0
      %v1588 = vadd.f32 0.0, %v1587
      %1589 = vmatmul.bf16.gmra.mxu0 %v1488
      %v1590 = vpop.f32.mrf.mxu0
      %v1591 = vadd.f32 0.0, %v1590
      %v1592 = vpop.f32.mrf.mxu0
      %v1593 = vadd.f32 0.0, %v1592
      %1594 = vmatmul.bf16.gmra.mxu0 %v1489
      %v1595 = vpop.f32.mrf.mxu0
      %v1596 = vadd.f32 0.0, %v1595
      %v1597 = vpop.f32.mrf.mxu0
      %v1598 = vadd.f32 0.0, %v1597
      %1599 = vmatmul.bf16.gmra.mxu0 %v1490
      %v1600 = vpop.f32.mrf.mxu0
      %v1601 = vadd.f32 0.0, %v1600
      %v1602 = vpop.f32.mrf.mxu0
      %v1603 = vadd.f32 0.0, %v1602
      %1604 = vmatmul.bf16.gmra.mxu0 %v1491
      %v1605 = vpop.f32.mrf.mxu0
      %v1606 = vadd.f32 0.0, %v1605
      %v1607 = vpop.f32.mrf.mxu0
      %v1608 = vadd.f32 0.0, %v1607
      %1609 = vmatmul.bf16.gmra.mxu0 %v1492
      %v1610 = vpop.f32.mrf.mxu0
      %v1611 = vadd.f32 0.0, %v1610
      %v1612 = vpop.f32.mrf.mxu0
      %v1613 = vadd.f32 0.0, %v1612
      %1614 = vmatmul.bf16.gmra.mxu0 %v1493
      %v1615 = vpop.f32.mrf.mxu0
      %v1616 = vadd.f32 0.0, %v1615
      %v1617 = vpop.f32.mrf.mxu0
      %v1618 = vadd.f32 0.0, %v1617
      %1619 = vmatmul.bf16.gmra.mxu0 %v1494
      %v1620 = vpop.f32.mrf.mxu0
      %v1621 = vadd.f32 0.0, %v1620
      %v1622 = vpop.f32.mrf.mxu0
      %v1623 = vadd.f32 0.0, %v1622
      %1624 = vmatmul.bf16.gmra.mxu0 %v1495
      %v1625 = vpop.f32.mrf.mxu0
      %v1626 = vadd.f32 0.0, %v1625
      %v1627 = vpop.f32.mrf.mxu0
      %v1628 = vadd.f32 0.0, %v1627
      %1629 = vmatmul.bf16.gmra.mxu0 %v1496
      %v1630 = vpop.f32.mrf.mxu0
      %v1631 = vadd.f32 0.0, %v1630
      %v1632 = vpop.f32.mrf.mxu0
      %v1633 = vadd.f32 0.0, %v1632
      %1634 = vmatmul.bf16.gmra.mxu0 %v1497
      %v1635 = vpop.f32.mrf.mxu0
      %v1636 = vadd.f32 0.0, %v1635
      %v1637 = vpop.f32.mrf.mxu0
      %v1638 = vadd.f32 0.0, %v1637
      %1639 = vmatmul.bf16.gmra.mxu0 %v1498
      %v1640 = vpop.f32.mrf.mxu0
      %v1641 = vadd.f32 0.0, %v1640
      %v1642 = vpop.f32.mrf.mxu0
      %v1643 = vadd.f32 0.0, %v1642
      %1644 = vmatmul.bf16.gmra.mxu0 %v1499
      %v1645 = vpop.f32.mrf.mxu0
      %v1646 = vadd.f32 0.0, %v1645
      %v1647 = vpop.f32.mrf.mxu0
      %v1648 = vadd.f32 0.0, %v1647
      %1649 = vmatmul.bf16.gmra.mxu0 %v1500
      %v1650 = vpop.f32.mrf.mxu0
      %v1651 = vadd.f32 0.0, %v1650
      %v1652 = vpop.f32.mrf.mxu0
      %v1653 = vadd.f32 0.0, %v1652
      %1654 = vdwg.mxu0
      %v1655 = vadd.f32 %v1453, %v1576
      %v1656 = vadd.f32 %v1454, %v1578
      %v1657 = vadd.f32 %v1455, %v1581
      %v1658 = vadd.f32 %v1456, %v1583
      %v1659 = vadd.f32 %v1457, %v1586
      %v1660 = vadd.f32 %v1458, %v1588
      %v1661 = vadd.f32 %v1459, %v1591
      %v1662 = vadd.f32 %v1460, %v1593
      %v1663 = vadd.f32 %v1461, %v1596
      %v1664 = vadd.f32 %v1462, %v1598
      %v1665 = vadd.f32 %v1463, %v1601
      %v1666 = vadd.f32 %v1464, %v1603
      %v1667 = vadd.f32 %v1465, %v1606
      %v1668 = vadd.f32 %v1466, %v1608
      %v1669 = vadd.f32 %v1467, %v1611
      %v1670 = vadd.f32 %v1468, %v1613
      %v1671 = vadd.f32 %v1469, %v1616
      %v1672 = vadd.f32 %v1470, %v1618
      %v1673 = vadd.f32 %v1471, %v1621
      %v1674 = vadd.f32 %v1472, %v1623
      %v1675 = vadd.f32 %v1473, %v1626
      %v1676 = vadd.f32 %v1474, %v1628
      %v1677 = vadd.f32 %v1475, %v1631
      %v1678 = vadd.f32 %v1476, %v1633
      %v1679 = vadd.f32 %v1477, %v1636
      %v1680 = vadd.f32 %v1478, %v1638
      %v1681 = vadd.f32 %v1479, %v1641
      %v1682 = vadd.f32 %v1480, %v1643
      %v1683 = vadd.f32 %v1481, %v1646
      %v1684 = vadd.f32 %v1482, %v1648
      %v1685 = vadd.f32 %v1483, %v1651
      %v1686 = vadd.f32 %v1484, %v1653
      %1687 = vst [vmem:[#allocation3] sm:$0xff] %v1655
      %1688 = vst [vmem:[#allocation3 + $0x8] sm:$0xff] %v1656
      %1689 = vst [vmem:[#allocation3 + $0x10] sm:$0xff] %v1657
      %1690 = vst [vmem:[#allocation3 + $0x18] sm:$0xff] %v1658
      %1691 = vst [vmem:[#allocation3 + $0x20] sm:$0xff] %v1659
      %1692 = vst [vmem:[#allocation3 + $0x28] sm:$0xff] %v1660
      %1693 = vst [vmem:[#allocation3 + $0x30] sm:$0xff] %v1661
      %1694 = vst [vmem:[#allocation3 + $0x38] sm:$0xff] %v1662
      %1695 = vst [vmem:[#allocation3 + $0x40] sm:$0xff] %v1663
      %1696 = vst [vmem:[#allocation3 + $0x48] sm:$0xff] %v1664
      %1697 = vst [vmem:[#allocation3 + $0x50] sm:$0xff] %v1665
      %1698 = vst [vmem:[#allocation3 + $0x58] sm:$0xff] %v1666
      %1699 = vst [vmem:[#allocation3 + $0x60] sm:$0xff] %v1667
      %1700 = vst [vmem:[#allocation3 + $0x68] sm:$0xff] %v1668
      %1701 = vst [vmem:[#allocation3 + $0x70] sm:$0xff] %v1669
      %1702 = vst [vmem:[#allocation3 + $0x78] sm:$0xff] %v1670
      %1703 = vst [vmem:[#allocation3 + $0x80] sm:$0xff] %v1671
      %1704 = vst [vmem:[#allocation3 + $0x88] sm:$0xff] %v1672
      %1705 = vst [vmem:[#allocation3 + $0x90] sm:$0xff] %v1673
      %1706 = vst [vmem:[#allocation3 + $0x98] sm:$0xff] %v1674
      %1707 = vst [vmem:[#allocation3 + $0xa0] sm:$0xff] %v1675
      %1708 = vst [vmem:[#allocation3 + $0xa8] sm:$0xff] %v1676
      %1709 = vst [vmem:[#allocation3 + $0xb0] sm:$0xff] %v1677
      %1710 = vst [vmem:[#allocation3 + $0xb8] sm:$0xff] %v1678
      %1711 = vst [vmem:[#allocation3 + $0xc0] sm:$0xff] %v1679
      %1712 = vst [vmem:[#allocation3 + $0xc8] sm:$0xff] %v1680
      %1713 = vst [vmem:[#allocation3 + $0xd0] sm:$0xff] %v1681
      %1714 = vst [vmem:[#allocation3 + $0xd8] sm:$0xff] %v1682
      %1715 = vst [vmem:[#allocation3 + $0xe0] sm:$0xff] %v1683
      %1716 = vst [vmem:[#allocation3 + $0xe8] sm:$0xff] %v1684
      %1717 = vst [vmem:[#allocation3 + $0xf0] sm:$0xff] %v1685
      %1718 = vst [vmem:[#allocation3 + $0xf8] sm:$0xff] %v1686
      %v1719 = vld [vmem:[%s463 + $0x1] sm:$0xff]
      %v1720 = vld [vmem:[%s463 + $0x9] sm:$0xff]
      %v1721 = vld [vmem:[%s463 + $0x19] sm:$0xff]
      %v1722 = vld [vmem:[%s463 + $0x21] sm:$0xff]
      %v1723 = vld [vmem:[%s463 + $0x31] sm:$0xff]
      %v1724 = vld [vmem:[%s463 + $0x39] sm:$0xff]
      %v1725 = vld [vmem:[%s463 + $0x49] sm:$0xff]
      %v1726 = vld [vmem:[%s463 + $0x51] sm:$0xff]
      %v1727 = vld [vmem:[%s463 + $0x61] sm:$0xff]
      %v1728 = vld [vmem:[%s463 + $0x69] sm:$0xff]
      %v1729 = vld [vmem:[%s463 + $0x79] sm:$0xff]
      %v1730 = vld [vmem:[%s463 + $0x81] sm:$0xff]
      %v1731 = vld [vmem:[%s463 + $0x91] sm:$0xff]
      %v1732 = vld [vmem:[%s463 + $0x99] sm:$0xff]
      %v1733 = vld [vmem:[%s463 + $0xa9] sm:$0xff]
      %v1734 = vld [vmem:[%s463 + $0xb1] sm:$0xff]
      %v1735 = vld [vmem:[%s463 + $0xc1] sm:$0xff]
      %v1736 = vld [vmem:[%s463 + $0xc9] sm:$0xff]
      %v1737 = vld [vmem:[%s463 + $0xd9] sm:$0xff]
      %v1738 = vld [vmem:[%s463 + $0xe1] sm:$0xff]
      %v1739 = vld [vmem:[%s463 + $0xf1] sm:$0xff]
      %v1740 = vld [vmem:[%s463 + $0xf9] sm:$0xff]
      %v1741 = vld [vmem:[%s463 + $0x109] sm:$0xff]
      %v1742 = vld [vmem:[%s463 + $0x111] sm:$0xff]
      %v1743 = vld [vmem:[%s463 + $0x121] sm:$0xff]
      %v1744 = vld [vmem:[%s463 + $0x129] sm:$0xff]
      %v1745 = vld [vmem:[%s463 + $0x139] sm:$0xff]
      %v1746 = vld [vmem:[%s463 + $0x141] sm:$0xff]
      %v1747 = vld [vmem:[%s463 + $0x151] sm:$0xff]
      %v1748 = vld [vmem:[%s463 + $0x159] sm:$0xff]
      %v1749 = vld [vmem:[%s463 + $0x169] sm:$0xff]
      %v1750 = vld [vmem:[%s463 + $0x171] sm:$0xff]
      %v1751 = vld [vmem:[#allocation3] sm:$0xff]
      %v1752 = vld [vmem:[#allocation3 + $0x8] sm:$0xff]
      %v1753 = vld [vmem:[#allocation3 + $0x10] sm:$0xff]
      %v1754 = vld [vmem:[#allocation3 + $0x18] sm:$0xff]
      %v1755 = vld [vmem:[#allocation3 + $0x20] sm:$0xff]
      %v1756 = vld [vmem:[#allocation3 + $0x28] sm:$0xff]
      %v1757 = vld [vmem:[#allocation3 + $0x30] sm:$0xff]
      %v1758 = vld [vmem:[#allocation3 + $0x38] sm:$0xff]
      %v1759 = vld [vmem:[#allocation3 + $0x40] sm:$0xff]
      %v1760 = vld [vmem:[#allocation3 + $0x48] sm:$0xff]
      %v1761 = vld [vmem:[#allocation3 + $0x50] sm:$0xff]
      %v1762 = vld [vmem:[#allocation3 + $0x58] sm:$0xff]
      %v1763 = vld [vmem:[#allocation3 + $0x60] sm:$0xff]
      %v1764 = vld [vmem:[#allocation3 + $0x68] sm:$0xff]
      %v1765 = vld [vmem:[#allocation3 + $0x70] sm:$0xff]
      %v1766 = vld [vmem:[#allocation3 + $0x78] sm:$0xff]
      %v1767 = vld [vmem:[#allocation3 + $0x80] sm:$0xff]
      %v1768 = vld [vmem:[#allocation3 + $0x88] sm:$0xff]
      %v1769 = vld [vmem:[#allocation3 + $0x90] sm:$0xff]
      %v1770 = vld [vmem:[#allocation3 + $0x98] sm:$0xff]
      %v1771 = vld [vmem:[#allocation3 + $0xa0] sm:$0xff]
      %v1772 = vld [vmem:[#allocation3 + $0xa8] sm:$0xff]
      %v1773 = vld [vmem:[#allocation3 + $0xb0] sm:$0xff]
      %v1774 = vld [vmem:[#allocation3 + $0xb8] sm:$0xff]
      %v1775 = vld [vmem:[#allocation3 + $0xc0] sm:$0xff]
      %v1776 = vld [vmem:[#allocation3 + $0xc8] sm:$0xff]
      %v1777 = vld [vmem:[#allocation3 + $0xd0] sm:$0xff]
      %v1778 = vld [vmem:[#allocation3 + $0xd8] sm:$0xff]
      %v1779 = vld [vmem:[#allocation3 + $0xe0] sm:$0xff]
      %v1780 = vld [vmem:[#allocation3 + $0xe8] sm:$0xff]
      %v1781 = vld [vmem:[#allocation3 + $0xf0] sm:$0xff]
      %v1782 = vld [vmem:[#allocation3 + $0xf8] sm:$0xff]
      %v1783 = vpack.c.bf16 %v1720, %v1719
      %v1784 = vpack.c.bf16 %v1722, %v1721
      %v1785 = vpack.c.bf16 %v1724, %v1723
      %v1786 = vpack.c.bf16 %v1726, %v1725
      %v1787 = vpack.c.bf16 %v1728, %v1727
      %v1788 = vpack.c.bf16 %v1730, %v1729
      %v1789 = vpack.c.bf16 %v1732, %v1731
      %v1790 = vpack.c.bf16 %v1734, %v1733
      %v1791 = vpack.c.bf16 %v1736, %v1735
      %v1792 = vpack.c.bf16 %v1738, %v1737
      %v1793 = vpack.c.bf16 %v1740, %v1739
      %v1794 = vpack.c.bf16 %v1742, %v1741
      %v1795 = vpack.c.bf16 %v1744, %v1743
      %v1796 = vpack.c.bf16 %v1746, %v1745
      %v1797 = vpack.c.bf16 %v1748, %v1747
      %v1798 = vpack.c.bf16 %v1750, %v1749
      %s1799 = scalar_lea.vmem %s1, 256
      %v1800 = vld [vmem:[%s1799] sm:$0xf]
      %v1801 = vld [vmem:[%s1799 + $0x4] sm:$0xf]
      %v1802 = vld [vmem:[%s1799 + $0x8] sm:$0xf]
      %v1803 = vld [vmem:[%s1799 + $0xc] sm:$0xf]
      %v1804 = vld [vmem:[%s1799 + $0x10] sm:$0xf]
      %v1805 = vld [vmem:[%s1799 + $0x14] sm:$0xf]
      %v1806 = vld [vmem:[%s1799 + $0x18] sm:$0xf]
      %v1807 = vld [vmem:[%s1799 + $0x1c] sm:$0xf]
      %v1808 = vld [vmem:[%s1799 + $0x20] sm:$0xf]
      %v1809 = vld [vmem:[%s1799 + $0x24] sm:$0xf]
      %v1810 = vld [vmem:[%s1799 + $0x28] sm:$0xf]
      %v1811 = vld [vmem:[%s1799 + $0x2c] sm:$0xf]
      %v1812 = vld [vmem:[%s1799 + $0x30] sm:$0xf]
      %v1813 = vld [vmem:[%s1799 + $0x34] sm:$0xf]
      %v1814 = vld [vmem:[%s1799 + $0x38] sm:$0xf]
      %v1815 = vld [vmem:[%s1799 + $0x3c] sm:$0xf]
      %v1832 = vunpack.c.l.b16 %v1800
      %v1833 = vunpack.c.l.b16 %v1801
      %v1834 = vunpack.c.l.b16 %v1802
      %v1835 = vunpack.c.l.b16 %v1803
      %v1836 = vunpack.c.l.b16 %v1804
      %v1837 = vunpack.c.l.b16 %v1805
      %v1838 = vunpack.c.l.b16 %v1806
      %v1839 = vunpack.c.l.b16 %v1807
      %v1840 = vunpack.c.l.b16 %v1808
      %v1841 = vunpack.c.l.b16 %v1809
      %v1842 = vunpack.c.l.b16 %v1810
      %v1843 = vunpack.c.l.b16 %v1811
      %v1844 = vunpack.c.l.b16 %v1812
      %v1845 = vunpack.c.l.b16 %v1813
      %v1846 = vunpack.c.l.b16 %v1814
      %v1847 = vunpack.c.l.b16 %v1815
      %v1848 = vpack.c.b16 %v1833, %v1832
      %v1849 = vpack.c.b16 %v1835, %v1834
      %v1850 = vpack.c.b16 %v1837, %v1836
      %v1851 = vpack.c.b16 %v1839, %v1838
      %v1852 = vpack.c.b16 %v1841, %v1840
      %v1853 = vpack.c.b16 %v1843, %v1842
      %v1854 = vpack.c.b16 %v1845, %v1844
      %v1855 = vpack.c.b16 %v1847, %v1846
      %1864 = vmatpush.bf16.msra.mxu0 %v1855
      %1865 = vmatpush.bf16.msra.mxu0 %v1854
      %1866 = vmatpush.bf16.msra.mxu0 %v1853
      %1867 = vmatpush.bf16.msra.mxu0 %v1852
      %1868 = vmatpush.bf16.msra.mxu0 %v1851
      %1869 = vmatpush.bf16.msra.mxu0 %v1850
      %1870 = vmatpush.bf16.msra.mxu0 %v1849
      %1871 = vmatpush.bf16.msra.mxu0 %v1848
      %1872 = vmatmul.bf16.gmra.mxu0 %v1783
      %v1873 = vpop.f32.mrf.mxu0
      %v1874 = vadd.f32 0.0, %v1873
      %v1875 = vpop.f32.mrf.mxu0
      %v1876 = vadd.f32 0.0, %v1875
      %1877 = vmatmul.bf16.gmra.mxu0 %v1784
      %v1878 = vpop.f32.mrf.mxu0
      %v1879 = vadd.f32 0.0, %v1878
      %v1880 = vpop.f32.mrf.mxu0
      %v1881 = vadd.f32 0.0, %v1880
      %1882 = vmatmul.bf16.gmra.mxu0 %v1785
      %v1883 = vpop.f32.mrf.mxu0
      %v1884 = vadd.f32 0.0, %v1883
      %v1885 = vpop.f32.mrf.mxu0
      %v1886 = vadd.f32 0.0, %v1885
      %1887 = vmatmul.bf16.gmra.mxu0 %v1786
      %v1888 = vpop.f32.mrf.mxu0
      %v1889 = vadd.f32 0.0, %v1888
      %v1890 = vpop.f32.mrf.mxu0
      %v1891 = vadd.f32 0.0, %v1890
      %1892 = vmatmul.bf16.gmra.mxu0 %v1787
      %v1893 = vpop.f32.mrf.mxu0
      %v1894 = vadd.f32 0.0, %v1893
      %v1895 = vpop.f32.mrf.mxu0
      %v1896 = vadd.f32 0.0, %v1895
      %1897 = vmatmul.bf16.gmra.mxu0 %v1788
      %v1898 = vpop.f32.mrf.mxu0
      %v1899 = vadd.f32 0.0, %v1898
      %v1900 = vpop.f32.mrf.mxu0
      %v1901 = vadd.f32 0.0, %v1900
      %1902 = vmatmul.bf16.gmra.mxu0 %v1789
      %v1903 = vpop.f32.mrf.mxu0
      %v1904 = vadd.f32 0.0, %v1903
      %v1905 = vpop.f32.mrf.mxu0
      %v1906 = vadd.f32 0.0, %v1905
      %1907 = vmatmul.bf16.gmra.mxu0 %v1790
      %v1908 = vpop.f32.mrf.mxu0
      %v1909 = vadd.f32 0.0, %v1908
      %v1910 = vpop.f32.mrf.mxu0
      %v1911 = vadd.f32 0.0, %v1910
      %1912 = vmatmul.bf16.gmra.mxu0 %v1791
      %v1913 = vpop.f32.mrf.mxu0
      %v1914 = vadd.f32 0.0, %v1913
      %v1915 = vpop.f32.mrf.mxu0
      %v1916 = vadd.f32 0.0, %v1915
      %1917 = vmatmul.bf16.gmra.mxu0 %v1792
      %v1918 = vpop.f32.mrf.mxu0
      %v1919 = vadd.f32 0.0, %v1918
      %v1920 = vpop.f32.mrf.mxu0
      %v1921 = vadd.f32 0.0, %v1920
      %1922 = vmatmul.bf16.gmra.mxu0 %v1793
      %v1923 = vpop.f32.mrf.mxu0
      %v1924 = vadd.f32 0.0, %v1923
      %v1925 = vpop.f32.mrf.mxu0
      %v1926 = vadd.f32 0.0, %v1925
      %1927 = vmatmul.bf16.gmra.mxu0 %v1794
      %v1928 = vpop.f32.mrf.mxu0
      %v1929 = vadd.f32 0.0, %v1928
      %v1930 = vpop.f32.mrf.mxu0
      %v1931 = vadd.f32 0.0, %v1930
      %1932 = vmatmul.bf16.gmra.mxu0 %v1795
      %v1933 = vpop.f32.mrf.mxu0
      %v1934 = vadd.f32 0.0, %v1933
      %v1935 = vpop.f32.mrf.mxu0
      %v1936 = vadd.f32 0.0, %v1935
      %1937 = vmatmul.bf16.gmra.mxu0 %v1796
      %v1938 = vpop.f32.mrf.mxu0
      %v1939 = vadd.f32 0.0, %v1938
      %v1940 = vpop.f32.mrf.mxu0
      %v1941 = vadd.f32 0.0, %v1940
      %1942 = vmatmul.bf16.gmra.mxu0 %v1797
      %v1943 = vpop.f32.mrf.mxu0
      %v1944 = vadd.f32 0.0, %v1943
      %v1945 = vpop.f32.mrf.mxu0
      %v1946 = vadd.f32 0.0, %v1945
      %1947 = vmatmul.bf16.gmra.mxu0 %v1798
      %v1948 = vpop.f32.mrf.mxu0
      %v1949 = vadd.f32 0.0, %v1948
      %v1950 = vpop.f32.mrf.mxu0
      %v1951 = vadd.f32 0.0, %v1950
      %1952 = vdwg.mxu0
      %v1953 = vadd.f32 %v1751, %v1874
      %v1954 = vadd.f32 %v1752, %v1876
      %v1955 = vadd.f32 %v1753, %v1879
      %v1956 = vadd.f32 %v1754, %v1881
      %v1957 = vadd.f32 %v1755, %v1884
      %v1958 = vadd.f32 %v1756, %v1886
      %v1959 = vadd.f32 %v1757, %v1889
      %v1960 = vadd.f32 %v1758, %v1891
      %v1961 = vadd.f32 %v1759, %v1894
      %v1962 = vadd.f32 %v1760, %v1896
      %v1963 = vadd.f32 %v1761, %v1899
      %v1964 = vadd.f32 %v1762, %v1901
      %v1965 = vadd.f32 %v1763, %v1904
      %v1966 = vadd.f32 %v1764, %v1906
      %v1967 = vadd.f32 %v1765, %v1909
      %v1968 = vadd.f32 %v1766, %v1911
      %v1969 = vadd.f32 %v1767, %v1914
      %v1970 = vadd.f32 %v1768, %v1916
      %v1971 = vadd.f32 %v1769, %v1919
      %v1972 = vadd.f32 %v1770, %v1921
      %v1973 = vadd.f32 %v1771, %v1924
      %v1974 = vadd.f32 %v1772, %v1926
      %v1975 = vadd.f32 %v1773, %v1929
      %v1976 = vadd.f32 %v1774, %v1931
      %v1977 = vadd.f32 %v1775, %v1934
      %v1978 = vadd.f32 %v1776, %v1936
      %v1979 = vadd.f32 %v1777, %v1939
      %v1980 = vadd.f32 %v1778, %v1941
      %v1981 = vadd.f32 %v1779, %v1944
      %v1982 = vadd.f32 %v1780, %v1946
      %v1983 = vadd.f32 %v1781, %v1949
      %v1984 = vadd.f32 %v1782, %v1951
      %1985 = vst [vmem:[#allocation3] sm:$0xff] %v1953
      %1986 = vst [vmem:[#allocation3 + $0x8] sm:$0xff] %v1954
      %1987 = vst [vmem:[#allocation3 + $0x10] sm:$0xff] %v1955
      %1988 = vst [vmem:[#allocation3 + $0x18] sm:$0xff] %v1956
      %1989 = vst [vmem:[#allocation3 + $0x20] sm:$0xff] %v1957
      %1990 = vst [vmem:[#allocation3 + $0x28] sm:$0xff] %v1958
      %1991 = vst [vmem:[#allocation3 + $0x30] sm:$0xff] %v1959
      %1992 = vst [vmem:[#allocation3 + $0x38] sm:$0xff] %v1960
      %1993 = vst [vmem:[#allocation3 + $0x40] sm:$0xff] %v1961
      %1994 = vst [vmem:[#allocation3 + $0x48] sm:$0xff] %v1962
      %1995 = vst [vmem:[#allocation3 + $0x50] sm:$0xff] %v1963
      %1996 = vst [vmem:[#allocation3 + $0x58] sm:$0xff] %v1964
      %1997 = vst [vmem:[#allocation3 + $0x60] sm:$0xff] %v1965
      %1998 = vst [vmem:[#allocation3 + $0x68] sm:$0xff] %v1966
      %1999 = vst [vmem:[#allocation3 + $0x70] sm:$0xff] %v1967
      %2000 = vst [vmem:[#allocation3 + $0x78] sm:$0xff] %v1968
      %2001 = vst [vmem:[#allocation3 + $0x80] sm:$0xff] %v1969
      %2002 = vst [vmem:[#allocation3 + $0x88] sm:$0xff] %v1970
      %2003 = vst [vmem:[#allocation3 + $0x90] sm:$0xff] %v1971
      %2004 = vst [vmem:[#allocation3 + $0x98] sm:$0xff] %v1972
      %2005 = vst [vmem:[#allocation3 + $0xa0] sm:$0xff] %v1973
      %2006 = vst [vmem:[#allocation3 + $0xa8] sm:$0xff] %v1974
      %2007 = vst [vmem:[#allocation3 + $0xb0] sm:$0xff] %v1975
      %2008 = vst [vmem:[#allocation3 + $0xb8] sm:$0xff] %v1976
      %2009 = vst [vmem:[#allocation3 + $0xc0] sm:$0xff] %v1977
      %2010 = vst [vmem:[#allocation3 + $0xc8] sm:$0xff] %v1978
      %2011 = vst [vmem:[#allocation3 + $0xd0] sm:$0xff] %v1979
      %2012 = vst [vmem:[#allocation3 + $0xd8] sm:$0xff] %v1980
      %2013 = vst [vmem:[#allocation3 + $0xe0] sm:$0xff] %v1981
      %2014 = vst [vmem:[#allocation3 + $0xe8] sm:$0xff] %v1982
      %2015 = vst [vmem:[#allocation3 + $0xf0] sm:$0xff] %v1983
      %2016 = vst [vmem:[#allocation3 + $0xf8] sm:$0xff] %v1984
      %v2017 = vld [vmem:[%s463 + $0x2] sm:$0xff]
      %v2018 = vld [vmem:[%s463 + $0xa] sm:$0xff]
      %v2019 = vld [vmem:[%s463 + $0x1a] sm:$0xff]
      %v2020 = vld [vmem:[%s463 + $0x22] sm:$0xff]
      %v2021 = vld [vmem:[%s463 + $0x32] sm:$0xff]
      %v2022 = vld [vmem:[%s463 + $0x3a] sm:$0xff]
      %v2023 = vld [vmem:[%s463 + $0x4a] sm:$0xff]
      %v2024 = vld [vmem:[%s463 + $0x52] sm:$0xff]
      %v2025 = vld [vmem:[%s463 + $0x62] sm:$0xff]
      %v2026 = vld [vmem:[%s463 + $0x6a] sm:$0xff]
      %v2027 = vld [vmem:[%s463 + $0x7a] sm:$0xff]
      %v2028 = vld [vmem:[%s463 + $0x82] sm:$0xff]
      %v2029 = vld [vmem:[%s463 + $0x92] sm:$0xff]
      %v2030 = vld [vmem:[%s463 + $0x9a] sm:$0xff]
      %v2031 = vld [vmem:[%s463 + $0xaa] sm:$0xff]
      %v2032 = vld [vmem:[%s463 + $0xb2] sm:$0xff]
      %v2033 = vld [vmem:[%s463 + $0xc2] sm:$0xff]
      %v2034 = vld [vmem:[%s463 + $0xca] sm:$0xff]
      %v2035 = vld [vmem:[%s463 + $0xda] sm:$0xff]
      %v2036 = vld [vmem:[%s463 + $0xe2] sm:$0xff]
      %v2037 = vld [vmem:[%s463 + $0xf2] sm:$0xff]
      %v2038 = vld [vmem:[%s463 + $0xfa] sm:$0xff]
      %v2039 = vld [vmem:[%s463 + $0x10a] sm:$0xff]
      %v2040 = vld [vmem:[%s463 + $0x112] sm:$0xff]
      %v2041 = vld [vmem:[%s463 + $0x122] sm:$0xff]
      %v2042 = vld [vmem:[%s463 + $0x12a] sm:$0xff]
      %v2043 = vld [vmem:[%s463 + $0x13a] sm:$0xff]
      %v2044 = vld [vmem:[%s463 + $0x142] sm:$0xff]
      %v2045 = vld [vmem:[%s463 + $0x152] sm:$0xff]
      %v2046 = vld [vmem:[%s463 + $0x15a] sm:$0xff]
      %v2047 = vld [vmem:[%s463 + $0x16a] sm:$0xff]
      %v2048 = vld [vmem:[%s463 + $0x172] sm:$0xff]
      %v2049 = vld [vmem:[#allocation3] sm:$0xff]
      %v2050 = vld [vmem:[#allocation3 + $0x8] sm:$0xff]
      %v2051 = vld [vmem:[#allocation3 + $0x10] sm:$0xff]
      %v2052 = vld [vmem:[#allocation3 + $0x18] sm:$0xff]
      %v2053 = vld [vmem:[#allocation3 + $0x20] sm:$0xff]
      %v2054 = vld [vmem:[#allocation3 + $0x28] sm:$0xff]
      %v2055 = vld [vmem:[#allocation3 + $0x30] sm:$0xff]
      %v2056 = vld [vmem:[#allocation3 + $0x38] sm:$0xff]
      %v2057 = vld [vmem:[#allocation3 + $0x40] sm:$0xff]
      %v2058 = vld [vmem:[#allocation3 + $0x48] sm:$0xff]
      %v2059 = vld [vmem:[#allocation3 + $0x50] sm:$0xff]
      %v2060 = vld [vmem:[#allocation3 + $0x58] sm:$0xff]
      %v2061 = vld [vmem:[#allocation3 + $0x60] sm:$0xff]
      %v2062 = vld [vmem:[#allocation3 + $0x68] sm:$0xff]
      %v2063 = vld [vmem:[#allocation3 + $0x70] sm:$0xff]
      %v2064 = vld [vmem:[#allocation3 + $0x78] sm:$0xff]
      %v2065 = vld [vmem:[#allocation3 + $0x80] sm:$0xff]
      %v2066 = vld [vmem:[#allocation3 + $0x88] sm:$0xff]
      %v2067 = vld [vmem:[#allocation3 + $0x90] sm:$0xff]
      %v2068 = vld [vmem:[#allocation3 + $0x98] sm:$0xff]
      %v2069 = vld [vmem:[#allocation3 + $0xa0] sm:$0xff]
      %v2070 = vld [vmem:[#allocation3 + $0xa8] sm:$0xff]
      %v2071 = vld [vmem:[#allocation3 + $0xb0] sm:$0xff]
      %v2072 = vld [vmem:[#allocation3 + $0xb8] sm:$0xff]
      %v2073 = vld [vmem:[#allocation3 + $0xc0] sm:$0xff]
      %v2074 = vld [vmem:[#allocation3 + $0xc8] sm:$0xff]
      %v2075 = vld [vmem:[#allocation3 + $0xd0] sm:$0xff]
      %v2076 = vld [vmem:[#allocation3 + $0xd8] sm:$0xff]
      %v2077 = vld [vmem:[#allocation3 + $0xe0] sm:$0xff]
      %v2078 = vld [vmem:[#allocation3 + $0xe8] sm:$0xff]
      %v2079 = vld [vmem:[#allocation3 + $0xf0] sm:$0xff]
      %v2080 = vld [vmem:[#allocation3 + $0xf8] sm:$0xff]
      %v2081 = vpack.c.bf16 %v2018, %v2017
      %v2082 = vpack.c.bf16 %v2020, %v2019
      %v2083 = vpack.c.bf16 %v2022, %v2021
      %v2084 = vpack.c.bf16 %v2024, %v2023
      %v2085 = vpack.c.bf16 %v2026, %v2025
      %v2086 = vpack.c.bf16 %v2028, %v2027
      %v2087 = vpack.c.bf16 %v2030, %v2029
      %v2088 = vpack.c.bf16 %v2032, %v2031
      %v2089 = vpack.c.bf16 %v2034, %v2033
      %v2090 = vpack.c.bf16 %v2036, %v2035
      %v2091 = vpack.c.bf16 %v2038, %v2037
      %v2092 = vpack.c.bf16 %v2040, %v2039
      %v2093 = vpack.c.bf16 %v2042, %v2041
      %v2094 = vpack.c.bf16 %v2044, %v2043
      %v2095 = vpack.c.bf16 %v2046, %v2045
      %v2096 = vpack.c.bf16 %v2048, %v2047
      %s2097 = scalar_lea.vmem %s1, 320
      %v2098 = vld [vmem:[%s2097] sm:$0xf]
      %v2099 = vld [vmem:[%s2097 + $0x4] sm:$0xf]
      %v2100 = vld [vmem:[%s2097 + $0x8] sm:$0xf]
      %v2101 = vld [vmem:[%s2097 + $0xc] sm:$0xf]
      %v2102 = vld [vmem:[%s2097 + $0x10] sm:$0xf]
      %v2103 = vld [vmem:[%s2097 + $0x14] sm:$0xf]
      %v2104 = vld [vmem:[%s2097 + $0x18] sm:$0xf]
      %v2105 = vld [vmem:[%s2097 + $0x1c] sm:$0xf]
      %v2106 = vld [vmem:[%s2097 + $0x20] sm:$0xf]
      %v2107 = vld [vmem:[%s2097 + $0x24] sm:$0xf]
      %v2108 = vld [vmem:[%s2097 + $0x28] sm:$0xf]
      %v2109 = vld [vmem:[%s2097 + $0x2c] sm:$0xf]
      %v2110 = vld [vmem:[%s2097 + $0x30] sm:$0xf]
      %v2111 = vld [vmem:[%s2097 + $0x34] sm:$0xf]
      %v2112 = vld [vmem:[%s2097 + $0x38] sm:$0xf]
      %v2113 = vld [vmem:[%s2097 + $0x3c] sm:$0xf]
      %v2130 = vunpack.c.l.b16 %v2098
      %v2131 = vunpack.c.l.b16 %v2099
      %v2132 = vunpack.c.l.b16 %v2100
      %v2133 = vunpack.c.l.b16 %v2101
      %v2134 = vunpack.c.l.b16 %v2102
      %v2135 = vunpack.c.l.b16 %v2103
      %v2136 = vunpack.c.l.b16 %v2104
      %v2137 = vunpack.c.l.b16 %v2105
      %v2138 = vunpack.c.l.b16 %v2106
      %v2139 = vunpack.c.l.b16 %v2107
      %v2140 = vunpack.c.l.b16 %v2108
      %v2141 = vunpack.c.l.b16 %v2109
      %v2142 = vunpack.c.l.b16 %v2110
      %v2143 = vunpack.c.l.b16 %v2111
      %v2144 = vunpack.c.l.b16 %v2112
      %v2145 = vunpack.c.l.b16 %v2113
      %v2146 = vpack.c.b16 %v2131, %v2130
      %v2147 = vpack.c.b16 %v2133, %v2132
      %v2148 = vpack.c.b16 %v2135, %v2134
      %v2149 = vpack.c.b16 %v2137, %v2136
      %v2150 = vpack.c.b16 %v2139, %v2138
      %v2151 = vpack.c.b16 %v2141, %v2140
      %v2152 = vpack.c.b16 %v2143, %v2142
      %v2153 = vpack.c.b16 %v2145, %v2144
      %2162 = vmatpush.bf16.msra.mxu0 %v2153
      %2163 = vmatpush.bf16.msra.mxu0 %v2152
      %2164 = vmatpush.bf16.msra.mxu0 %v2151
      %2165 = vmatpush.bf16.msra.mxu0 %v2150
      %2166 = vmatpush.bf16.msra.mxu0 %v2149
      %2167 = vmatpush.bf16.msra.mxu0 %v2148
      %2168 = vmatpush.bf16.msra.mxu0 %v2147
      %2169 = vmatpush.bf16.msra.mxu0 %v2146
      %2170 = vmatmul.bf16.gmra.mxu0 %v2081
      %v2171 = vpop.f32.mrf.mxu0
      %v2172 = vadd.f32 0.0, %v2171
      %v2173 = vpop.f32.mrf.mxu0
      %v2174 = vadd.f32 0.0, %v2173
      %2175 = vmatmul.bf16.gmra.mxu0 %v2082
      %v2176 = vpop.f32.mrf.mxu0
      %v2177 = vadd.f32 0.0, %v2176
      %v2178 = vpop.f32.mrf.mxu0
      %v2179 = vadd.f32 0.0, %v2178
      %2180 = vmatmul.bf16.gmra.mxu0 %v2083
      %v2181 = vpop.f32.mrf.mxu0
      %v2182 = vadd.f32 0.0, %v2181
      %v2183 = vpop.f32.mrf.mxu0
      %v2184 = vadd.f32 0.0, %v2183
      %2185 = vmatmul.bf16.gmra.mxu0 %v2084
      %v2186 = vpop.f32.mrf.mxu0
      %v2187 = vadd.f32 0.0, %v2186
      %v2188 = vpop.f32.mrf.mxu0
      %v2189 = vadd.f32 0.0, %v2188
      %2190 = vmatmul.bf16.gmra.mxu0 %v2085
      %v2191 = vpop.f32.mrf.mxu0
      %v2192 = vadd.f32 0.0, %v2191
      %v2193 = vpop.f32.mrf.mxu0
      %v2194 = vadd.f32 0.0, %v2193
      %2195 = vmatmul.bf16.gmra.mxu0 %v2086
      %v2196 = vpop.f32.mrf.mxu0
      %v2197 = vadd.f32 0.0, %v2196
      %v2198 = vpop.f32.mrf.mxu0
      %v2199 = vadd.f32 0.0, %v2198
      %2200 = vmatmul.bf16.gmra.mxu0 %v2087
      %v2201 = vpop.f32.mrf.mxu0
      %v2202 = vadd.f32 0.0, %v2201
      %v2203 = vpop.f32.mrf.mxu0
      %v2204 = vadd.f32 0.0, %v2203
      %2205 = vmatmul.bf16.gmra.mxu0 %v2088
      %v2206 = vpop.f32.mrf.mxu0
      %v2207 = vadd.f32 0.0, %v2206
      %v2208 = vpop.f32.mrf.mxu0
      %v2209 = vadd.f32 0.0, %v2208
      %2210 = vmatmul.bf16.gmra.mxu0 %v2089
      %v2211 = vpop.f32.mrf.mxu0
      %v2212 = vadd.f32 0.0, %v2211
      %v2213 = vpop.f32.mrf.mxu0
      %v2214 = vadd.f32 0.0, %v2213
      %2215 = vmatmul.bf16.gmra.mxu0 %v2090
      %v2216 = vpop.f32.mrf.mxu0
      %v2217 = vadd.f32 0.0, %v2216
      %v2218 = vpop.f32.mrf.mxu0
      %v2219 = vadd.f32 0.0, %v2218
      %2220 = vmatmul.bf16.gmra.mxu0 %v2091
      %v2221 = vpop.f32.mrf.mxu0
      %v2222 = vadd.f32 0.0, %v2221
      %v2223 = vpop.f32.mrf.mxu0
      %v2224 = vadd.f32 0.0, %v2223
      %2225 = vmatmul.bf16.gmra.mxu0 %v2092
      %v2226 = vpop.f32.mrf.mxu0
      %v2227 = vadd.f32 0.0, %v2226
      %v2228 = vpop.f32.mrf.mxu0
      %v2229 = vadd.f32 0.0, %v2228
      %2230 = vmatmul.bf16.gmra.mxu0 %v2093
      %v2231 = vpop.f32.mrf.mxu0
      %v2232 = vadd.f32 0.0, %v2231
      %v2233 = vpop.f32.mrf.mxu0
      %v2234 = vadd.f32 0.0, %v2233
      %2235 = vmatmul.bf16.gmra.mxu0 %v2094
      %v2236 = vpop.f32.mrf.mxu0
      %v2237 = vadd.f32 0.0, %v2236
      %v2238 = vpop.f32.mrf.mxu0
      %v2239 = vadd.f32 0.0, %v2238
      %2240 = vmatmul.bf16.gmra.mxu0 %v2095
      %v2241 = vpop.f32.mrf.mxu0
      %v2242 = vadd.f32 0.0, %v2241
      %v2243 = vpop.f32.mrf.mxu0
      %v2244 = vadd.f32 0.0, %v2243
      %2245 = vmatmul.bf16.gmra.mxu0 %v2096
      %v2246 = vpop.f32.mrf.mxu0
      %v2247 = vadd.f32 0.0, %v2246
      %v2248 = vpop.f32.mrf.mxu0
      %v2249 = vadd.f32 0.0, %v2248
      %2250 = vdwg.mxu0
      %v2251 = vadd.f32 %v2049, %v2172
      %v2252 = vadd.f32 %v2050, %v2174
      %v2253 = vadd.f32 %v2051, %v2177
      %v2254 = vadd.f32 %v2052, %v2179
      %v2255 = vadd.f32 %v2053, %v2182
      %v2256 = vadd.f32 %v2054, %v2184
      %v2257 = vadd.f32 %v2055, %v2187
      %v2258 = vadd.f32 %v2056, %v2189
      %v2259 = vadd.f32 %v2057, %v2192
      %v2260 = vadd.f32 %v2058, %v2194
      %v2261 = vadd.f32 %v2059, %v2197
      %v2262 = vadd.f32 %v2060, %v2199
      %v2263 = vadd.f32 %v2061, %v2202
      %v2264 = vadd.f32 %v2062, %v2204
      %v2265 = vadd.f32 %v2063, %v2207
      %v2266 = vadd.f32 %v2064, %v2209
      %v2267 = vadd.f32 %v2065, %v2212
      %v2268 = vadd.f32 %v2066, %v2214
      %v2269 = vadd.f32 %v2067, %v2217
      %v2270 = vadd.f32 %v2068, %v2219
      %v2271 = vadd.f32 %v2069, %v2222
      %v2272 = vadd.f32 %v2070, %v2224
      %v2273 = vadd.f32 %v2071, %v2227
      %v2274 = vadd.f32 %v2072, %v2229
      %v2275 = vadd.f32 %v2073, %v2232
      %v2276 = vadd.f32 %v2074, %v2234
      %v2277 = vadd.f32 %v2075, %v2237
      %v2278 = vadd.f32 %v2076, %v2239
      %v2279 = vadd.f32 %v2077, %v2242
      %v2280 = vadd.f32 %v2078, %v2244
      %v2281 = vadd.f32 %v2079, %v2247
      %v2282 = vadd.f32 %v2080, %v2249
      %2283 = vst [vmem:[#allocation3] sm:$0xff] %v2251
      %2284 = vst [vmem:[#allocation3 + $0x8] sm:$0xff] %v2252
      %2285 = vst [vmem:[#allocation3 + $0x10] sm:$0xff] %v2253
      %2286 = vst [vmem:[#allocation3 + $0x18] sm:$0xff] %v2254
      %2287 = vst [vmem:[#allocation3 + $0x20] sm:$0xff] %v2255
      %2288 = vst [vmem:[#allocation3 + $0x28] sm:$0xff] %v2256
      %2289 = vst [vmem:[#allocation3 + $0x30] sm:$0xff] %v2257
      %2290 = vst [vmem:[#allocation3 + $0x38] sm:$0xff] %v2258
      %2291 = vst [vmem:[#allocation3 + $0x40] sm:$0xff] %v2259
      %2292 = vst [vmem:[#allocation3 + $0x48] sm:$0xff] %v2260
      %2293 = vst [vmem:[#allocation3 + $0x50] sm:$0xff] %v2261
      %2294 = vst [vmem:[#allocation3 + $0x58] sm:$0xff] %v2262
      %2295 = vst [vmem:[#allocation3 + $0x60] sm:$0xff] %v2263
      %2296 = vst [vmem:[#allocation3 + $0x68] sm:$0xff] %v2264
      %2297 = vst [vmem:[#allocation3 + $0x70] sm:$0xff] %v2265
      %2298 = vst [vmem:[#allocation3 + $0x78] sm:$0xff] %v2266
      %2299 = vst [vmem:[#allocation3 + $0x80] sm:$0xff] %v2267
      %2300 = vst [vmem:[#allocation3 + $0x88] sm:$0xff] %v2268
      %2301 = vst [vmem:[#allocation3 + $0x90] sm:$0xff] %v2269
      %2302 = vst [vmem:[#allocation3 + $0x98] sm:$0xff] %v2270
      %2303 = vst [vmem:[#allocation3 + $0xa0] sm:$0xff] %v2271
      %2304 = vst [vmem:[#allocation3 + $0xa8] sm:$0xff] %v2272
      %2305 = vst [vmem:[#allocation3 + $0xb0] sm:$0xff] %v2273
      %2306 = vst [vmem:[#allocation3 + $0xb8] sm:$0xff] %v2274
      %2307 = vst [vmem:[#allocation3 + $0xc0] sm:$0xff] %v2275
      %2308 = vst [vmem:[#allocation3 + $0xc8] sm:$0xff] %v2276
      %2309 = vst [vmem:[#allocation3 + $0xd0] sm:$0xff] %v2277
      %2310 = vst [vmem:[#allocation3 + $0xd8] sm:$0xff] %v2278
      %2311 = vst [vmem:[#allocation3 + $0xe0] sm:$0xff] %v2279
      %2312 = vst [vmem:[#allocation3 + $0xe8] sm:$0xff] %v2280
      %2313 = vst [vmem:[#allocation3 + $0xf0] sm:$0xff] %v2281
      %2314 = vst [vmem:[#allocation3 + $0xf8] sm:$0xff] %v2282
      %s2315 = scalar_lea.vmem [#allocation2], 48
      %v2316 = vld [vmem:[%s2315] sm:$0xff]
      %v2317 = vld [vmem:[%s2315 + $0x8] sm:$0xff]
      %v2318 = vld [vmem:[%s2315 + $0x18] sm:$0xff]
      %v2319 = vld [vmem:[%s2315 + $0x20] sm:$0xff]
      %v2320 = vld [vmem:[%s2315 + $0x30] sm:$0xff]
      %v2321 = vld [vmem:[%s2315 + $0x38] sm:$0xff]
      %v2322 = vld [vmem:[%s2315 + $0x48] sm:$0xff]
      %v2323 = vld [vmem:[%s2315 + $0x50] sm:$0xff]
      %v2324 = vld [vmem:[%s2315 + $0x60] sm:$0xff]
      %v2325 = vld [vmem:[%s2315 + $0x68] sm:$0xff]
      %v2326 = vld [vmem:[%s2315 + $0x78] sm:$0xff]
      %v2327 = vld [vmem:[%s2315 + $0x80] sm:$0xff]
      %v2328 = vld [vmem:[%s2315 + $0x90] sm:$0xff]
      %v2329 = vld [vmem:[%s2315 + $0x98] sm:$0xff]
      %v2330 = vld [vmem:[%s2315 + $0xa8] sm:$0xff]
      %v2331 = vld [vmem:[%s2315 + $0xb0] sm:$0xff]
      %v2332 = vld [vmem:[%s2315 + $0xc0] sm:$0xff]
      %v2333 = vld [vmem:[%s2315 + $0xc8] sm:$0xff]
      %v2334 = vld [vmem:[%s2315 + $0xd8] sm:$0xff]
      %v2335 = vld [vmem:[%s2315 + $0xe0] sm:$0xff]
      %v2336 = vld [vmem:[%s2315 + $0xf0] sm:$0xff]
      %v2337 = vld [vmem:[%s2315 + $0xf8] sm:$0xff]
      %v2338 = vld [vmem:[%s2315 + $0x108] sm:$0xff]
      %v2339 = vld [vmem:[%s2315 + $0x110] sm:$0xff]
      %v2340 = vld [vmem:[%s2315 + $0x120] sm:$0xff]
      %v2341 = vld [vmem:[%s2315 + $0x128] sm:$0xff]
      %v2342 = vld [vmem:[%s2315 + $0x138] sm:$0xff]
      %v2343 = vld [vmem:[%s2315 + $0x140] sm:$0xff]
      %v2344 = vld [vmem:[%s2315 + $0x150] sm:$0xff]
      %v2345 = vld [vmem:[%s2315 + $0x158] sm:$0xff]
      %v2346 = vld [vmem:[%s2315 + $0x168] sm:$0xff]
      %v2347 = vld [vmem:[%s2315 + $0x170] sm:$0xff]
      %v2348 = vld [vmem:[#allocation3] sm:$0xff]
      %v2349 = vld [vmem:[#allocation3 + $0x8] sm:$0xff]
      %v2350 = vld [vmem:[#allocation3 + $0x10] sm:$0xff]
      %v2351 = vld [vmem:[#allocation3 + $0x18] sm:$0xff]
      %v2352 = vld [vmem:[#allocation3 + $0x20] sm:$0xff]
      %v2353 = vld [vmem:[#allocation3 + $0x28] sm:$0xff]
      %v2354 = vld [vmem:[#allocation3 + $0x30] sm:$0xff]
      %v2355 = vld [vmem:[#allocation3 + $0x38] sm:$0xff]
      %v2356 = vld [vmem:[#allocation3 + $0x40] sm:$0xff]
      %v2357 = vld [vmem:[#allocation3 + $0x48] sm:$0xff]
      %v2358 = vld [vmem:[#allocation3 + $0x50] sm:$0xff]
      %v2359 = vld [vmem:[#allocation3 + $0x58] sm:$0xff]
      %v2360 = vld [vmem:[#allocation3 + $0x60] sm:$0xff]
      %v2361 = vld [vmem:[#allocation3 + $0x68] sm:$0xff]
      %v2362 = vld [vmem:[#allocation3 + $0x70] sm:$0xff]
      %v2363 = vld [vmem:[#allocation3 + $0x78] sm:$0xff]
      %v2364 = vld [vmem:[#allocation3 + $0x80] sm:$0xff]
      %v2365 = vld [vmem:[#allocation3 + $0x88] sm:$0xff]
      %v2366 = vld [vmem:[#allocation3 + $0x90] sm:$0xff]
      %v2367 = vld [vmem:[#allocation3 + $0x98] sm:$0xff]
      %v2368 = vld [vmem:[#allocation3 + $0xa0] sm:$0xff]
      %v2369 = vld [vmem:[#allocation3 + $0xa8] sm:$0xff]
      %v2370 = vld [vmem:[#allocation3 + $0xb0] sm:$0xff]
      %v2371 = vld [vmem:[#allocation3 + $0xb8] sm:$0xff]
      %v2372 = vld [vmem:[#allocation3 + $0xc0] sm:$0xff]
      %v2373 = vld [vmem:[#allocation3 + $0xc8] sm:$0xff]
      %v2374 = vld [vmem:[#allocation3 + $0xd0] sm:$0xff]
      %v2375 = vld [vmem:[#allocation3 + $0xd8] sm:$0xff]
      %v2376 = vld [vmem:[#allocation3 + $0xe0] sm:$0xff]
      %v2377 = vld [vmem:[#allocation3 + $0xe8] sm:$0xff]
      %v2378 = vld [vmem:[#allocation3 + $0xf0] sm:$0xff]
      %v2379 = vld [vmem:[#allocation3 + $0xf8] sm:$0xff]
      %v2380 = vpack.c.bf16 %v2317, %v2316
      %v2381 = vpack.c.bf16 %v2319, %v2318
      %v2382 = vpack.c.bf16 %v2321, %v2320
      %v2383 = vpack.c.bf16 %v2323, %v2322
      %v2384 = vpack.c.bf16 %v2325, %v2324
      %v2385 = vpack.c.bf16 %v2327, %v2326
      %v2386 = vpack.c.bf16 %v2329, %v2328
      %v2387 = vpack.c.bf16 %v2331, %v2330
      %v2388 = vpack.c.bf16 %v2333, %v2332
      %v2389 = vpack.c.bf16 %v2335, %v2334
      %v2390 = vpack.c.bf16 %v2337, %v2336
      %v2391 = vpack.c.bf16 %v2339, %v2338
      %v2392 = vpack.c.bf16 %v2341, %v2340
      %v2393 = vpack.c.bf16 %v2343, %v2342
      %v2394 = vpack.c.bf16 %v2345, %v2344
      %v2395 = vpack.c.bf16 %v2347, %v2346
      %s2396 = scalar_lea.vmem %s1, 384
      %v2397 = vld [vmem:[%s2396] sm:$0xf]
      %v2398 = vld [vmem:[%s2396 + $0x4] sm:$0xf]
      %v2399 = vld [vmem:[%s2396 + $0x8] sm:$0xf]
      %v2400 = vld [vmem:[%s2396 + $0xc] sm:$0xf]
      %v2401 = vld [vmem:[%s2396 + $0x10] sm:$0xf]
      %v2402 = vld [vmem:[%s2396 + $0x14] sm:$0xf]
      %v2403 = vld [vmem:[%s2396 + $0x18] sm:$0xf]
      %v2404 = vld [vmem:[%s2396 + $0x1c] sm:$0xf]
      %v2405 = vld [vmem:[%s2396 + $0x20] sm:$0xf]
      %v2406 = vld [vmem:[%s2396 + $0x24] sm:$0xf]
      %v2407 = vld [vmem:[%s2396 + $0x28] sm:$0xf]
      %v2408 = vld [vmem:[%s2396 + $0x2c] sm:$0xf]
      %v2409 = vld [vmem:[%s2396 + $0x30] sm:$0xf]
      %v2410 = vld [vmem:[%s2396 + $0x34] sm:$0xf]
      %v2411 = vld [vmem:[%s2396 + $0x38] sm:$0xf]
      %v2412 = vld [vmem:[%s2396 + $0x3c] sm:$0xf]
      %v2429 = vunpack.c.l.b16 %v2397
      %v2430 = vunpack.c.l.b16 %v2398
      %v2431 = vunpack.c.l.b16 %v2399
      %v2432 = vunpack.c.l.b16 %v2400
      %v2433 = vunpack.c.l.b16 %v2401
      %v2434 = vunpack.c.l.b16 %v2402
      %v2435 = vunpack.c.l.b16 %v2403
      %v2436 = vunpack.c.l.b16 %v2404
      %v2437 = vunpack.c.l.b16 %v2405
      %v2438 = vunpack.c.l.b16 %v2406
      %v2439 = vunpack.c.l.b16 %v2407
      %v2440 = vunpack.c.l.b16 %v2408
      %v2441 = vunpack.c.l.b16 %v2409
      %v2442 = vunpack.c.l.b16 %v2410
      %v2443 = vunpack.c.l.b16 %v2411
      %v2444 = vunpack.c.l.b16 %v2412
      %v2445 = vpack.c.b16 %v2430, %v2429
      %v2446 = vpack.c.b16 %v2432, %v2431
      %v2447 = vpack.c.b16 %v2434, %v2433
      %v2448 = vpack.c.b16 %v2436, %v2435
      %v2449 = vpack.c.b16 %v2438, %v2437
      %v2450 = vpack.c.b16 %v2440, %v2439
      %v2451 = vpack.c.b16 %v2442, %v2441
      %v2452 = vpack.c.b16 %v2444, %v2443
      %2461 = vmatpush.bf16.msra.mxu0 %v2452
      %2462 = vmatpush.bf16.msra.mxu0 %v2451
      %2463 = vmatpush.bf16.msra.mxu0 %v2450
      %2464 = vmatpush.bf16.msra.mxu0 %v2449
      %2465 = vmatpush.bf16.msra.mxu0 %v2448
      %2466 = vmatpush.bf16.msra.mxu0 %v2447
      %2467 = vmatpush.bf16.msra.mxu0 %v2446
      %2468 = vmatpush.bf16.msra.mxu0 %v2445
      %2469 = vmatmul.bf16.gmra.mxu0 %v2380
      %v2470 = vpop.f32.mrf.mxu0
      %v2471 = vadd.f32 0.0, %v2470
      %v2472 = vpop.f32.mrf.mxu0
      %v2473 = vadd.f32 0.0, %v2472
      %2474 = vmatmul.bf16.gmra.mxu0 %v2381
      %v2475 = vpop.f32.mrf.mxu0
      %v2476 = vadd.f32 0.0, %v2475
      %v2477 = vpop.f32.mrf.mxu0
      %v2478 = vadd.f32 0.0, %v2477
      %2479 = vmatmul.bf16.gmra.mxu0 %v2382
      %v2480 = vpop.f32.mrf.mxu0
      %v2481 = vadd.f32 0.0, %v2480
      %v2482 = vpop.f32.mrf.mxu0
      %v2483 = vadd.f32 0.0, %v2482
      %2484 = vmatmul.bf16.gmra.mxu0 %v2383
      %v2485 = vpop.f32.mrf.mxu0
      %v2486 = vadd.f32 0.0, %v2485
      %v2487 = vpop.f32.mrf.mxu0
      %v2488 = vadd.f32 0.0, %v2487
      %2489 = vmatmul.bf16.gmra.mxu0 %v2384
      %v2490 = vpop.f32.mrf.mxu0
      %v2491 = vadd.f32 0.0, %v2490
      %v2492 = vpop.f32.mrf.mxu0
      %v2493 = vadd.f32 0.0, %v2492
      %2494 = vmatmul.bf16.gmra.mxu0 %v2385
      %v2495 = vpop.f32.mrf.mxu0
      %v2496 = vadd.f32 0.0, %v2495
      %v2497 = vpop.f32.mrf.mxu0
      %v2498 = vadd.f32 0.0, %v2497
      %2499 = vmatmul.bf16.gmra.mxu0 %v2386
      %v2500 = vpop.f32.mrf.mxu0
      %v2501 = vadd.f32 0.0, %v2500
      %v2502 = vpop.f32.mrf.mxu0
      %v2503 = vadd.f32 0.0, %v2502
      %2504 = vmatmul.bf16.gmra.mxu0 %v2387
      %v2505 = vpop.f32.mrf.mxu0
      %v2506 = vadd.f32 0.0, %v2505
      %v2507 = vpop.f32.mrf.mxu0
      %v2508 = vadd.f32 0.0, %v2507
      %2509 = vmatmul.bf16.gmra.mxu0 %v2388
      %v2510 = vpop.f32.mrf.mxu0
      %v2511 = vadd.f32 0.0, %v2510
      %v2512 = vpop.f32.mrf.mxu0
      %v2513 = vadd.f32 0.0, %v2512
      %2514 = vmatmul.bf16.gmra.mxu0 %v2389
      %v2515 = vpop.f32.mrf.mxu0
      %v2516 = vadd.f32 0.0, %v2515
      %v2517 = vpop.f32.mrf.mxu0
      %v2518 = vadd.f32 0.0, %v2517
      %2519 = vmatmul.bf16.gmra.mxu0 %v2390
      %v2520 = vpop.f32.mrf.mxu0
      %v2521 = vadd.f32 0.0, %v2520
      %v2522 = vpop.f32.mrf.mxu0
      %v2523 = vadd.f32 0.0, %v2522
      %2524 = vmatmul.bf16.gmra.mxu0 %v2391
      %v2525 = vpop.f32.mrf.mxu0
      %v2526 = vadd.f32 0.0, %v2525
      %v2527 = vpop.f32.mrf.mxu0
      %v2528 = vadd.f32 0.0, %v2527
      %2529 = vmatmul.bf16.gmra.mxu0 %v2392
      %v2530 = vpop.f32.mrf.mxu0
      %v2531 = vadd.f32 0.0, %v2530
      %v2532 = vpop.f32.mrf.mxu0
      %v2533 = vadd.f32 0.0, %v2532
      %2534 = vmatmul.bf16.gmra.mxu0 %v2393
      %v2535 = vpop.f32.mrf.mxu0
      %v2536 = vadd.f32 0.0, %v2535
      %v2537 = vpop.f32.mrf.mxu0
      %v2538 = vadd.f32 0.0, %v2537
      %2539 = vmatmul.bf16.gmra.mxu0 %v2394
      %v2540 = vpop.f32.mrf.mxu0
      %v2541 = vadd.f32 0.0, %v2540
      %v2542 = vpop.f32.mrf.mxu0
      %v2543 = vadd.f32 0.0, %v2542
      %2544 = vmatmul.bf16.gmra.mxu0 %v2395
      %v2545 = vpop.f32.mrf.mxu0
      %v2546 = vadd.f32 0.0, %v2545
      %v2547 = vpop.f32.mrf.mxu0
      %v2548 = vadd.f32 0.0, %v2547
      %2549 = vdwg.mxu0
      %v2550 = vadd.f32 %v2348, %v2471
      %v2551 = vadd.f32 %v2349, %v2473
      %v2552 = vadd.f32 %v2350, %v2476
      %v2553 = vadd.f32 %v2351, %v2478
      %v2554 = vadd.f32 %v2352, %v2481
      %v2555 = vadd.f32 %v2353, %v2483
      %v2556 = vadd.f32 %v2354, %v2486
      %v2557 = vadd.f32 %v2355, %v2488
      %v2558 = vadd.f32 %v2356, %v2491
      %v2559 = vadd.f32 %v2357, %v2493
      %v2560 = vadd.f32 %v2358, %v2496
      %v2561 = vadd.f32 %v2359, %v2498
      %v2562 = vadd.f32 %v2360, %v2501
      %v2563 = vadd.f32 %v2361, %v2503
      %v2564 = vadd.f32 %v2362, %v2506
      %v2565 = vadd.f32 %v2363, %v2508
      %v2566 = vadd.f32 %v2364, %v2511
      %v2567 = vadd.f32 %v2365, %v2513
      %v2568 = vadd.f32 %v2366, %v2516
      %v2569 = vadd.f32 %v2367, %v2518
      %v2570 = vadd.f32 %v2368, %v2521
      %v2571 = vadd.f32 %v2369, %v2523
      %v2572 = vadd.f32 %v2370, %v2526
      %v2573 = vadd.f32 %v2371, %v2528
      %v2574 = vadd.f32 %v2372, %v2531
      %v2575 = vadd.f32 %v2373, %v2533
      %v2576 = vadd.f32 %v2374, %v2536
      %v2577 = vadd.f32 %v2375, %v2538
      %v2578 = vadd.f32 %v2376, %v2541
      %v2579 = vadd.f32 %v2377, %v2543
      %v2580 = vadd.f32 %v2378, %v2546
      %v2581 = vadd.f32 %v2379, %v2548
      %2582 = vst [vmem:[#allocation3] sm:$0xff] %v2550
      %2583 = vst [vmem:[#allocation3 + $0x8] sm:$0xff] %v2551
      %2584 = vst [vmem:[#allocation3 + $0x10] sm:$0xff] %v2552
      %2585 = vst [vmem:[#allocation3 + $0x18] sm:$0xff] %v2553
      %2586 = vst [vmem:[#allocation3 + $0x20] sm:$0xff] %v2554
      %2587 = vst [vmem:[#allocation3 + $0x28] sm:$0xff] %v2555
      %2588 = vst [vmem:[#allocation3 + $0x30] sm:$0xff] %v2556
      %2589 = vst [vmem:[#allocation3 + $0x38] sm:$0xff] %v2557
      %2590 = vst [vmem:[#allocation3 + $0x40] sm:$0xff] %v2558
      %2591 = vst [vmem:[#allocation3 + $0x48] sm:$0xff] %v2559
      %2592 = vst [vmem:[#allocation3 + $0x50] sm:$0xff] %v2560
      %2593 = vst [vmem:[#allocation3 + $0x58] sm:$0xff] %v2561
      %2594 = vst [vmem:[#allocation3 + $0x60] sm:$0xff] %v2562
      %2595 = vst [vmem:[#allocation3 + $0x68] sm:$0xff] %v2563
      %2596 = vst [vmem:[#allocation3 + $0x70] sm:$0xff] %v2564
      %2597 = vst [vmem:[#allocation3 + $0x78] sm:$0xff] %v2565
      %2598 = vst [vmem:[#allocation3 + $0x80] sm:$0xff] %v2566
      %2599 = vst [vmem:[#allocation3 + $0x88] sm:$0xff] %v2567
      %2600 = vst [vmem:[#allocation3 + $0x90] sm:$0xff] %v2568
      %2601 = vst [vmem:[#allocation3 + $0x98] sm:$0xff] %v2569
      %2602 = vst [vmem:[#allocation3 + $0xa0] sm:$0xff] %v2570
      %2603 = vst [vmem:[#allocation3 + $0xa8] sm:$0xff] %v2571
      %2604 = vst [vmem:[#allocation3 + $0xb0] sm:$0xff] %v2572
      %2605 = vst [vmem:[#allocation3 + $0xb8] sm:$0xff] %v2573
      %2606 = vst [vmem:[#allocation3 + $0xc0] sm:$0xff] %v2574
      %2607 = vst [vmem:[#allocation3 + $0xc8] sm:$0xff] %v2575
      %2608 = vst [vmem:[#allocation3 + $0xd0] sm:$0xff] %v2576
      %2609 = vst [vmem:[#allocation3 + $0xd8] sm:$0xff] %v2577
      %2610 = vst [vmem:[#allocation3 + $0xe0] sm:$0xff] %v2578
      %2611 = vst [vmem:[#allocation3 + $0xe8] sm:$0xff] %v2579
      %2612 = vst [vmem:[#allocation3 + $0xf0] sm:$0xff] %v2580
      %2613 = vst [vmem:[#allocation3 + $0xf8] sm:$0xff] %v2581
      %v2614 = vld [vmem:[%s2315 + $0x1] sm:$0xff]
      %v2615 = vld [vmem:[%s2315 + $0x9] sm:$0xff]
      %v2616 = vld [vmem:[%s2315 + $0x19] sm:$0xff]
      %v2617 = vld [vmem:[%s2315 + $0x21] sm:$0xff]
      %v2618 = vld [vmem:[%s2315 + $0x31] sm:$0xff]
      %v2619 = vld [vmem:[%s2315 + $0x39] sm:$0xff]
      %v2620 = vld [vmem:[%s2315 + $0x49] sm:$0xff]
      %v2621 = vld [vmem:[%s2315 + $0x51] sm:$0xff]
      %v2622 = vld [vmem:[%s2315 + $0x61] sm:$0xff]
      %v2623 = vld [vmem:[%s2315 + $0x69] sm:$0xff]
      %v2624 = vld [vmem:[%s2315 + $0x79] sm:$0xff]
      %v2625 = vld [vmem:[%s2315 + $0x81] sm:$0xff]
      %v2626 = vld [vmem:[%s2315 + $0x91] sm:$0xff]
      %v2627 = vld [vmem:[%s2315 + $0x99] sm:$0xff]
      %v2628 = vld [vmem:[%s2315 + $0xa9] sm:$0xff]
      %v2629 = vld [vmem:[%s2315 + $0xb1] sm:$0xff]
      %v2630 = vld [vmem:[%s2315 + $0xc1] sm:$0xff]
      %v2631 = vld [vmem:[%s2315 + $0xc9] sm:$0xff]
      %v2632 = vld [vmem:[%s2315 + $0xd9] sm:$0xff]
      %v2633 = vld [vmem:[%s2315 + $0xe1] sm:$0xff]
      %v2634 = vld [vmem:[%s2315 + $0xf1] sm:$0xff]
      %v2635 = vld [vmem:[%s2315 + $0xf9] sm:$0xff]
      %v2636 = vld [vmem:[%s2315 + $0x109] sm:$0xff]
      %v2637 = vld [vmem:[%s2315 + $0x111] sm:$0xff]
      %v2638 = vld [vmem:[%s2315 + $0x121] sm:$0xff]
      %v2639 = vld [vmem:[%s2315 + $0x129] sm:$0xff]
      %v2640 = vld [vmem:[%s2315 + $0x139] sm:$0xff]
      %v2641 = vld [vmem:[%s2315 + $0x141] sm:$0xff]
      %v2642 = vld [vmem:[%s2315 + $0x151] sm:$0xff]
      %v2643 = vld [vmem:[%s2315 + $0x159] sm:$0xff]
      %v2644 = vld [vmem:[%s2315 + $0x169] sm:$0xff]
      %v2645 = vld [vmem:[%s2315 + $0x171] sm:$0xff]
      %v2646 = vld [vmem:[#allocation3] sm:$0xff]
      %v2647 = vld [vmem:[#allocation3 + $0x8] sm:$0xff]
      %v2648 = vld [vmem:[#allocation3 + $0x10] sm:$0xff]
      %v2649 = vld [vmem:[#allocation3 + $0x18] sm:$0xff]
      %v2650 = vld [vmem:[#allocation3 + $0x20] sm:$0xff]
      %v2651 = vld [vmem:[#allocation3 + $0x28] sm:$0xff]
      %v2652 = vld [vmem:[#allocation3 + $0x30] sm:$0xff]
      %v2653 = vld [vmem:[#allocation3 + $0x38] sm:$0xff]
      %v2654 = vld [vmem:[#allocation3 + $0x40] sm:$0xff]
      %v2655 = vld [vmem:[#allocation3 + $0x48] sm:$0xff]
      %v2656 = vld [vmem:[#allocation3 + $0x50] sm:$0xff]
      %v2657 = vld [vmem:[#allocation3 + $0x58] sm:$0xff]
      %v2658 = vld [vmem:[#allocation3 + $0x60] sm:$0xff]
      %v2659 = vld [vmem:[#allocation3 + $0x68] sm:$0xff]
      %v2660 = vld [vmem:[#allocation3 + $0x70] sm:$0xff]
      %v2661 = vld [vmem:[#allocation3 + $0x78] sm:$0xff]
      %v2662 = vld [vmem:[#allocation3 + $0x80] sm:$0xff]
      %v2663 = vld [vmem:[#allocation3 + $0x88] sm:$0xff]
      %v2664 = vld [vmem:[#allocation3 + $0x90] sm:$0xff]
      %v2665 = vld [vmem:[#allocation3 + $0x98] sm:$0xff]
      %v2666 = vld [vmem:[#allocation3 + $0xa0] sm:$0xff]
      %v2667 = vld [vmem:[#allocation3 + $0xa8] sm:$0xff]
      %v2668 = vld [vmem:[#allocation3 + $0xb0] sm:$0xff]
      %v2669 = vld [vmem:[#allocation3 + $0xb8] sm:$0xff]
      %v2670 = vld [vmem:[#allocation3 + $0xc0] sm:$0xff]
      %v2671 = vld [vmem:[#allocation3 + $0xc8] sm:$0xff]
      %v2672 = vld [vmem:[#allocation3 + $0xd0] sm:$0xff]
      %v2673 = vld [vmem:[#allocation3 + $0xd8] sm:$0xff]
      %v2674 = vld [vmem:[#allocation3 + $0xe0] sm:$0xff]
      %v2675 = vld [vmem:[#allocation3 + $0xe8] sm:$0xff]
      %v2676 = vld [vmem:[#allocation3 + $0xf0] sm:$0xff]
      %v2677 = vld [vmem:[#allocation3 + $0xf8] sm:$0xff]
      %v2678 = vpack.c.bf16 %v2615, %v2614
      %v2679 = vpack.c.bf16 %v2617, %v2616
      %v2680 = vpack.c.bf16 %v2619, %v2618
      %v2681 = vpack.c.bf16 %v2621, %v2620
      %v2682 = vpack.c.bf16 %v2623, %v2622
      %v2683 = vpack.c.bf16 %v2625, %v2624
      %v2684 = vpack.c.bf16 %v2627, %v2626
      %v2685 = vpack.c.bf16 %v2629, %v2628
      %v2686 = vpack.c.bf16 %v2631, %v2630
      %v2687 = vpack.c.bf16 %v2633, %v2632
      %v2688 = vpack.c.bf16 %v2635, %v2634
      %v2689 = vpack.c.bf16 %v2637, %v2636
      %v2690 = vpack.c.bf16 %v2639, %v2638
      %v2691 = vpack.c.bf16 %v2641, %v2640
      %v2692 = vpack.c.bf16 %v2643, %v2642
      %v2693 = vpack.c.bf16 %v2645, %v2644
      %s2694 = scalar_lea.vmem %s1, 448
      %v2695 = vld [vmem:[%s2694] sm:$0xf]
      %v2696 = vld [vmem:[%s2694 + $0x4] sm:$0xf]
      %v2697 = vld [vmem:[%s2694 + $0x8] sm:$0xf]
      %v2698 = vld [vmem:[%s2694 + $0xc] sm:$0xf]
      %v2699 = vld [vmem:[%s2694 + $0x10] sm:$0xf]
      %v2700 = vld [vmem:[%s2694 + $0x14] sm:$0xf]
      %v2701 = vld [vmem:[%s2694 + $0x18] sm:$0xf]
      %v2702 = vld [vmem:[%s2694 + $0x1c] sm:$0xf]
      %v2703 = vld [vmem:[%s2694 + $0x20] sm:$0xf]
      %v2704 = vld [vmem:[%s2694 + $0x24] sm:$0xf]
      %v2705 = vld [vmem:[%s2694 + $0x28] sm:$0xf]
      %v2706 = vld [vmem:[%s2694 + $0x2c] sm:$0xf]
      %v2707 = vld [vmem:[%s2694 + $0x30] sm:$0xf]
      %v2708 = vld [vmem:[%s2694 + $0x34] sm:$0xf]
      %v2709 = vld [vmem:[%s2694 + $0x38] sm:$0xf]
      %v2710 = vld [vmem:[%s2694 + $0x3c] sm:$0xf]
      %v2727 = vunpack.c.l.b16 %v2695
      %v2728 = vunpack.c.l.b16 %v2696
      %v2729 = vunpack.c.l.b16 %v2697
      %v2730 = vunpack.c.l.b16 %v2698
      %v2731 = vunpack.c.l.b16 %v2699
      %v2732 = vunpack.c.l.b16 %v2700
      %v2733 = vunpack.c.l.b16 %v2701
      %v2734 = vunpack.c.l.b16 %v2702
      %v2735 = vunpack.c.l.b16 %v2703
      %v2736 = vunpack.c.l.b16 %v2704
      %v2737 = vunpack.c.l.b16 %v2705
      %v2738 = vunpack.c.l.b16 %v2706
      %v2739 = vunpack.c.l.b16 %v2707
      %v2740 = vunpack.c.l.b16 %v2708
      %v2741 = vunpack.c.l.b16 %v2709
      %v2742 = vunpack.c.l.b16 %v2710
      %v2743 = vpack.c.b16 %v2728, %v2727
      %v2744 = vpack.c.b16 %v2730, %v2729
      %v2745 = vpack.c.b16 %v2732, %v2731
      %v2746 = vpack.c.b16 %v2734, %v2733
      %v2747 = vpack.c.b16 %v2736, %v2735
      %v2748 = vpack.c.b16 %v2738, %v2737
      %v2749 = vpack.c.b16 %v2740, %v2739
      %v2750 = vpack.c.b16 %v2742, %v2741
      %2759 = vmatpush.bf16.msra.mxu0 %v2750
      %2760 = vmatpush.bf16.msra.mxu0 %v2749
      %2761 = vmatpush.bf16.msra.mxu0 %v2748
      %2762 = vmatpush.bf16.msra.mxu0 %v2747
      %2763 = vmatpush.bf16.msra.mxu0 %v2746
      %2764 = vmatpush.bf16.msra.mxu0 %v2745
      %2765 = vmatpush.bf16.msra.mxu0 %v2744
      %2766 = vmatpush.bf16.msra.mxu0 %v2743
      %2767 = vmatmul.bf16.gmra.mxu0 %v2678
      %v2768 = vpop.f32.mrf.mxu0
      %v2769 = vadd.f32 0.0, %v2768
      %v2770 = vpop.f32.mrf.mxu0
      %v2771 = vadd.f32 0.0, %v2770
      %2772 = vmatmul.bf16.gmra.mxu0 %v2679
      %v2773 = vpop.f32.mrf.mxu0
      %v2774 = vadd.f32 0.0, %v2773
      %v2775 = vpop.f32.mrf.mxu0
      %v2776 = vadd.f32 0.0, %v2775
      %2777 = vmatmul.bf16.gmra.mxu0 %v2680
      %v2778 = vpop.f32.mrf.mxu0
      %v2779 = vadd.f32 0.0, %v2778
      %v2780 = vpop.f32.mrf.mxu0
      %v2781 = vadd.f32 0.0, %v2780
      %2782 = vmatmul.bf16.gmra.mxu0 %v2681
      %v2783 = vpop.f32.mrf.mxu0
      %v2784 = vadd.f32 0.0, %v2783
      %v2785 = vpop.f32.mrf.mxu0
      %v2786 = vadd.f32 0.0, %v2785
      %2787 = vmatmul.bf16.gmra.mxu0 %v2682
      %v2788 = vpop.f32.mrf.mxu0
      %v2789 = vadd.f32 0.0, %v2788
      %v2790 = vpop.f32.mrf.mxu0
      %v2791 = vadd.f32 0.0, %v2790
      %2792 = vmatmul.bf16.gmra.mxu0 %v2683
      %v2793 = vpop.f32.mrf.mxu0
      %v2794 = vadd.f32 0.0, %v2793
      %v2795 = vpop.f32.mrf.mxu0
      %v2796 = vadd.f32 0.0, %v2795
      %2797 = vmatmul.bf16.gmra.mxu0 %v2684
      %v2798 = vpop.f32.mrf.mxu0
      %v2799 = vadd.f32 0.0, %v2798
      %v2800 = vpop.f32.mrf.mxu0
      %v2801 = vadd.f32 0.0, %v2800
      %2802 = vmatmul.bf16.gmra.mxu0 %v2685
      %v2803 = vpop.f32.mrf.mxu0
      %v2804 = vadd.f32 0.0, %v2803
      %v2805 = vpop.f32.mrf.mxu0
      %v2806 = vadd.f32 0.0, %v2805
      %2807 = vmatmul.bf16.gmra.mxu0 %v2686
      %v2808 = vpop.f32.mrf.mxu0
      %v2809 = vadd.f32 0.0, %v2808
      %v2810 = vpop.f32.mrf.mxu0
      %v2811 = vadd.f32 0.0, %v2810
      %2812 = vmatmul.bf16.gmra.mxu0 %v2687
      %v2813 = vpop.f32.mrf.mxu0
      %v2814 = vadd.f32 0.0, %v2813
      %v2815 = vpop.f32.mrf.mxu0
      %v2816 = vadd.f32 0.0, %v2815
      %2817 = vmatmul.bf16.gmra.mxu0 %v2688
      %v2818 = vpop.f32.mrf.mxu0
      %v2819 = vadd.f32 0.0, %v2818
      %v2820 = vpop.f32.mrf.mxu0
      %v2821 = vadd.f32 0.0, %v2820
      %2822 = vmatmul.bf16.gmra.mxu0 %v2689
      %v2823 = vpop.f32.mrf.mxu0
      %v2824 = vadd.f32 0.0, %v2823
      %v2825 = vpop.f32.mrf.mxu0
      %v2826 = vadd.f32 0.0, %v2825
      %2827 = vmatmul.bf16.gmra.mxu0 %v2690
      %v2828 = vpop.f32.mrf.mxu0
      %v2829 = vadd.f32 0.0, %v2828
      %v2830 = vpop.f32.mrf.mxu0
      %v2831 = vadd.f32 0.0, %v2830
      %2832 = vmatmul.bf16.gmra.mxu0 %v2691
      %v2833 = vpop.f32.mrf.mxu0
      %v2834 = vadd.f32 0.0, %v2833
      %v2835 = vpop.f32.mrf.mxu0
      %v2836 = vadd.f32 0.0, %v2835
      %2837 = vmatmul.bf16.gmra.mxu0 %v2692
      %v2838 = vpop.f32.mrf.mxu0
      %v2839 = vadd.f32 0.0, %v2838
      %v2840 = vpop.f32.mrf.mxu0
      %v2841 = vadd.f32 0.0, %v2840
      %2842 = vmatmul.bf16.gmra.mxu0 %v2693
      %v2843 = vpop.f32.mrf.mxu0
      %v2844 = vadd.f32 0.0, %v2843
      %v2845 = vpop.f32.mrf.mxu0
      %v2846 = vadd.f32 0.0, %v2845
      %2847 = vdwg.mxu0
      %v2848 = vadd.f32 %v2646, %v2769
      %v2849 = vadd.f32 %v2647, %v2771
      %v2850 = vadd.f32 %v2648, %v2774
      %v2851 = vadd.f32 %v2649, %v2776
      %v2852 = vadd.f32 %v2650, %v2779
      %v2853 = vadd.f32 %v2651, %v2781
      %v2854 = vadd.f32 %v2652, %v2784
      %v2855 = vadd.f32 %v2653, %v2786
      %v2856 = vadd.f32 %v2654, %v2789
      %v2857 = vadd.f32 %v2655, %v2791
      %v2858 = vadd.f32 %v2656, %v2794
      %v2859 = vadd.f32 %v2657, %v2796
      %v2860 = vadd.f32 %v2658, %v2799
      %v2861 = vadd.f32 %v2659, %v2801
      %v2862 = vadd.f32 %v2660, %v2804
      %v2863 = vadd.f32 %v2661, %v2806
      %v2864 = vadd.f32 %v2662, %v2809
      %v2865 = vadd.f32 %v2663, %v2811
      %v2866 = vadd.f32 %v2664, %v2814
      %v2867 = vadd.f32 %v2665, %v2816
      %v2868 = vadd.f32 %v2666, %v2819
      %v2869 = vadd.f32 %v2667, %v2821
      %v2870 = vadd.f32 %v2668, %v2824
      %v2871 = vadd.f32 %v2669, %v2826
      %v2872 = vadd.f32 %v2670, %v2829
      %v2873 = vadd.f32 %v2671, %v2831
      %v2874 = vadd.f32 %v2672, %v2834
      %v2875 = vadd.f32 %v2673, %v2836
      %v2876 = vadd.f32 %v2674, %v2839
      %v2877 = vadd.f32 %v2675, %v2841
      %v2878 = vadd.f32 %v2676, %v2844
      %v2879 = vadd.f32 %v2677, %v2846
      %2880 = vst [vmem:[#allocation3] sm:$0xff] %v2848
      %2881 = vst [vmem:[#allocation3 + $0x8] sm:$0xff] %v2849
      %2882 = vst [vmem:[#allocation3 + $0x10] sm:$0xff] %v2850
      %2883 = vst [vmem:[#allocation3 + $0x18] sm:$0xff] %v2851
      %2884 = vst [vmem:[#allocation3 + $0x20] sm:$0xff] %v2852
      %2885 = vst [vmem:[#allocation3 + $0x28] sm:$0xff] %v2853
      %2886 = vst [vmem:[#allocation3 + $0x30] sm:$0xff] %v2854
      %2887 = vst [vmem:[#allocation3 + $0x38] sm:$0xff] %v2855
      %2888 = vst [vmem:[#allocation3 + $0x40] sm:$0xff] %v2856
      %2889 = vst [vmem:[#allocation3 + $0x48] sm:$0xff] %v2857
      %2890 = vst [vmem:[#allocation3 + $0x50] sm:$0xff] %v2858
      %2891 = vst [vmem:[#allocation3 + $0x58] sm:$0xff] %v2859
      %2892 = vst [vmem:[#allocation3 + $0x60] sm:$0xff] %v2860
      %2893 = vst [vmem:[#allocation3 + $0x68] sm:$0xff] %v2861
      %2894 = vst [vmem:[#allocation3 + $0x70] sm:$0xff] %v2862
      %2895 = vst [vmem:[#allocation3 + $0x78] sm:$0xff] %v2863
      %2896 = vst [vmem:[#allocation3 + $0x80] sm:$0xff] %v2864
      %2897 = vst [vmem:[#allocation3 + $0x88] sm:$0xff] %v2865
      %2898 = vst [vmem:[#allocation3 + $0x90] sm:$0xff] %v2866
      %2899 = vst [vmem:[#allocation3 + $0x98] sm:$0xff] %v2867
      %2900 = vst [vmem:[#allocation3 + $0xa0] sm:$0xff] %v2868
      %2901 = vst [vmem:[#allocation3 + $0xa8] sm:$0xff] %v2869
      %2902 = vst [vmem:[#allocation3 + $0xb0] sm:$0xff] %v2870
      %2903 = vst [vmem:[#allocation3 + $0xb8] sm:$0xff] %v2871
      %2904 = vst [vmem:[#allocation3 + $0xc0] sm:$0xff] %v2872
      %2905 = vst [vmem:[#allocation3 + $0xc8] sm:$0xff] %v2873
      %2906 = vst [vmem:[#allocation3 + $0xd0] sm:$0xff] %v2874
      %2907 = vst [vmem:[#allocation3 + $0xd8] sm:$0xff] %v2875
      %2908 = vst [vmem:[#allocation3 + $0xe0] sm:$0xff] %v2876
      %2909 = vst [vmem:[#allocation3 + $0xe8] sm:$0xff] %v2877
      %2910 = vst [vmem:[#allocation3 + $0xf0] sm:$0xff] %v2878
      %2911 = vst [vmem:[#allocation3 + $0xf8] sm:$0xff] %v2879
      %v2912 = vld [vmem:[%s2315 + $0x2] sm:$0xff]
      %v2913 = vld [vmem:[%s2315 + $0xa] sm:$0xff]
      %v2914 = vld [vmem:[%s2315 + $0x1a] sm:$0xff]
      %v2915 = vld [vmem:[%s2315 + $0x22] sm:$0xff]
      %v2916 = vld [vmem:[%s2315 + $0x32] sm:$0xff]
      %v2917 = vld [vmem:[%s2315 + $0x3a] sm:$0xff]
      %v2918 = vld [vmem:[%s2315 + $0x4a] sm:$0xff]
      %v2919 = vld [vmem:[%s2315 + $0x52] sm:$0xff]
      %v2920 = vld [vmem:[%s2315 + $0x62] sm:$0xff]
      %v2921 = vld [vmem:[%s2315 + $0x6a] sm:$0xff]
      %v2922 = vld [vmem:[%s2315 + $0x7a] sm:$0xff]
      %v2923 = vld [vmem:[%s2315 + $0x82] sm:$0xff]
      %v2924 = vld [vmem:[%s2315 + $0x92] sm:$0xff]
      %v2925 = vld [vmem:[%s2315 + $0x9a] sm:$0xff]
      %v2926 = vld [vmem:[%s2315 + $0xaa] sm:$0xff]
      %v2927 = vld [vmem:[%s2315 + $0xb2] sm:$0xff]
      %v2928 = vld [vmem:[%s2315 + $0xc2] sm:$0xff]
      %v2929 = vld [vmem:[%s2315 + $0xca] sm:$0xff]
      %v2930 = vld [vmem:[%s2315 + $0xda] sm:$0xff]
      %v2931 = vld [vmem:[%s2315 + $0xe2] sm:$0xff]
      %v2932 = vld [vmem:[%s2315 + $0xf2] sm:$0xff]
      %v2933 = vld [vmem:[%s2315 + $0xfa] sm:$0xff]
      %v2934 = vld [vmem:[%s2315 + $0x10a] sm:$0xff]
      %v2935 = vld [vmem:[%s2315 + $0x112] sm:$0xff]
      %v2936 = vld [vmem:[%s2315 + $0x122] sm:$0xff]
      %v2937 = vld [vmem:[%s2315 + $0x12a] sm:$0xff]
      %v2938 = vld [vmem:[%s2315 + $0x13a] sm:$0xff]
      %v2939 = vld [vmem:[%s2315 + $0x142] sm:$0xff]
      %v2940 = vld [vmem:[%s2315 + $0x152] sm:$0xff]
      %v2941 = vld [vmem:[%s2315 + $0x15a] sm:$0xff]
      %v2942 = vld [vmem:[%s2315 + $0x16a] sm:$0xff]
      %v2943 = vld [vmem:[%s2315 + $0x172] sm:$0xff]
      %v2944 = vld [vmem:[#allocation3] sm:$0xff]
      %v2945 = vld [vmem:[#allocation3 + $0x8] sm:$0xff]
      %v2946 = vld [vmem:[#allocation3 + $0x10] sm:$0xff]
      %v2947 = vld [vmem:[#allocation3 + $0x18] sm:$0xff]
      %v2948 = vld [vmem:[#allocation3 + $0x20] sm:$0xff]
      %v2949 = vld [vmem:[#allocation3 + $0x28] sm:$0xff]
      %v2950 = vld [vmem:[#allocation3 + $0x30] sm:$0xff]
      %v2951 = vld [vmem:[#allocation3 + $0x38] sm:$0xff]
      %v2952 = vld [vmem:[#allocation3 + $0x40] sm:$0xff]
      %v2953 = vld [vmem:[#allocation3 + $0x48] sm:$0xff]
      %v2954 = vld [vmem:[#allocation3 + $0x50] sm:$0xff]
      %v2955 = vld [vmem:[#allocation3 + $0x58] sm:$0xff]
      %v2956 = vld [vmem:[#allocation3 + $0x60] sm:$0xff]
      %v2957 = vld [vmem:[#allocation3 + $0x68] sm:$0xff]
      %v2958 = vld [vmem:[#allocation3 + $0x70] sm:$0xff]
      %v2959 = vld [vmem:[#allocation3 + $0x78] sm:$0xff]
      %v2960 = vld [vmem:[#allocation3 + $0x80] sm:$0xff]
      %v2961 = vld [vmem:[#allocation3 + $0x88] sm:$0xff]
      %v2962 = vld [vmem:[#allocation3 + $0x90] sm:$0xff]
      %v2963 = vld [vmem:[#allocation3 + $0x98] sm:$0xff]
      %v2964 = vld [vmem:[#allocation3 + $0xa0] sm:$0xff]
      %v2965 = vld [vmem:[#allocation3 + $0xa8] sm:$0xff]
      %v2966 = vld [vmem:[#allocation3 + $0xb0] sm:$0xff]
      %v2967 = vld [vmem:[#allocation3 + $0xb8] sm:$0xff]
      %v2968 = vld [vmem:[#allocation3 + $0xc0] sm:$0xff]
      %v2969 = vld [vmem:[#allocation3 + $0xc8] sm:$0xff]
      %v2970 = vld [vmem:[#allocation3 + $0xd0] sm:$0xff]
      %v2971 = vld [vmem:[#allocation3 + $0xd8] sm:$0xff]
      %v2972 = vld [vmem:[#allocation3 + $0xe0] sm:$0xff]
      %v2973 = vld [vmem:[#allocation3 + $0xe8] sm:$0xff]
      %v2974 = vld [vmem:[#allocation3 + $0xf0] sm:$0xff]
      %v2975 = vld [vmem:[#allocation3 + $0xf8] sm:$0xff]
      %v2976 = vpack.c.bf16 %v2913, %v2912
      %v2977 = vpack.c.bf16 %v2915, %v2914
      %v2978 = vpack.c.bf16 %v2917, %v2916
      %v2979 = vpack.c.bf16 %v2919, %v2918
      %v2980 = vpack.c.bf16 %v2921, %v2920
      %v2981 = vpack.c.bf16 %v2923, %v2922
      %v2982 = vpack.c.bf16 %v2925, %v2924
      %v2983 = vpack.c.bf16 %v2927, %v2926
      %v2984 = vpack.c.bf16 %v2929, %v2928
      %v2985 = vpack.c.bf16 %v2931, %v2930
      %v2986 = vpack.c.bf16 %v2933, %v2932
      %v2987 = vpack.c.bf16 %v2935, %v2934
      %v2988 = vpack.c.bf16 %v2937, %v2936
      %v2989 = vpack.c.bf16 %v2939, %v2938
      %v2990 = vpack.c.bf16 %v2941, %v2940
      %v2991 = vpack.c.bf16 %v2943, %v2942
      %s2992 = scalar_lea.vmem %s1, 512
      %v2993 = vld [vmem:[%s2992] sm:$0xf]
      %v2994 = vld [vmem:[%s2992 + $0x4] sm:$0xf]
      %v2995 = vld [vmem:[%s2992 + $0x8] sm:$0xf]
      %v2996 = vld [vmem:[%s2992 + $0xc] sm:$0xf]
      %v2997 = vld [vmem:[%s2992 + $0x10] sm:$0xf]
      %v2998 = vld [vmem:[%s2992 + $0x14] sm:$0xf]
      %v2999 = vld [vmem:[%s2992 + $0x18] sm:$0xf]
      %v3000 = vld [vmem:[%s2992 + $0x1c] sm:$0xf]
      %v3001 = vld [vmem:[%s2992 + $0x20] sm:$0xf]
      %v3002 = vld [vmem:[%s2992 + $0x24] sm:$0xf]
      %v3003 = vld [vmem:[%s2992 + $0x28] sm:$0xf]
      %v3004 = vld [vmem:[%s2992 + $0x2c] sm:$0xf]
      %v3005 = vld [vmem:[%s2992 + $0x30] sm:$0xf]
      %v3006 = vld [vmem:[%s2992 + $0x34] sm:$0xf]
      %v3007 = vld [vmem:[%s2992 + $0x38] sm:$0xf]
      %v3008 = vld [vmem:[%s2992 + $0x3c] sm:$0xf]
      %v3025 = vunpack.c.l.b16 %v2993
      %v3026 = vunpack.c.l.b16 %v2994
      %v3027 = vunpack.c.l.b16 %v2995
      %v3028 = vunpack.c.l.b16 %v2996
      %v3029 = vunpack.c.l.b16 %v2997
      %v3030 = vunpack.c.l.b16 %v2998
      %v3031 = vunpack.c.l.b16 %v2999
      %v3032 = vunpack.c.l.b16 %v3000
      %v3033 = vunpack.c.l.b16 %v3001
      %v3034 = vunpack.c.l.b16 %v3002
      %v3035 = vunpack.c.l.b16 %v3003
      %v3036 = vunpack.c.l.b16 %v3004
      %v3037 = vunpack.c.l.b16 %v3005
      %v3038 = vunpack.c.l.b16 %v3006
      %v3039 = vunpack.c.l.b16 %v3007
      %v3040 = vunpack.c.l.b16 %v3008
      %v3041 = vpack.c.b16 %v3026, %v3025
      %v3042 = vpack.c.b16 %v3028, %v3027
      %v3043 = vpack.c.b16 %v3030, %v3029
      %v3044 = vpack.c.b16 %v3032, %v3031
      %v3045 = vpack.c.b16 %v3034, %v3033
      %v3046 = vpack.c.b16 %v3036, %v3035
      %v3047 = vpack.c.b16 %v3038, %v3037
      %v3048 = vpack.c.b16 %v3040, %v3039
      %3057 = vmatpush.bf16.msra.mxu0 %v3048
      %3058 = vmatpush.bf16.msra.mxu0 %v3047
      %3059 = vmatpush.bf16.msra.mxu0 %v3046
      %3060 = vmatpush.bf16.msra.mxu0 %v3045
      %3061 = vmatpush.bf16.msra.mxu0 %v3044
      %3062 = vmatpush.bf16.msra.mxu0 %v3043
      %3063 = vmatpush.bf16.msra.mxu0 %v3042
      %3064 = vmatpush.bf16.msra.mxu0 %v3041
      %3065 = vmatmul.bf16.gmra.mxu0 %v2976
      %v3066 = vpop.f32.mrf.mxu0
      %v3067 = vadd.f32 0.0, %v3066
      %v3068 = vpop.f32.mrf.mxu0
      %v3069 = vadd.f32 0.0, %v3068
      %3070 = vmatmul.bf16.gmra.mxu0 %v2977
      %v3071 = vpop.f32.mrf.mxu0
      %v3072 = vadd.f32 0.0, %v3071
      %v3073 = vpop.f32.mrf.mxu0
      %v3074 = vadd.f32 0.0, %v3073
      %3075 = vmatmul.bf16.gmra.mxu0 %v2978
      %v3076 = vpop.f32.mrf.mxu0
      %v3077 = vadd.f32 0.0, %v3076
      %v3078 = vpop.f32.mrf.mxu0
      %v3079 = vadd.f32 0.0, %v3078
      %3080 = vmatmul.bf16.gmra.mxu0 %v2979
      %v3081 = vpop.f32.mrf.mxu0
      %v3082 = vadd.f32 0.0, %v3081
      %v3083 = vpop.f32.mrf.mxu0
      %v3084 = vadd.f32 0.0, %v3083
      %3085 = vmatmul.bf16.gmra.mxu0 %v2980
      %v3086 = vpop.f32.mrf.mxu0
      %v3087 = vadd.f32 0.0, %v3086
      %v3088 = vpop.f32.mrf.mxu0
      %v3089 = vadd.f32 0.0, %v3088
      %3090 = vmatmul.bf16.gmra.mxu0 %v2981
      %v3091 = vpop.f32.mrf.mxu0
      %v3092 = vadd.f32 0.0, %v3091
      %v3093 = vpop.f32.mrf.mxu0
      %v3094 = vadd.f32 0.0, %v3093
      %3095 = vmatmul.bf16.gmra.mxu0 %v2982
      %v3096 = vpop.f32.mrf.mxu0
      %v3097 = vadd.f32 0.0, %v3096
      %v3098 = vpop.f32.mrf.mxu0
      %v3099 = vadd.f32 0.0, %v3098
      %3100 = vmatmul.bf16.gmra.mxu0 %v2983
      %v3101 = vpop.f32.mrf.mxu0
      %v3102 = vadd.f32 0.0, %v3101
      %v3103 = vpop.f32.mrf.mxu0
      %v3104 = vadd.f32 0.0, %v3103
      %3105 = vmatmul.bf16.gmra.mxu0 %v2984
      %v3106 = vpop.f32.mrf.mxu0
      %v3107 = vadd.f32 0.0, %v3106
      %v3108 = vpop.f32.mrf.mxu0
      %v3109 = vadd.f32 0.0, %v3108
      %3110 = vmatmul.bf16.gmra.mxu0 %v2985
      %v3111 = vpop.f32.mrf.mxu0
      %v3112 = vadd.f32 0.0, %v3111
      %v3113 = vpop.f32.mrf.mxu0
      %v3114 = vadd.f32 0.0, %v3113
      %3115 = vmatmul.bf16.gmra.mxu0 %v2986
      %v3116 = vpop.f32.mrf.mxu0
      %v3117 = vadd.f32 0.0, %v3116
      %v3118 = vpop.f32.mrf.mxu0
      %v3119 = vadd.f32 0.0, %v3118
      %3120 = vmatmul.bf16.gmra.mxu0 %v2987
      %v3121 = vpop.f32.mrf.mxu0
      %v3122 = vadd.f32 0.0, %v3121
      %v3123 = vpop.f32.mrf.mxu0
      %v3124 = vadd.f32 0.0, %v3123
      %3125 = vmatmul.bf16.gmra.mxu0 %v2988
      %v3126 = vpop.f32.mrf.mxu0
      %v3127 = vadd.f32 0.0, %v3126
      %v3128 = vpop.f32.mrf.mxu0
      %v3129 = vadd.f32 0.0, %v3128
      %3130 = vmatmul.bf16.gmra.mxu0 %v2989
      %v3131 = vpop.f32.mrf.mxu0
      %v3132 = vadd.f32 0.0, %v3131
      %v3133 = vpop.f32.mrf.mxu0
      %v3134 = vadd.f32 0.0, %v3133
      %3135 = vmatmul.bf16.gmra.mxu0 %v2990
      %v3136 = vpop.f32.mrf.mxu0
      %v3137 = vadd.f32 0.0, %v3136
      %v3138 = vpop.f32.mrf.mxu0
      %v3139 = vadd.f32 0.0, %v3138
      %3140 = vmatmul.bf16.gmra.mxu0 %v2991
      %v3141 = vpop.f32.mrf.mxu0
      %v3142 = vadd.f32 0.0, %v3141
      %v3143 = vpop.f32.mrf.mxu0
      %v3144 = vadd.f32 0.0, %v3143
      %3145 = vdwg.mxu0
      %v3146 = vadd.f32 %v2944, %v3067
      %v3147 = vadd.f32 %v2945, %v3069
      %v3148 = vadd.f32 %v2946, %v3072
      %v3149 = vadd.f32 %v2947, %v3074
      %v3150 = vadd.f32 %v2948, %v3077
      %v3151 = vadd.f32 %v2949, %v3079
      %v3152 = vadd.f32 %v2950, %v3082
      %v3153 = vadd.f32 %v2951, %v3084
      %v3154 = vadd.f32 %v2952, %v3087
      %v3155 = vadd.f32 %v2953, %v3089
      %v3156 = vadd.f32 %v2954, %v3092
      %v3157 = vadd.f32 %v2955, %v3094
      %v3158 = vadd.f32 %v2956, %v3097
      %v3159 = vadd.f32 %v2957, %v3099
      %v3160 = vadd.f32 %v2958, %v3102
      %v3161 = vadd.f32 %v2959, %v3104
      %v3162 = vadd.f32 %v2960, %v3107
      %v3163 = vadd.f32 %v2961, %v3109
      %v3164 = vadd.f32 %v2962, %v3112
      %v3165 = vadd.f32 %v2963, %v3114
      %v3166 = vadd.f32 %v2964, %v3117
      %v3167 = vadd.f32 %v2965, %v3119
      %v3168 = vadd.f32 %v2966, %v3122
      %v3169 = vadd.f32 %v2967, %v3124
      %v3170 = vadd.f32 %v2968, %v3127
      %v3171 = vadd.f32 %v2969, %v3129
      %v3172 = vadd.f32 %v2970, %v3132
      %v3173 = vadd.f32 %v2971, %v3134
      %v3174 = vadd.f32 %v2972, %v3137
      %v3175 = vadd.f32 %v2973, %v3139
      %v3176 = vadd.f32 %v2974, %v3142
      %v3177 = vadd.f32 %v2975, %v3144
      %3178 = vst [vmem:[#allocation3] sm:$0xff] %v3146
      %3179 = vst [vmem:[#allocation3 + $0x8] sm:$0xff] %v3147
      %3180 = vst [vmem:[#allocation3 + $0x10] sm:$0xff] %v3148
      %3181 = vst [vmem:[#allocation3 + $0x18] sm:$0xff] %v3149
      %3182 = vst [vmem:[#allocation3 + $0x20] sm:$0xff] %v3150
      %3183 = vst [vmem:[#allocation3 + $0x28] sm:$0xff] %v3151
      %3184 = vst [vmem:[#allocation3 + $0x30] sm:$0xff] %v3152
      %3185 = vst [vmem:[#allocation3 + $0x38] sm:$0xff] %v3153
      %3186 = vst [vmem:[#allocation3 + $0x40] sm:$0xff] %v3154
      %3187 = vst [vmem:[#allocation3 + $0x48] sm:$0xff] %v3155
      %3188 = vst [vmem:[#allocation3 + $0x50] sm:$0xff] %v3156
      %3189 = vst [vmem:[#allocation3 + $0x58] sm:$0xff] %v3157
      %3190 = vst [vmem:[#allocation3 + $0x60] sm:$0xff] %v3158
      %3191 = vst [vmem:[#allocation3 + $0x68] sm:$0xff] %v3159
      %3192 = vst [vmem:[#allocation3 + $0x70] sm:$0xff] %v3160
      %3193 = vst [vmem:[#allocation3 + $0x78] sm:$0xff] %v3161
      %3194 = vst [vmem:[#allocation3 + $0x80] sm:$0xff] %v3162
      %3195 = vst [vmem:[#allocation3 + $0x88] sm:$0xff] %v3163
      %3196 = vst [vmem:[#allocation3 + $0x90] sm:$0xff] %v3164
      %3197 = vst [vmem:[#allocation3 + $0x98] sm:$0xff] %v3165
      %3198 = vst [vmem:[#allocation3 + $0xa0] sm:$0xff] %v3166
      %3199 = vst [vmem:[#allocation3 + $0xa8] sm:$0xff] %v3167
      %3200 = vst [vmem:[#allocation3 + $0xb0] sm:$0xff] %v3168
      %3201 = vst [vmem:[#allocation3 + $0xb8] sm:$0xff] %v3169
      %3202 = vst [vmem:[#allocation3 + $0xc0] sm:$0xff] %v3170
      %3203 = vst [vmem:[#allocation3 + $0xc8] sm:$0xff] %v3171
      %3204 = vst [vmem:[#allocation3 + $0xd0] sm:$0xff] %v3172
      %3205 = vst [vmem:[#allocation3 + $0xd8] sm:$0xff] %v3173
      %3206 = vst [vmem:[#allocation3 + $0xe0] sm:$0xff] %v3174
      %3207 = vst [vmem:[#allocation3 + $0xe8] sm:$0xff] %v3175
      %3208 = vst [vmem:[#allocation3 + $0xf0] sm:$0xff] %v3176
      %3209 = vst [vmem:[#allocation3 + $0xf8] sm:$0xff] %v3177
      %v3210 = vld [vmem:[#allocation3] sm:$0xff]
      %v3211 = vld [vmem:[#allocation3 + $0x8] sm:$0xff]
      %v3212 = vld [vmem:[#allocation3 + $0x10] sm:$0xff]
      %v3213 = vld [vmem:[#allocation3 + $0x18] sm:$0xff]
      %v3214 = vld [vmem:[#allocation3 + $0x20] sm:$0xff]
      %v3215 = vld [vmem:[#allocation3 + $0x28] sm:$0xff]
      %v3216 = vld [vmem:[#allocation3 + $0x30] sm:$0xff]
      %v3217 = vld [vmem:[#allocation3 + $0x38] sm:$0xff]
      %v3218 = vld [vmem:[#allocation3 + $0x40] sm:$0xff]
      %v3219 = vld [vmem:[#allocation3 + $0x48] sm:$0xff]
      %v3220 = vld [vmem:[#allocation3 + $0x50] sm:$0xff]
      %v3221 = vld [vmem:[#allocation3 + $0x58] sm:$0xff]
      %v3222 = vld [vmem:[#allocation3 + $0x60] sm:$0xff]
      %v3223 = vld [vmem:[#allocation3 + $0x68] sm:$0xff]
      %v3224 = vld [vmem:[#allocation3 + $0x70] sm:$0xff]
      %v3225 = vld [vmem:[#allocation3 + $0x78] sm:$0xff]
      %v3226 = vld [vmem:[#allocation3 + $0x80] sm:$0xff]
      %v3227 = vld [vmem:[#allocation3 + $0x88] sm:$0xff]
      %v3228 = vld [vmem:[#allocation3 + $0x90] sm:$0xff]
      %v3229 = vld [vmem:[#allocation3 + $0x98] sm:$0xff]
      %v3230 = vld [vmem:[#allocation3 + $0xa0] sm:$0xff]
      %v3231 = vld [vmem:[#allocation3 + $0xa8] sm:$0xff]
      %v3232 = vld [vmem:[#allocation3 + $0xb0] sm:$0xff]
      %v3233 = vld [vmem:[#allocation3 + $0xb8] sm:$0xff]
      %v3234 = vld [vmem:[#allocation3 + $0xc0] sm:$0xff]
      %v3235 = vld [vmem:[#allocation3 + $0xc8] sm:$0xff]
      %v3236 = vld [vmem:[#allocation3 + $0xd0] sm:$0xff]
      %v3237 = vld [vmem:[#allocation3 + $0xd8] sm:$0xff]
      %v3238 = vld [vmem:[#allocation3 + $0xe0] sm:$0xff]
      %v3239 = vld [vmem:[#allocation3 + $0xe8] sm:$0xff]
      %v3240 = vld [vmem:[#allocation3 + $0xf0] sm:$0xff]
      %v3241 = vld [vmem:[#allocation3 + $0xf8] sm:$0xff]
      %3242 = vst [vmem:[%s264] sm:$0xff] %v3210
      %3243 = vst [vmem:[%s264 + $0x8] sm:$0xff] %v3211
      %3244 = vst [vmem:[%s264 + $0x10] sm:$0xff] %v3212
      %3245 = vst [vmem:[%s264 + $0x18] sm:$0xff] %v3213
      %3246 = vst [vmem:[%s264 + $0x20] sm:$0xff] %v3214
      %3247 = vst [vmem:[%s264 + $0x28] sm:$0xff] %v3215
      %3248 = vst [vmem:[%s264 + $0x30] sm:$0xff] %v3216
      %3249 = vst [vmem:[%s264 + $0x38] sm:$0xff] %v3217
      %3250 = vst [vmem:[%s264 + $0x40] sm:$0xff] %v3218
      %3251 = vst [vmem:[%s264 + $0x48] sm:$0xff] %v3219
      %3252 = vst [vmem:[%s264 + $0x50] sm:$0xff] %v3220
      %3253 = vst [vmem:[%s264 + $0x58] sm:$0xff] %v3221
      %3254 = vst [vmem:[%s264 + $0x60] sm:$0xff] %v3222
      %3255 = vst [vmem:[%s264 + $0x68] sm:$0xff] %v3223
      %3256 = vst [vmem:[%s264 + $0x70] sm:$0xff] %v3224
      %3257 = vst [vmem:[%s264 + $0x78] sm:$0xff] %v3225
      %3258 = vst [vmem:[%s264 + $0x80] sm:$0xff] %v3226
      %3259 = vst [vmem:[%s264 + $0x88] sm:$0xff] %v3227
      %3260 = vst [vmem:[%s264 + $0x90] sm:$0xff] %v3228
      %3261 = vst [vmem:[%s264 + $0x98] sm:$0xff] %v3229
      %3262 = vst [vmem:[%s264 + $0xa0] sm:$0xff] %v3230
      %3263 = vst [vmem:[%s264 + $0xa8] sm:$0xff] %v3231
      %3264 = vst [vmem:[%s264 + $0xb0] sm:$0xff] %v3232
      %3265 = vst [vmem:[%s264 + $0xb8] sm:$0xff] %v3233
      %3266 = vst [vmem:[%s264 + $0xc0] sm:$0xff] %v3234
      %3267 = vst [vmem:[%s264 + $0xc8] sm:$0xff] %v3235
      %3268 = vst [vmem:[%s264 + $0xd0] sm:$0xff] %v3236
      %3269 = vst [vmem:[%s264 + $0xd8] sm:$0xff] %v3237
      %3270 = vst [vmem:[%s264 + $0xe0] sm:$0xff] %v3238
      %3271 = vst [vmem:[%s264 + $0xe8] sm:$0xff] %v3239
      %3272 = vst [vmem:[%s264 + $0xf0] sm:$0xff] %v3240
      %3273 = vst [vmem:[%s264 + $0xf8] sm:$0xff] %v3241
      %v3274 = vadd.f32 %v3210, %v3211
      %v3275 = vadd.f32 %v3274, %v3212
      %v3276 = vadd.f32 %v3275, %v3213
      %v3277 = vadd.f32 %v3276, %v3214
      %v3278 = vadd.f32 %v3277, %v3215
      %v3279 = vadd.f32 %v3278, %v3216
      %v3280 = vadd.f32 %v3279, %v3217
      %v3281 = vadd.f32 %v3280, %v3218
      %v3282 = vadd.f32 %v3281, %v3219
      %v3283 = vadd.f32 %v3282, %v3220
      %v3284 = vadd.f32 %v3283, %v3221
      %v3285 = vadd.f32 %v3284, %v3222
      %v3286 = vadd.f32 %v3285, %v3223
      %v3287 = vadd.f32 %v3286, %v3224
      %v3288 = vadd.f32 %v3287, %v3225
      %v3289 = vadd.f32 %v3288, %v3226
      %v3290 = vadd.f32 %v3289, %v3227
      %v3291 = vadd.f32 %v3290, %v3228
      %v3292 = vadd.f32 %v3291, %v3229
      %v3293 = vadd.f32 %v3292, %v3230
      %v3294 = vadd.f32 %v3293, %v3231
      %v3295 = vadd.f32 %v3294, %v3232
      %v3296 = vadd.f32 %v3295, %v3233
      %v3297 = vadd.f32 %v3296, %v3234
      %v3298 = vadd.f32 %v3297, %v3235
      %v3299 = vadd.f32 %v3298, %v3236
      %v3300 = vadd.f32 %v3299, %v3237
      %v3301 = vadd.f32 %v3300, %v3238
      %v3302 = vadd.f32 %v3301, %v3239
      %v3303 = vadd.f32 %v3302, %v3240
      %v3304 = vadd.f32 %v3303, %v3241
      %v3305 = vrot.slane %v3304, 4
      %v3306 = vadd.f32 %v3304, %v3305
      %v3307 = vrot.slane %v3306, 2
      %v3308 = vadd.f32 %v3306, %v3307
      %v3309 = vrot.slane %v3308, 1
      %v3310 = vadd.f32 %v3308, %v3309
      %v3311 = vmul.f32 %v3210, %v3210
      %v3312 = vmul.f32 %v3211, %v3211
      %v3313 = vmul.f32 %v3212, %v3212
      %v3314 = vmul.f32 %v3213, %v3213
      %v3315 = vmul.f32 %v3214, %v3214
      %v3316 = vmul.f32 %v3215, %v3215
      %v3317 = vmul.f32 %v3216, %v3216
      %v3318 = vmul.f32 %v3217, %v3217
      %v3319 = vmul.f32 %v3218, %v3218
      %v3320 = vmul.f32 %v3219, %v3219
      %v3321 = vmul.f32 %v3220, %v3220
      %v3322 = vmul.f32 %v3221, %v3221
      %v3323 = vmul.f32 %v3222, %v3222
      %v3324 = vmul.f32 %v3223, %v3223
      %v3325 = vmul.f32 %v3224, %v3224
      %v3326 = vmul.f32 %v3225, %v3225
      %v3327 = vmul.f32 %v3226, %v3226
      %v3328 = vmul.f32 %v3227, %v3227
      %v3329 = vmul.f32 %v3228, %v3228
      %v3330 = vmul.f32 %v3229, %v3229
      %v3331 = vmul.f32 %v3230, %v3230
      %v3332 = vmul.f32 %v3231, %v3231
      %v3333 = vmul.f32 %v3232, %v3232
      %v3334 = vmul.f32 %v3233, %v3233
      %v3335 = vmul.f32 %v3234, %v3234
      %v3336 = vmul.f32 %v3235, %v3235
      %v3337 = vmul.f32 %v3236, %v3236
      %v3338 = vmul.f32 %v3237, %v3237
      %v3339 = vmul.f32 %v3238, %v3238
      %v3340 = vmul.f32 %v3239, %v3239
      %v3341 = vmul.f32 %v3240, %v3240
      %v3342 = vmul.f32 %v3241, %v3241
      %v3343 = vadd.f32 %v3311, %v3312
      %v3344 = vadd.f32 %v3343, %v3313
      %v3345 = vadd.f32 %v3344, %v3314
      %v3346 = vadd.f32 %v3345, %v3315
      %v3347 = vadd.f32 %v3346, %v3316
      %v3348 = vadd.f32 %v3347, %v3317
      %v3349 = vadd.f32 %v3348, %v3318
      %v3350 = vadd.f32 %v3349, %v3319
      %v3351 = vadd.f32 %v3350, %v3320
      %v3352 = vadd.f32 %v3351, %v3321
      %v3353 = vadd.f32 %v3352, %v3322
      %v3354 = vadd.f32 %v3353, %v3323
      %v3355 = vadd.f32 %v3354, %v3324
      %v3356 = vadd.f32 %v3355, %v3325
      %v3357 = vadd.f32 %v3356, %v3326
      %v3358 = vadd.f32 %v3357, %v3327
      %v3359 = vadd.f32 %v3358, %v3328
      %v3360 = vadd.f32 %v3359, %v3329
      %v3361 = vadd.f32 %v3360, %v3330
      %v3362 = vadd.f32 %v3361, %v3331
      %v3363 = vadd.f32 %v3362, %v3332
      %v3364 = vadd.f32 %v3363, %v3333
      %v3365 = vadd.f32 %v3364, %v3334
      %v3366 = vadd.f32 %v3365, %v3335
      %v3367 = vadd.f32 %v3366, %v3336
      %v3368 = vadd.f32 %v3367, %v3337
      %v3369 = vadd.f32 %v3368, %v3338
      %v3370 = vadd.f32 %v3369, %v3339
      %v3371 = vadd.f32 %v3370, %v3340
      %v3372 = vadd.f32 %v3371, %v3341
      %v3373 = vadd.f32 %v3372, %v3342
      %v3374 = vrot.slane %v3373, 4
      %v3375 = vadd.f32 %v3373, %v3374
      %v3376 = vrot.slane %v3375, 2
      %v3377 = vadd.f32 %v3375, %v3376
      %v3378 = vrot.slane %v3377, 1
      %v3379 = vadd.f32 %v3377, %v3378
      %3380 = vst [vmem:[%s268] sm:$0xff] %v3310
      %3381 = vst [vmem:[%s272] sm:$0xff] %v3379
      %p3382 = scmp.lt.s32.totalorder %s18, 1
      %s3383 = scalar_select %p3382, %s18, 1
      %s3384 = smul.addr %s3383, 32
      %s3385 = smul.addr %s3384, 8
      %s3386 = scalar_lea.vmem %s4, %s3385
      %p3387 = scmp.lt.s32.totalorder %s18, 1
      %s3388 = scalar_select %p3387, %s18, 1
      %s3389 = smul.addr %s3388, 8
      %s3390 = scalar_lea.vmem %s5, %s3389
      %p3391 = scmp.lt.s32.totalorder %s18, 1
      %s3392 = scalar_select %p3391, %s18, 1
      %s3393 = smul.addr %s3392, 8
      %s3394 = scalar_lea.vmem %s6, %s3393
      // Predicated region
      $region37: #{bottleneck_forward.6} parent=35 // pred_check
        %p3395 = pneg %p125
      $region38: #{bottleneck_forward.6} parent=35 // pred_check_branch
        %3397 = sbr.rel (%p3395) target = $region40
      $region39: #{bottleneck_forward.6} parent=35 // pred_region
        _
      $region40: #{bottleneck_forward.6} parent=35 // pred_fallthru
        _
      // Predicated region
      $region41: #{bottleneck_forward.6} parent=35 // pred_check
        %p3398 = pneg %p151
      $region42: #{bottleneck_forward.6} parent=35 // pred_check_branch
        %3400 = sbr.rel (%p3398) target = $region44
      $region43: #{bottleneck_forward.6} parent=35 // pred_region
        _
      $region44: #{bottleneck_forward.6} parent=35 // pred_fallthru
        _
      // Predicated region
      $region45: #{bottleneck_forward.6} parent=35 // pred_check
        %p3401 = pneg %p177
      $region46: #{bottleneck_forward.6} parent=35 // pred_check_branch
        %3403 = sbr.rel (%p3401) target = $region48
      $region47: #{bottleneck_forward.6} parent=35 // pred_region
        _
      $region48: #{bottleneck_forward.6} parent=35 // pred_fallthru
        _
    $region36: #{bottleneck_forward.6} parent=5 // pred_fallthru
      _
    %p3404 = scmp.le.s32.totalorder 2, %s13
    // Predicated region
    $region49: #{bottleneck_forward.6} parent=5 // pred_check
      %p3405 = pneg %p3404
    $region50: #{bottleneck_forward.6} parent=5 // pred_check_branch
      %3407 = sbr.rel (%p3405) target = $region52
    $region51: #{bottleneck_forward.6} parent=5 // pred_region
      %s3408 = ssub.s32 %s13, 2
      // Predicated region
      $region53: #{bottleneck_forward.6} parent=51 // pred_check
        %p3409 = pneg %p131
      $region54: #{bottleneck_forward.6} parent=51 // pred_check_branch
        %3411 = sbr.rel (%p3409) target = $region56
      $region55: #{bottleneck_forward.6} parent=51 // pred_region
        %p3412 = scmp.lt.s32.totalorder %s19, 1
        %s3413 = scalar_select %p3412, %s19, 1
        %s3414 = smul.addr %s3413, 32
        %s3415 = smul.addr %s3414, 8
        %s3416 = scalar_lea.vmem %s4, %s3415
      $region56: #{bottleneck_forward.6} parent=51 // pred_fallthru
        _
      // Predicated region
      $region57: #{bottleneck_forward.6} parent=51 // pred_check
        %p3417 = pneg %p157
      $region58: #{bottleneck_forward.6} parent=51 // pred_check_branch
        %3419 = sbr.rel (%p3417) target = $region60
      $region59: #{bottleneck_forward.6} parent=51 // pred_region
        %p3420 = scmp.lt.s32.totalorder %s19, 1
        %s3421 = scalar_select %p3420, %s19, 1
        %s3422 = smul.addr %s3421, 8
        %s3423 = scalar_lea.vmem %s5, %s3422
      $region60: #{bottleneck_forward.6} parent=51 // pred_fallthru
        _
      // Predicated region
      $region61: #{bottleneck_forward.6} parent=51 // pred_check
        %p3424 = pneg %p183
      $region62: #{bottleneck_forward.6} parent=51 // pred_check_branch
        %3426 = sbr.rel (%p3424) target = $region64
      $region63: #{bottleneck_forward.6} parent=51 // pred_region
        %p3427 = scmp.lt.s32.totalorder %s19, 1
        %s3428 = scalar_select %p3427, %s19, 1
        %s3429 = smul.addr %s3428, 8
        %s3430 = scalar_lea.vmem %s6, %s3429
      $region64: #{bottleneck_forward.6} parent=51 // pred_fallthru
        _
    $region52: #{bottleneck_forward.6} parent=5 // pred_fallthru
      _
  $region6: #{bottleneck_forward.6} parent=0 // loop_footer
    %s17 = sadd.s32 1, %s13
  $region7: #{bottleneck_forward.6} parent=0 // loop_footer_branch
    %12 = sbr.rel target = $region3
  $region8: #{bottleneck_forward.6} parent=0 // loop_exit
    _

</llo_original>
